<compile_context>
chip_gen: v5e
topology: v5e:2x2
jax: 0.10.0
libtpu: 0.0.40
codegen_flags: <defaults>
</compile_context>

<pallas_src>
import functools

import jax
import jax.numpy as jnp
import numpy as np
from jax.experimental import pallas as pl
from jax.experimental.pallas import tpu as pltpu

# ---------------- model config (small, consistent with the module) ----------------
VOCAB_SIZE = 128
EMBED_DIM = 128
HIDDEN_DIM = 128      # small-shape stand-in for the module's 256 default
NUM_LAYERS = 2
BATCH = 2
SEQ_LEN = 8
B_PAD = 8             # batch padded to the f32 sublane minimum (8)


# ---------------------------- fused Pallas kernel ----------------------------------
def _fused_forward_kernel(x_ref, w0_ref, b0_ref, w1_hbm, b1_ref, wfc_hbm, bfc_ref,
                          logits_ref, hn_ref, cn_ref,
                          seq_scr, pre_scr, w1_scr, wfc_scr, dma_sem,
                          *, seq_len, batch, hidden_dim):
    """Both LSTM layers + time loop + FC, all VMEM resident.

    x_ref:      (T*B, E) f32   time-major, batch-padded, flattened embeddings
    w0_ref:     (2, H, 4H) bf16  stacked [W_ih^T ; W_hh^T], layer 0 (VMEM input)
    w1_hbm:     (2, H, 4H) bf16  layer-1 weights, raw HBM ref (manual prefetch)
    wfc_hbm:    (H, V) bf16      FC weight, raw HBM ref (manual prefetch)
    bK_ref:     (1, 4H) f32      combined b_ih + b_hh ; bfc_ref (1, V) f32
    logits_ref: (T*B, V) f32 ; hn_ref/cn_ref: (L, B, H) f32
    seq_scr:    VMEM (T*B, H) f32  current layer's hidden sequence
    pre_scr:    VMEM (T*B, 4H) f32 hoisted input projection for all timesteps
    """
    T, B, H = seq_len, batch, hidden_dim

    # Kick off the layer-1 / FC weight DMAs immediately: they are not needed
    # until after the layer-0 recurrence, so their HBM->VMEM transfer is hidden
    # behind layer-0 compute.
    w1_cp = pltpu.make_async_copy(w1_hbm, w1_scr, dma_sem.at[0])
    wfc_cp = pltpu.make_async_copy(wfc_hbm, wfc_scr, dma_sem.at[1])
    w1_cp.start()
    wfc_cp.start()

    def run_layer(layer_in_bf16, w_ref, b_ref, layer_idx):
        # Hoisted input->hidden projection + bias for ALL timesteps at once:
        # one (T*B, H) @ (H, 4H) matmul, off the serial recurrence.
        pre_scr[...] = (jnp.dot(layer_in_bf16, w_ref[0],
                                preferred_element_type=jnp.float32)
                        + b_ref[...])

        def step(t, carry):
            h, c = carry
            row = pl.multiple_of(t * B, B)
            # Per-step critical path: one (B, H) @ (H, 4H) bf16 MXU matmul.
            gates = pre_scr[pl.ds(row, B), :] + jnp.dot(
                h.astype(jnp.bfloat16), w_ref[1],
                preferred_element_type=jnp.float32)          # (B, 4H) f32
            # gate slices at exact 128-lane boundaries (PyTorch order i,f,g,o)
            i_g = jax.nn.sigmoid(gates[:, 0 * H:1 * H])
            f_g = jax.nn.sigmoid(gates[:, 1 * H:2 * H])
            g_g = jnp.tanh(gates[:, 2 * H:3 * H])
            o_g = jax.nn.sigmoid(gates[:, 3 * H:4 * H])
            c_new = f_g * c + i_g * g_g
            h_new = o_g * jnp.tanh(c_new)
            # layer output overwrites its own input slot (already consumed via pre_scr)
            seq_scr[pl.ds(row, B), :] = h_new
            return h_new, c_new

        zeros = jnp.zeros((B, H), jnp.float32)
        h_n, c_n = jax.lax.fori_loop(0, T, step, (zeros, zeros), unroll=True)
        # final hidden/cell state written once per layer (not per timestep)
        hn_ref[layer_idx] = h_n
        cn_ref[layer_idx] = c_n

    # ---- layer 0: reads the embeddings directly (no seq_scr pre-copy) ----
    run_layer(x_ref[...].astype(jnp.bfloat16), w0_ref, b0_ref, 0)

    # layer-1 weights must have landed before the second recurrence
    w1_cp.wait()
    # ---- layer 1: consumes the layer-0 hidden sequence from seq_scr ----
    run_layer(seq_scr[...].astype(jnp.bfloat16), w1_scr, b1_ref, 1)

    # ---- final FC over the whole VMEM-resident hidden sequence ----
    # dropout before FC: identity (eval mode)
    wfc_cp.wait()
    logits_ref[...] = (jnp.dot(seq_scr[...].astype(jnp.bfloat16), wfc_scr[...],
                               preferred_element_type=jnp.float32)
                       + bfc_ref[...])


def fused_forward(x2d, w0, b0, w1, b1, wfc, bfc):
    """x2d: (T*B_PAD, E) f32. Returns (logits (T*B_PAD, V), h_n, c_n) with (L,B_PAD,H)."""
    N, E = x2d.shape
    H = HIDDEN_DIM
    V = wfc.shape[-1]
    kernel = functools.partial(_fused_forward_kernel,
                               seq_len=SEQ_LEN, batch=B_PAD, hidden_dim=H)
    return pl.pallas_call(
        kernel,
        out_shape=(jax.ShapeDtypeStruct((N, V), jnp.float32),
                   jax.ShapeDtypeStruct((NUM_LAYERS, B_PAD, H), jnp.float32),
                   jax.ShapeDtypeStruct((NUM_LAYERS, B_PAD, H), jnp.float32)),
        grid=(1,),
        in_specs=[
            pl.BlockSpec((N, E), lambda i: (0, 0)),                # x (VMEM)
            pl.BlockSpec((2, E, 4 * H), lambda i: (0, 0, 0)),      # w0 (VMEM, needed first)
            pl.BlockSpec((1, 4 * H), lambda i: (0, 0)),            # b0
            pl.BlockSpec(memory_space=pl.ANY),                     # w1 (HBM, manual prefetch)
            pl.BlockSpec((1, 4 * H), lambda i: (0, 0)),            # b1
            pl.BlockSpec(memory_space=pl.ANY),                     # wfc (HBM, manual prefetch)
            pl.BlockSpec((1, V), lambda i: (0, 0)),                # bfc
        ],
        out_specs=(pl.BlockSpec((N, V), lambda i: (0, 0)),
                   pl.BlockSpec((NUM_LAYERS, B_PAD, H), lambda i: (0, 0, 0)),
                   pl.BlockSpec((NUM_LAYERS, B_PAD, H), lambda i: (0, 0, 0))),
        scratch_shapes=[
            pltpu.VMEM((N, H), jnp.float32),           # seq_scr: hidden sequence
            pltpu.VMEM((N, 4 * H), jnp.float32),       # pre_scr: hoisted input projection
            pltpu.VMEM((2, H, 4 * H), jnp.bfloat16),   # w1_scr: prefetched layer-1 weights
            pltpu.VMEM((H, V), jnp.bfloat16),          # wfc_scr: prefetched FC weight
            pltpu.SemaphoreType.DMA((2,)),
        ],
        compiler_params=pltpu.CompilerParams(
            dimension_semantics=("arbitrary",)),
    )(x2d, w0, b0, w1, b1, wfc, bfc)


# ------------------------------- forward wrapper -----------------------------------
def lstm_text_generator_forward(params, tokens):
    B, T = tokens.shape
    emb = jnp.take(params["embedding"], tokens, axis=0)        # (B, T, E)
    x = jnp.transpose(emb, (1, 0, 2)).astype(jnp.float32)      # (T, B, E) time-major
    x = jnp.pad(x, ((0, 0), (0, B_PAD - B), (0, 0)))           # pad batch to 8 sublanes
    x2d = x.reshape(T * B_PAD, EMBED_DIM)

    logits_p, hn_p, cn_p = fused_forward(
        x2d,
        params["w_0"], params["b_0"],
        params["w_1"], params["b_1"],
        params["w_fc"], params["b_fc"])

    logits = logits_p.reshape(T, B_PAD, VOCAB_SIZE)[:, :B]     # drop batch padding
    logits = jnp.transpose(logits, (1, 0, 2))                  # (B, T, V), batch_first
    hidden = (hn_p[:, :B], cn_p[:, :B])                        # ((L,B,H), (L,B,H))
    return logits, hidden


# ------------------------------- pure-JAX reference --------------------------------
def _lstm_layer_ref(x_tbe, w_ih, w_hh, bias):
    B = x_tbe.shape[1]
    H = HIDDEN_DIM

    def step(carry, x_t):
        h, c = carry
        gates = x_t @ w_ih + h @ w_hh + bias[0]
        i, f, g, o = jnp.split(gates, 4, axis=-1)
        i, f, g, o = jax.nn.sigmoid(i), jax.nn.sigmoid(f), jnp.tanh(g), jax.nn.sigmoid(o)
        c = f * c + i * g
        h = o * jnp.tanh(c)
        return (h, c), h

    init = (jnp.zeros((B, H), jnp.float32), jnp.zeros((B, H), jnp.float32))
    (h_n, c_n), hs = jax.lax.scan(step, init, x_tbe)
    return hs, h_n, c_n


def forward_ref(params, tokens):
    B, T = tokens.shape
    emb = jnp.take(params["embedding"], tokens, axis=0)
    x = jnp.transpose(emb, (1, 0, 2)).astype(jnp.float32)
    h_ns, c_ns = [], []
    for layer in range(NUM_LAYERS):
        w = params[f"w_{layer}"].astype(jnp.float32)           # (2, H, 4H)
        x, h_n, c_n = _lstm_layer_ref(x, w[0], w[1], params[f"b_{layer}"])
        h_ns.append(h_n)
        c_ns.append(c_n)
    lstm_out = jnp.transpose(x, (1, 0, 2))
    flat = lstm_out.reshape(B * T, HIDDEN_DIM)
    logits = (flat @ params["w_fc"].astype(jnp.float32)
              + params["b_fc"]).reshape(B, T, VOCAB_SIZE)
    return logits, (jnp.stack(h_ns, 0), jnp.stack(c_ns, 0))


# ------------------------------- param init ----------------------------------------
def init_params(key):
    params = {}
    k = 1.0 / np.sqrt(HIDDEN_DIM)
    keys = jax.random.split(key, 1 + 4 * NUM_LAYERS + 2)
    params["embedding"] = jax.random.normal(keys[0], (VOCAB_SIZE, EMBED_DIM), jnp.float32)
    ki = 1
    for layer in range(NUM_LAYERS):
        in_dim = EMBED_DIM if layer == 0 else HIDDEN_DIM       # both == HIDDEN_DIM here
        w_ih = jax.random.uniform(keys[ki + 0], (in_dim, 4 * HIDDEN_DIM), jnp.float32, -k, k)
        w_hh = jax.random.uniform(keys[ki + 1], (HIDDEN_DIM, 4 * HIDDEN_DIM), jnp.float32, -k, k)
        b_ih = jax.random.uniform(keys[ki + 2], (4 * HIDDEN_DIM,), jnp.float32, -k, k)
        b_hh = jax.random.uniform(keys[ki + 3], (4 * HIDDEN_DIM,), jnp.float32, -k, k)
        ki += 4
        # stacked, pre-transposed gate weights [W_ih^T ; W_hh^T], stored bf16 (MXU native)
        params[f"w_{layer}"] = jnp.stack([w_ih, w_hh], axis=0).astype(jnp.bfloat16)
        # b_ih + b_hh summed from two independent U(-k, k) draws (PyTorch semantics)
        params[f"b_{layer}"] = (b_ih + b_hh).reshape(1, 4 * HIDDEN_DIM)
    params["w_fc"] = jax.random.uniform(
        keys[ki], (HIDDEN_DIM, VOCAB_SIZE), jnp.float32, -k, k).astype(jnp.bfloat16)
    params["b_fc"] = jax.random.uniform(keys[ki + 1], (1, VOCAB_SIZE), jnp.float32, -k, k)
    return params


# ------------------------------------ main ------------------------------------------
if __name__ == "__main__":
    key = jax.random.PRNGKey(0)
    pkey, tkey = jax.random.split(key)
    params = init_params(pkey)
    tokens = jax.random.randint(tkey, (BATCH, SEQ_LEN), 0, VOCAB_SIZE, dtype=jnp.int32)

    logits, (h_n, c_n) = jax.jit(lstm_text_generator_forward)(params, tokens)
    jax.block_until_ready((logits, h_n, c_n))

    assert logits.shape == (BATCH, SEQ_LEN, VOCAB_SIZE)
    assert h_n.shape == (NUM_LAYERS, BATCH, HIDDEN_DIM)
    assert c_n.shape == (NUM_LAYERS, BATCH, HIDDEN_DIM)

    ref_logits, (ref_hn, ref_cn) = jax.jit(forward_ref)(params, tokens)
    # bf16 matmul operands in the kernel (per perf feedback) vs an f32 reference:
    # tolerance widened from 5e-3 to 1e-2 (f32-operand kernel matched at 5e-3).
    np.testing.assert_allclose(np.asarray(logits), np.asarray(ref_logits),
                               rtol=1e-2, atol=1e-2)
    np.testing.assert_allclose(np.asarray(h_n), np.asarray(ref_hn), rtol=1e-2, atol=1e-2)
    np.testing.assert_allclose(np.asarray(c_n), np.asarray(ref_cn), rtol=1e-2, atol=1e-2)

    print("KERNEL_OK")
</pallas_src>

<mosaic_0001>
module attributes {stable_mosaic.version = 11 : i64} {
  func.func @_fused_forward_kernel(%arg0: i32, %arg1: memref<64x128xf32, #tpu.memory_space<vmem>>, %arg2: memref<2x128x512xbf16, #tpu.memory_space<vmem>>, %arg3: memref<1x512xf32, #tpu.memory_space<vmem>>, %arg4: memref<2x128x512xbf16, #tpu.memory_space<any>>, %arg5: memref<1x512xf32, #tpu.memory_space<vmem>>, %arg6: memref<128x128xbf16, #tpu.memory_space<any>>, %arg7: memref<1x128xf32, #tpu.memory_space<vmem>>, %arg8: memref<64x128xf32, #tpu.memory_space<vmem>>, %arg9: memref<2x8x128xf32, #tpu.memory_space<vmem>>, %arg10: memref<2x8x128xf32, #tpu.memory_space<vmem>>, %arg11: memref<64x128xf32, #tpu.memory_space<vmem>>, %arg12: memref<64x512xf32, #tpu.memory_space<vmem>>, %arg13: memref<2x128x512xbf16, #tpu.memory_space<vmem>>, %arg14: memref<128x128xbf16, #tpu.memory_space<vmem>>, %arg15: memref<2x!tpu.dma_semaphore, #tpu.memory_space<semaphore_mem>>) attributes {dimension_semantics = [#tpu.dimension_semantics<arbitrary>], iteration_bounds = array<i64: 1>, scalar_prefetch = 0 : i64, scratch_operands = 5 : i64, tpu.core_type = #tpu.core_type<tc>, window_params = [{pipeline_mode = #tpu.pipeline_mode<synchronous>, transform_indices = @transform_0, window_bounds = array<i64: 64, 128>}, {pipeline_mode = #tpu.pipeline_mode<synchronous>, transform_indices = @transform_1, window_bounds = array<i64: 2, 128, 512>}, {pipeline_mode = #tpu.pipeline_mode<synchronous>, transform_indices = @transform_2, window_bounds = array<i64: 1, 512>}, {}, {pipeline_mode = #tpu.pipeline_mode<synchronous>, transform_indices = @transform_4, window_bounds = array<i64: 1, 512>}, {}, {pipeline_mode = #tpu.pipeline_mode<synchronous>, transform_indices = @transform_6, window_bounds = array<i64: 1, 128>}, {pipeline_mode = #tpu.pipeline_mode<synchronous>, transform_indices = @transform_7, window_bounds = array<i64: 64, 128>}, {pipeline_mode = #tpu.pipeline_mode<synchronous>, transform_indices = @transform_8, window_bounds = array<i64: 2, 8, 128>}, {pipeline_mode = #tpu.pipeline_mode<synchronous>, transform_indices = @transform_9, window_bounds = array<i64: 2, 8, 128>}]} {
    %c0_i32 = arith.constant 0 : i32
    %0 = tpu.memref_slice %arg15[%c0_i32] : memref<2x!tpu.dma_semaphore, #tpu.memory_space<semaphore_mem>> -> memref<1x!tpu.dma_semaphore, #tpu.memory_space<semaphore_mem>>
    %1 = tpu.memref_squeeze %0 : memref<1x!tpu.dma_semaphore, #tpu.memory_space<semaphore_mem>> -> memref<!tpu.dma_semaphore, #tpu.memory_space<semaphore_mem>>
    tpu.enqueue_dma source(%arg4 : memref<2x128x512xbf16, #tpu.memory_space<any>>) target(%arg13 : memref<2x128x512xbf16, #tpu.memory_space<vmem>>) target_semaphore(%1 : memref<!tpu.dma_semaphore, #tpu.memory_space<semaphore_mem>>)
    %c1_i32 = arith.constant 1 : i32
    %2 = tpu.memref_slice %arg15[%c1_i32] : memref<2x!tpu.dma_semaphore, #tpu.memory_space<semaphore_mem>> -> memref<1x!tpu.dma_semaphore, #tpu.memory_space<semaphore_mem>>
    %3 = tpu.memref_squeeze %2 : memref<1x!tpu.dma_semaphore, #tpu.memory_space<semaphore_mem>> -> memref<!tpu.dma_semaphore, #tpu.memory_space<semaphore_mem>>
    tpu.enqueue_dma source(%arg6 : memref<128x128xbf16, #tpu.memory_space<any>>) target(%arg14 : memref<128x128xbf16, #tpu.memory_space<vmem>>) target_semaphore(%3 : memref<!tpu.dma_semaphore, #tpu.memory_space<semaphore_mem>>)
    %c0 = arith.constant 0 : index
    %c0_0 = arith.constant 0 : index
    %4 = vector.load %arg1[%c0, %c0_0] : memref<64x128xf32, #tpu.memory_space<vmem>>, vector<64x128xf32>
    %5 = arith.truncf %4 : vector<64x128xf32> to vector<64x128xbf16>
    %c0_1 = arith.constant 0 : index
    %c0_2 = arith.constant 0 : index
    %c0_3 = arith.constant 0 : index
    %6 = vector.load %arg2[%c0_1, %c0_2, %c0_3] : memref<2x128x512xbf16, #tpu.memory_space<vmem>>, vector<1x128x512xbf16>
    %7 = vector.shape_cast %6 : vector<1x128x512xbf16> to vector<128x512xbf16>
    %cst = arith.constant dense<0.000000e+00> : vector<64x512xf32>
    %8 = tpu.matmul %5, %7, %cst {dimension_numbers = #tpu.dot_dimension_numbers<[1], [0], [0], [1], [0, 0, 1, 1], [], []>} : vector<64x128xbf16>, vector<128x512xbf16>, vector<64x512xf32> -> vector<64x512xf32>
    %c0_4 = arith.constant 0 : index
    %c0_5 = arith.constant 0 : index
    %9 = vector.load %arg3[%c0_4, %c0_5] : memref<1x512xf32, #tpu.memory_space<vmem>>, vector<1x512xf32>
    %10 = vector.broadcast %9 : vector<1x512xf32> to vector<64x512xf32>
    %11 = arith.addf %8, %10 : vector<64x512xf32>
    %c0_6 = arith.constant 0 : index
    %c0_7 = arith.constant 0 : index
    %12 = vector.load %arg12[%c0_6, %c0_7] : memref<64x512xf32, #tpu.memory_space<vmem>>, vector<64x512xf32>
    tpu.vector_store %arg12[%c0_6, %c0_7], %11 {strides = array<i32>} : memref<64x512xf32, #tpu.memory_space<vmem>>, vector<64x512xf32>,
    %cst_8 = arith.constant 0.000000e+00 : f32
    %13 = vector.broadcast %cst_8 : f32 to vector<8x128xf32>
    %c0_i32_9 = arith.constant 0 : i32
    %c8_i32 = arith.constant 8 : i32
    %14 = arith.muli %c0_i32_9, %c8_i32 : i32
    %15 = tpu.assume_multiple %14, 8 : i32
    %16 = arith.index_cast %15 : i32 to index
    %c0_10 = arith.constant 0 : index
    %17 = vector.load %arg12[%16, %c0_10] : memref<64x512xf32, #tpu.memory_space<vmem>>, vector<8x512xf32>
    %18 = arith.truncf %13 : vector<8x128xf32> to vector<8x128xbf16>
    %c1 = arith.constant 1 : index
    %c0_11 = arith.constant 0 : index
    %c0_12 = arith.constant 0 : index
    %19 = vector.load %arg2[%c1, %c0_11, %c0_12] : memref<2x128x512xbf16, #tpu.memory_space<vmem>>, vector<1x128x512xbf16>
    %20 = vector.shape_cast %19 : vector<1x128x512xbf16> to vector<128x512xbf16>
    %cst_13 = arith.constant dense<0.000000e+00> : vector<8x512xf32>
    %21 = tpu.matmul %18, %20, %cst_13 {dimension_numbers = #tpu.dot_dimension_numbers<[1], [0], [0], [1], [0, 0, 1, 1], [], []>} : vector<8x128xbf16>, vector<128x512xbf16>, vector<8x512xf32> -> vector<8x512xf32>
    %22 = arith.addf %17, %21 : vector<8x512xf32>
    %23 = vector.extract_strided_slice %22 {offsets = [0, 0], sizes = [8, 128], strides = [1, 1]} : vector<8x512xf32> to vector<8x128xf32>
    %24 = arith.negf %23 : vector<8x128xf32>
    %25 = math.exp %24 : vector<8x128xf32>
    %cst_14 = arith.constant 1.000000e+00 : f32
    %26 = vector.broadcast %cst_14 : f32 to vector<8x128xf32>
    %27 = arith.addf %26, %25 : vector<8x128xf32>
    %28 = arith.divf %26, %27 : vector<8x128xf32>
    %29 = vector.extract_strided_slice %22 {offsets = [0, 128], sizes = [8, 128], strides = [1, 1]} : vector<8x512xf32> to vector<8x128xf32>
    %30 = arith.negf %29 : vector<8x128xf32>
    %31 = math.exp %30 : vector<8x128xf32>
    %cst_15 = arith.constant 1.000000e+00 : f32
    %32 = vector.broadcast %cst_15 : f32 to vector<8x128xf32>
    %33 = arith.addf %32, %31 : vector<8x128xf32>
    %34 = arith.divf %32, %33 : vector<8x128xf32>
    %35 = vector.extract_strided_slice %22 {offsets = [0, 256], sizes = [8, 128], strides = [1, 1]} : vector<8x512xf32> to vector<8x128xf32>
    %36 = math.tanh %35 : vector<8x128xf32>
    %37 = vector.extract_strided_slice %22 {offsets = [0, 384], sizes = [8, 128], strides = [1, 1]} : vector<8x512xf32> to vector<8x128xf32>
    %38 = arith.negf %37 : vector<8x128xf32>
    %39 = math.exp %38 : vector<8x128xf32>
    %cst_16 = arith.constant 1.000000e+00 : f32
    %40 = vector.broadcast %cst_16 : f32 to vector<8x128xf32>
    %41 = arith.addf %40, %39 : vector<8x128xf32>
    %42 = arith.divf %40, %41 : vector<8x128xf32>
    %43 = arith.mulf %34, %13 : vector<8x128xf32>
    %44 = arith.mulf %28, %36 : vector<8x128xf32>
    %45 = arith.addf %43, %44 : vector<8x128xf32>
    %46 = math.tanh %45 : vector<8x128xf32>
    %47 = arith.mulf %42, %46 : vector<8x128xf32>
    %48 = arith.index_cast %15 : i32 to index
    %c0_17 = arith.constant 0 : index
    %49 = vector.load %arg11[%48, %c0_17] : memref<64x128xf32, #tpu.memory_space<vmem>>, vector<8x128xf32>
    tpu.vector_store %arg11[%48, %c0_17], %47 {strides = array<i32>} : memref<64x128xf32, #tpu.memory_space<vmem>>, vector<8x128xf32>,
    %c1_i32_18 = arith.constant 1 : i32
    %c8_i32_19 = arith.constant 8 : i32
    %50 = arith.muli %c1_i32_18, %c8_i32_19 : i32
    %51 = tpu.assume_multiple %50, 8 : i32
    %52 = arith.index_cast %51 : i32 to index
    %c0_20 = arith.constant 0 : index
    %53 = vector.load %arg12[%52, %c0_20] : memref<64x512xf32, #tpu.memory_space<vmem>>, vector<8x512xf32>
    %54 = arith.truncf %47 : vector<8x128xf32> to vector<8x128xbf16>
    %c1_21 = arith.constant 1 : index
    %c0_22 = arith.constant 0 : index
    %c0_23 = arith.constant 0 : index
    %55 = vector.load %arg2[%c1_21, %c0_22, %c0_23] : memref<2x128x512xbf16, #tpu.memory_space<vmem>>, vector<1x128x512xbf16>
    %56 = vector.shape_cast %55 : vector<1x128x512xbf16> to vector<128x512xbf16>
    %cst_24 = arith.constant dense<0.000000e+00> : vector<8x512xf32>
    %57 = tpu.matmul %54, %56, %cst_24 {dimension_numbers = #tpu.dot_dimension_numbers<[1], [0], [0], [1], [0, 0, 1, 1], [], []>} : vector<8x128xbf16>, vector<128x512xbf16>, vector<8x512xf32> -> vector<8x512xf32>
    %58 = arith.addf %53, %57 : vector<8x512xf32>
    %59 = vector.extract_strided_slice %58 {offsets = [0, 0], sizes = [8, 128], strides = [1, 1]} : vector<8x512xf32> to vector<8x128xf32>
    %60 = arith.negf %59 : vector<8x128xf32>
    %61 = math.exp %60 : vector<8x128xf32>
    %cst_25 = arith.constant 1.000000e+00 : f32
    %62 = vector.broadcast %cst_25 : f32 to vector<8x128xf32>
    %63 = arith.addf %62, %61 : vector<8x128xf32>
    %64 = arith.divf %62, %63 : vector<8x128xf32>
    %65 = vector.extract_strided_slice %58 {offsets = [0, 128], sizes = [8, 128], strides = [1, 1]} : vector<8x512xf32> to vector<8x128xf32>
    %66 = arith.negf %65 : vector<8x128xf32>
    %67 = math.exp %66 : vector<8x128xf32>
    %cst_26 = arith.constant 1.000000e+00 : f32
    %68 = vector.broadcast %cst_26 : f32 to vector<8x128xf32>
    %69 = arith.addf %68, %67 : vector<8x128xf32>
    %70 = arith.divf %68, %69 : vector<8x128xf32>
    %71 = vector.extract_strided_slice %58 {offsets = [0, 256], sizes = [8, 128], strides = [1, 1]} : vector<8x512xf32> to vector<8x128xf32>
    %72 = math.tanh %71 : vector<8x128xf32>
    %73 = vector.extract_strided_slice %58 {offsets = [0, 384], sizes = [8, 128], strides = [1, 1]} : vector<8x512xf32> to vector<8x128xf32>
    %74 = arith.negf %73 : vector<8x128xf32>
    %75 = math.exp %74 : vector<8x128xf32>
    %cst_27 = arith.constant 1.000000e+00 : f32
    %76 = vector.broadcast %cst_27 : f32 to vector<8x128xf32>
    %77 = arith.addf %76, %75 : vector<8x128xf32>
    %78 = arith.divf %76, %77 : vector<8x128xf32>
    %79 = arith.mulf %70, %45 : vector<8x128xf32>
    %80 = arith.mulf %64, %72 : vector<8x128xf32>
    %81 = arith.addf %79, %80 : vector<8x128xf32>
    %82 = math.tanh %81 : vector<8x128xf32>
    %83 = arith.mulf %78, %82 : vector<8x128xf32>
    %84 = arith.index_cast %51 : i32 to index
    %c0_28 = arith.constant 0 : index
    %85 = vector.load %arg11[%84, %c0_28] : memref<64x128xf32, #tpu.memory_space<vmem>>, vector<8x128xf32>
    tpu.vector_store %arg11[%84, %c0_28], %83 {strides = array<i32>} : memref<64x128xf32, #tpu.memory_space<vmem>>, vector<8x128xf32>,
    %c2_i32 = arith.constant 2 : i32
    %c8_i32_29 = arith.constant 8 : i32
    %86 = arith.muli %c2_i32, %c8_i32_29 : i32
    %87 = tpu.assume_multiple %86, 8 : i32
    %88 = arith.index_cast %87 : i32 to index
    %c0_30 = arith.constant 0 : index
    %89 = vector.load %arg12[%88, %c0_30] : memref<64x512xf32, #tpu.memory_space<vmem>>, vector<8x512xf32>
    %90 = arith.truncf %83 : vector<8x128xf32> to vector<8x128xbf16>
    %c1_31 = arith.constant 1 : index
    %c0_32 = arith.constant 0 : index
    %c0_33 = arith.constant 0 : index
    %91 = vector.load %arg2[%c1_31, %c0_32, %c0_33] : memref<2x128x512xbf16, #tpu.memory_space<vmem>>, vector<1x128x512xbf16>
    %92 = vector.shape_cast %91 : vector<1x128x512xbf16> to vector<128x512xbf16>
    %cst_34 = arith.constant dense<0.000000e+00> : vector<8x512xf32>
    %93 = tpu.matmul %90, %92, %cst_34 {dimension_numbers = #tpu.dot_dimension_numbers<[1], [0], [0], [1], [0, 0, 1, 1], [], []>} : vector<8x128xbf16>, vector<128x512xbf16>, vector<8x512xf32> -> vector<8x512xf32>
    %94 = arith.addf %89, %93 : vector<8x512xf32>
    %95 = vector.extract_strided_slice %94 {offsets = [0, 0], sizes = [8, 128], strides = [1, 1]} : vector<8x512xf32> to vector<8x128xf32>
    %96 = arith.negf %95 : vector<8x128xf32>
    %97 = math.exp %96 : vector<8x128xf32>
    %cst_35 = arith.constant 1.000000e+00 : f32
    %98 = vector.broadcast %cst_35 : f32 to vector<8x128xf32>
    %99 = arith.addf %98, %97 : vector<8x128xf32>
    %100 = arith.divf %98, %99 : vector<8x128xf32>
    %101 = vector.extract_strided_slice %94 {offsets = [0, 128], sizes = [8, 128], strides = [1, 1]} : vector<8x512xf32> to vector<8x128xf32>
    %102 = arith.negf %101 : vector<8x128xf32>
    %103 = math.exp %102 : vector<8x128xf32>
    %cst_36 = arith.constant 1.000000e+00 : f32
    %104 = vector.broadcast %cst_36 : f32 to vector<8x128xf32>
    %105 = arith.addf %104, %103 : vector<8x128xf32>
    %106 = arith.divf %104, %105 : vector<8x128xf32>
    %107 = vector.extract_strided_slice %94 {offsets = [0, 256], sizes = [8, 128], strides = [1, 1]} : vector<8x512xf32> to vector<8x128xf32>
    %108 = math.tanh %107 : vector<8x128xf32>
    %109 = vector.extract_strided_slice %94 {offsets = [0, 384], sizes = [8, 128], strides = [1, 1]} : vector<8x512xf32> to vector<8x128xf32>
    %110 = arith.negf %109 : vector<8x128xf32>
    %111 = math.exp %110 : vector<8x128xf32>
    %cst_37 = arith.constant 1.000000e+00 : f32
    %112 = vector.broadcast %cst_37 : f32 to vector<8x128xf32>
    %113 = arith.addf %112, %111 : vector<8x128xf32>
    %114 = arith.divf %112, %113 : vector<8x128xf32>
    %115 = arith.mulf %106, %81 : vector<8x128xf32>
    %116 = arith.mulf %100, %108 : vector<8x128xf32>
    %117 = arith.addf %115, %116 : vector<8x128xf32>
    %118 = math.tanh %117 : vector<8x128xf32>
    %119 = arith.mulf %114, %118 : vector<8x128xf32>
    %120 = arith.index_cast %87 : i32 to index
    %c0_38 = arith.constant 0 : index
    %121 = vector.load %arg11[%120, %c0_38] : memref<64x128xf32, #tpu.memory_space<vmem>>, vector<8x128xf32>
    tpu.vector_store %arg11[%120, %c0_38], %119 {strides = array<i32>} : memref<64x128xf32, #tpu.memory_space<vmem>>, vector<8x128xf32>,
    %c3_i32 = arith.constant 3 : i32
    %c8_i32_39 = arith.constant 8 : i32
    %122 = arith.muli %c3_i32, %c8_i32_39 : i32
    %123 = tpu.assume_multiple %122, 8 : i32
    %124 = arith.index_cast %123 : i32 to index
    %c0_40 = arith.constant 0 : index
    %125 = vector.load %arg12[%124, %c0_40] : memref<64x512xf32, #tpu.memory_space<vmem>>, vector<8x512xf32>
    %126 = arith.truncf %119 : vector<8x128xf32> to vector<8x128xbf16>
    %c1_41 = arith.constant 1 : index
    %c0_42 = arith.constant 0 : index
    %c0_43 = arith.constant 0 : index
    %127 = vector.load %arg2[%c1_41, %c0_42, %c0_43] : memref<2x128x512xbf16, #tpu.memory_space<vmem>>, vector<1x128x512xbf16>
    %128 = vector.shape_cast %127 : vector<1x128x512xbf16> to vector<128x512xbf16>
    %cst_44 = arith.constant dense<0.000000e+00> : vector<8x512xf32>
    %129 = tpu.matmul %126, %128, %cst_44 {dimension_numbers = #tpu.dot_dimension_numbers<[1], [0], [0], [1], [0, 0, 1, 1], [], []>} : vector<8x128xbf16>, vector<128x512xbf16>, vector<8x512xf32> -> vector<8x512xf32>
    %130 = arith.addf %125, %129 : vector<8x512xf32>
    %131 = vector.extract_strided_slice %130 {offsets = [0, 0], sizes = [8, 128], strides = [1, 1]} : vector<8x512xf32> to vector<8x128xf32>
    %132 = arith.negf %131 : vector<8x128xf32>
    %133 = math.exp %132 : vector<8x128xf32>
    %cst_45 = arith.constant 1.000000e+00 : f32
    %134 = vector.broadcast %cst_45 : f32 to vector<8x128xf32>
    %135 = arith.addf %134, %133 : vector<8x128xf32>
    %136 = arith.divf %134, %135 : vector<8x128xf32>
    %137 = vector.extract_strided_slice %130 {offsets = [0, 128], sizes = [8, 128], strides = [1, 1]} : vector<8x512xf32> to vector<8x128xf32>
    %138 = arith.negf %137 : vector<8x128xf32>
    %139 = math.exp %138 : vector<8x128xf32>
    %cst_46 = arith.constant 1.000000e+00 : f32
    %140 = vector.broadcast %cst_46 : f32 to vector<8x128xf32>
    %141 = arith.addf %140, %139 : vector<8x128xf32>
    %142 = arith.divf %140, %141 : vector<8x128xf32>
    %143 = vector.extract_strided_slice %130 {offsets = [0, 256], sizes = [8, 128], strides = [1, 1]} : vector<8x512xf32> to vector<8x128xf32>
    %144 = math.tanh %143 : vector<8x128xf32>
    %145 = vector.extract_strided_slice %130 {offsets = [0, 384], sizes = [8, 128], strides = [1, 1]} : vector<8x512xf32> to vector<8x128xf32>
    %146 = arith.negf %145 : vector<8x128xf32>
    %147 = math.exp %146 : vector<8x128xf32>
    %cst_47 = arith.constant 1.000000e+00 : f32
    %148 = vector.broadcast %cst_47 : f32 to vector<8x128xf32>
    %149 = arith.addf %148, %147 : vector<8x128xf32>
    %150 = arith.divf %148, %149 : vector<8x128xf32>
    %151 = arith.mulf %142, %117 : vector<8x128xf32>
    %152 = arith.mulf %136, %144 : vector<8x128xf32>
    %153 = arith.addf %151, %152 : vector<8x128xf32>
    %154 = math.tanh %153 : vector<8x128xf32>
    %155 = arith.mulf %150, %154 : vector<8x128xf32>
    %156 = arith.index_cast %123 : i32 to index
    %c0_48 = arith.constant 0 : index
    %157 = vector.load %arg11[%156, %c0_48] : memref<64x128xf32, #tpu.memory_space<vmem>>, vector<8x128xf32>
    tpu.vector_store %arg11[%156, %c0_48], %155 {strides = array<i32>} : memref<64x128xf32, #tpu.memory_space<vmem>>, vector<8x128xf32>,
    %c4_i32 = arith.constant 4 : i32
    %c8_i32_49 = arith.constant 8 : i32
    %158 = arith.muli %c4_i32, %c8_i32_49 : i32
    %159 = tpu.assume_multiple %158, 8 : i32
    %160 = arith.index_cast %159 : i32 to index
    %c0_50 = arith.constant 0 : index
    %161 = vector.load %arg12[%160, %c0_50] : memref<64x512xf32, #tpu.memory_space<vmem>>, vector<8x512xf32>
    %162 = arith.truncf %155 : vector<8x128xf32> to vector<8x128xbf16>
    %c1_51 = arith.constant 1 : index
    %c0_52 = arith.constant 0 : index
    %c0_53 = arith.constant 0 : index
    %163 = vector.load %arg2[%c1_51, %c0_52, %c0_53] : memref<2x128x512xbf16, #tpu.memory_space<vmem>>, vector<1x128x512xbf16>
    %164 = vector.shape_cast %163 : vector<1x128x512xbf16> to vector<128x512xbf16>
    %cst_54 = arith.constant dense<0.000000e+00> : vector<8x512xf32>
    %165 = tpu.matmul %162, %164, %cst_54 {dimension_numbers = #tpu.dot_dimension_numbers<[1], [0], [0], [1], [0, 0, 1, 1], [], []>} : vector<8x128xbf16>, vector<128x512xbf16>, vector<8x512xf32> -> vector<8x512xf32>
    %166 = arith.addf %161, %165 : vector<8x512xf32>
    %167 = vector.extract_strided_slice %166 {offsets = [0, 0], sizes = [8, 128], strides = [1, 1]} : vector<8x512xf32> to vector<8x128xf32>
    %168 = arith.negf %167 : vector<8x128xf32>
    %169 = math.exp %168 : vector<8x128xf32>
    %cst_55 = arith.constant 1.000000e+00 : f32
    %170 = vector.broadcast %cst_55 : f32 to vector<8x128xf32>
    %171 = arith.addf %170, %169 : vector<8x128xf32>
    %172 = arith.divf %170, %171 : vector<8x128xf32>
    %173 = vector.extract_strided_slice %166 {offsets = [0, 128], sizes = [8, 128], strides = [1, 1]} : vector<8x512xf32> to vector<8x128xf32>
    %174 = arith.negf %173 : vector<8x128xf32>
    %175 = math.exp %174 : vector<8x128xf32>
    %cst_56 = arith.constant 1.000000e+00 : f32
    %176 = vector.broadcast %cst_56 : f32 to vector<8x128xf32>
    %177 = arith.addf %176, %175 : vector<8x128xf32>
    %178 = arith.divf %176, %177 : vector<8x128xf32>
    %179 = vector.extract_strided_slice %166 {offsets = [0, 256], sizes = [8, 128], strides = [1, 1]} : vector<8x512xf32> to vector<8x128xf32>
    %180 = math.tanh %179 : vector<8x128xf32>
    %181 = vector.extract_strided_slice %166 {offsets = [0, 384], sizes = [8, 128], strides = [1, 1]} : vector<8x512xf32> to vector<8x128xf32>
    %182 = arith.negf %181 : vector<8x128xf32>
    %183 = math.exp %182 : vector<8x128xf32>
    %cst_57 = arith.constant 1.000000e+00 : f32
    %184 = vector.broadcast %cst_57 : f32 to vector<8x128xf32>
    %185 = arith.addf %184, %183 : vector<8x128xf32>
    %186 = arith.divf %184, %185 : vector<8x128xf32>
    %187 = arith.mulf %178, %153 : vector<8x128xf32>
    %188 = arith.mulf %172, %180 : vector<8x128xf32>
    %189 = arith.addf %187, %188 : vector<8x128xf32>
    %190 = math.tanh %189 : vector<8x128xf32>
    %191 = arith.mulf %186, %190 : vector<8x128xf32>
    %192 = arith.index_cast %159 : i32 to index
    %c0_58 = arith.constant 0 : index
    %193 = vector.load %arg11[%192, %c0_58] : memref<64x128xf32, #tpu.memory_space<vmem>>, vector<8x128xf32>
    tpu.vector_store %arg11[%192, %c0_58], %191 {strides = array<i32>} : memref<64x128xf32, #tpu.memory_space<vmem>>, vector<8x128xf32>,
    %c5_i32 = arith.constant 5 : i32
    %c8_i32_59 = arith.constant 8 : i32
    %194 = arith.muli %c5_i32, %c8_i32_59 : i32
    %195 = tpu.assume_multiple %194, 8 : i32
    %196 = arith.index_cast %195 : i32 to index
    %c0_60 = arith.constant 0 : index
    %197 = vector.load %arg12[%196, %c0_60] : memref<64x512xf32, #tpu.memory_space<vmem>>, vector<8x512xf32>
    %198 = arith.truncf %191 : vector<8x128xf32> to vector<8x128xbf16>
    %c1_61 = arith.constant 1 : index
    %c0_62 = arith.constant 0 : index
    %c0_63 = arith.constant 0 : index
    %199 = vector.load %arg2[%c1_61, %c0_62, %c0_63] : memref<2x128x512xbf16, #tpu.memory_space<vmem>>, vector<1x128x512xbf16>
    %200 = vector.shape_cast %199 : vector<1x128x512xbf16> to vector<128x512xbf16>
    %cst_64 = arith.constant dense<0.000000e+00> : vector<8x512xf32>
    %201 = tpu.matmul %198, %200, %cst_64 {dimension_numbers = #tpu.dot_dimension_numbers<[1], [0], [0], [1], [0, 0, 1, 1], [], []>} : vector<8x128xbf16>, vector<128x512xbf16>, vector<8x512xf32> -> vector<8x512xf32>
    %202 = arith.addf %197, %201 : vector<8x512xf32>
    %203 = vector.extract_strided_slice %202 {offsets = [0, 0], sizes = [8, 128], strides = [1, 1]} : vector<8x512xf32> to vector<8x128xf32>
    %204 = arith.negf %203 : vector<8x128xf32>
    %205 = math.exp %204 : vector<8x128xf32>
    %cst_65 = arith.constant 1.000000e+00 : f32
    %206 = vector.broadcast %cst_65 : f32 to vector<8x128xf32>
    %207 = arith.addf %206, %205 : vector<8x128xf32>
    %208 = arith.divf %206, %207 : vector<8x128xf32>
    %209 = vector.extract_strided_slice %202 {offsets = [0, 128], sizes = [8, 128], strides = [1, 1]} : vector<8x512xf32> to vector<8x128xf32>
    %210 = arith.negf %209 : vector<8x128xf32>
    %211 = math.exp %210 : vector<8x128xf32>
    %cst_66 = arith.constant 1.000000e+00 : f32
    %212 = vector.broadcast %cst_66 : f32 to vector<8x128xf32>
    %213 = arith.addf %212, %211 : vector<8x128xf32>
    %214 = arith.divf %212, %213 : vector<8x128xf32>
    %215 = vector.extract_strided_slice %202 {offsets = [0, 256], sizes = [8, 128], strides = [1, 1]} : vector<8x512xf32> to vector<8x128xf32>
    %216 = math.tanh %215 : vector<8x128xf32>
    %217 = vector.extract_strided_slice %202 {offsets = [0, 384], sizes = [8, 128], strides = [1, 1]} : vector<8x512xf32> to vector<8x128xf32>
    %218 = arith.negf %217 : vector<8x128xf32>
    %219 = math.exp %218 : vector<8x128xf32>
    %cst_67 = arith.constant 1.000000e+00 : f32
    %220 = vector.broadcast %cst_67 : f32 to vector<8x128xf32>
    %221 = arith.addf %220, %219 : vector<8x128xf32>
    %222 = arith.divf %220, %221 : vector<8x128xf32>
    %223 = arith.mulf %214, %189 : vector<8x128xf32>
    %224 = arith.mulf %208, %216 : vector<8x128xf32>
    %225 = arith.addf %223, %224 : vector<8x128xf32>
    %226 = math.tanh %225 : vector<8x128xf32>
    %227 = arith.mulf %222, %226 : vector<8x128xf32>
    %228 = arith.index_cast %195 : i32 to index
    %c0_68 = arith.constant 0 : index
    %229 = vector.load %arg11[%228, %c0_68] : memref<64x128xf32, #tpu.memory_space<vmem>>, vector<8x128xf32>
    tpu.vector_store %arg11[%228, %c0_68], %227 {strides = array<i32>} : memref<64x128xf32, #tpu.memory_space<vmem>>, vector<8x128xf32>,
    %c6_i32 = arith.constant 6 : i32
    %c8_i32_69 = arith.constant 8 : i32
    %230 = arith.muli %c6_i32, %c8_i32_69 : i32
    %231 = tpu.assume_multiple %230, 8 : i32
    %232 = arith.index_cast %231 : i32 to index
    %c0_70 = arith.constant 0 : index
    %233 = vector.load %arg12[%232, %c0_70] : memref<64x512xf32, #tpu.memory_space<vmem>>, vector<8x512xf32>
    %234 = arith.truncf %227 : vector<8x128xf32> to vector<8x128xbf16>
    %c1_71 = arith.constant 1 : index
    %c0_72 = arith.constant 0 : index
    %c0_73 = arith.constant 0 : index
    %235 = vector.load %arg2[%c1_71, %c0_72, %c0_73] : memref<2x128x512xbf16, #tpu.memory_space<vmem>>, vector<1x128x512xbf16>
    %236 = vector.shape_cast %235 : vector<1x128x512xbf16> to vector<128x512xbf16>
    %cst_74 = arith.constant dense<0.000000e+00> : vector<8x512xf32>
    %237 = tpu.matmul %234, %236, %cst_74 {dimension_numbers = #tpu.dot_dimension_numbers<[1], [0], [0], [1], [0, 0, 1, 1], [], []>} : vector<8x128xbf16>, vector<128x512xbf16>, vector<8x512xf32> -> vector<8x512xf32>
    %238 = arith.addf %233, %237 : vector<8x512xf32>
    %239 = vector.extract_strided_slice %238 {offsets = [0, 0], sizes = [8, 128], strides = [1, 1]} : vector<8x512xf32> to vector<8x128xf32>
    %240 = arith.negf %239 : vector<8x128xf32>
    %241 = math.exp %240 : vector<8x128xf32>
    %cst_75 = arith.constant 1.000000e+00 : f32
    %242 = vector.broadcast %cst_75 : f32 to vector<8x128xf32>
    %243 = arith.addf %242, %241 : vector<8x128xf32>
    %244 = arith.divf %242, %243 : vector<8x128xf32>
    %245 = vector.extract_strided_slice %238 {offsets = [0, 128], sizes = [8, 128], strides = [1, 1]} : vector<8x512xf32> to vector<8x128xf32>
    %246 = arith.negf %245 : vector<8x128xf32>
    %247 = math.exp %246 : vector<8x128xf32>
    %cst_76 = arith.constant 1.000000e+00 : f32
    %248 = vector.broadcast %cst_76 : f32 to vector<8x128xf32>
    %249 = arith.addf %248, %247 : vector<8x128xf32>
    %250 = arith.divf %248, %249 : vector<8x128xf32>
    %251 = vector.extract_strided_slice %238 {offsets = [0, 256], sizes = [8, 128], strides = [1, 1]} : vector<8x512xf32> to vector<8x128xf32>
    %252 = math.tanh %251 : vector<8x128xf32>
    %253 = vector.extract_strided_slice %238 {offsets = [0, 384], sizes = [8, 128], strides = [1, 1]} : vector<8x512xf32> to vector<8x128xf32>
    %254 = arith.negf %253 : vector<8x128xf32>
    %255 = math.exp %254 : vector<8x128xf32>
    %cst_77 = arith.constant 1.000000e+00 : f32
    %256 = vector.broadcast %cst_77 : f32 to vector<8x128xf32>
    %257 = arith.addf %256, %255 : vector<8x128xf32>
    %258 = arith.divf %256, %257 : vector<8x128xf32>
    %259 = arith.mulf %250, %225 : vector<8x128xf32>
    %260 = arith.mulf %244, %252 : vector<8x128xf32>
    %261 = arith.addf %259, %260 : vector<8x128xf32>
    %262 = math.tanh %261 : vector<8x128xf32>
    %263 = arith.mulf %258, %262 : vector<8x128xf32>
    %264 = arith.index_cast %231 : i32 to index
    %c0_78 = arith.constant 0 : index
    %265 = vector.load %arg11[%264, %c0_78] : memref<64x128xf32, #tpu.memory_space<vmem>>, vector<8x128xf32>
    tpu.vector_store %arg11[%264, %c0_78], %263 {strides = array<i32>} : memref<64x128xf32, #tpu.memory_space<vmem>>, vector<8x128xf32>,
    %c7_i32 = arith.constant 7 : i32
    %c8_i32_79 = arith.constant 8 : i32
    %266 = arith.muli %c7_i32, %c8_i32_79 : i32
    %267 = tpu.assume_multiple %266, 8 : i32
    %268 = arith.index_cast %267 : i32 to index
    %c0_80 = arith.constant 0 : index
    %269 = vector.load %arg12[%268, %c0_80] : memref<64x512xf32, #tpu.memory_space<vmem>>, vector<8x512xf32>
    %270 = arith.truncf %263 : vector<8x128xf32> to vector<8x128xbf16>
    %c1_81 = arith.constant 1 : index
    %c0_82 = arith.constant 0 : index
    %c0_83 = arith.constant 0 : index
    %271 = vector.load %arg2[%c1_81, %c0_82, %c0_83] : memref<2x128x512xbf16, #tpu.memory_space<vmem>>, vector<1x128x512xbf16>
    %272 = vector.shape_cast %271 : vector<1x128x512xbf16> to vector<128x512xbf16>
    %cst_84 = arith.constant dense<0.000000e+00> : vector<8x512xf32>
    %273 = tpu.matmul %270, %272, %cst_84 {dimension_numbers = #tpu.dot_dimension_numbers<[1], [0], [0], [1], [0, 0, 1, 1], [], []>} : vector<8x128xbf16>, vector<128x512xbf16>, vector<8x512xf32> -> vector<8x512xf32>
    %274 = arith.addf %269, %273 : vector<8x512xf32>
    %275 = vector.extract_strided_slice %274 {offsets = [0, 0], sizes = [8, 128], strides = [1, 1]} : vector<8x512xf32> to vector<8x128xf32>
    %276 = arith.negf %275 : vector<8x128xf32>
    %277 = math.exp %276 : vector<8x128xf32>
    %cst_85 = arith.constant 1.000000e+00 : f32
    %278 = vector.broadcast %cst_85 : f32 to vector<8x128xf32>
    %279 = arith.addf %278, %277 : vector<8x128xf32>
    %280 = arith.divf %278, %279 : vector<8x128xf32>
    %281 = vector.extract_strided_slice %274 {offsets = [0, 128], sizes = [8, 128], strides = [1, 1]} : vector<8x512xf32> to vector<8x128xf32>
    %282 = arith.negf %281 : vector<8x128xf32>
    %283 = math.exp %282 : vector<8x128xf32>
    %cst_86 = arith.constant 1.000000e+00 : f32
    %284 = vector.broadcast %cst_86 : f32 to vector<8x128xf32>
    %285 = arith.addf %284, %283 : vector<8x128xf32>
    %286 = arith.divf %284, %285 : vector<8x128xf32>
    %287 = vector.extract_strided_slice %274 {offsets = [0, 256], sizes = [8, 128], strides = [1, 1]} : vector<8x512xf32> to vector<8x128xf32>
    %288 = math.tanh %287 : vector<8x128xf32>
    %289 = vector.extract_strided_slice %274 {offsets = [0, 384], sizes = [8, 128], strides = [1, 1]} : vector<8x512xf32> to vector<8x128xf32>
    %290 = arith.negf %289 : vector<8x128xf32>
    %291 = math.exp %290 : vector<8x128xf32>
    %cst_87 = arith.constant 1.000000e+00 : f32
    %292 = vector.broadcast %cst_87 : f32 to vector<8x128xf32>
    %293 = arith.addf %292, %291 : vector<8x128xf32>
    %294 = arith.divf %292, %293 : vector<8x128xf32>
    %295 = arith.mulf %286, %261 : vector<8x128xf32>
    %296 = arith.mulf %280, %288 : vector<8x128xf32>
    %297 = arith.addf %295, %296 : vector<8x128xf32>
    %298 = math.tanh %297 : vector<8x128xf32>
    %299 = arith.mulf %294, %298 : vector<8x128xf32>
    %300 = arith.index_cast %267 : i32 to index
    %c0_88 = arith.constant 0 : index
    %301 = vector.load %arg11[%300, %c0_88] : memref<64x128xf32, #tpu.memory_space<vmem>>, vector<8x128xf32>
    tpu.vector_store %arg11[%300, %c0_88], %299 {strides = array<i32>} : memref<64x128xf32, #tpu.memory_space<vmem>>, vector<8x128xf32>,
    %c8_i32_89 = arith.constant 8 : i32
    %c0_90 = arith.constant 0 : index
    %c0_91 = arith.constant 0 : index
    %c0_92 = arith.constant 0 : index
    %302 = vector.load %arg9[%c0_90, %c0_91, %c0_92] : memref<2x8x128xf32, #tpu.memory_space<vmem>>, vector<1x8x128xf32>
    %303 = vector.shape_cast %302 : vector<1x8x128xf32> to vector<8x128xf32>
    %304 = vector.shape_cast %299 : vector<8x128xf32> to vector<1x8x128xf32>
    tpu.vector_store %arg9[%c0_90, %c0_91, %c0_92], %304 {strides = array<i32>} : memref<2x8x128xf32, #tpu.memory_space<vmem>>, vector<1x8x128xf32>,
    %c0_93 = arith.constant 0 : index
    %c0_94 = arith.constant 0 : index
    %c0_95 = arith.constant 0 : index
    %305 = vector.load %arg10[%c0_93, %c0_94, %c0_95] : memref<2x8x128xf32, #tpu.memory_space<vmem>>, vector<1x8x128xf32>
    %306 = vector.shape_cast %305 : vector<1x8x128xf32> to vector<8x128xf32>
    %307 = vector.shape_cast %297 : vector<8x128xf32> to vector<1x8x128xf32>
    tpu.vector_store %arg10[%c0_93, %c0_94, %c0_95], %307 {strides = array<i32>} : memref<2x8x128xf32, #tpu.memory_space<vmem>>, vector<1x8x128xf32>,
    %c0_i32_96 = arith.constant 0 : i32
    %308 = tpu.memref_slice %arg15[%c0_i32_96] : memref<2x!tpu.dma_semaphore, #tpu.memory_space<semaphore_mem>> -> memref<1x!tpu.dma_semaphore, #tpu.memory_space<semaphore_mem>>
    %309 = tpu.memref_squeeze %308 : memref<1x!tpu.dma_semaphore, #tpu.memory_space<semaphore_mem>> -> memref<!tpu.dma_semaphore, #tpu.memory_space<semaphore_mem>>
    tpu.wait_dma2 semaphore(%309 : memref<!tpu.dma_semaphore, #tpu.memory_space<semaphore_mem>>) src(%arg4 : memref<2x128x512xbf16, #tpu.memory_space<any>>) dst(%arg13 : memref<2x128x512xbf16, #tpu.memory_space<vmem>>)
    %c0_97 = arith.constant 0 : index
    %c0_98 = arith.constant 0 : index
    %310 = vector.load %arg11[%c0_97, %c0_98] : memref<64x128xf32, #tpu.memory_space<vmem>>, vector<64x128xf32>
    %311 = arith.truncf %310 : vector<64x128xf32> to vector<64x128xbf16>
    %c0_99 = arith.constant 0 : index
    %c0_100 = arith.constant 0 : index
    %c0_101 = arith.constant 0 : index
    %312 = vector.load %arg13[%c0_99, %c0_100, %c0_101] : memref<2x128x512xbf16, #tpu.memory_space<vmem>>, vector<1x128x512xbf16>
    %313 = vector.shape_cast %312 : vector<1x128x512xbf16> to vector<128x512xbf16>
    %cst_102 = arith.constant dense<0.000000e+00> : vector<64x512xf32>
    %314 = tpu.matmul %311, %313, %cst_102 {dimension_numbers = #tpu.dot_dimension_numbers<[1], [0], [0], [1], [0, 0, 1, 1], [], []>} : vector<64x128xbf16>, vector<128x512xbf16>, vector<64x512xf32> -> vector<64x512xf32>
    %c0_103 = arith.constant 0 : index
    %c0_104 = arith.constant 0 : index
    %315 = vector.load %arg5[%c0_103, %c0_104] : memref<1x512xf32, #tpu.memory_space<vmem>>, vector<1x512xf32>
    %316 = vector.broadcast %315 : vector<1x512xf32> to vector<64x512xf32>
    %317 = arith.addf %314, %316 : vector<64x512xf32>
    %c0_105 = arith.constant 0 : index
    %c0_106 = arith.constant 0 : index
    %318 = vector.load %arg12[%c0_105, %c0_106] : memref<64x512xf32, #tpu.memory_space<vmem>>, vector<64x512xf32>
    tpu.vector_store %arg12[%c0_105, %c0_106], %317 {strides = array<i32>} : memref<64x512xf32, #tpu.memory_space<vmem>>, vector<64x512xf32>,
    %cst_107 = arith.constant 0.000000e+00 : f32
    %319 = vector.broadcast %cst_107 : f32 to vector<8x128xf32>
    %c0_i32_108 = arith.constant 0 : i32
    %c8_i32_109 = arith.constant 8 : i32
    %320 = arith.muli %c0_i32_108, %c8_i32_109 : i32
    %321 = tpu.assume_multiple %320, 8 : i32
    %322 = arith.index_cast %321 : i32 to index
    %c0_110 = arith.constant 0 : index
    %323 = vector.load %arg12[%322, %c0_110] : memref<64x512xf32, #tpu.memory_space<vmem>>, vector<8x512xf32>
    %324 = arith.truncf %319 : vector<8x128xf32> to vector<8x128xbf16>
    %c1_111 = arith.constant 1 : index
    %c0_112 = arith.constant 0 : index
    %c0_113 = arith.constant 0 : index
    %325 = vector.load %arg13[%c1_111, %c0_112, %c0_113] : memref<2x128x512xbf16, #tpu.memory_space<vmem>>, vector<1x128x512xbf16>
    %326 = vector.shape_cast %325 : vector<1x128x512xbf16> to vector<128x512xbf16>
    %cst_114 = arith.constant dense<0.000000e+00> : vector<8x512xf32>
    %327 = tpu.matmul %324, %326, %cst_114 {dimension_numbers = #tpu.dot_dimension_numbers<[1], [0], [0], [1], [0, 0, 1, 1], [], []>} : vector<8x128xbf16>, vector<128x512xbf16>, vector<8x512xf32> -> vector<8x512xf32>
    %328 = arith.addf %323, %327 : vector<8x512xf32>
    %329 = vector.extract_strided_slice %328 {offsets = [0, 0], sizes = [8, 128], strides = [1, 1]} : vector<8x512xf32> to vector<8x128xf32>
    %330 = arith.negf %329 : vector<8x128xf32>
    %331 = math.exp %330 : vector<8x128xf32>
    %cst_115 = arith.constant 1.000000e+00 : f32
    %332 = vector.broadcast %cst_115 : f32 to vector<8x128xf32>
    %333 = arith.addf %332, %331 : vector<8x128xf32>
    %334 = arith.divf %332, %333 : vector<8x128xf32>
    %335 = vector.extract_strided_slice %328 {offsets = [0, 128], sizes = [8, 128], strides = [1, 1]} : vector<8x512xf32> to vector<8x128xf32>
    %336 = arith.negf %335 : vector<8x128xf32>
    %337 = math.exp %336 : vector<8x128xf32>
    %cst_116 = arith.constant 1.000000e+00 : f32
    %338 = vector.broadcast %cst_116 : f32 to vector<8x128xf32>
    %339 = arith.addf %338, %337 : vector<8x128xf32>
    %340 = arith.divf %338, %339 : vector<8x128xf32>
    %341 = vector.extract_strided_slice %328 {offsets = [0, 256], sizes = [8, 128], strides = [1, 1]} : vector<8x512xf32> to vector<8x128xf32>
    %342 = math.tanh %341 : vector<8x128xf32>
    %343 = vector.extract_strided_slice %328 {offsets = [0, 384], sizes = [8, 128], strides = [1, 1]} : vector<8x512xf32> to vector<8x128xf32>
    %344 = arith.negf %343 : vector<8x128xf32>
    %345 = math.exp %344 : vector<8x128xf32>
    %cst_117 = arith.constant 1.000000e+00 : f32
    %346 = vector.broadcast %cst_117 : f32 to vector<8x128xf32>
    %347 = arith.addf %346, %345 : vector<8x128xf32>
    %348 = arith.divf %346, %347 : vector<8x128xf32>
    %349 = arith.mulf %340, %319 : vector<8x128xf32>
    %350 = arith.mulf %334, %342 : vector<8x128xf32>
    %351 = arith.addf %349, %350 : vector<8x128xf32>
    %352 = math.tanh %351 : vector<8x128xf32>
    %353 = arith.mulf %348, %352 : vector<8x128xf32>
    %354 = arith.index_cast %321 : i32 to index
    %c0_118 = arith.constant 0 : index
    %355 = vector.load %arg11[%354, %c0_118] : memref<64x128xf32, #tpu.memory_space<vmem>>, vector<8x128xf32>
    tpu.vector_store %arg11[%354, %c0_118], %353 {strides = array<i32>} : memref<64x128xf32, #tpu.memory_space<vmem>>, vector<8x128xf32>,
    %c1_i32_119 = arith.constant 1 : i32
    %c8_i32_120 = arith.constant 8 : i32
    %356 = arith.muli %c1_i32_119, %c8_i32_120 : i32
    %357 = tpu.assume_multiple %356, 8 : i32
    %358 = arith.index_cast %357 : i32 to index
    %c0_121 = arith.constant 0 : index
    %359 = vector.load %arg12[%358, %c0_121] : memref<64x512xf32, #tpu.memory_space<vmem>>, vector<8x512xf32>
    %360 = arith.truncf %353 : vector<8x128xf32> to vector<8x128xbf16>
    %c1_122 = arith.constant 1 : index
    %c0_123 = arith.constant 0 : index
    %c0_124 = arith.constant 0 : index
    %361 = vector.load %arg13[%c1_122, %c0_123, %c0_124] : memref<2x128x512xbf16, #tpu.memory_space<vmem>>, vector<1x128x512xbf16>
    %362 = vector.shape_cast %361 : vector<1x128x512xbf16> to vector<128x512xbf16>
    %cst_125 = arith.constant dense<0.000000e+00> : vector<8x512xf32>
    %363 = tpu.matmul %360, %362, %cst_125 {dimension_numbers = #tpu.dot_dimension_numbers<[1], [0], [0], [1], [0, 0, 1, 1], [], []>} : vector<8x128xbf16>, vector<128x512xbf16>, vector<8x512xf32> -> vector<8x512xf32>
    %364 = arith.addf %359, %363 : vector<8x512xf32>
    %365 = vector.extract_strided_slice %364 {offsets = [0, 0], sizes = [8, 128], strides = [1, 1]} : vector<8x512xf32> to vector<8x128xf32>
    %366 = arith.negf %365 : vector<8x128xf32>
    %367 = math.exp %366 : vector<8x128xf32>
    %cst_126 = arith.constant 1.000000e+00 : f32
    %368 = vector.broadcast %cst_126 : f32 to vector<8x128xf32>
    %369 = arith.addf %368, %367 : vector<8x128xf32>
    %370 = arith.divf %368, %369 : vector<8x128xf32>
    %371 = vector.extract_strided_slice %364 {offsets = [0, 128], sizes = [8, 128], strides = [1, 1]} : vector<8x512xf32> to vector<8x128xf32>
    %372 = arith.negf %371 : vector<8x128xf32>
    %373 = math.exp %372 : vector<8x128xf32>
    %cst_127 = arith.constant 1.000000e+00 : f32
    %374 = vector.broadcast %cst_127 : f32 to vector<8x128xf32>
    %375 = arith.addf %374, %373 : vector<8x128xf32>
    %376 = arith.divf %374, %375 : vector<8x128xf32>
    %377 = vector.extract_strided_slice %364 {offsets = [0, 256], sizes = [8, 128], strides = [1, 1]} : vector<8x512xf32> to vector<8x128xf32>
    %378 = math.tanh %377 : vector<8x128xf32>
    %379 = vector.extract_strided_slice %364 {offsets = [0, 384], sizes = [8, 128], strides = [1, 1]} : vector<8x512xf32> to vector<8x128xf32>
    %380 = arith.negf %379 : vector<8x128xf32>
    %381 = math.exp %380 : vector<8x128xf32>
    %cst_128 = arith.constant 1.000000e+00 : f32
    %382 = vector.broadcast %cst_128 : f32 to vector<8x128xf32>
    %383 = arith.addf %382, %381 : vector<8x128xf32>
    %384 = arith.divf %382, %383 : vector<8x128xf32>
    %385 = arith.mulf %376, %351 : vector<8x128xf32>
    %386 = arith.mulf %370, %378 : vector<8x128xf32>
    %387 = arith.addf %385, %386 : vector<8x128xf32>
    %388 = math.tanh %387 : vector<8x128xf32>
    %389 = arith.mulf %384, %388 : vector<8x128xf32>
    %390 = arith.index_cast %357 : i32 to index
    %c0_129 = arith.constant 0 : index
    %391 = vector.load %arg11[%390, %c0_129] : memref<64x128xf32, #tpu.memory_space<vmem>>, vector<8x128xf32>
    tpu.vector_store %arg11[%390, %c0_129], %389 {strides = array<i32>} : memref<64x128xf32, #tpu.memory_space<vmem>>, vector<8x128xf32>,
    %c2_i32_130 = arith.constant 2 : i32
    %c8_i32_131 = arith.constant 8 : i32
    %392 = arith.muli %c2_i32_130, %c8_i32_131 : i32
    %393 = tpu.assume_multiple %392, 8 : i32
    %394 = arith.index_cast %393 : i32 to index
    %c0_132 = arith.constant 0 : index
    %395 = vector.load %arg12[%394, %c0_132] : memref<64x512xf32, #tpu.memory_space<vmem>>, vector<8x512xf32>
    %396 = arith.truncf %389 : vector<8x128xf32> to vector<8x128xbf16>
    %c1_133 = arith.constant 1 : index
    %c0_134 = arith.constant 0 : index
    %c0_135 = arith.constant 0 : index
    %397 = vector.load %arg13[%c1_133, %c0_134, %c0_135] : memref<2x128x512xbf16, #tpu.memory_space<vmem>>, vector<1x128x512xbf16>
    %398 = vector.shape_cast %397 : vector<1x128x512xbf16> to vector<128x512xbf16>
    %cst_136 = arith.constant dense<0.000000e+00> : vector<8x512xf32>
    %399 = tpu.matmul %396, %398, %cst_136 {dimension_numbers = #tpu.dot_dimension_numbers<[1], [0], [0], [1], [0, 0, 1, 1], [], []>} : vector<8x128xbf16>, vector<128x512xbf16>, vector<8x512xf32> -> vector<8x512xf32>
    %400 = arith.addf %395, %399 : vector<8x512xf32>
    %401 = vector.extract_strided_slice %400 {offsets = [0, 0], sizes = [8, 128], strides = [1, 1]} : vector<8x512xf32> to vector<8x128xf32>
    %402 = arith.negf %401 : vector<8x128xf32>
    %403 = math.exp %402 : vector<8x128xf32>
    %cst_137 = arith.constant 1.000000e+00 : f32
    %404 = vector.broadcast %cst_137 : f32 to vector<8x128xf32>
    %405 = arith.addf %404, %403 : vector<8x128xf32>
    %406 = arith.divf %404, %405 : vector<8x128xf32>
    %407 = vector.extract_strided_slice %400 {offsets = [0, 128], sizes = [8, 128], strides = [1, 1]} : vector<8x512xf32> to vector<8x128xf32>
    %408 = arith.negf %407 : vector<8x128xf32>
    %409 = math.exp %408 : vector<8x128xf32>
    %cst_138 = arith.constant 1.000000e+00 : f32
    %410 = vector.broadcast %cst_138 : f32 to vector<8x128xf32>
    %411 = arith.addf %410, %409 : vector<8x128xf32>
    %412 = arith.divf %410, %411 : vector<8x128xf32>
    %413 = vector.extract_strided_slice %400 {offsets = [0, 256], sizes = [8, 128], strides = [1, 1]} : vector<8x512xf32> to vector<8x128xf32>
    %414 = math.tanh %413 : vector<8x128xf32>
    %415 = vector.extract_strided_slice %400 {offsets = [0, 384], sizes = [8, 128], strides = [1, 1]} : vector<8x512xf32> to vector<8x128xf32>
    %416 = arith.negf %415 : vector<8x128xf32>
    %417 = math.exp %416 : vector<8x128xf32>
    %cst_139 = arith.constant 1.000000e+00 : f32
    %418 = vector.broadcast %cst_139 : f32 to vector<8x128xf32>
    %419 = arith.addf %418, %417 : vector<8x128xf32>
    %420 = arith.divf %418, %419 : vector<8x128xf32>
    %421 = arith.mulf %412, %387 : vector<8x128xf32>
    %422 = arith.mulf %406, %414 : vector<8x128xf32>
    %423 = arith.addf %421, %422 : vector<8x128xf32>
    %424 = math.tanh %423 : vector<8x128xf32>
    %425 = arith.mulf %420, %424 : vector<8x128xf32>
    %426 = arith.index_cast %393 : i32 to index
    %c0_140 = arith.constant 0 : index
    %427 = vector.load %arg11[%426, %c0_140] : memref<64x128xf32, #tpu.memory_space<vmem>>, vector<8x128xf32>
    tpu.vector_store %arg11[%426, %c0_140], %425 {strides = array<i32>} : memref<64x128xf32, #tpu.memory_space<vmem>>, vector<8x128xf32>,
    %c3_i32_141 = arith.constant 3 : i32
    %c8_i32_142 = arith.constant 8 : i32
    %428 = arith.muli %c3_i32_141, %c8_i32_142 : i32
    %429 = tpu.assume_multiple %428, 8 : i32
    %430 = arith.index_cast %429 : i32 to index
    %c0_143 = arith.constant 0 : index
    %431 = vector.load %arg12[%430, %c0_143] : memref<64x512xf32, #tpu.memory_space<vmem>>, vector<8x512xf32>
    %432 = arith.truncf %425 : vector<8x128xf32> to vector<8x128xbf16>
    %c1_144 = arith.constant 1 : index
    %c0_145 = arith.constant 0 : index
    %c0_146 = arith.constant 0 : index
    %433 = vector.load %arg13[%c1_144, %c0_145, %c0_146] : memref<2x128x512xbf16, #tpu.memory_space<vmem>>, vector<1x128x512xbf16>
    %434 = vector.shape_cast %433 : vector<1x128x512xbf16> to vector<128x512xbf16>
    %cst_147 = arith.constant dense<0.000000e+00> : vector<8x512xf32>
    %435 = tpu.matmul %432, %434, %cst_147 {dimension_numbers = #tpu.dot_dimension_numbers<[1], [0], [0], [1], [0, 0, 1, 1], [], []>} : vector<8x128xbf16>, vector<128x512xbf16>, vector<8x512xf32> -> vector<8x512xf32>
    %436 = arith.addf %431, %435 : vector<8x512xf32>
    %437 = vector.extract_strided_slice %436 {offsets = [0, 0], sizes = [8, 128], strides = [1, 1]} : vector<8x512xf32> to vector<8x128xf32>
    %438 = arith.negf %437 : vector<8x128xf32>
    %439 = math.exp %438 : vector<8x128xf32>
    %cst_148 = arith.constant 1.000000e+00 : f32
    %440 = vector.broadcast %cst_148 : f32 to vector<8x128xf32>
    %441 = arith.addf %440, %439 : vector<8x128xf32>
    %442 = arith.divf %440, %441 : vector<8x128xf32>
    %443 = vector.extract_strided_slice %436 {offsets = [0, 128], sizes = [8, 128], strides = [1, 1]} : vector<8x512xf32> to vector<8x128xf32>
    %444 = arith.negf %443 : vector<8x128xf32>
    %445 = math.exp %444 : vector<8x128xf32>
    %cst_149 = arith.constant 1.000000e+00 : f32
    %446 = vector.broadcast %cst_149 : f32 to vector<8x128xf32>
    %447 = arith.addf %446, %445 : vector<8x128xf32>
    %448 = arith.divf %446, %447 : vector<8x128xf32>
    %449 = vector.extract_strided_slice %436 {offsets = [0, 256], sizes = [8, 128], strides = [1, 1]} : vector<8x512xf32> to vector<8x128xf32>
    %450 = math.tanh %449 : vector<8x128xf32>
    %451 = vector.extract_strided_slice %436 {offsets = [0, 384], sizes = [8, 128], strides = [1, 1]} : vector<8x512xf32> to vector<8x128xf32>
    %452 = arith.negf %451 : vector<8x128xf32>
    %453 = math.exp %452 : vector<8x128xf32>
    %cst_150 = arith.constant 1.000000e+00 : f32
    %454 = vector.broadcast %cst_150 : f32 to vector<8x128xf32>
    %455 = arith.addf %454, %453 : vector<8x128xf32>
    %456 = arith.divf %454, %455 : vector<8x128xf32>
    %457 = arith.mulf %448, %423 : vector<8x128xf32>
    %458 = arith.mulf %442, %450 : vector<8x128xf32>
    %459 = arith.addf %457, %458 : vector<8x128xf32>
    %460 = math.tanh %459 : vector<8x128xf32>
    %461 = arith.mulf %456, %460 : vector<8x128xf32>
    %462 = arith.index_cast %429 : i32 to index
    %c0_151 = arith.constant 0 : index
    %463 = vector.load %arg11[%462, %c0_151] : memref<64x128xf32, #tpu.memory_space<vmem>>, vector<8x128xf32>
    tpu.vector_store %arg11[%462, %c0_151], %461 {strides = array<i32>} : memref<64x128xf32, #tpu.memory_space<vmem>>, vector<8x128xf32>,
    %c4_i32_152 = arith.constant 4 : i32
    %c8_i32_153 = arith.constant 8 : i32
    %464 = arith.muli %c4_i32_152, %c8_i32_153 : i32
    %465 = tpu.assume_multiple %464, 8 : i32
    %466 = arith.index_cast %465 : i32 to index
    %c0_154 = arith.constant 0 : index
    %467 = vector.load %arg12[%466, %c0_154] : memref<64x512xf32, #tpu.memory_space<vmem>>, vector<8x512xf32>
    %468 = arith.truncf %461 : vector<8x128xf32> to vector<8x128xbf16>
    %c1_155 = arith.constant 1 : index
    %c0_156 = arith.constant 0 : index
    %c0_157 = arith.constant 0 : index
    %469 = vector.load %arg13[%c1_155, %c0_156, %c0_157] : memref<2x128x512xbf16, #tpu.memory_space<vmem>>, vector<1x128x512xbf16>
    %470 = vector.shape_cast %469 : vector<1x128x512xbf16> to vector<128x512xbf16>
    %cst_158 = arith.constant dense<0.000000e+00> : vector<8x512xf32>
    %471 = tpu.matmul %468, %470, %cst_158 {dimension_numbers = #tpu.dot_dimension_numbers<[1], [0], [0], [1], [0, 0, 1, 1], [], []>} : vector<8x128xbf16>, vector<128x512xbf16>, vector<8x512xf32> -> vector<8x512xf32>
    %472 = arith.addf %467, %471 : vector<8x512xf32>
    %473 = vector.extract_strided_slice %472 {offsets = [0, 0], sizes = [8, 128], strides = [1, 1]} : vector<8x512xf32> to vector<8x128xf32>
    %474 = arith.negf %473 : vector<8x128xf32>
    %475 = math.exp %474 : vector<8x128xf32>
    %cst_159 = arith.constant 1.000000e+00 : f32
    %476 = vector.broadcast %cst_159 : f32 to vector<8x128xf32>
    %477 = arith.addf %476, %475 : vector<8x128xf32>
    %478 = arith.divf %476, %477 : vector<8x128xf32>
    %479 = vector.extract_strided_slice %472 {offsets = [0, 128], sizes = [8, 128], strides = [1, 1]} : vector<8x512xf32> to vector<8x128xf32>
    %480 = arith.negf %479 : vector<8x128xf32>
    %481 = math.exp %480 : vector<8x128xf32>
    %cst_160 = arith.constant 1.000000e+00 : f32
    %482 = vector.broadcast %cst_160 : f32 to vector<8x128xf32>
    %483 = arith.addf %482, %481 : vector<8x128xf32>
    %484 = arith.divf %482, %483 : vector<8x128xf32>
    %485 = vector.extract_strided_slice %472 {offsets = [0, 256], sizes = [8, 128], strides = [1, 1]} : vector<8x512xf32> to vector<8x128xf32>
    %486 = math.tanh %485 : vector<8x128xf32>
    %487 = vector.extract_strided_slice %472 {offsets = [0, 384], sizes = [8, 128], strides = [1, 1]} : vector<8x512xf32> to vector<8x128xf32>
    %488 = arith.negf %487 : vector<8x128xf32>
    %489 = math.exp %488 : vector<8x128xf32>
    %cst_161 = arith.constant 1.000000e+00 : f32
    %490 = vector.broadcast %cst_161 : f32 to vector<8x128xf32>
    %491 = arith.addf %490, %489 : vector<8x128xf32>
    %492 = arith.divf %490, %491 : vector<8x128xf32>
    %493 = arith.mulf %484, %459 : vector<8x128xf32>
    %494 = arith.mulf %478, %486 : vector<8x128xf32>
    %495 = arith.addf %493, %494 : vector<8x128xf32>
    %496 = math.tanh %495 : vector<8x128xf32>
    %497 = arith.mulf %492, %496 : vector<8x128xf32>
    %498 = arith.index_cast %465 : i32 to index
    %c0_162 = arith.constant 0 : index
    %499 = vector.load %arg11[%498, %c0_162] : memref<64x128xf32, #tpu.memory_space<vmem>>, vector<8x128xf32>
    tpu.vector_store %arg11[%498, %c0_162], %497 {strides = array<i32>} : memref<64x128xf32, #tpu.memory_space<vmem>>, vector<8x128xf32>,
    %c5_i32_163 = arith.constant 5 : i32
    %c8_i32_164 = arith.constant 8 : i32
    %500 = arith.muli %c5_i32_163, %c8_i32_164 : i32
    %501 = tpu.assume_multiple %500, 8 : i32
    %502 = arith.index_cast %501 : i32 to index
    %c0_165 = arith.constant 0 : index
    %503 = vector.load %arg12[%502, %c0_165] : memref<64x512xf32, #tpu.memory_space<vmem>>, vector<8x512xf32>
    %504 = arith.truncf %497 : vector<8x128xf32> to vector<8x128xbf16>
    %c1_166 = arith.constant 1 : index
    %c0_167 = arith.constant 0 : index
    %c0_168 = arith.constant 0 : index
    %505 = vector.load %arg13[%c1_166, %c0_167, %c0_168] : memref<2x128x512xbf16, #tpu.memory_space<vmem>>, vector<1x128x512xbf16>
    %506 = vector.shape_cast %505 : vector<1x128x512xbf16> to vector<128x512xbf16>
    %cst_169 = arith.constant dense<0.000000e+00> : vector<8x512xf32>
    %507 = tpu.matmul %504, %506, %cst_169 {dimension_numbers = #tpu.dot_dimension_numbers<[1], [0], [0], [1], [0, 0, 1, 1], [], []>} : vector<8x128xbf16>, vector<128x512xbf16>, vector<8x512xf32> -> vector<8x512xf32>
    %508 = arith.addf %503, %507 : vector<8x512xf32>
    %509 = vector.extract_strided_slice %508 {offsets = [0, 0], sizes = [8, 128], strides = [1, 1]} : vector<8x512xf32> to vector<8x128xf32>
    %510 = arith.negf %509 : vector<8x128xf32>
    %511 = math.exp %510 : vector<8x128xf32>
    %cst_170 = arith.constant 1.000000e+00 : f32
    %512 = vector.broadcast %cst_170 : f32 to vector<8x128xf32>
    %513 = arith.addf %512, %511 : vector<8x128xf32>
    %514 = arith.divf %512, %513 : vector<8x128xf32>
    %515 = vector.extract_strided_slice %508 {offsets = [0, 128], sizes = [8, 128], strides = [1, 1]} : vector<8x512xf32> to vector<8x128xf32>
    %516 = arith.negf %515 : vector<8x128xf32>
    %517 = math.exp %516 : vector<8x128xf32>
    %cst_171 = arith.constant 1.000000e+00 : f32
    %518 = vector.broadcast %cst_171 : f32 to vector<8x128xf32>
    %519 = arith.addf %518, %517 : vector<8x128xf32>
    %520 = arith.divf %518, %519 : vector<8x128xf32>
    %521 = vector.extract_strided_slice %508 {offsets = [0, 256], sizes = [8, 128], strides = [1, 1]} : vector<8x512xf32> to vector<8x128xf32>
    %522 = math.tanh %521 : vector<8x128xf32>
    %523 = vector.extract_strided_slice %508 {offsets = [0, 384], sizes = [8, 128], strides = [1, 1]} : vector<8x512xf32> to vector<8x128xf32>
    %524 = arith.negf %523 : vector<8x128xf32>
    %525 = math.exp %524 : vector<8x128xf32>
    %cst_172 = arith.constant 1.000000e+00 : f32
    %526 = vector.broadcast %cst_172 : f32 to vector<8x128xf32>
    %527 = arith.addf %526, %525 : vector<8x128xf32>
    %528 = arith.divf %526, %527 : vector<8x128xf32>
    %529 = arith.mulf %520, %495 : vector<8x128xf32>
    %530 = arith.mulf %514, %522 : vector<8x128xf32>
    %531 = arith.addf %529, %530 : vector<8x128xf32>
    %532 = math.tanh %531 : vector<8x128xf32>
    %533 = arith.mulf %528, %532 : vector<8x128xf32>
    %534 = arith.index_cast %501 : i32 to index
    %c0_173 = arith.constant 0 : index
    %535 = vector.load %arg11[%534, %c0_173] : memref<64x128xf32, #tpu.memory_space<vmem>>, vector<8x128xf32>
    tpu.vector_store %arg11[%534, %c0_173], %533 {strides = array<i32>} : memref<64x128xf32, #tpu.memory_space<vmem>>, vector<8x128xf32>,
    %c6_i32_174 = arith.constant 6 : i32
    %c8_i32_175 = arith.constant 8 : i32
    %536 = arith.muli %c6_i32_174, %c8_i32_175 : i32
    %537 = tpu.assume_multiple %536, 8 : i32
    %538 = arith.index_cast %537 : i32 to index
    %c0_176 = arith.constant 0 : index
    %539 = vector.load %arg12[%538, %c0_176] : memref<64x512xf32, #tpu.memory_space<vmem>>, vector<8x512xf32>
    %540 = arith.truncf %533 : vector<8x128xf32> to vector<8x128xbf16>
    %c1_177 = arith.constant 1 : index
    %c0_178 = arith.constant 0 : index
    %c0_179 = arith.constant 0 : index
    %541 = vector.load %arg13[%c1_177, %c0_178, %c0_179] : memref<2x128x512xbf16, #tpu.memory_space<vmem>>, vector<1x128x512xbf16>
    %542 = vector.shape_cast %541 : vector<1x128x512xbf16> to vector<128x512xbf16>
    %cst_180 = arith.constant dense<0.000000e+00> : vector<8x512xf32>
    %543 = tpu.matmul %540, %542, %cst_180 {dimension_numbers = #tpu.dot_dimension_numbers<[1], [0], [0], [1], [0, 0, 1, 1], [], []>} : vector<8x128xbf16>, vector<128x512xbf16>, vector<8x512xf32> -> vector<8x512xf32>
    %544 = arith.addf %539, %543 : vector<8x512xf32>
    %545 = vector.extract_strided_slice %544 {offsets = [0, 0], sizes = [8, 128], strides = [1, 1]} : vector<8x512xf32> to vector<8x128xf32>
    %546 = arith.negf %545 : vector<8x128xf32>
    %547 = math.exp %546 : vector<8x128xf32>
    %cst_181 = arith.constant 1.000000e+00 : f32
    %548 = vector.broadcast %cst_181 : f32 to vector<8x128xf32>
    %549 = arith.addf %548, %547 : vector<8x128xf32>
    %550 = arith.divf %548, %549 : vector<8x128xf32>
    %551 = vector.extract_strided_slice %544 {offsets = [0, 128], sizes = [8, 128], strides = [1, 1]} : vector<8x512xf32> to vector<8x128xf32>
    %552 = arith.negf %551 : vector<8x128xf32>
    %553 = math.exp %552 : vector<8x128xf32>
    %cst_182 = arith.constant 1.000000e+00 : f32
    %554 = vector.broadcast %cst_182 : f32 to vector<8x128xf32>
    %555 = arith.addf %554, %553 : vector<8x128xf32>
    %556 = arith.divf %554, %555 : vector<8x128xf32>
    %557 = vector.extract_strided_slice %544 {offsets = [0, 256], sizes = [8, 128], strides = [1, 1]} : vector<8x512xf32> to vector<8x128xf32>
    %558 = math.tanh %557 : vector<8x128xf32>
    %559 = vector.extract_strided_slice %544 {offsets = [0, 384], sizes = [8, 128], strides = [1, 1]} : vector<8x512xf32> to vector<8x128xf32>
    %560 = arith.negf %559 : vector<8x128xf32>
    %561 = math.exp %560 : vector<8x128xf32>
    %cst_183 = arith.constant 1.000000e+00 : f32
    %562 = vector.broadcast %cst_183 : f32 to vector<8x128xf32>
    %563 = arith.addf %562, %561 : vector<8x128xf32>
    %564 = arith.divf %562, %563 : vector<8x128xf32>
    %565 = arith.mulf %556, %531 : vector<8x128xf32>
    %566 = arith.mulf %550, %558 : vector<8x128xf32>
    %567 = arith.addf %565, %566 : vector<8x128xf32>
    %568 = math.tanh %567 : vector<8x128xf32>
    %569 = arith.mulf %564, %568 : vector<8x128xf32>
    %570 = arith.index_cast %537 : i32 to index
    %c0_184 = arith.constant 0 : index
    %571 = vector.load %arg11[%570, %c0_184] : memref<64x128xf32, #tpu.memory_space<vmem>>, vector<8x128xf32>
    tpu.vector_store %arg11[%570, %c0_184], %569 {strides = array<i32>} : memref<64x128xf32, #tpu.memory_space<vmem>>, vector<8x128xf32>,
    %c7_i32_185 = arith.constant 7 : i32
    %c8_i32_186 = arith.constant 8 : i32
    %572 = arith.muli %c7_i32_185, %c8_i32_186 : i32
    %573 = tpu.assume_multiple %572, 8 : i32
    %574 = arith.index_cast %573 : i32 to index
    %c0_187 = arith.constant 0 : index
    %575 = vector.load %arg12[%574, %c0_187] : memref<64x512xf32, #tpu.memory_space<vmem>>, vector<8x512xf32>
    %576 = arith.truncf %569 : vector<8x128xf32> to vector<8x128xbf16>
    %c1_188 = arith.constant 1 : index
    %c0_189 = arith.constant 0 : index
    %c0_190 = arith.constant 0 : index
    %577 = vector.load %arg13[%c1_188, %c0_189, %c0_190] : memref<2x128x512xbf16, #tpu.memory_space<vmem>>, vector<1x128x512xbf16>
    %578 = vector.shape_cast %577 : vector<1x128x512xbf16> to vector<128x512xbf16>
    %cst_191 = arith.constant dense<0.000000e+00> : vector<8x512xf32>
    %579 = tpu.matmul %576, %578, %cst_191 {dimension_numbers = #tpu.dot_dimension_numbers<[1], [0], [0], [1], [0, 0, 1, 1], [], []>} : vector<8x128xbf16>, vector<128x512xbf16>, vector<8x512xf32> -> vector<8x512xf32>
    %580 = arith.addf %575, %579 : vector<8x512xf32>
    %581 = vector.extract_strided_slice %580 {offsets = [0, 0], sizes = [8, 128], strides = [1, 1]} : vector<8x512xf32> to vector<8x128xf32>
    %582 = arith.negf %581 : vector<8x128xf32>
    %583 = math.exp %582 : vector<8x128xf32>
    %cst_192 = arith.constant 1.000000e+00 : f32
    %584 = vector.broadcast %cst_192 : f32 to vector<8x128xf32>
    %585 = arith.addf %584, %583 : vector<8x128xf32>
    %586 = arith.divf %584, %585 : vector<8x128xf32>
    %587 = vector.extract_strided_slice %580 {offsets = [0, 128], sizes = [8, 128], strides = [1, 1]} : vector<8x512xf32> to vector<8x128xf32>
    %588 = arith.negf %587 : vector<8x128xf32>
    %589 = math.exp %588 : vector<8x128xf32>
    %cst_193 = arith.constant 1.000000e+00 : f32
    %590 = vector.broadcast %cst_193 : f32 to vector<8x128xf32>
    %591 = arith.addf %590, %589 : vector<8x128xf32>
    %592 = arith.divf %590, %591 : vector<8x128xf32>
    %593 = vector.extract_strided_slice %580 {offsets = [0, 256], sizes = [8, 128], strides = [1, 1]} : vector<8x512xf32> to vector<8x128xf32>
    %594 = math.tanh %593 : vector<8x128xf32>
    %595 = vector.extract_strided_slice %580 {offsets = [0, 384], sizes = [8, 128], strides = [1, 1]} : vector<8x512xf32> to vector<8x128xf32>
    %596 = arith.negf %595 : vector<8x128xf32>
    %597 = math.exp %596 : vector<8x128xf32>
    %cst_194 = arith.constant 1.000000e+00 : f32
    %598 = vector.broadcast %cst_194 : f32 to vector<8x128xf32>
    %599 = arith.addf %598, %597 : vector<8x128xf32>
    %600 = arith.divf %598, %599 : vector<8x128xf32>
    %601 = arith.mulf %592, %567 : vector<8x128xf32>
    %602 = arith.mulf %586, %594 : vector<8x128xf32>
    %603 = arith.addf %601, %602 : vector<8x128xf32>
    %604 = math.tanh %603 : vector<8x128xf32>
    %605 = arith.mulf %600, %604 : vector<8x128xf32>
    %606 = arith.index_cast %573 : i32 to index
    %c0_195 = arith.constant 0 : index
    %607 = vector.load %arg11[%606, %c0_195] : memref<64x128xf32, #tpu.memory_space<vmem>>, vector<8x128xf32>
    tpu.vector_store %arg11[%606, %c0_195], %605 {strides = array<i32>} : memref<64x128xf32, #tpu.memory_space<vmem>>, vector<8x128xf32>,
    %c8_i32_196 = arith.constant 8 : i32
    %c1_197 = arith.constant 1 : index
    %c0_198 = arith.constant 0 : index
    %c0_199 = arith.constant 0 : index
    %608 = vector.load %arg9[%c1_197, %c0_198, %c0_199] : memref<2x8x128xf32, #tpu.memory_space<vmem>>, vector<1x8x128xf32>
    %609 = vector.shape_cast %608 : vector<1x8x128xf32> to vector<8x128xf32>
    %610 = vector.shape_cast %605 : vector<8x128xf32> to vector<1x8x128xf32>
    tpu.vector_store %arg9[%c1_197, %c0_198, %c0_199], %610 {strides = array<i32>} : memref<2x8x128xf32, #tpu.memory_space<vmem>>, vector<1x8x128xf32>,
    %c1_200 = arith.constant 1 : index
    %c0_201 = arith.constant 0 : index
    %c0_202 = arith.constant 0 : index
    %611 = vector.load %arg10[%c1_200, %c0_201, %c0_202] : memref<2x8x128xf32, #tpu.memory_space<vmem>>, vector<1x8x128xf32>
    %612 = vector.shape_cast %611 : vector<1x8x128xf32> to vector<8x128xf32>
    %613 = vector.shape_cast %603 : vector<8x128xf32> to vector<1x8x128xf32>
    tpu.vector_store %arg10[%c1_200, %c0_201, %c0_202], %613 {strides = array<i32>} : memref<2x8x128xf32, #tpu.memory_space<vmem>>, vector<1x8x128xf32>,
    %c1_i32_203 = arith.constant 1 : i32
    %614 = tpu.memref_slice %arg15[%c1_i32_203] : memref<2x!tpu.dma_semaphore, #tpu.memory_space<semaphore_mem>> -> memref<1x!tpu.dma_semaphore, #tpu.memory_space<semaphore_mem>>
    %615 = tpu.memref_squeeze %614 : memref<1x!tpu.dma_semaphore, #tpu.memory_space<semaphore_mem>> -> memref<!tpu.dma_semaphore, #tpu.memory_space<semaphore_mem>>
    tpu.wait_dma2 semaphore(%615 : memref<!tpu.dma_semaphore, #tpu.memory_space<semaphore_mem>>) src(%arg6 : memref<128x128xbf16, #tpu.memory_space<any>>) dst(%arg14 : memref<128x128xbf16, #tpu.memory_space<vmem>>)
    %c0_204 = arith.constant 0 : index
    %c0_205 = arith.constant 0 : index
    %616 = vector.load %arg11[%c0_204, %c0_205] : memref<64x128xf32, #tpu.memory_space<vmem>>, vector<64x128xf32>
    %617 = arith.truncf %616 : vector<64x128xf32> to vector<64x128xbf16>
    %c0_206 = arith.constant 0 : index
    %c0_207 = arith.constant 0 : index
    %618 = vector.load %arg14[%c0_206, %c0_207] : memref<128x128xbf16, #tpu.memory_space<vmem>>, vector<128x128xbf16>
    %cst_208 = arith.constant dense<0.000000e+00> : vector<64x128xf32>
    %619 = tpu.matmul %617, %618, %cst_208 {dimension_numbers = #tpu.dot_dimension_numbers<[1], [0], [0], [1], [0, 0, 1, 1], [], []>} : vector<64x128xbf16>, vector<128x128xbf16>, vector<64x128xf32> -> vector<64x128xf32>
    %c0_209 = arith.constant 0 : index
    %c0_210 = arith.constant 0 : index
    %620 = vector.load %arg7[%c0_209, %c0_210] : memref<1x128xf32, #tpu.memory_space<vmem>>, vector<1x128xf32>
    %621 = vector.broadcast %620 : vector<1x128xf32> to vector<64x128xf32>
    %622 = arith.addf %619, %621 : vector<64x128xf32>
    %c0_211 = arith.constant 0 : index
    %c0_212 = arith.constant 0 : index
    %623 = vector.load %arg8[%c0_211, %c0_212] : memref<64x128xf32, #tpu.memory_space<vmem>>, vector<64x128xf32>
    tpu.vector_store %arg8[%c0_211, %c0_212], %622 {strides = array<i32>} : memref<64x128xf32, #tpu.memory_space<vmem>>, vector<64x128xf32>,
    return
  }
  func.func @transform_0(%arg0: i32) -> (i32, i32) {
    %c0_i32 = arith.constant 0 : i32
    %c0_i32_0 = arith.constant 0 : i32
    %c0_i32_1 = arith.constant 0 : i32
    return %c0_i32, %c0_i32_0 : i32, i32
  }
  func.func @transform_1(%arg0: i32) -> (i32, i32, i32) {
    %c0_i32 = arith.constant 0 : i32
    %c0_i32_0 = arith.constant 0 : i32
    %c0_i32_1 = arith.constant 0 : i32
    %c0_i32_2 = arith.constant 0 : i32
    return %c0_i32, %c0_i32_0, %c0_i32_1 : i32, i32, i32
  }
  func.func @transform_2(%arg0: i32) -> (i32, i32) {
    %c0_i32 = arith.constant 0 : i32
    %c0_i32_0 = arith.constant 0 : i32
    %c0_i32_1 = arith.constant 0 : i32
    return %c0_i32, %c0_i32_0 : i32, i32
  }
  func.func @transform_4(%arg0: i32) -> (i32, i32) {
    %c0_i32 = arith.constant 0 : i32
    %c0_i32_0 = arith.constant 0 : i32
    %c0_i32_1 = arith.constant 0 : i32
    return %c0_i32, %c0_i32_0 : i32, i32
  }
  func.func @transform_6(%arg0: i32) -> (i32, i32) {
    %c0_i32 = arith.constant 0 : i32
    %c0_i32_0 = arith.constant 0 : i32
    %c0_i32_1 = arith.constant 0 : i32
    return %c0_i32, %c0_i32_0 : i32, i32
  }
  func.func @transform_7(%arg0: i32) -> (i32, i32) {
    %c0_i32 = arith.constant 0 : i32
    %c0_i32_0 = arith.constant 0 : i32
    %c0_i32_1 = arith.constant 0 : i32
    return %c0_i32, %c0_i32_0 : i32, i32
  }
  func.func @transform_8(%arg0: i32) -> (i32, i32, i32) {
    %c0_i32 = arith.constant 0 : i32
    %c0_i32_0 = arith.constant 0 : i32
    %c0_i32_1 = arith.constant 0 : i32
    %c0_i32_2 = arith.constant 0 : i32
    return %c0_i32, %c0_i32_0, %c0_i32_1 : i32, i32, i32
  }
  func.func @transform_9(%arg0: i32) -> (i32, i32, i32) {
    %c0_i32 = arith.constant 0 : i32
    %c0_i32_0 = arith.constant 0 : i32
    %c0_i32_1 = arith.constant 0 : i32
    %c0_i32_2 = arith.constant 0 : i32
    return %c0_i32, %c0_i32_0, %c0_i32_1 : i32, i32, i32
  }
}

</mosaic_0001>

<llo_original>
// kernel: lstm_text_generator_forward.1
$region0: #{lstm_text_generator_forward.1}
  #allocation0 [shape = 'u32[]', space=smem, size = 0x4, offset = 0x4, fixed_abs, tag = 'smem constant byte address 0x4 - core index']
  #allocation1 [shape = 'u32[72,128]{1,0:T(1,128)}', space=vmem, size = 0x9000, scoped, tag = 'internal scratch']
  #allocation2 [shape = 'f32[64,128]{1,0:T(8,128)}', space=vmem, size = 0x8000, scoped, tag = 'scratch operand']
  #allocation3 [shape = 'f32[64,512]{1,0:T(8,128)}', space=vmem, size = 0x20000, scoped, tag = 'scratch operand']
  #allocation4 [shape = 'bf16[2,128,512]{2,1,0:T(8,128)(2,1)}', space=vmem, size = 0x40000, scoped, tag = 'scratch operand']
  #allocation5 [shape = 'bf16[128,128]{1,0:T(8,128)(2,1)}', space=vmem, size = 0x8000, scoped, tag = 'scratch operand']
  #allocation6 [shape = 's32[2]{0}', space=sflag, size = 0x8, scoped, tag = 'scratch operand']
  #allocation9 [shape = 's32[]', space=sflag, size = 0x4, offset = 0, fixed_abs, tag = 'sflag constant byte address 0x0 - dummy sync flag']
  #allocation10 [shape = 's32[]', space=sflag, size = 0x4, offset = 0, fixed_abs, tag = 'sflag constant byte address 0x0 - dummy sync flag']
  #allocation11 [shape = 'u32[]', space=smem, size = 0x4, offset = 0x44, fixed_abs, tag = 'smem constant byte address 0x44 - assertion arg 0']
  #allocation12 [shape = 'u32[]', space=smem, size = 0x4, offset = 0x48, fixed_abs, tag = 'smem constant byte address 0x48 - assertion arg 1']
  #allocation13 [shape = 's32[]', space=sflag, size = 0x4, offset = 0, fixed_abs, tag = 'sflag constant byte address 0x0 - dummy sync flag']
  %s0 = inlined_call_operand.vmem [shape: f32[64,128], index: 0, kind: input, shape index: {}]
  %s1 = inlined_call_operand.hbm [shape: bf16[2,128,512], index: 1, kind: input, shape index: {}]
  %s2 = inlined_call_operand.vmem [shape: f32[1,512], index: 2, kind: input, shape index: {}]
  %s3 = inlined_call_operand.hbm [shape: bf16[2,128,512], index: 3, kind: input, shape index: {}]
  %s4 = inlined_call_operand.vmem [shape: f32[1,512], index: 4, kind: input, shape index: {}]
  %s5 = inlined_call_operand.vmem [shape: bf16[128,128], index: 5, kind: input, shape index: {}]
  %s6 = inlined_call_operand.vmem [shape: f32[1,128], index: 6, kind: input, shape index: {}]
  %s7 = inlined_call_operand.vmem [shape: f32[64,128], index: 7, kind: output, shape index: {0}]
  %s8 = inlined_call_operand.vmem [shape: f32[2,8,128], index: 8, kind: output, shape index: {1}]
  %s9 = inlined_call_operand.vmem [shape: f32[2,8,128], index: 9, kind: output, shape index: {2}]
  %10 = xla_tuple %s7, %s8, %s9
  %s11 = sld [smem:[#allocation0]]
  $region73: #{lstm_text_generator_forward.1} parent=0
    _
  %s13 = ssub.s32 1, %s11
  %s14 = scalar_select 0, %s13, %s11
  $region1: #{lstm_text_generator_forward.1} parent=0
    #allocation7 [shape = 'u8[262144]{0}', space=vmem, size = 0x40000, scoped, tag = 'input window, operand 1, single buffered']
    #allocation8 [shape = 's32[1]{0}', space=sflag, size = 0x4, scoped, tag = 'scoped memory for lstm_text_generator_forward.1']
    %15 = vsyncpa [#allocation8], 0
    // Predicated region
    $region2: #{lstm_text_generator_forward.1} parent=1 // pred_check
      _
    $region3: #{lstm_text_generator_forward.1} parent=1 // pred_check_branch
      %17 = sbr.rel (0) target = $region5
    $region4: #{lstm_text_generator_forward.1} parent=1 // pred_region
      _
    $region5: #{lstm_text_generator_forward.1} parent=1 // pred_fallthru
      _
    // Predicated region
    $region6: #{lstm_text_generator_forward.1} parent=1 // pred_check
      _
    $region7: #{lstm_text_generator_forward.1} parent=1 // pred_check_branch
      %19 = sbr.rel (0) target = $region9
    $region8: #{lstm_text_generator_forward.1} parent=1 // pred_region
      %21 = vsyncadd [#allocation8], 0
      %s22 = sshll.u32 %s1, 4
      %s23 = int_to_ptr.hbm [resolvable:$true] %s22
      %s24 = sshll.u32 [#allocation7], 4
      %s25 = int_to_ptr.vmem [resolvable:$true] %s24
      %30 = dma.hbm_to_vmem [thread:$0]  %s23, 8192, %s25, [#allocation8], 256, 256, 16
    $region9: #{lstm_text_generator_forward.1} parent=1 // pred_fallthru
      _
    // Predicated region
    $region10: #{lstm_text_generator_forward.1} parent=1 // pred_check
      _
    $region11: #{lstm_text_generator_forward.1} parent=1 // pred_check_branch
      %32 = sbr.rel (0) target = $region13
    $region12: #{lstm_text_generator_forward.1} parent=1 // pred_region
      _
    $region13: #{lstm_text_generator_forward.1} parent=1 // pred_fallthru
      _
    // Predicated region
    $region14: #{lstm_text_generator_forward.1} parent=1 // pred_check
      _
    $region15: #{lstm_text_generator_forward.1} parent=1 // pred_check_branch
      %34 = sbr.rel (0) target = $region17
    $region16: #{lstm_text_generator_forward.1} parent=1 // pred_region
      _
    $region17: #{lstm_text_generator_forward.1} parent=1 // pred_fallthru
      _
    // Predicated region
    $region18: #{lstm_text_generator_forward.1} parent=1 // pred_check
      _
    $region19: #{lstm_text_generator_forward.1} parent=1 // pred_check_branch
      %36 = sbr.rel (0) target = $region21
    $region20: #{lstm_text_generator_forward.1} parent=1 // pred_region
      _
    $region21: #{lstm_text_generator_forward.1} parent=1 // pred_fallthru
      _
    // Predicated region
    $region22: #{lstm_text_generator_forward.1} parent=1 // pred_check
      _
    $region23: #{lstm_text_generator_forward.1} parent=1 // pred_check_branch
      %38 = sbr.rel (0) target = $region25
    $region24: #{lstm_text_generator_forward.1} parent=1 // pred_region
      %40 = dma.done [#allocation8], 8192
    $region25: #{lstm_text_generator_forward.1} parent=1 // pred_fallthru
      _
    // Predicated region
    $region26: #{lstm_text_generator_forward.1} parent=1 // pred_check
      _
    $region27: #{lstm_text_generator_forward.1} parent=1 // pred_check_branch
      %43 = sbr.rel target = $region29
    $region28: #{lstm_text_generator_forward.1} parent=1 // pred_region
      %44 = sst [smem:[#allocation11]] [#allocation10]
      %45 = sst [smem:[#allocation12]] [#allocation9]
    $region29: #{lstm_text_generator_forward.1} parent=1 // pred_fallthru
      _
    %47 = shalt.err (0)
    %s49 = sshll.u32 %s3, 4
    %s50 = int_to_ptr.hbm [resolvable:$true] %s49
    %s51 = sshll.u32 [#allocation4], 4
    %s52 = int_to_ptr.vmem [resolvable:$true] %s51
    %54 = dma.hbm_to_vmem [thread:$0]  %s50, 8192, %s52, [#allocation6]
    %s55 = scalar_lea.sflag [#allocation6], 1
    // Predicated region
    $region30: #{lstm_text_generator_forward.1} parent=1 // pred_check
      _
    $region31: #{lstm_text_generator_forward.1} parent=1 // pred_check_branch
      %57 = sbr.rel (0) target = $region33
    $region32: #{lstm_text_generator_forward.1} parent=1 // pred_region
      loop: start=0, step=1, limit=1
      $region34: #{lstm_text_generator_forward.1} parent=32 // loop_pre_header
        _
      $region35: #{lstm_text_generator_forward.1} parent=32 // loop_header
        %s59 = sphi 0, %s63
        %p60 = scmp.ge.s32.totalorder %s59, 1
        %s64 = sphi %s5, %s5
        %s65 = sphi [#allocation5], [#allocation5]
      $region36: #{lstm_text_generator_forward.1} parent=32 // loop_header_branch
        %62 = sbr.rel (%p60) target = $region40
      $region37: #{lstm_text_generator_forward.1} parent=32 // loop_body
        %v66 = vld [vmem:[%s64] sm:$0xff]
        %67 = vst [vmem:[%s65] sm:$0xff] %v66
        %v68 = vld [vmem:[%s64 + $0x8] sm:$0xff]
        %69 = vst [vmem:[%s65 + $0x8] sm:$0xff] %v68
        %v70 = vld [vmem:[%s64 + $0x10] sm:$0xff]
        %71 = vst [vmem:[%s65 + $0x10] sm:$0xff] %v70
        %v72 = vld [vmem:[%s64 + $0x18] sm:$0xff]
        %73 = vst [vmem:[%s65 + $0x18] sm:$0xff] %v72
        %v74 = vld [vmem:[%s64 + $0x20] sm:$0xff]
        %75 = vst [vmem:[%s65 + $0x20] sm:$0xff] %v74
        %v76 = vld [vmem:[%s64 + $0x28] sm:$0xff]
        %77 = vst [vmem:[%s65 + $0x28] sm:$0xff] %v76
        %v78 = vld [vmem:[%s64 + $0x30] sm:$0xff]
        %79 = vst [vmem:[%s65 + $0x30] sm:$0xff] %v78
        %v80 = vld [vmem:[%s64 + $0x38] sm:$0xff]
        %81 = vst [vmem:[%s65 + $0x38] sm:$0xff] %v80
      $region38: #{lstm_text_generator_forward.1} parent=32 // loop_footer
        %s63 = sadd.s32 1, %s59
      $region39: #{lstm_text_generator_forward.1} parent=32 // loop_footer_branch
        %58 = sbr.rel target = $region35
      $region40: #{lstm_text_generator_forward.1} parent=32 // loop_exit
        _
    $region33: #{lstm_text_generator_forward.1} parent=1 // pred_fallthru
      _
    // Predicated region
    $region41: #{lstm_text_generator_forward.1} parent=1 // pred_check
      _
    $region42: #{lstm_text_generator_forward.1} parent=1 // pred_check_branch
      %83 = sbr.rel target = $region44
    $region43: #{lstm_text_generator_forward.1} parent=1 // pred_region
      _
    $region44: #{lstm_text_generator_forward.1} parent=1 // pred_fallthru
      _
    // Predicated region
    $region45: #{lstm_text_generator_forward.1} parent=1 // pred_check
      _
    $region46: #{lstm_text_generator_forward.1} parent=1 // pred_check_branch
      %86 = sbr.rel (0) target = $region48
    $region47: #{lstm_text_generator_forward.1} parent=1 // pred_region
      %87 = vsyncadd %s55, 1024
    $region48: #{lstm_text_generator_forward.1} parent=1 // pred_fallthru
      _
    %v88 = vld [vmem:[%s0] sm:$0xff]
    %v89 = vld [vmem:[%s0 + $0x8] sm:$0xff]
    %v90 = vld [vmem:[%s0 + $0x10] sm:$0xff]
    %v91 = vld [vmem:[%s0 + $0x18] sm:$0xff]
    %v92 = vld [vmem:[%s0 + $0x20] sm:$0xff]
    %v93 = vld [vmem:[%s0 + $0x28] sm:$0xff]
    %v94 = vld [vmem:[%s0 + $0x30] sm:$0xff]
    %v95 = vld [vmem:[%s0 + $0x38] sm:$0xff]
    %v96 = vpack.c.bf16 %v89, %v88
    %v97 = vpack.c.bf16 %v91, %v90
    %v98 = vpack.c.bf16 %v93, %v92
    %v99 = vpack.c.bf16 %v95, %v94
    %v100 = vld [vmem:[#allocation7] sm:$0xff]
    %v101 = vld [vmem:[#allocation7 + $0x8] sm:$0xff]
    %v102 = vld [vmem:[#allocation7 + $0x10] sm:$0xff]
    %v103 = vld [vmem:[#allocation7 + $0x18] sm:$0xff]
    %v104 = vld [vmem:[#allocation7 + $0x20] sm:$0xff]
    %v105 = vld [vmem:[#allocation7 + $0x28] sm:$0xff]
    %v106 = vld [vmem:[#allocation7 + $0x30] sm:$0xff]
    %v107 = vld [vmem:[#allocation7 + $0x38] sm:$0xff]
    %v108 = vld [vmem:[#allocation7 + $0x40] sm:$0xff]
    %v109 = vld [vmem:[#allocation7 + $0x48] sm:$0xff]
    %v110 = vld [vmem:[#allocation7 + $0x50] sm:$0xff]
    %v111 = vld [vmem:[#allocation7 + $0x58] sm:$0xff]
    %v112 = vld [vmem:[#allocation7 + $0x60] sm:$0xff]
    %v113 = vld [vmem:[#allocation7 + $0x68] sm:$0xff]
    %v114 = vld [vmem:[#allocation7 + $0x70] sm:$0xff]
    %v115 = vld [vmem:[#allocation7 + $0x78] sm:$0xff]
    %v116 = vld [vmem:[#allocation7 + $0x80] sm:$0xff]
    %v117 = vld [vmem:[#allocation7 + $0x88] sm:$0xff]
    %v118 = vld [vmem:[#allocation7 + $0x90] sm:$0xff]
    %v119 = vld [vmem:[#allocation7 + $0x98] sm:$0xff]
    %v120 = vld [vmem:[#allocation7 + $0xa0] sm:$0xff]
    %v121 = vld [vmem:[#allocation7 + $0xa8] sm:$0xff]
    %v122 = vld [vmem:[#allocation7 + $0xb0] sm:$0xff]
    %v123 = vld [vmem:[#allocation7 + $0xb8] sm:$0xff]
    %v124 = vld [vmem:[#allocation7 + $0xc0] sm:$0xff]
    %v125 = vld [vmem:[#allocation7 + $0xc8] sm:$0xff]
    %v126 = vld [vmem:[#allocation7 + $0xd0] sm:$0xff]
    %v127 = vld [vmem:[#allocation7 + $0xd8] sm:$0xff]
    %v128 = vld [vmem:[#allocation7 + $0xe0] sm:$0xff]
    %v129 = vld [vmem:[#allocation7 + $0xe8] sm:$0xff]
    %v130 = vld [vmem:[#allocation7 + $0xf0] sm:$0xff]
    %v131 = vld [vmem:[#allocation7 + $0xf8] sm:$0xff]
    %v132 = vld [vmem:[%s2] sm:$0xf]
    %v134 = vperm.slane %v132, 0
    %v135 = vperm.slane %v132, 1
    %v136 = vperm.slane %v132, 2
    %v137 = vperm.slane %v132, 3
    %v174 = vunpack.c.l.b16 %v100
    %v175 = vunpack.c.h.b16 %v100
    %v176 = vunpack.c.l.b16 %v101
    %v177 = vunpack.c.h.b16 %v101
    %v178 = vunpack.c.l.b16 %v102
    %v179 = vunpack.c.h.b16 %v102
    %v180 = vunpack.c.l.b16 %v103
    %v181 = vunpack.c.h.b16 %v103
    %v182 = vunpack.c.l.b16 %v104
    %v183 = vunpack.c.h.b16 %v104
    %v184 = vunpack.c.l.b16 %v105
    %v185 = vunpack.c.h.b16 %v105
    %v186 = vunpack.c.l.b16 %v106
    %v187 = vunpack.c.h.b16 %v106
    %v188 = vunpack.c.l.b16 %v107
    %v189 = vunpack.c.h.b16 %v107
    %v190 = vunpack.c.l.b16 %v108
    %v191 = vunpack.c.h.b16 %v108
    %v192 = vunpack.c.l.b16 %v109
    %v193 = vunpack.c.h.b16 %v109
    %v194 = vunpack.c.l.b16 %v110
    %v195 = vunpack.c.h.b16 %v110
    %v196 = vunpack.c.l.b16 %v111
    %v197 = vunpack.c.h.b16 %v111
    %v198 = vunpack.c.l.b16 %v112
    %v199 = vunpack.c.h.b16 %v112
    %v200 = vunpack.c.l.b16 %v113
    %v201 = vunpack.c.h.b16 %v113
    %v202 = vunpack.c.l.b16 %v114
    %v203 = vunpack.c.h.b16 %v114
    %v204 = vunpack.c.l.b16 %v115
    %v205 = vunpack.c.h.b16 %v115
    %v206 = vunpack.c.l.b16 %v116
    %v207 = vunpack.c.h.b16 %v116
    %v208 = vunpack.c.l.b16 %v117
    %v209 = vunpack.c.h.b16 %v117
    %v210 = vunpack.c.l.b16 %v118
    %v211 = vunpack.c.h.b16 %v118
    %v212 = vunpack.c.l.b16 %v119
    %v213 = vunpack.c.h.b16 %v119
    %v214 = vunpack.c.l.b16 %v120
    %v215 = vunpack.c.h.b16 %v120
    %v216 = vunpack.c.l.b16 %v121
    %v217 = vunpack.c.h.b16 %v121
    %v218 = vunpack.c.l.b16 %v122
    %v219 = vunpack.c.h.b16 %v122
    %v220 = vunpack.c.l.b16 %v123
    %v221 = vunpack.c.h.b16 %v123
    %v222 = vunpack.c.l.b16 %v124
    %v223 = vunpack.c.h.b16 %v124
    %v224 = vunpack.c.l.b16 %v125
    %v225 = vunpack.c.h.b16 %v125
    %v226 = vunpack.c.l.b16 %v126
    %v227 = vunpack.c.h.b16 %v126
    %v228 = vunpack.c.l.b16 %v127
    %v229 = vunpack.c.h.b16 %v127
    %v230 = vunpack.c.l.b16 %v128
    %v231 = vunpack.c.h.b16 %v128
    %v232 = vunpack.c.l.b16 %v129
    %v233 = vunpack.c.h.b16 %v129
    %v234 = vunpack.c.l.b16 %v130
    %v235 = vunpack.c.h.b16 %v130
    %v236 = vunpack.c.l.b16 %v131
    %v237 = vunpack.c.h.b16 %v131
    %v238 = vpack.c.b16 %v178, %v174
    %v239 = vpack.c.b16 %v179, %v175
    %v240 = vpack.c.b16 %v180, %v176
    %v241 = vpack.c.b16 %v181, %v177
    %v242 = vpack.c.b16 %v186, %v182
    %v243 = vpack.c.b16 %v187, %v183
    %v244 = vpack.c.b16 %v188, %v184
    %v245 = vpack.c.b16 %v189, %v185
    %v246 = vpack.c.b16 %v194, %v190
    %v247 = vpack.c.b16 %v195, %v191
    %v248 = vpack.c.b16 %v196, %v192
    %v249 = vpack.c.b16 %v197, %v193
    %v250 = vpack.c.b16 %v202, %v198
    %v251 = vpack.c.b16 %v203, %v199
    %v252 = vpack.c.b16 %v204, %v200
    %v253 = vpack.c.b16 %v205, %v201
    %v254 = vpack.c.b16 %v210, %v206
    %v255 = vpack.c.b16 %v211, %v207
    %v256 = vpack.c.b16 %v212, %v208
    %v257 = vpack.c.b16 %v213, %v209
    %v258 = vpack.c.b16 %v218, %v214
    %v259 = vpack.c.b16 %v219, %v215
    %v260 = vpack.c.b16 %v220, %v216
    %v261 = vpack.c.b16 %v221, %v217
    %v262 = vpack.c.b16 %v226, %v222
    %v263 = vpack.c.b16 %v227, %v223
    %v264 = vpack.c.b16 %v228, %v224
    %v265 = vpack.c.b16 %v229, %v225
    %v266 = vpack.c.b16 %v234, %v230
    %v267 = vpack.c.b16 %v235, %v231
    %v268 = vpack.c.b16 %v236, %v232
    %v269 = vpack.c.b16 %v237, %v233
    %302 = vmatpush.bf16.msra.mxu0 %v266
    %303 = vmatpush.bf16.msra.mxu0 %v262
    %304 = vmatpush.bf16.msra.mxu0 %v258
    %305 = vmatpush.bf16.msra.mxu0 %v254
    %306 = vmatpush.bf16.msra.mxu0 %v250
    %307 = vmatpush.bf16.msra.mxu0 %v246
    %308 = vmatpush.bf16.msra.mxu0 %v242
    %309 = vmatpush.bf16.msra.mxu0 %v238
    %310 = vmatmul.bf16.gmra.mxu0 %v96
    %v311 = vpop.f32.mrf.mxu0
    %v312 = vadd.f32 %v134, %v311
    %v313 = vpop.f32.mrf.mxu0
    %v314 = vadd.f32 %v134, %v313
    %315 = vmatmul.bf16.gmra.mxu0 %v97
    %v316 = vpop.f32.mrf.mxu0
    %v317 = vadd.f32 %v134, %v316
    %v318 = vpop.f32.mrf.mxu0
    %v319 = vadd.f32 %v134, %v318
    %320 = vmatmul.bf16.gmra.mxu0 %v98
    %v321 = vpop.f32.mrf.mxu0
    %v322 = vadd.f32 %v134, %v321
    %v323 = vpop.f32.mrf.mxu0
    %v324 = vadd.f32 %v134, %v323
    %325 = vmatmul.bf16.gmra.mxu0 %v99
    %v326 = vpop.f32.mrf.mxu0
    %v327 = vadd.f32 %v134, %v326
    %v328 = vpop.f32.mrf.mxu0
    %v329 = vadd.f32 %v134, %v328
    %330 = vdwg.mxu0
    %331 = vmatpush.bf16.msra.mxu0 %v267
    %332 = vmatpush.bf16.msra.mxu0 %v263
    %333 = vmatpush.bf16.msra.mxu0 %v259
    %334 = vmatpush.bf16.msra.mxu0 %v255
    %335 = vmatpush.bf16.msra.mxu0 %v251
    %336 = vmatpush.bf16.msra.mxu0 %v247
    %337 = vmatpush.bf16.msra.mxu0 %v243
    %338 = vmatpush.bf16.msra.mxu0 %v239
    %339 = vmatmul.bf16.gmra.mxu0 %v96
    %v340 = vpop.f32.mrf.mxu0
    %v341 = vadd.f32 %v135, %v340
    %v342 = vpop.f32.mrf.mxu0
    %v343 = vadd.f32 %v135, %v342
    %344 = vmatmul.bf16.gmra.mxu0 %v97
    %v345 = vpop.f32.mrf.mxu0
    %v346 = vadd.f32 %v135, %v345
    %v347 = vpop.f32.mrf.mxu0
    %v348 = vadd.f32 %v135, %v347
    %349 = vmatmul.bf16.gmra.mxu0 %v98
    %v350 = vpop.f32.mrf.mxu0
    %v351 = vadd.f32 %v135, %v350
    %v352 = vpop.f32.mrf.mxu0
    %v353 = vadd.f32 %v135, %v352
    %354 = vmatmul.bf16.gmra.mxu0 %v99
    %v355 = vpop.f32.mrf.mxu0
    %v356 = vadd.f32 %v135, %v355
    %v357 = vpop.f32.mrf.mxu0
    %v358 = vadd.f32 %v135, %v357
    %359 = vdwg.mxu0
    %360 = vmatpush.bf16.msra.mxu0 %v268
    %361 = vmatpush.bf16.msra.mxu0 %v264
    %362 = vmatpush.bf16.msra.mxu0 %v260
    %363 = vmatpush.bf16.msra.mxu0 %v256
    %364 = vmatpush.bf16.msra.mxu0 %v252
    %365 = vmatpush.bf16.msra.mxu0 %v248
    %366 = vmatpush.bf16.msra.mxu0 %v244
    %367 = vmatpush.bf16.msra.mxu0 %v240
    %368 = vmatmul.bf16.gmra.mxu0 %v96
    %v369 = vpop.f32.mrf.mxu0
    %v370 = vadd.f32 %v136, %v369
    %v371 = vpop.f32.mrf.mxu0
    %v372 = vadd.f32 %v136, %v371
    %373 = vmatmul.bf16.gmra.mxu0 %v97
    %v374 = vpop.f32.mrf.mxu0
    %v375 = vadd.f32 %v136, %v374
    %v376 = vpop.f32.mrf.mxu0
    %v377 = vadd.f32 %v136, %v376
    %378 = vmatmul.bf16.gmra.mxu0 %v98
    %v379 = vpop.f32.mrf.mxu0
    %v380 = vadd.f32 %v136, %v379
    %v381 = vpop.f32.mrf.mxu0
    %v382 = vadd.f32 %v136, %v381
    %383 = vmatmul.bf16.gmra.mxu0 %v99
    %v384 = vpop.f32.mrf.mxu0
    %v385 = vadd.f32 %v136, %v384
    %v386 = vpop.f32.mrf.mxu0
    %v387 = vadd.f32 %v136, %v386
    %388 = vdwg.mxu0
    %389 = vmatpush.bf16.msra.mxu0 %v269
    %390 = vmatpush.bf16.msra.mxu0 %v265
    %391 = vmatpush.bf16.msra.mxu0 %v261
    %392 = vmatpush.bf16.msra.mxu0 %v257
    %393 = vmatpush.bf16.msra.mxu0 %v253
    %394 = vmatpush.bf16.msra.mxu0 %v249
    %395 = vmatpush.bf16.msra.mxu0 %v245
    %396 = vmatpush.bf16.msra.mxu0 %v241
    %397 = vmatmul.bf16.gmra.mxu0 %v96
    %v398 = vpop.f32.mrf.mxu0
    %v399 = vadd.f32 %v137, %v398
    %v400 = vpop.f32.mrf.mxu0
    %v401 = vadd.f32 %v137, %v400
    %402 = vmatmul.bf16.gmra.mxu0 %v97
    %v403 = vpop.f32.mrf.mxu0
    %v404 = vadd.f32 %v137, %v403
    %v405 = vpop.f32.mrf.mxu0
    %v406 = vadd.f32 %v137, %v405
    %407 = vmatmul.bf16.gmra.mxu0 %v98
    %v408 = vpop.f32.mrf.mxu0
    %v409 = vadd.f32 %v137, %v408
    %v410 = vpop.f32.mrf.mxu0
    %v411 = vadd.f32 %v137, %v410
    %412 = vmatmul.bf16.gmra.mxu0 %v99
    %v413 = vpop.f32.mrf.mxu0
    %v414 = vadd.f32 %v137, %v413
    %v415 = vpop.f32.mrf.mxu0
    %v416 = vadd.f32 %v137, %v415
    %417 = vdwg.mxu0
    %418 = vst [vmem:[#allocation3] sm:$0xff] %v312
    %419 = vst [vmem:[#allocation3 + $0x8] sm:$0xff] %v341
    %420 = vst [vmem:[#allocation3 + $0x10] sm:$0xff] %v370
    %421 = vst [vmem:[#allocation3 + $0x18] sm:$0xff] %v399
    %422 = vst [vmem:[#allocation3 + $0x20] sm:$0xff] %v314
    %423 = vst [vmem:[#allocation3 + $0x28] sm:$0xff] %v343
    %424 = vst [vmem:[#allocation3 + $0x30] sm:$0xff] %v372
    %425 = vst [vmem:[#allocation3 + $0x38] sm:$0xff] %v401
    %426 = vst [vmem:[#allocation3 + $0x40] sm:$0xff] %v317
    %427 = vst [vmem:[#allocation3 + $0x48] sm:$0xff] %v346
    %428 = vst [vmem:[#allocation3 + $0x50] sm:$0xff] %v375
    %429 = vst [vmem:[#allocation3 + $0x58] sm:$0xff] %v404
    %430 = vst [vmem:[#allocation3 + $0x60] sm:$0xff] %v319
    %431 = vst [vmem:[#allocation3 + $0x68] sm:$0xff] %v348
    %432 = vst [vmem:[#allocation3 + $0x70] sm:$0xff] %v377
    %433 = vst [vmem:[#allocation3 + $0x78] sm:$0xff] %v406
    %434 = vst [vmem:[#allocation3 + $0x80] sm:$0xff] %v322
    %435 = vst [vmem:[#allocation3 + $0x88] sm:$0xff] %v351
    %436 = vst [vmem:[#allocation3 + $0x90] sm:$0xff] %v380
    %437 = vst [vmem:[#allocation3 + $0x98] sm:$0xff] %v409
    %438 = vst [vmem:[#allocation3 + $0xa0] sm:$0xff] %v324
    %439 = vst [vmem:[#allocation3 + $0xa8] sm:$0xff] %v353
    %440 = vst [vmem:[#allocation3 + $0xb0] sm:$0xff] %v382
    %441 = vst [vmem:[#allocation3 + $0xb8] sm:$0xff] %v411
    %442 = vst [vmem:[#allocation3 + $0xc0] sm:$0xff] %v327
    %443 = vst [vmem:[#allocation3 + $0xc8] sm:$0xff] %v356
    %444 = vst [vmem:[#allocation3 + $0xd0] sm:$0xff] %v385
    %445 = vst [vmem:[#allocation3 + $0xd8] sm:$0xff] %v414
    %446 = vst [vmem:[#allocation3 + $0xe0] sm:$0xff] %v329
    %447 = vst [vmem:[#allocation3 + $0xe8] sm:$0xff] %v358
    %448 = vst [vmem:[#allocation3 + $0xf0] sm:$0xff] %v387
    %449 = vst [vmem:[#allocation3 + $0xf8] sm:$0xff] %v416
    %s450 = smul.u32 0, 4
    %s451 = smul.addr %s450, 8
    %s452 = scalar_lea.vmem [#allocation3], %s451
    %v453 = vld [vmem:[%s452] sm:$0xff]
    %v454 = vld [vmem:[%s452 + $0x8] sm:$0xff]
    %v455 = vld [vmem:[%s452 + $0x10] sm:$0xff]
    %v456 = vld [vmem:[%s452 + $0x18] sm:$0xff]
    %s457 = scalar_lea.vmem [#allocation7], 256
    %v458 = vld [vmem:[%s457] sm:$0xff]
    %v459 = vld [vmem:[%s457 + $0x8] sm:$0xff]
    %v460 = vld [vmem:[%s457 + $0x10] sm:$0xff]
    %v461 = vld [vmem:[%s457 + $0x18] sm:$0xff]
    %v462 = vld [vmem:[%s457 + $0x20] sm:$0xff]
    %v463 = vld [vmem:[%s457 + $0x28] sm:$0xff]
    %v464 = vld [vmem:[%s457 + $0x30] sm:$0xff]
    %v465 = vld [vmem:[%s457 + $0x38] sm:$0xff]
    %v466 = vld [vmem:[%s457 + $0x40] sm:$0xff]
    %v467 = vld [vmem:[%s457 + $0x48] sm:$0xff]
    %v468 = vld [vmem:[%s457 + $0x50] sm:$0xff]
    %v469 = vld [vmem:[%s457 + $0x58] sm:$0xff]
    %v470 = vld [vmem:[%s457 + $0x60] sm:$0xff]
    %v471 = vld [vmem:[%s457 + $0x68] sm:$0xff]
    %v472 = vld [vmem:[%s457 + $0x70] sm:$0xff]
    %v473 = vld [vmem:[%s457 + $0x78] sm:$0xff]
    %v474 = vld [vmem:[%s457 + $0x80] sm:$0xff]
    %v475 = vld [vmem:[%s457 + $0x88] sm:$0xff]
    %v476 = vld [vmem:[%s457 + $0x90] sm:$0xff]
    %v477 = vld [vmem:[%s457 + $0x98] sm:$0xff]
    %v478 = vld [vmem:[%s457 + $0xa0] sm:$0xff]
    %v479 = vld [vmem:[%s457 + $0xa8] sm:$0xff]
    %v480 = vld [vmem:[%s457 + $0xb0] sm:$0xff]
    %v481 = vld [vmem:[%s457 + $0xb8] sm:$0xff]
    %v482 = vld [vmem:[%s457 + $0xc0] sm:$0xff]
    %v483 = vld [vmem:[%s457 + $0xc8] sm:$0xff]
    %v484 = vld [vmem:[%s457 + $0xd0] sm:$0xff]
    %v485 = vld [vmem:[%s457 + $0xd8] sm:$0xff]
    %v486 = vld [vmem:[%s457 + $0xe0] sm:$0xff]
    %v487 = vld [vmem:[%s457 + $0xe8] sm:$0xff]
    %v488 = vld [vmem:[%s457 + $0xf0] sm:$0xff]
    %v489 = vld [vmem:[%s457 + $0xf8] sm:$0xff]
    %v522 = vunpack.c.l.b16 %v458
    %v523 = vunpack.c.h.b16 %v458
    %v524 = vunpack.c.l.b16 %v459
    %v525 = vunpack.c.h.b16 %v459
    %v526 = vunpack.c.l.b16 %v460
    %v527 = vunpack.c.h.b16 %v460
    %v528 = vunpack.c.l.b16 %v461
    %v529 = vunpack.c.h.b16 %v461
    %v530 = vunpack.c.l.b16 %v462
    %v531 = vunpack.c.h.b16 %v462
    %v532 = vunpack.c.l.b16 %v463
    %v533 = vunpack.c.h.b16 %v463
    %v534 = vunpack.c.l.b16 %v464
    %v535 = vunpack.c.h.b16 %v464
    %v536 = vunpack.c.l.b16 %v465
    %v537 = vunpack.c.h.b16 %v465
    %v538 = vunpack.c.l.b16 %v466
    %v539 = vunpack.c.h.b16 %v466
    %v540 = vunpack.c.l.b16 %v467
    %v541 = vunpack.c.h.b16 %v467
    %v542 = vunpack.c.l.b16 %v468
    %v543 = vunpack.c.h.b16 %v468
    %v544 = vunpack.c.l.b16 %v469
    %v545 = vunpack.c.h.b16 %v469
    %v546 = vunpack.c.l.b16 %v470
    %v547 = vunpack.c.h.b16 %v470
    %v548 = vunpack.c.l.b16 %v471
    %v549 = vunpack.c.h.b16 %v471
    %v550 = vunpack.c.l.b16 %v472
    %v551 = vunpack.c.h.b16 %v472
    %v552 = vunpack.c.l.b16 %v473
    %v553 = vunpack.c.h.b16 %v473
    %v554 = vunpack.c.l.b16 %v474
    %v555 = vunpack.c.h.b16 %v474
    %v556 = vunpack.c.l.b16 %v475
    %v557 = vunpack.c.h.b16 %v475
    %v558 = vunpack.c.l.b16 %v476
    %v559 = vunpack.c.h.b16 %v476
    %v560 = vunpack.c.l.b16 %v477
    %v561 = vunpack.c.h.b16 %v477
    %v562 = vunpack.c.l.b16 %v478
    %v563 = vunpack.c.h.b16 %v478
    %v564 = vunpack.c.l.b16 %v479
    %v565 = vunpack.c.h.b16 %v479
    %v566 = vunpack.c.l.b16 %v480
    %v567 = vunpack.c.h.b16 %v480
    %v568 = vunpack.c.l.b16 %v481
    %v569 = vunpack.c.h.b16 %v481
    %v570 = vunpack.c.l.b16 %v482
    %v571 = vunpack.c.h.b16 %v482
    %v572 = vunpack.c.l.b16 %v483
    %v573 = vunpack.c.h.b16 %v483
    %v574 = vunpack.c.l.b16 %v484
    %v575 = vunpack.c.h.b16 %v484
    %v576 = vunpack.c.l.b16 %v485
    %v577 = vunpack.c.h.b16 %v485
    %v578 = vunpack.c.l.b16 %v486
    %v579 = vunpack.c.h.b16 %v486
    %v580 = vunpack.c.l.b16 %v487
    %v581 = vunpack.c.h.b16 %v487
    %v582 = vunpack.c.l.b16 %v488
    %v583 = vunpack.c.h.b16 %v488
    %v584 = vunpack.c.l.b16 %v489
    %v585 = vunpack.c.h.b16 %v489
    %v586 = vpack.c.b16 %v526, %v522
    %v587 = vpack.c.b16 %v527, %v523
    %v588 = vpack.c.b16 %v528, %v524
    %v589 = vpack.c.b16 %v529, %v525
    %v590 = vpack.c.b16 %v534, %v530
    %v591 = vpack.c.b16 %v535, %v531
    %v592 = vpack.c.b16 %v536, %v532
    %v593 = vpack.c.b16 %v537, %v533
    %v594 = vpack.c.b16 %v542, %v538
    %v595 = vpack.c.b16 %v543, %v539
    %v596 = vpack.c.b16 %v544, %v540
    %v597 = vpack.c.b16 %v545, %v541
    %v598 = vpack.c.b16 %v550, %v546
    %v599 = vpack.c.b16 %v551, %v547
    %v600 = vpack.c.b16 %v552, %v548
    %v601 = vpack.c.b16 %v553, %v549
    %v602 = vpack.c.b16 %v558, %v554
    %v603 = vpack.c.b16 %v559, %v555
    %v604 = vpack.c.b16 %v560, %v556
    %v605 = vpack.c.b16 %v561, %v557
    %v606 = vpack.c.b16 %v566, %v562
    %v607 = vpack.c.b16 %v567, %v563
    %v608 = vpack.c.b16 %v568, %v564
    %v609 = vpack.c.b16 %v569, %v565
    %v610 = vpack.c.b16 %v574, %v570
    %v611 = vpack.c.b16 %v575, %v571
    %v612 = vpack.c.b16 %v576, %v572
    %v613 = vpack.c.b16 %v577, %v573
    %v614 = vpack.c.b16 %v582, %v578
    %v615 = vpack.c.b16 %v583, %v579
    %v616 = vpack.c.b16 %v584, %v580
    %v617 = vpack.c.b16 %v585, %v581
    %650 = vmatpush.bf16.msra.mxu0 %v614
    %651 = vmatpush.bf16.msra.mxu0 %v610
    %652 = vmatpush.bf16.msra.mxu0 %v606
    %653 = vmatpush.bf16.msra.mxu0 %v602
    %654 = vmatpush.bf16.msra.mxu0 %v598
    %655 = vmatpush.bf16.msra.mxu0 %v594
    %656 = vmatpush.bf16.msra.mxu0 %v590
    %657 = vmatpush.bf16.msra.mxu0 %v586
    %658 = vmatmul.bf16.gmra.mxu0 0
    %v659 = vpop.f32.mrf.mxu0
    %v660 = vadd.f32 0.0, %v659
    %v661 = vpop.f32.mrf.mxu0
    %662 = vdwg.mxu0
    %663 = vmatpush.bf16.msra.mxu0 %v615
    %664 = vmatpush.bf16.msra.mxu0 %v611
    %665 = vmatpush.bf16.msra.mxu0 %v607
    %666 = vmatpush.bf16.msra.mxu0 %v603
    %667 = vmatpush.bf16.msra.mxu0 %v599
    %668 = vmatpush.bf16.msra.mxu0 %v595
    %669 = vmatpush.bf16.msra.mxu0 %v591
    %670 = vmatpush.bf16.msra.mxu0 %v587
    %671 = vmatmul.bf16.gmra.mxu0 0
    %v672 = vpop.f32.mrf.mxu0
    %v673 = vadd.f32 0.0, %v672
    %v674 = vpop.f32.mrf.mxu0
    %675 = vdwg.mxu0
    %676 = vmatpush.bf16.msra.mxu0 %v616
    %677 = vmatpush.bf16.msra.mxu0 %v612
    %678 = vmatpush.bf16.msra.mxu0 %v608
    %679 = vmatpush.bf16.msra.mxu0 %v604
    %680 = vmatpush.bf16.msra.mxu0 %v600
    %681 = vmatpush.bf16.msra.mxu0 %v596
    %682 = vmatpush.bf16.msra.mxu0 %v592
    %683 = vmatpush.bf16.msra.mxu0 %v588
    %684 = vmatmul.bf16.gmra.mxu0 0
    %v685 = vpop.f32.mrf.mxu0
    %v686 = vadd.f32 0.0, %v685
    %v687 = vpop.f32.mrf.mxu0
    %688 = vdwg.mxu0
    %689 = vmatpush.bf16.msra.mxu0 %v617
    %690 = vmatpush.bf16.msra.mxu0 %v613
    %691 = vmatpush.bf16.msra.mxu0 %v609
    %692 = vmatpush.bf16.msra.mxu0 %v605
    %693 = vmatpush.bf16.msra.mxu0 %v601
    %694 = vmatpush.bf16.msra.mxu0 %v597
    %695 = vmatpush.bf16.msra.mxu0 %v593
    %696 = vmatpush.bf16.msra.mxu0 %v589
    %697 = vmatmul.bf16.gmra.mxu0 0
    %v698 = vpop.f32.mrf.mxu0
    %v699 = vadd.f32 0.0, %v698
    %v700 = vpop.f32.mrf.mxu0
    %701 = vdwg.mxu0
    %v702 = vadd.f32 %v453, %v660
    %v703 = vadd.f32 %v454, %v673
    %v704 = vadd.f32 %v455, %v686
    %v705 = vadd.f32 %v456, %v699
    %v706 = vxor.u32 %v702, 2147483648
    %v707 = vmul.f32 %v706, 1.442695
    %v708 = vpow.pop %v707
    %v709 = vadd.f32 %v708, 1.0
    %v710 = vrcp.pop %v709
    %v711 = vmul.f32 %v709, %v710
    %v712 = vsub.f32 1.0, %v711
    %v713 = vmul.f32 %v710, %v712
    %v714 = vadd.f32 %v710, %v713
    %vm715 = vweird.f32 %v709
    %vm716 = vweird.f32 %v710
    %vm717 = vmor %vm715, %vm716
    %v718 = vsel %vm717, %v710, %v714
    %v719 = vand.u32 2147483647, %v709
    %vm720 = vcmp.eq.f32.partialorder %v719, 8.507059e+37
    %v721 = vand.u32 %v709, 2147483648
    %v722 = vor.u32 1.1754944e-38, %v721
    %v723 = vsel %vm720, %v722, %v718
    %v724 = vmul.f32 1.0, %v723
    %v725 = vxor.u32 %v703, 2147483648
    %v726 = vmul.f32 %v725, 1.442695
    %v727 = vpow.pop %v726
    %v728 = vadd.f32 %v727, 1.0
    %v729 = vrcp.pop %v728
    %v730 = vmul.f32 %v728, %v729
    %v731 = vsub.f32 1.0, %v730
    %v732 = vmul.f32 %v729, %v731
    %v733 = vadd.f32 %v729, %v732
    %vm734 = vweird.f32 %v728
    %vm735 = vweird.f32 %v729
    %vm736 = vmor %vm734, %vm735
    %v737 = vsel %vm736, %v729, %v733
    %v738 = vand.u32 2147483647, %v728
    %vm739 = vcmp.eq.f32.partialorder %v738, 8.507059e+37
    %v740 = vand.u32 %v728, 2147483648
    %v741 = vor.u32 1.1754944e-38, %v740
    %v742 = vsel %vm739, %v741, %v737
    %v743 = vmul.f32 1.0, %v742
    %v744 = vtanh.pop %v704
    %v745 = vxor.u32 %v705, 2147483648
    %v746 = vmul.f32 %v745, 1.442695
    %v747 = vpow.pop %v746
    %v748 = vadd.f32 %v747, 1.0
    %v749 = vrcp.pop %v748
    %v750 = vmul.f32 %v748, %v749
    %v751 = vsub.f32 1.0, %v750
    %v752 = vmul.f32 %v749, %v751
    %v753 = vadd.f32 %v749, %v752
    %vm754 = vweird.f32 %v748
    %vm755 = vweird.f32 %v749
    %vm756 = vmor %vm754, %vm755
    %v757 = vsel %vm756, %v749, %v753
    %v758 = vand.u32 2147483647, %v748
    %vm759 = vcmp.eq.f32.partialorder %v758, 8.507059e+37
    %v760 = vand.u32 %v748, 2147483648
    %v761 = vor.u32 1.1754944e-38, %v760
    %v762 = vsel %vm759, %v761, %v757
    %v763 = vmul.f32 1.0, %v762
    %v764 = vmul.f32 %v743, 0.0
    %v765 = vmul.f32 %v724, %v744
    %v766 = vadd.f32 %v764, %v765
    %v767 = vtanh.pop %v766
    %v768 = vmul.f32 %v763, %v767
    %769 = vst [vmem:[#allocation2] sm:$0xff] %v768
    %s770 = smul.u32 1, 4
    %s771 = smul.addr %s770, 8
    %s772 = scalar_lea.vmem [#allocation3], %s771
    %v773 = vld [vmem:[%s772] sm:$0xff]
    %v774 = vld [vmem:[%s772 + $0x8] sm:$0xff]
    %v775 = vld [vmem:[%s772 + $0x10] sm:$0xff]
    %v776 = vld [vmem:[%s772 + $0x18] sm:$0xff]
    %v777 = vpack.c.bf16 %v768, %v768
    %v778 = vld [vmem:[%s457] sm:$0xff]
    %v779 = vld [vmem:[%s457 + $0x8] sm:$0xff]
    %v780 = vld [vmem:[%s457 + $0x10] sm:$0xff]
    %v781 = vld [vmem:[%s457 + $0x18] sm:$0xff]
    %v782 = vld [vmem:[%s457 + $0x20] sm:$0xff]
    %v783 = vld [vmem:[%s457 + $0x28] sm:$0xff]
    %v784 = vld [vmem:[%s457 + $0x30] sm:$0xff]
    %v785 = vld [vmem:[%s457 + $0x38] sm:$0xff]
    %v786 = vld [vmem:[%s457 + $0x40] sm:$0xff]
    %v787 = vld [vmem:[%s457 + $0x48] sm:$0xff]
    %v788 = vld [vmem:[%s457 + $0x50] sm:$0xff]
    %v789 = vld [vmem:[%s457 + $0x58] sm:$0xff]
    %v790 = vld [vmem:[%s457 + $0x60] sm:$0xff]
    %v791 = vld [vmem:[%s457 + $0x68] sm:$0xff]
    %v792 = vld [vmem:[%s457 + $0x70] sm:$0xff]
    %v793 = vld [vmem:[%s457 + $0x78] sm:$0xff]
    %v794 = vld [vmem:[%s457 + $0x80] sm:$0xff]
    %v795 = vld [vmem:[%s457 + $0x88] sm:$0xff]
    %v796 = vld [vmem:[%s457 + $0x90] sm:$0xff]
    %v797 = vld [vmem:[%s457 + $0x98] sm:$0xff]
    %v798 = vld [vmem:[%s457 + $0xa0] sm:$0xff]
    %v799 = vld [vmem:[%s457 + $0xa8] sm:$0xff]
    %v800 = vld [vmem:[%s457 + $0xb0] sm:$0xff]
    %v801 = vld [vmem:[%s457 + $0xb8] sm:$0xff]
    %v802 = vld [vmem:[%s457 + $0xc0] sm:$0xff]
    %v803 = vld [vmem:[%s457 + $0xc8] sm:$0xff]
    %v804 = vld [vmem:[%s457 + $0xd0] sm:$0xff]
    %v805 = vld [vmem:[%s457 + $0xd8] sm:$0xff]
    %v806 = vld [vmem:[%s457 + $0xe0] sm:$0xff]
    %v807 = vld [vmem:[%s457 + $0xe8] sm:$0xff]
    %v808 = vld [vmem:[%s457 + $0xf0] sm:$0xff]
    %v809 = vld [vmem:[%s457 + $0xf8] sm:$0xff]
    %v842 = vunpack.c.l.b16 %v778
    %v843 = vunpack.c.h.b16 %v778
    %v844 = vunpack.c.l.b16 %v779
    %v845 = vunpack.c.h.b16 %v779
    %v846 = vunpack.c.l.b16 %v780
    %v847 = vunpack.c.h.b16 %v780
    %v848 = vunpack.c.l.b16 %v781
    %v849 = vunpack.c.h.b16 %v781
    %v850 = vunpack.c.l.b16 %v782
    %v851 = vunpack.c.h.b16 %v782
    %v852 = vunpack.c.l.b16 %v783
    %v853 = vunpack.c.h.b16 %v783
    %v854 = vunpack.c.l.b16 %v784
    %v855 = vunpack.c.h.b16 %v784
    %v856 = vunpack.c.l.b16 %v785
    %v857 = vunpack.c.h.b16 %v785
    %v858 = vunpack.c.l.b16 %v786
    %v859 = vunpack.c.h.b16 %v786
    %v860 = vunpack.c.l.b16 %v787
    %v861 = vunpack.c.h.b16 %v787
    %v862 = vunpack.c.l.b16 %v788
    %v863 = vunpack.c.h.b16 %v788
    %v864 = vunpack.c.l.b16 %v789
    %v865 = vunpack.c.h.b16 %v789
    %v866 = vunpack.c.l.b16 %v790
    %v867 = vunpack.c.h.b16 %v790
    %v868 = vunpack.c.l.b16 %v791
    %v869 = vunpack.c.h.b16 %v791
    %v870 = vunpack.c.l.b16 %v792
    %v871 = vunpack.c.h.b16 %v792
    %v872 = vunpack.c.l.b16 %v793
    %v873 = vunpack.c.h.b16 %v793
    %v874 = vunpack.c.l.b16 %v794
    %v875 = vunpack.c.h.b16 %v794
    %v876 = vunpack.c.l.b16 %v795
    %v877 = vunpack.c.h.b16 %v795
    %v878 = vunpack.c.l.b16 %v796
    %v879 = vunpack.c.h.b16 %v796
    %v880 = vunpack.c.l.b16 %v797
    %v881 = vunpack.c.h.b16 %v797
    %v882 = vunpack.c.l.b16 %v798
    %v883 = vunpack.c.h.b16 %v798
    %v884 = vunpack.c.l.b16 %v799
    %v885 = vunpack.c.h.b16 %v799
    %v886 = vunpack.c.l.b16 %v800
    %v887 = vunpack.c.h.b16 %v800
    %v888 = vunpack.c.l.b16 %v801
    %v889 = vunpack.c.h.b16 %v801
    %v890 = vunpack.c.l.b16 %v802
    %v891 = vunpack.c.h.b16 %v802
    %v892 = vunpack.c.l.b16 %v803
    %v893 = vunpack.c.h.b16 %v803
    %v894 = vunpack.c.l.b16 %v804
    %v895 = vunpack.c.h.b16 %v804
    %v896 = vunpack.c.l.b16 %v805
    %v897 = vunpack.c.h.b16 %v805
    %v898 = vunpack.c.l.b16 %v806
    %v899 = vunpack.c.h.b16 %v806
    %v900 = vunpack.c.l.b16 %v807
    %v901 = vunpack.c.h.b16 %v807
    %v902 = vunpack.c.l.b16 %v808
    %v903 = vunpack.c.h.b16 %v808
    %v904 = vunpack.c.l.b16 %v809
    %v905 = vunpack.c.h.b16 %v809
    %v906 = vpack.c.b16 %v846, %v842
    %v907 = vpack.c.b16 %v847, %v843
    %v908 = vpack.c.b16 %v848, %v844
    %v909 = vpack.c.b16 %v849, %v845
    %v910 = vpack.c.b16 %v854, %v850
    %v911 = vpack.c.b16 %v855, %v851
    %v912 = vpack.c.b16 %v856, %v852
    %v913 = vpack.c.b16 %v857, %v853
    %v914 = vpack.c.b16 %v862, %v858
    %v915 = vpack.c.b16 %v863, %v859
    %v916 = vpack.c.b16 %v864, %v860
    %v917 = vpack.c.b16 %v865, %v861
    %v918 = vpack.c.b16 %v870, %v866
    %v919 = vpack.c.b16 %v871, %v867
    %v920 = vpack.c.b16 %v872, %v868
    %v921 = vpack.c.b16 %v873, %v869
    %v922 = vpack.c.b16 %v878, %v874
    %v923 = vpack.c.b16 %v879, %v875
    %v924 = vpack.c.b16 %v880, %v876
    %v925 = vpack.c.b16 %v881, %v877
    %v926 = vpack.c.b16 %v886, %v882
    %v927 = vpack.c.b16 %v887, %v883
    %v928 = vpack.c.b16 %v888, %v884
    %v929 = vpack.c.b16 %v889, %v885
    %v930 = vpack.c.b16 %v894, %v890
    %v931 = vpack.c.b16 %v895, %v891
    %v932 = vpack.c.b16 %v896, %v892
    %v933 = vpack.c.b16 %v897, %v893
    %v934 = vpack.c.b16 %v902, %v898
    %v935 = vpack.c.b16 %v903, %v899
    %v936 = vpack.c.b16 %v904, %v900
    %v937 = vpack.c.b16 %v905, %v901
    %970 = vmatpush.bf16.msra.mxu0 %v934
    %971 = vmatpush.bf16.msra.mxu0 %v930
    %972 = vmatpush.bf16.msra.mxu0 %v926
    %973 = vmatpush.bf16.msra.mxu0 %v922
    %974 = vmatpush.bf16.msra.mxu0 %v918
    %975 = vmatpush.bf16.msra.mxu0 %v914
    %976 = vmatpush.bf16.msra.mxu0 %v910
    %977 = vmatpush.bf16.msra.mxu0 %v906
    %978 = vmatmul.bf16.gmra.mxu0 %v777
    %v979 = vpop.f32.mrf.mxu0
    %v980 = vadd.f32 0.0, %v979
    %v981 = vpop.f32.mrf.mxu0
    %982 = vdwg.mxu0
    %983 = vmatpush.bf16.msra.mxu0 %v935
    %984 = vmatpush.bf16.msra.mxu0 %v931
    %985 = vmatpush.bf16.msra.mxu0 %v927
    %986 = vmatpush.bf16.msra.mxu0 %v923
    %987 = vmatpush.bf16.msra.mxu0 %v919
    %988 = vmatpush.bf16.msra.mxu0 %v915
    %989 = vmatpush.bf16.msra.mxu0 %v911
    %990 = vmatpush.bf16.msra.mxu0 %v907
    %991 = vmatmul.bf16.gmra.mxu0 %v777
    %v992 = vpop.f32.mrf.mxu0
    %v993 = vadd.f32 0.0, %v992
    %v994 = vpop.f32.mrf.mxu0
    %995 = vdwg.mxu0
    %996 = vmatpush.bf16.msra.mxu0 %v936
    %997 = vmatpush.bf16.msra.mxu0 %v932
    %998 = vmatpush.bf16.msra.mxu0 %v928
    %999 = vmatpush.bf16.msra.mxu0 %v924
    %1000 = vmatpush.bf16.msra.mxu0 %v920
    %1001 = vmatpush.bf16.msra.mxu0 %v916
    %1002 = vmatpush.bf16.msra.mxu0 %v912
    %1003 = vmatpush.bf16.msra.mxu0 %v908
    %1004 = vmatmul.bf16.gmra.mxu0 %v777
    %v1005 = vpop.f32.mrf.mxu0
    %v1006 = vadd.f32 0.0, %v1005
    %v1007 = vpop.f32.mrf.mxu0
    %1008 = vdwg.mxu0
    %1009 = vmatpush.bf16.msra.mxu0 %v937
    %1010 = vmatpush.bf16.msra.mxu0 %v933
    %1011 = vmatpush.bf16.msra.mxu0 %v929
    %1012 = vmatpush.bf16.msra.mxu0 %v925
    %1013 = vmatpush.bf16.msra.mxu0 %v921
    %1014 = vmatpush.bf16.msra.mxu0 %v917
    %1015 = vmatpush.bf16.msra.mxu0 %v913
    %1016 = vmatpush.bf16.msra.mxu0 %v909
    %1017 = vmatmul.bf16.gmra.mxu0 %v777
    %v1018 = vpop.f32.mrf.mxu0
    %v1019 = vadd.f32 0.0, %v1018
    %v1020 = vpop.f32.mrf.mxu0
    %1021 = vdwg.mxu0
    %v1022 = vadd.f32 %v773, %v980
    %v1023 = vadd.f32 %v774, %v993
    %v1024 = vadd.f32 %v775, %v1006
    %v1025 = vadd.f32 %v776, %v1019
    %v1026 = vxor.u32 %v1022, 2147483648
    %v1027 = vmul.f32 %v1026, 1.442695
    %v1028 = vpow.pop %v1027
    %v1029 = vadd.f32 %v1028, 1.0
    %v1030 = vrcp.pop %v1029
    %v1031 = vmul.f32 %v1029, %v1030
    %v1032 = vsub.f32 1.0, %v1031
    %v1033 = vmul.f32 %v1030, %v1032
    %v1034 = vadd.f32 %v1030, %v1033
    %vm1035 = vweird.f32 %v1029
    %vm1036 = vweird.f32 %v1030
    %vm1037 = vmor %vm1035, %vm1036
    %v1038 = vsel %vm1037, %v1030, %v1034
    %v1039 = vand.u32 2147483647, %v1029
    %vm1040 = vcmp.eq.f32.partialorder %v1039, 8.507059e+37
    %v1041 = vand.u32 %v1029, 2147483648
    %v1042 = vor.u32 1.1754944e-38, %v1041
    %v1043 = vsel %vm1040, %v1042, %v1038
    %v1044 = vmul.f32 1.0, %v1043
    %v1045 = vxor.u32 %v1023, 2147483648
    %v1046 = vmul.f32 %v1045, 1.442695
    %v1047 = vpow.pop %v1046
    %v1048 = vadd.f32 %v1047, 1.0
    %v1049 = vrcp.pop %v1048
    %v1050 = vmul.f32 %v1048, %v1049
    %v1051 = vsub.f32 1.0, %v1050
    %v1052 = vmul.f32 %v1049, %v1051
    %v1053 = vadd.f32 %v1049, %v1052
    %vm1054 = vweird.f32 %v1048
    %vm1055 = vweird.f32 %v1049
    %vm1056 = vmor %vm1054, %vm1055
    %v1057 = vsel %vm1056, %v1049, %v1053
    %v1058 = vand.u32 2147483647, %v1048
    %vm1059 = vcmp.eq.f32.partialorder %v1058, 8.507059e+37
    %v1060 = vand.u32 %v1048, 2147483648
    %v1061 = vor.u32 1.1754944e-38, %v1060
    %v1062 = vsel %vm1059, %v1061, %v1057
    %v1063 = vmul.f32 1.0, %v1062
    %v1064 = vtanh.pop %v1024
    %v1065 = vxor.u32 %v1025, 2147483648
    %v1066 = vmul.f32 %v1065, 1.442695
    %v1067 = vpow.pop %v1066
    %v1068 = vadd.f32 %v1067, 1.0
    %v1069 = vrcp.pop %v1068
    %v1070 = vmul.f32 %v1068, %v1069
    %v1071 = vsub.f32 1.0, %v1070
    %v1072 = vmul.f32 %v1069, %v1071
    %v1073 = vadd.f32 %v1069, %v1072
    %vm1074 = vweird.f32 %v1068
    %vm1075 = vweird.f32 %v1069
    %vm1076 = vmor %vm1074, %vm1075
    %v1077 = vsel %vm1076, %v1069, %v1073
    %v1078 = vand.u32 2147483647, %v1068
    %vm1079 = vcmp.eq.f32.partialorder %v1078, 8.507059e+37
    %v1080 = vand.u32 %v1068, 2147483648
    %v1081 = vor.u32 1.1754944e-38, %v1080
    %v1082 = vsel %vm1079, %v1081, %v1077
    %v1083 = vmul.f32 1.0, %v1082
    %v1084 = vmul.f32 %v1063, %v766
    %v1085 = vmul.f32 %v1044, %v1064
    %v1086 = vadd.f32 %v1084, %v1085
    %v1087 = vtanh.pop %v1086
    %v1088 = vmul.f32 %v1083, %v1087
    %s1089 = scalar_lea.vmem [#allocation2], 8
    %1090 = vst [vmem:[%s1089] sm:$0xff] %v1088
    %s1091 = smul.u32 2, 4
    %s1092 = smul.addr %s1091, 8
    %s1093 = scalar_lea.vmem [#allocation3], %s1092
    %v1094 = vld [vmem:[%s1093] sm:$0xff]
    %v1095 = vld [vmem:[%s1093 + $0x8] sm:$0xff]
    %v1096 = vld [vmem:[%s1093 + $0x10] sm:$0xff]
    %v1097 = vld [vmem:[%s1093 + $0x18] sm:$0xff]
    %v1098 = vpack.c.bf16 %v1088, %v1088
    %v1099 = vld [vmem:[%s457] sm:$0xff]
    %v1100 = vld [vmem:[%s457 + $0x8] sm:$0xff]
    %v1101 = vld [vmem:[%s457 + $0x10] sm:$0xff]
    %v1102 = vld [vmem:[%s457 + $0x18] sm:$0xff]
    %v1103 = vld [vmem:[%s457 + $0x20] sm:$0xff]
    %v1104 = vld [vmem:[%s457 + $0x28] sm:$0xff]
    %v1105 = vld [vmem:[%s457 + $0x30] sm:$0xff]
    %v1106 = vld [vmem:[%s457 + $0x38] sm:$0xff]
    %v1107 = vld [vmem:[%s457 + $0x40] sm:$0xff]
    %v1108 = vld [vmem:[%s457 + $0x48] sm:$0xff]
    %v1109 = vld [vmem:[%s457 + $0x50] sm:$0xff]
    %v1110 = vld [vmem:[%s457 + $0x58] sm:$0xff]
    %v1111 = vld [vmem:[%s457 + $0x60] sm:$0xff]
    %v1112 = vld [vmem:[%s457 + $0x68] sm:$0xff]
    %v1113 = vld [vmem:[%s457 + $0x70] sm:$0xff]
    %v1114 = vld [vmem:[%s457 + $0x78] sm:$0xff]
    %v1115 = vld [vmem:[%s457 + $0x80] sm:$0xff]
    %v1116 = vld [vmem:[%s457 + $0x88] sm:$0xff]
    %v1117 = vld [vmem:[%s457 + $0x90] sm:$0xff]
    %v1118 = vld [vmem:[%s457 + $0x98] sm:$0xff]
    %v1119 = vld [vmem:[%s457 + $0xa0] sm:$0xff]
    %v1120 = vld [vmem:[%s457 + $0xa8] sm:$0xff]
    %v1121 = vld [vmem:[%s457 + $0xb0] sm:$0xff]
    %v1122 = vld [vmem:[%s457 + $0xb8] sm:$0xff]
    %v1123 = vld [vmem:[%s457 + $0xc0] sm:$0xff]
    %v1124 = vld [vmem:[%s457 + $0xc8] sm:$0xff]
    %v1125 = vld [vmem:[%s457 + $0xd0] sm:$0xff]
    %v1126 = vld [vmem:[%s457 + $0xd8] sm:$0xff]
    %v1127 = vld [vmem:[%s457 + $0xe0] sm:$0xff]
    %v1128 = vld [vmem:[%s457 + $0xe8] sm:$0xff]
    %v1129 = vld [vmem:[%s457 + $0xf0] sm:$0xff]
    %v1130 = vld [vmem:[%s457 + $0xf8] sm:$0xff]
    %v1163 = vunpack.c.l.b16 %v1099
    %v1164 = vunpack.c.h.b16 %v1099
    %v1165 = vunpack.c.l.b16 %v1100
    %v1166 = vunpack.c.h.b16 %v1100
    %v1167 = vunpack.c.l.b16 %v1101
    %v1168 = vunpack.c.h.b16 %v1101
    %v1169 = vunpack.c.l.b16 %v1102
    %v1170 = vunpack.c.h.b16 %v1102
    %v1171 = vunpack.c.l.b16 %v1103
    %v1172 = vunpack.c.h.b16 %v1103
    %v1173 = vunpack.c.l.b16 %v1104
    %v1174 = vunpack.c.h.b16 %v1104
    %v1175 = vunpack.c.l.b16 %v1105
    %v1176 = vunpack.c.h.b16 %v1105
    %v1177 = vunpack.c.l.b16 %v1106
    %v1178 = vunpack.c.h.b16 %v1106
    %v1179 = vunpack.c.l.b16 %v1107
    %v1180 = vunpack.c.h.b16 %v1107
    %v1181 = vunpack.c.l.b16 %v1108
    %v1182 = vunpack.c.h.b16 %v1108
    %v1183 = vunpack.c.l.b16 %v1109
    %v1184 = vunpack.c.h.b16 %v1109
    %v1185 = vunpack.c.l.b16 %v1110
    %v1186 = vunpack.c.h.b16 %v1110
    %v1187 = vunpack.c.l.b16 %v1111
    %v1188 = vunpack.c.h.b16 %v1111
    %v1189 = vunpack.c.l.b16 %v1112
    %v1190 = vunpack.c.h.b16 %v1112
    %v1191 = vunpack.c.l.b16 %v1113
    %v1192 = vunpack.c.h.b16 %v1113
    %v1193 = vunpack.c.l.b16 %v1114
    %v1194 = vunpack.c.h.b16 %v1114
    %v1195 = vunpack.c.l.b16 %v1115
    %v1196 = vunpack.c.h.b16 %v1115
    %v1197 = vunpack.c.l.b16 %v1116
    %v1198 = vunpack.c.h.b16 %v1116
    %v1199 = vunpack.c.l.b16 %v1117
    %v1200 = vunpack.c.h.b16 %v1117
    %v1201 = vunpack.c.l.b16 %v1118
    %v1202 = vunpack.c.h.b16 %v1118
    %v1203 = vunpack.c.l.b16 %v1119
    %v1204 = vunpack.c.h.b16 %v1119
    %v1205 = vunpack.c.l.b16 %v1120
    %v1206 = vunpack.c.h.b16 %v1120
    %v1207 = vunpack.c.l.b16 %v1121
    %v1208 = vunpack.c.h.b16 %v1121
    %v1209 = vunpack.c.l.b16 %v1122
    %v1210 = vunpack.c.h.b16 %v1122
    %v1211 = vunpack.c.l.b16 %v1123
    %v1212 = vunpack.c.h.b16 %v1123
    %v1213 = vunpack.c.l.b16 %v1124
    %v1214 = vunpack.c.h.b16 %v1124
    %v1215 = vunpack.c.l.b16 %v1125
    %v1216 = vunpack.c.h.b16 %v1125
    %v1217 = vunpack.c.l.b16 %v1126
    %v1218 = vunpack.c.h.b16 %v1126
    %v1219 = vunpack.c.l.b16 %v1127
    %v1220 = vunpack.c.h.b16 %v1127
    %v1221 = vunpack.c.l.b16 %v1128
    %v1222 = vunpack.c.h.b16 %v1128
    %v1223 = vunpack.c.l.b16 %v1129
    %v1224 = vunpack.c.h.b16 %v1129
    %v1225 = vunpack.c.l.b16 %v1130
    %v1226 = vunpack.c.h.b16 %v1130
    %v1227 = vpack.c.b16 %v1167, %v1163
    %v1228 = vpack.c.b16 %v1168, %v1164
    %v1229 = vpack.c.b16 %v1169, %v1165
    %v1230 = vpack.c.b16 %v1170, %v1166
    %v1231 = vpack.c.b16 %v1175, %v1171
    %v1232 = vpack.c.b16 %v1176, %v1172
    %v1233 = vpack.c.b16 %v1177, %v1173
    %v1234 = vpack.c.b16 %v1178, %v1174
    %v1235 = vpack.c.b16 %v1183, %v1179
    %v1236 = vpack.c.b16 %v1184, %v1180
    %v1237 = vpack.c.b16 %v1185, %v1181
    %v1238 = vpack.c.b16 %v1186, %v1182
    %v1239 = vpack.c.b16 %v1191, %v1187
    %v1240 = vpack.c.b16 %v1192, %v1188
    %v1241 = vpack.c.b16 %v1193, %v1189
    %v1242 = vpack.c.b16 %v1194, %v1190
    %v1243 = vpack.c.b16 %v1199, %v1195
    %v1244 = vpack.c.b16 %v1200, %v1196
    %v1245 = vpack.c.b16 %v1201, %v1197
    %v1246 = vpack.c.b16 %v1202, %v1198
    %v1247 = vpack.c.b16 %v1207, %v1203
    %v1248 = vpack.c.b16 %v1208, %v1204
    %v1249 = vpack.c.b16 %v1209, %v1205
    %v1250 = vpack.c.b16 %v1210, %v1206
    %v1251 = vpack.c.b16 %v1215, %v1211
    %v1252 = vpack.c.b16 %v1216, %v1212
    %v1253 = vpack.c.b16 %v1217, %v1213
    %v1254 = vpack.c.b16 %v1218, %v1214
    %v1255 = vpack.c.b16 %v1223, %v1219
    %v1256 = vpack.c.b16 %v1224, %v1220
    %v1257 = vpack.c.b16 %v1225, %v1221
    %v1258 = vpack.c.b16 %v1226, %v1222
    %1291 = vmatpush.bf16.msra.mxu0 %v1255
    %1292 = vmatpush.bf16.msra.mxu0 %v1251
    %1293 = vmatpush.bf16.msra.mxu0 %v1247
    %1294 = vmatpush.bf16.msra.mxu0 %v1243
    %1295 = vmatpush.bf16.msra.mxu0 %v1239
    %1296 = vmatpush.bf16.msra.mxu0 %v1235
    %1297 = vmatpush.bf16.msra.mxu0 %v1231
    %1298 = vmatpush.bf16.msra.mxu0 %v1227
    %1299 = vmatmul.bf16.gmra.mxu0 %v1098
    %v1300 = vpop.f32.mrf.mxu0
    %v1301 = vadd.f32 0.0, %v1300
    %v1302 = vpop.f32.mrf.mxu0
    %1303 = vdwg.mxu0
    %1304 = vmatpush.bf16.msra.mxu0 %v1256
    %1305 = vmatpush.bf16.msra.mxu0 %v1252
    %1306 = vmatpush.bf16.msra.mxu0 %v1248
    %1307 = vmatpush.bf16.msra.mxu0 %v1244
    %1308 = vmatpush.bf16.msra.mxu0 %v1240
    %1309 = vmatpush.bf16.msra.mxu0 %v1236
    %1310 = vmatpush.bf16.msra.mxu0 %v1232
    %1311 = vmatpush.bf16.msra.mxu0 %v1228
    %1312 = vmatmul.bf16.gmra.mxu0 %v1098
    %v1313 = vpop.f32.mrf.mxu0
    %v1314 = vadd.f32 0.0, %v1313
    %v1315 = vpop.f32.mrf.mxu0
    %1316 = vdwg.mxu0
    %1317 = vmatpush.bf16.msra.mxu0 %v1257
    %1318 = vmatpush.bf16.msra.mxu0 %v1253
    %1319 = vmatpush.bf16.msra.mxu0 %v1249
    %1320 = vmatpush.bf16.msra.mxu0 %v1245
    %1321 = vmatpush.bf16.msra.mxu0 %v1241
    %1322 = vmatpush.bf16.msra.mxu0 %v1237
    %1323 = vmatpush.bf16.msra.mxu0 %v1233
    %1324 = vmatpush.bf16.msra.mxu0 %v1229
    %1325 = vmatmul.bf16.gmra.mxu0 %v1098
    %v1326 = vpop.f32.mrf.mxu0
    %v1327 = vadd.f32 0.0, %v1326
    %v1328 = vpop.f32.mrf.mxu0
    %1329 = vdwg.mxu0
    %1330 = vmatpush.bf16.msra.mxu0 %v1258
    %1331 = vmatpush.bf16.msra.mxu0 %v1254
    %1332 = vmatpush.bf16.msra.mxu0 %v1250
    %1333 = vmatpush.bf16.msra.mxu0 %v1246
    %1334 = vmatpush.bf16.msra.mxu0 %v1242
    %1335 = vmatpush.bf16.msra.mxu0 %v1238
    %1336 = vmatpush.bf16.msra.mxu0 %v1234
    %1337 = vmatpush.bf16.msra.mxu0 %v1230
    %1338 = vmatmul.bf16.gmra.mxu0 %v1098
    %v1339 = vpop.f32.mrf.mxu0
    %v1340 = vadd.f32 0.0, %v1339
    %v1341 = vpop.f32.mrf.mxu0
    %1342 = vdwg.mxu0
    %v1343 = vadd.f32 %v1094, %v1301
    %v1344 = vadd.f32 %v1095, %v1314
    %v1345 = vadd.f32 %v1096, %v1327
    %v1346 = vadd.f32 %v1097, %v1340
    %v1347 = vxor.u32 %v1343, 2147483648
    %v1348 = vmul.f32 %v1347, 1.442695
    %v1349 = vpow.pop %v1348
    %v1350 = vadd.f32 %v1349, 1.0
    %v1351 = vrcp.pop %v1350
    %v1352 = vmul.f32 %v1350, %v1351
    %v1353 = vsub.f32 1.0, %v1352
    %v1354 = vmul.f32 %v1351, %v1353
    %v1355 = vadd.f32 %v1351, %v1354
    %vm1356 = vweird.f32 %v1350
    %vm1357 = vweird.f32 %v1351
    %vm1358 = vmor %vm1356, %vm1357
    %v1359 = vsel %vm1358, %v1351, %v1355
    %v1360 = vand.u32 2147483647, %v1350
    %vm1361 = vcmp.eq.f32.partialorder %v1360, 8.507059e+37
    %v1362 = vand.u32 %v1350, 2147483648
    %v1363 = vor.u32 1.1754944e-38, %v1362
    %v1364 = vsel %vm1361, %v1363, %v1359
    %v1365 = vmul.f32 1.0, %v1364
    %v1366 = vxor.u32 %v1344, 2147483648
    %v1367 = vmul.f32 %v1366, 1.442695
    %v1368 = vpow.pop %v1367
    %v1369 = vadd.f32 %v1368, 1.0
    %v1370 = vrcp.pop %v1369
    %v1371 = vmul.f32 %v1369, %v1370
    %v1372 = vsub.f32 1.0, %v1371
    %v1373 = vmul.f32 %v1370, %v1372
    %v1374 = vadd.f32 %v1370, %v1373
    %vm1375 = vweird.f32 %v1369
    %vm1376 = vweird.f32 %v1370
    %vm1377 = vmor %vm1375, %vm1376
    %v1378 = vsel %vm1377, %v1370, %v1374
    %v1379 = vand.u32 2147483647, %v1369
    %vm1380 = vcmp.eq.f32.partialorder %v1379, 8.507059e+37
    %v1381 = vand.u32 %v1369, 2147483648
    %v1382 = vor.u32 1.1754944e-38, %v1381
    %v1383 = vsel %vm1380, %v1382, %v1378
    %v1384 = vmul.f32 1.0, %v1383
    %v1385 = vtanh.pop %v1345
    %v1386 = vxor.u32 %v1346, 2147483648
    %v1387 = vmul.f32 %v1386, 1.442695
    %v1388 = vpow.pop %v1387
    %v1389 = vadd.f32 %v1388, 1.0
    %v1390 = vrcp.pop %v1389
    %v1391 = vmul.f32 %v1389, %v1390
    %v1392 = vsub.f32 1.0, %v1391
    %v1393 = vmul.f32 %v1390, %v1392
    %v1394 = vadd.f32 %v1390, %v1393
    %vm1395 = vweird.f32 %v1389
    %vm1396 = vweird.f32 %v1390
    %vm1397 = vmor %vm1395, %vm1396
    %v1398 = vsel %vm1397, %v1390, %v1394
    %v1399 = vand.u32 2147483647, %v1389
    %vm1400 = vcmp.eq.f32.partialorder %v1399, 8.507059e+37
    %v1401 = vand.u32 %v1389, 2147483648
    %v1402 = vor.u32 1.1754944e-38, %v1401
    %v1403 = vsel %vm1400, %v1402, %v1398
    %v1404 = vmul.f32 1.0, %v1403
    %v1405 = vmul.f32 %v1384, %v1086
    %v1406 = vmul.f32 %v1365, %v1385
    %v1407 = vadd.f32 %v1405, %v1406
    %v1408 = vtanh.pop %v1407
    %v1409 = vmul.f32 %v1404, %v1408
    %s1410 = scalar_lea.vmem [#allocation2], 16
    %1411 = vst [vmem:[%s1410] sm:$0xff] %v1409
    %s1412 = smul.u32 3, 4
    %s1413 = smul.addr %s1412, 8
    %s1414 = scalar_lea.vmem [#allocation3], %s1413
    %v1415 = vld [vmem:[%s1414] sm:$0xff]
    %v1416 = vld [vmem:[%s1414 + $0x8] sm:$0xff]
    %v1417 = vld [vmem:[%s1414 + $0x10] sm:$0xff]
    %v1418 = vld [vmem:[%s1414 + $0x18] sm:$0xff]
    %v1419 = vpack.c.bf16 %v1409, %v1409
    %v1420 = vld [vmem:[%s457] sm:$0xff]
    %v1421 = vld [vmem:[%s457 + $0x8] sm:$0xff]
    %v1422 = vld [vmem:[%s457 + $0x10] sm:$0xff]
    %v1423 = vld [vmem:[%s457 + $0x18] sm:$0xff]
    %v1424 = vld [vmem:[%s457 + $0x20] sm:$0xff]
    %v1425 = vld [vmem:[%s457 + $0x28] sm:$0xff]
    %v1426 = vld [vmem:[%s457 + $0x30] sm:$0xff]
    %v1427 = vld [vmem:[%s457 + $0x38] sm:$0xff]
    %v1428 = vld [vmem:[%s457 + $0x40] sm:$0xff]
    %v1429 = vld [vmem:[%s457 + $0x48] sm:$0xff]
    %v1430 = vld [vmem:[%s457 + $0x50] sm:$0xff]
    %v1431 = vld [vmem:[%s457 + $0x58] sm:$0xff]
    %v1432 = vld [vmem:[%s457 + $0x60] sm:$0xff]
    %v1433 = vld [vmem:[%s457 + $0x68] sm:$0xff]
    %v1434 = vld [vmem:[%s457 + $0x70] sm:$0xff]
    %v1435 = vld [vmem:[%s457 + $0x78] sm:$0xff]
    %v1436 = vld [vmem:[%s457 + $0x80] sm:$0xff]
    %v1437 = vld [vmem:[%s457 + $0x88] sm:$0xff]
    %v1438 = vld [vmem:[%s457 + $0x90] sm:$0xff]
    %v1439 = vld [vmem:[%s457 + $0x98] sm:$0xff]
    %v1440 = vld [vmem:[%s457 + $0xa0] sm:$0xff]
    %v1441 = vld [vmem:[%s457 + $0xa8] sm:$0xff]
    %v1442 = vld [vmem:[%s457 + $0xb0] sm:$0xff]
    %v1443 = vld [vmem:[%s457 + $0xb8] sm:$0xff]
    %v1444 = vld [vmem:[%s457 + $0xc0] sm:$0xff]
    %v1445 = vld [vmem:[%s457 + $0xc8] sm:$0xff]
    %v1446 = vld [vmem:[%s457 + $0xd0] sm:$0xff]
    %v1447 = vld [vmem:[%s457 + $0xd8] sm:$0xff]
    %v1448 = vld [vmem:[%s457 + $0xe0] sm:$0xff]
    %v1449 = vld [vmem:[%s457 + $0xe8] sm:$0xff]
    %v1450 = vld [vmem:[%s457 + $0xf0] sm:$0xff]
    %v1451 = vld [vmem:[%s457 + $0xf8] sm:$0xff]
    %v1484 = vunpack.c.l.b16 %v1420
    %v1485 = vunpack.c.h.b16 %v1420
    %v1486 = vunpack.c.l.b16 %v1421
    %v1487 = vunpack.c.h.b16 %v1421
    %v1488 = vunpack.c.l.b16 %v1422
    %v1489 = vunpack.c.h.b16 %v1422
    %v1490 = vunpack.c.l.b16 %v1423
    %v1491 = vunpack.c.h.b16 %v1423
    %v1492 = vunpack.c.l.b16 %v1424
    %v1493 = vunpack.c.h.b16 %v1424
    %v1494 = vunpack.c.l.b16 %v1425
    %v1495 = vunpack.c.h.b16 %v1425
    %v1496 = vunpack.c.l.b16 %v1426
    %v1497 = vunpack.c.h.b16 %v1426
    %v1498 = vunpack.c.l.b16 %v1427
    %v1499 = vunpack.c.h.b16 %v1427
    %v1500 = vunpack.c.l.b16 %v1428
    %v1501 = vunpack.c.h.b16 %v1428
    %v1502 = vunpack.c.l.b16 %v1429
    %v1503 = vunpack.c.h.b16 %v1429
    %v1504 = vunpack.c.l.b16 %v1430
    %v1505 = vunpack.c.h.b16 %v1430
    %v1506 = vunpack.c.l.b16 %v1431
    %v1507 = vunpack.c.h.b16 %v1431
    %v1508 = vunpack.c.l.b16 %v1432
    %v1509 = vunpack.c.h.b16 %v1432
    %v1510 = vunpack.c.l.b16 %v1433
    %v1511 = vunpack.c.h.b16 %v1433
    %v1512 = vunpack.c.l.b16 %v1434
    %v1513 = vunpack.c.h.b16 %v1434
    %v1514 = vunpack.c.l.b16 %v1435
    %v1515 = vunpack.c.h.b16 %v1435
    %v1516 = vunpack.c.l.b16 %v1436
    %v1517 = vunpack.c.h.b16 %v1436
    %v1518 = vunpack.c.l.b16 %v1437
    %v1519 = vunpack.c.h.b16 %v1437
    %v1520 = vunpack.c.l.b16 %v1438
    %v1521 = vunpack.c.h.b16 %v1438
    %v1522 = vunpack.c.l.b16 %v1439
    %v1523 = vunpack.c.h.b16 %v1439
    %v1524 = vunpack.c.l.b16 %v1440
    %v1525 = vunpack.c.h.b16 %v1440
    %v1526 = vunpack.c.l.b16 %v1441
    %v1527 = vunpack.c.h.b16 %v1441
    %v1528 = vunpack.c.l.b16 %v1442
    %v1529 = vunpack.c.h.b16 %v1442
    %v1530 = vunpack.c.l.b16 %v1443
    %v1531 = vunpack.c.h.b16 %v1443
    %v1532 = vunpack.c.l.b16 %v1444
    %v1533 = vunpack.c.h.b16 %v1444
    %v1534 = vunpack.c.l.b16 %v1445
    %v1535 = vunpack.c.h.b16 %v1445
    %v1536 = vunpack.c.l.b16 %v1446
    %v1537 = vunpack.c.h.b16 %v1446
    %v1538 = vunpack.c.l.b16 %v1447
    %v1539 = vunpack.c.h.b16 %v1447
    %v1540 = vunpack.c.l.b16 %v1448
    %v1541 = vunpack.c.h.b16 %v1448
    %v1542 = vunpack.c.l.b16 %v1449
    %v1543 = vunpack.c.h.b16 %v1449
    %v1544 = vunpack.c.l.b16 %v1450
    %v1545 = vunpack.c.h.b16 %v1450
    %v1546 = vunpack.c.l.b16 %v1451
    %v1547 = vunpack.c.h.b16 %v1451
    %v1548 = vpack.c.b16 %v1488, %v1484
    %v1549 = vpack.c.b16 %v1489, %v1485
    %v1550 = vpack.c.b16 %v1490, %v1486
    %v1551 = vpack.c.b16 %v1491, %v1487
    %v1552 = vpack.c.b16 %v1496, %v1492
    %v1553 = vpack.c.b16 %v1497, %v1493
    %v1554 = vpack.c.b16 %v1498, %v1494
    %v1555 = vpack.c.b16 %v1499, %v1495
    %v1556 = vpack.c.b16 %v1504, %v1500
    %v1557 = vpack.c.b16 %v1505, %v1501
    %v1558 = vpack.c.b16 %v1506, %v1502
    %v1559 = vpack.c.b16 %v1507, %v1503
    %v1560 = vpack.c.b16 %v1512, %v1508
    %v1561 = vpack.c.b16 %v1513, %v1509
    %v1562 = vpack.c.b16 %v1514, %v1510
    %v1563 = vpack.c.b16 %v1515, %v1511
    %v1564 = vpack.c.b16 %v1520, %v1516
    %v1565 = vpack.c.b16 %v1521, %v1517
    %v1566 = vpack.c.b16 %v1522, %v1518
    %v1567 = vpack.c.b16 %v1523, %v1519
    %v1568 = vpack.c.b16 %v1528, %v1524
    %v1569 = vpack.c.b16 %v1529, %v1525
    %v1570 = vpack.c.b16 %v1530, %v1526
    %v1571 = vpack.c.b16 %v1531, %v1527
    %v1572 = vpack.c.b16 %v1536, %v1532
    %v1573 = vpack.c.b16 %v1537, %v1533
    %v1574 = vpack.c.b16 %v1538, %v1534
    %v1575 = vpack.c.b16 %v1539, %v1535
    %v1576 = vpack.c.b16 %v1544, %v1540
    %v1577 = vpack.c.b16 %v1545, %v1541
    %v1578 = vpack.c.b16 %v1546, %v1542
    %v1579 = vpack.c.b16 %v1547, %v1543
    %1612 = vmatpush.bf16.msra.mxu0 %v1576
    %1613 = vmatpush.bf16.msra.mxu0 %v1572
    %1614 = vmatpush.bf16.msra.mxu0 %v1568
    %1615 = vmatpush.bf16.msra.mxu0 %v1564
    %1616 = vmatpush.bf16.msra.mxu0 %v1560
    %1617 = vmatpush.bf16.msra.mxu0 %v1556
    %1618 = vmatpush.bf16.msra.mxu0 %v1552
    %1619 = vmatpush.bf16.msra.mxu0 %v1548
    %1620 = vmatmul.bf16.gmra.mxu0 %v1419
    %v1621 = vpop.f32.mrf.mxu0
    %v1622 = vadd.f32 0.0, %v1621
    %v1623 = vpop.f32.mrf.mxu0
    %1624 = vdwg.mxu0
    %1625 = vmatpush.bf16.msra.mxu0 %v1577
    %1626 = vmatpush.bf16.msra.mxu0 %v1573
    %1627 = vmatpush.bf16.msra.mxu0 %v1569
    %1628 = vmatpush.bf16.msra.mxu0 %v1565
    %1629 = vmatpush.bf16.msra.mxu0 %v1561
    %1630 = vmatpush.bf16.msra.mxu0 %v1557
    %1631 = vmatpush.bf16.msra.mxu0 %v1553
    %1632 = vmatpush.bf16.msra.mxu0 %v1549
    %1633 = vmatmul.bf16.gmra.mxu0 %v1419
    %v1634 = vpop.f32.mrf.mxu0
    %v1635 = vadd.f32 0.0, %v1634
    %v1636 = vpop.f32.mrf.mxu0
    %1637 = vdwg.mxu0
    %1638 = vmatpush.bf16.msra.mxu0 %v1578
    %1639 = vmatpush.bf16.msra.mxu0 %v1574
    %1640 = vmatpush.bf16.msra.mxu0 %v1570
    %1641 = vmatpush.bf16.msra.mxu0 %v1566
    %1642 = vmatpush.bf16.msra.mxu0 %v1562
    %1643 = vmatpush.bf16.msra.mxu0 %v1558
    %1644 = vmatpush.bf16.msra.mxu0 %v1554
    %1645 = vmatpush.bf16.msra.mxu0 %v1550
    %1646 = vmatmul.bf16.gmra.mxu0 %v1419
    %v1647 = vpop.f32.mrf.mxu0
    %v1648 = vadd.f32 0.0, %v1647
    %v1649 = vpop.f32.mrf.mxu0
    %1650 = vdwg.mxu0
    %1651 = vmatpush.bf16.msra.mxu0 %v1579
    %1652 = vmatpush.bf16.msra.mxu0 %v1575
    %1653 = vmatpush.bf16.msra.mxu0 %v1571
    %1654 = vmatpush.bf16.msra.mxu0 %v1567
    %1655 = vmatpush.bf16.msra.mxu0 %v1563
    %1656 = vmatpush.bf16.msra.mxu0 %v1559
    %1657 = vmatpush.bf16.msra.mxu0 %v1555
    %1658 = vmatpush.bf16.msra.mxu0 %v1551
    %1659 = vmatmul.bf16.gmra.mxu0 %v1419
    %v1660 = vpop.f32.mrf.mxu0
    %v1661 = vadd.f32 0.0, %v1660
    %v1662 = vpop.f32.mrf.mxu0
    %1663 = vdwg.mxu0
    %v1664 = vadd.f32 %v1415, %v1622
    %v1665 = vadd.f32 %v1416, %v1635
    %v1666 = vadd.f32 %v1417, %v1648
    %v1667 = vadd.f32 %v1418, %v1661
    %v1668 = vxor.u32 %v1664, 2147483648
    %v1669 = vmul.f32 %v1668, 1.442695
    %v1670 = vpow.pop %v1669
    %v1671 = vadd.f32 %v1670, 1.0
    %v1672 = vrcp.pop %v1671
    %v1673 = vmul.f32 %v1671, %v1672
    %v1674 = vsub.f32 1.0, %v1673
    %v1675 = vmul.f32 %v1672, %v1674
    %v1676 = vadd.f32 %v1672, %v1675
    %vm1677 = vweird.f32 %v1671
    %vm1678 = vweird.f32 %v1672
    %vm1679 = vmor %vm1677, %vm1678
    %v1680 = vsel %vm1679, %v1672, %v1676
    %v1681 = vand.u32 2147483647, %v1671
    %vm1682 = vcmp.eq.f32.partialorder %v1681, 8.507059e+37
    %v1683 = vand.u32 %v1671, 2147483648
    %v1684 = vor.u32 1.1754944e-38, %v1683
    %v1685 = vsel %vm1682, %v1684, %v1680
    %v1686 = vmul.f32 1.0, %v1685
    %v1687 = vxor.u32 %v1665, 2147483648
    %v1688 = vmul.f32 %v1687, 1.442695
    %v1689 = vpow.pop %v1688
    %v1690 = vadd.f32 %v1689, 1.0
    %v1691 = vrcp.pop %v1690
    %v1692 = vmul.f32 %v1690, %v1691
    %v1693 = vsub.f32 1.0, %v1692
    %v1694 = vmul.f32 %v1691, %v1693
    %v1695 = vadd.f32 %v1691, %v1694
    %vm1696 = vweird.f32 %v1690
    %vm1697 = vweird.f32 %v1691
    %vm1698 = vmor %vm1696, %vm1697
    %v1699 = vsel %vm1698, %v1691, %v1695
    %v1700 = vand.u32 2147483647, %v1690
    %vm1701 = vcmp.eq.f32.partialorder %v1700, 8.507059e+37
    %v1702 = vand.u32 %v1690, 2147483648
    %v1703 = vor.u32 1.1754944e-38, %v1702
    %v1704 = vsel %vm1701, %v1703, %v1699
    %v1705 = vmul.f32 1.0, %v1704
    %v1706 = vtanh.pop %v1666
    %v1707 = vxor.u32 %v1667, 2147483648
    %v1708 = vmul.f32 %v1707, 1.442695
    %v1709 = vpow.pop %v1708
    %v1710 = vadd.f32 %v1709, 1.0
    %v1711 = vrcp.pop %v1710
    %v1712 = vmul.f32 %v1710, %v1711
    %v1713 = vsub.f32 1.0, %v1712
    %v1714 = vmul.f32 %v1711, %v1713
    %v1715 = vadd.f32 %v1711, %v1714
    %vm1716 = vweird.f32 %v1710
    %vm1717 = vweird.f32 %v1711
    %vm1718 = vmor %vm1716, %vm1717
    %v1719 = vsel %vm1718, %v1711, %v1715
    %v1720 = vand.u32 2147483647, %v1710
    %vm1721 = vcmp.eq.f32.partialorder %v1720, 8.507059e+37
    %v1722 = vand.u32 %v1710, 2147483648
    %v1723 = vor.u32 1.1754944e-38, %v1722
    %v1724 = vsel %vm1721, %v1723, %v1719
    %v1725 = vmul.f32 1.0, %v1724
    %v1726 = vmul.f32 %v1705, %v1407
    %v1727 = vmul.f32 %v1686, %v1706
    %v1728 = vadd.f32 %v1726, %v1727
    %v1729 = vtanh.pop %v1728
    %v1730 = vmul.f32 %v1725, %v1729
    %s1731 = scalar_lea.vmem [#allocation2], 24
    %1732 = vst [vmem:[%s1731] sm:$0xff] %v1730
    %s1733 = smul.u32 4, 4
    %s1734 = smul.addr %s1733, 8
    %s1735 = scalar_lea.vmem [#allocation3], %s1734
    %v1736 = vld [vmem:[%s1735] sm:$0xff]
    %v1737 = vld [vmem:[%s1735 + $0x8] sm:$0xff]
    %v1738 = vld [vmem:[%s1735 + $0x10] sm:$0xff]
    %v1739 = vld [vmem:[%s1735 + $0x18] sm:$0xff]
    %v1740 = vpack.c.bf16 %v1730, %v1730
    %v1741 = vld [vmem:[%s457] sm:$0xff]
    %v1742 = vld [vmem:[%s457 + $0x8] sm:$0xff]
    %v1743 = vld [vmem:[%s457 + $0x10] sm:$0xff]
    %v1744 = vld [vmem:[%s457 + $0x18] sm:$0xff]
    %v1745 = vld [vmem:[%s457 + $0x20] sm:$0xff]
    %v1746 = vld [vmem:[%s457 + $0x28] sm:$0xff]
    %v1747 = vld [vmem:[%s457 + $0x30] sm:$0xff]
    %v1748 = vld [vmem:[%s457 + $0x38] sm:$0xff]
    %v1749 = vld [vmem:[%s457 + $0x40] sm:$0xff]
    %v1750 = vld [vmem:[%s457 + $0x48] sm:$0xff]
    %v1751 = vld [vmem:[%s457 + $0x50] sm:$0xff]
    %v1752 = vld [vmem:[%s457 + $0x58] sm:$0xff]
    %v1753 = vld [vmem:[%s457 + $0x60] sm:$0xff]
    %v1754 = vld [vmem:[%s457 + $0x68] sm:$0xff]
    %v1755 = vld [vmem:[%s457 + $0x70] sm:$0xff]
    %v1756 = vld [vmem:[%s457 + $0x78] sm:$0xff]
    %v1757 = vld [vmem:[%s457 + $0x80] sm:$0xff]
    %v1758 = vld [vmem:[%s457 + $0x88] sm:$0xff]
    %v1759 = vld [vmem:[%s457 + $0x90] sm:$0xff]
    %v1760 = vld [vmem:[%s457 + $0x98] sm:$0xff]
    %v1761 = vld [vmem:[%s457 + $0xa0] sm:$0xff]
    %v1762 = vld [vmem:[%s457 + $0xa8] sm:$0xff]
    %v1763 = vld [vmem:[%s457 + $0xb0] sm:$0xff]
    %v1764 = vld [vmem:[%s457 + $0xb8] sm:$0xff]
    %v1765 = vld [vmem:[%s457 + $0xc0] sm:$0xff]
    %v1766 = vld [vmem:[%s457 + $0xc8] sm:$0xff]
    %v1767 = vld [vmem:[%s457 + $0xd0] sm:$0xff]
    %v1768 = vld [vmem:[%s457 + $0xd8] sm:$0xff]
    %v1769 = vld [vmem:[%s457 + $0xe0] sm:$0xff]
    %v1770 = vld [vmem:[%s457 + $0xe8] sm:$0xff]
    %v1771 = vld [vmem:[%s457 + $0xf0] sm:$0xff]
    %v1772 = vld [vmem:[%s457 + $0xf8] sm:$0xff]
    %v1805 = vunpack.c.l.b16 %v1741
    %v1806 = vunpack.c.h.b16 %v1741
    %v1807 = vunpack.c.l.b16 %v1742
    %v1808 = vunpack.c.h.b16 %v1742
    %v1809 = vunpack.c.l.b16 %v1743
    %v1810 = vunpack.c.h.b16 %v1743
    %v1811 = vunpack.c.l.b16 %v1744
    %v1812 = vunpack.c.h.b16 %v1744
    %v1813 = vunpack.c.l.b16 %v1745
    %v1814 = vunpack.c.h.b16 %v1745
    %v1815 = vunpack.c.l.b16 %v1746
    %v1816 = vunpack.c.h.b16 %v1746
    %v1817 = vunpack.c.l.b16 %v1747
    %v1818 = vunpack.c.h.b16 %v1747
    %v1819 = vunpack.c.l.b16 %v1748
    %v1820 = vunpack.c.h.b16 %v1748
    %v1821 = vunpack.c.l.b16 %v1749
    %v1822 = vunpack.c.h.b16 %v1749
    %v1823 = vunpack.c.l.b16 %v1750
    %v1824 = vunpack.c.h.b16 %v1750
    %v1825 = vunpack.c.l.b16 %v1751
    %v1826 = vunpack.c.h.b16 %v1751
    %v1827 = vunpack.c.l.b16 %v1752
    %v1828 = vunpack.c.h.b16 %v1752
    %v1829 = vunpack.c.l.b16 %v1753
    %v1830 = vunpack.c.h.b16 %v1753
    %v1831 = vunpack.c.l.b16 %v1754
    %v1832 = vunpack.c.h.b16 %v1754
    %v1833 = vunpack.c.l.b16 %v1755
    %v1834 = vunpack.c.h.b16 %v1755
    %v1835 = vunpack.c.l.b16 %v1756
    %v1836 = vunpack.c.h.b16 %v1756
    %v1837 = vunpack.c.l.b16 %v1757
    %v1838 = vunpack.c.h.b16 %v1757
    %v1839 = vunpack.c.l.b16 %v1758
    %v1840 = vunpack.c.h.b16 %v1758
    %v1841 = vunpack.c.l.b16 %v1759
    %v1842 = vunpack.c.h.b16 %v1759
    %v1843 = vunpack.c.l.b16 %v1760
    %v1844 = vunpack.c.h.b16 %v1760
    %v1845 = vunpack.c.l.b16 %v1761
    %v1846 = vunpack.c.h.b16 %v1761
    %v1847 = vunpack.c.l.b16 %v1762
    %v1848 = vunpack.c.h.b16 %v1762
    %v1849 = vunpack.c.l.b16 %v1763
    %v1850 = vunpack.c.h.b16 %v1763
    %v1851 = vunpack.c.l.b16 %v1764
    %v1852 = vunpack.c.h.b16 %v1764
    %v1853 = vunpack.c.l.b16 %v1765
    %v1854 = vunpack.c.h.b16 %v1765
    %v1855 = vunpack.c.l.b16 %v1766
    %v1856 = vunpack.c.h.b16 %v1766
    %v1857 = vunpack.c.l.b16 %v1767
    %v1858 = vunpack.c.h.b16 %v1767
    %v1859 = vunpack.c.l.b16 %v1768
    %v1860 = vunpack.c.h.b16 %v1768
    %v1861 = vunpack.c.l.b16 %v1769
    %v1862 = vunpack.c.h.b16 %v1769
    %v1863 = vunpack.c.l.b16 %v1770
    %v1864 = vunpack.c.h.b16 %v1770
    %v1865 = vunpack.c.l.b16 %v1771
    %v1866 = vunpack.c.h.b16 %v1771
    %v1867 = vunpack.c.l.b16 %v1772
    %v1868 = vunpack.c.h.b16 %v1772
    %v1869 = vpack.c.b16 %v1809, %v1805
    %v1870 = vpack.c.b16 %v1810, %v1806
    %v1871 = vpack.c.b16 %v1811, %v1807
    %v1872 = vpack.c.b16 %v1812, %v1808
    %v1873 = vpack.c.b16 %v1817, %v1813
    %v1874 = vpack.c.b16 %v1818, %v1814
    %v1875 = vpack.c.b16 %v1819, %v1815
    %v1876 = vpack.c.b16 %v1820, %v1816
    %v1877 = vpack.c.b16 %v1825, %v1821
    %v1878 = vpack.c.b16 %v1826, %v1822
    %v1879 = vpack.c.b16 %v1827, %v1823
    %v1880 = vpack.c.b16 %v1828, %v1824
    %v1881 = vpack.c.b16 %v1833, %v1829
    %v1882 = vpack.c.b16 %v1834, %v1830
    %v1883 = vpack.c.b16 %v1835, %v1831
    %v1884 = vpack.c.b16 %v1836, %v1832
    %v1885 = vpack.c.b16 %v1841, %v1837
    %v1886 = vpack.c.b16 %v1842, %v1838
    %v1887 = vpack.c.b16 %v1843, %v1839
    %v1888 = vpack.c.b16 %v1844, %v1840
    %v1889 = vpack.c.b16 %v1849, %v1845
    %v1890 = vpack.c.b16 %v1850, %v1846
    %v1891 = vpack.c.b16 %v1851, %v1847
    %v1892 = vpack.c.b16 %v1852, %v1848
    %v1893 = vpack.c.b16 %v1857, %v1853
    %v1894 = vpack.c.b16 %v1858, %v1854
    %v1895 = vpack.c.b16 %v1859, %v1855
    %v1896 = vpack.c.b16 %v1860, %v1856
    %v1897 = vpack.c.b16 %v1865, %v1861
    %v1898 = vpack.c.b16 %v1866, %v1862
    %v1899 = vpack.c.b16 %v1867, %v1863
    %v1900 = vpack.c.b16 %v1868, %v1864
    %1933 = vmatpush.bf16.msra.mxu0 %v1897
    %1934 = vmatpush.bf16.msra.mxu0 %v1893
    %1935 = vmatpush.bf16.msra.mxu0 %v1889
    %1936 = vmatpush.bf16.msra.mxu0 %v1885
    %1937 = vmatpush.bf16.msra.mxu0 %v1881
    %1938 = vmatpush.bf16.msra.mxu0 %v1877
    %1939 = vmatpush.bf16.msra.mxu0 %v1873
    %1940 = vmatpush.bf16.msra.mxu0 %v1869
    %1941 = vmatmul.bf16.gmra.mxu0 %v1740
    %v1942 = vpop.f32.mrf.mxu0
    %v1943 = vadd.f32 0.0, %v1942
    %v1944 = vpop.f32.mrf.mxu0
    %1945 = vdwg.mxu0
    %1946 = vmatpush.bf16.msra.mxu0 %v1898
    %1947 = vmatpush.bf16.msra.mxu0 %v1894
    %1948 = vmatpush.bf16.msra.mxu0 %v1890
    %1949 = vmatpush.bf16.msra.mxu0 %v1886
    %1950 = vmatpush.bf16.msra.mxu0 %v1882
    %1951 = vmatpush.bf16.msra.mxu0 %v1878
    %1952 = vmatpush.bf16.msra.mxu0 %v1874
    %1953 = vmatpush.bf16.msra.mxu0 %v1870
    %1954 = vmatmul.bf16.gmra.mxu0 %v1740
    %v1955 = vpop.f32.mrf.mxu0
    %v1956 = vadd.f32 0.0, %v1955
    %v1957 = vpop.f32.mrf.mxu0
    %1958 = vdwg.mxu0
    %1959 = vmatpush.bf16.msra.mxu0 %v1899
    %1960 = vmatpush.bf16.msra.mxu0 %v1895
    %1961 = vmatpush.bf16.msra.mxu0 %v1891
    %1962 = vmatpush.bf16.msra.mxu0 %v1887
    %1963 = vmatpush.bf16.msra.mxu0 %v1883
    %1964 = vmatpush.bf16.msra.mxu0 %v1879
    %1965 = vmatpush.bf16.msra.mxu0 %v1875
    %1966 = vmatpush.bf16.msra.mxu0 %v1871
    %1967 = vmatmul.bf16.gmra.mxu0 %v1740
    %v1968 = vpop.f32.mrf.mxu0
    %v1969 = vadd.f32 0.0, %v1968
    %v1970 = vpop.f32.mrf.mxu0
    %1971 = vdwg.mxu0
    %1972 = vmatpush.bf16.msra.mxu0 %v1900
    %1973 = vmatpush.bf16.msra.mxu0 %v1896
    %1974 = vmatpush.bf16.msra.mxu0 %v1892
    %1975 = vmatpush.bf16.msra.mxu0 %v1888
    %1976 = vmatpush.bf16.msra.mxu0 %v1884
    %1977 = vmatpush.bf16.msra.mxu0 %v1880
    %1978 = vmatpush.bf16.msra.mxu0 %v1876
    %1979 = vmatpush.bf16.msra.mxu0 %v1872
    %1980 = vmatmul.bf16.gmra.mxu0 %v1740
    %v1981 = vpop.f32.mrf.mxu0
    %v1982 = vadd.f32 0.0, %v1981
    %v1983 = vpop.f32.mrf.mxu0
    %1984 = vdwg.mxu0
    %v1985 = vadd.f32 %v1736, %v1943
    %v1986 = vadd.f32 %v1737, %v1956
    %v1987 = vadd.f32 %v1738, %v1969
    %v1988 = vadd.f32 %v1739, %v1982
    %v1989 = vxor.u32 %v1985, 2147483648
    %v1990 = vmul.f32 %v1989, 1.442695
    %v1991 = vpow.pop %v1990
    %v1992 = vadd.f32 %v1991, 1.0
    %v1993 = vrcp.pop %v1992
    %v1994 = vmul.f32 %v1992, %v1993
    %v1995 = vsub.f32 1.0, %v1994
    %v1996 = vmul.f32 %v1993, %v1995
    %v1997 = vadd.f32 %v1993, %v1996
    %vm1998 = vweird.f32 %v1992
    %vm1999 = vweird.f32 %v1993
    %vm2000 = vmor %vm1998, %vm1999
    %v2001 = vsel %vm2000, %v1993, %v1997
    %v2002 = vand.u32 2147483647, %v1992
    %vm2003 = vcmp.eq.f32.partialorder %v2002, 8.507059e+37
    %v2004 = vand.u32 %v1992, 2147483648
    %v2005 = vor.u32 1.1754944e-38, %v2004
    %v2006 = vsel %vm2003, %v2005, %v2001
    %v2007 = vmul.f32 1.0, %v2006
    %v2008 = vxor.u32 %v1986, 2147483648
    %v2009 = vmul.f32 %v2008, 1.442695
    %v2010 = vpow.pop %v2009
    %v2011 = vadd.f32 %v2010, 1.0
    %v2012 = vrcp.pop %v2011
    %v2013 = vmul.f32 %v2011, %v2012
    %v2014 = vsub.f32 1.0, %v2013
    %v2015 = vmul.f32 %v2012, %v2014
    %v2016 = vadd.f32 %v2012, %v2015
    %vm2017 = vweird.f32 %v2011
    %vm2018 = vweird.f32 %v2012
    %vm2019 = vmor %vm2017, %vm2018
    %v2020 = vsel %vm2019, %v2012, %v2016
    %v2021 = vand.u32 2147483647, %v2011
    %vm2022 = vcmp.eq.f32.partialorder %v2021, 8.507059e+37
    %v2023 = vand.u32 %v2011, 2147483648
    %v2024 = vor.u32 1.1754944e-38, %v2023
    %v2025 = vsel %vm2022, %v2024, %v2020
    %v2026 = vmul.f32 1.0, %v2025
    %v2027 = vtanh.pop %v1987
    %v2028 = vxor.u32 %v1988, 2147483648
    %v2029 = vmul.f32 %v2028, 1.442695
    %v2030 = vpow.pop %v2029
    %v2031 = vadd.f32 %v2030, 1.0
    %v2032 = vrcp.pop %v2031
    %v2033 = vmul.f32 %v2031, %v2032
    %v2034 = vsub.f32 1.0, %v2033
    %v2035 = vmul.f32 %v2032, %v2034
    %v2036 = vadd.f32 %v2032, %v2035
    %vm2037 = vweird.f32 %v2031
    %vm2038 = vweird.f32 %v2032
    %vm2039 = vmor %vm2037, %vm2038
    %v2040 = vsel %vm2039, %v2032, %v2036
    %v2041 = vand.u32 2147483647, %v2031
    %vm2042 = vcmp.eq.f32.partialorder %v2041, 8.507059e+37
    %v2043 = vand.u32 %v2031, 2147483648
    %v2044 = vor.u32 1.1754944e-38, %v2043
    %v2045 = vsel %vm2042, %v2044, %v2040
    %v2046 = vmul.f32 1.0, %v2045
    %v2047 = vmul.f32 %v2026, %v1728
    %v2048 = vmul.f32 %v2007, %v2027
    %v2049 = vadd.f32 %v2047, %v2048
    %v2050 = vtanh.pop %v2049
    %v2051 = vmul.f32 %v2046, %v2050
    %s2052 = scalar_lea.vmem [#allocation2], 32
    %2053 = vst [vmem:[%s2052] sm:$0xff] %v2051
    %s2054 = smul.u32 5, 4
    %s2055 = smul.addr %s2054, 8
    %s2056 = scalar_lea.vmem [#allocation3], %s2055
    %v2057 = vld [vmem:[%s2056] sm:$0xff]
    %v2058 = vld [vmem:[%s2056 + $0x8] sm:$0xff]
    %v2059 = vld [vmem:[%s2056 + $0x10] sm:$0xff]
    %v2060 = vld [vmem:[%s2056 + $0x18] sm:$0xff]
    %v2061 = vpack.c.bf16 %v2051, %v2051
    %v2062 = vld [vmem:[%s457] sm:$0xff]
    %v2063 = vld [vmem:[%s457 + $0x8] sm:$0xff]
    %v2064 = vld [vmem:[%s457 + $0x10] sm:$0xff]
    %v2065 = vld [vmem:[%s457 + $0x18] sm:$0xff]
    %v2066 = vld [vmem:[%s457 + $0x20] sm:$0xff]
    %v2067 = vld [vmem:[%s457 + $0x28] sm:$0xff]
    %v2068 = vld [vmem:[%s457 + $0x30] sm:$0xff]
    %v2069 = vld [vmem:[%s457 + $0x38] sm:$0xff]
    %v2070 = vld [vmem:[%s457 + $0x40] sm:$0xff]
    %v2071 = vld [vmem:[%s457 + $0x48] sm:$0xff]
    %v2072 = vld [vmem:[%s457 + $0x50] sm:$0xff]
    %v2073 = vld [vmem:[%s457 + $0x58] sm:$0xff]
    %v2074 = vld [vmem:[%s457 + $0x60] sm:$0xff]
    %v2075 = vld [vmem:[%s457 + $0x68] sm:$0xff]
    %v2076 = vld [vmem:[%s457 + $0x70] sm:$0xff]
    %v2077 = vld [vmem:[%s457 + $0x78] sm:$0xff]
    %v2078 = vld [vmem:[%s457 + $0x80] sm:$0xff]
    %v2079 = vld [vmem:[%s457 + $0x88] sm:$0xff]
    %v2080 = vld [vmem:[%s457 + $0x90] sm:$0xff]
    %v2081 = vld [vmem:[%s457 + $0x98] sm:$0xff]
    %v2082 = vld [vmem:[%s457 + $0xa0] sm:$0xff]
    %v2083 = vld [vmem:[%s457 + $0xa8] sm:$0xff]
    %v2084 = vld [vmem:[%s457 + $0xb0] sm:$0xff]
    %v2085 = vld [vmem:[%s457 + $0xb8] sm:$0xff]
    %v2086 = vld [vmem:[%s457 + $0xc0] sm:$0xff]
    %v2087 = vld [vmem:[%s457 + $0xc8] sm:$0xff]
    %v2088 = vld [vmem:[%s457 + $0xd0] sm:$0xff]
    %v2089 = vld [vmem:[%s457 + $0xd8] sm:$0xff]
    %v2090 = vld [vmem:[%s457 + $0xe0] sm:$0xff]
    %v2091 = vld [vmem:[%s457 + $0xe8] sm:$0xff]
    %v2092 = vld [vmem:[%s457 + $0xf0] sm:$0xff]
    %v2093 = vld [vmem:[%s457 + $0xf8] sm:$0xff]
    %v2126 = vunpack.c.l.b16 %v2062
    %v2127 = vunpack.c.h.b16 %v2062
    %v2128 = vunpack.c.l.b16 %v2063
    %v2129 = vunpack.c.h.b16 %v2063
    %v2130 = vunpack.c.l.b16 %v2064
    %v2131 = vunpack.c.h.b16 %v2064
    %v2132 = vunpack.c.l.b16 %v2065
    %v2133 = vunpack.c.h.b16 %v2065
    %v2134 = vunpack.c.l.b16 %v2066
    %v2135 = vunpack.c.h.b16 %v2066
    %v2136 = vunpack.c.l.b16 %v2067
    %v2137 = vunpack.c.h.b16 %v2067
    %v2138 = vunpack.c.l.b16 %v2068
    %v2139 = vunpack.c.h.b16 %v2068
    %v2140 = vunpack.c.l.b16 %v2069
    %v2141 = vunpack.c.h.b16 %v2069
    %v2142 = vunpack.c.l.b16 %v2070
    %v2143 = vunpack.c.h.b16 %v2070
    %v2144 = vunpack.c.l.b16 %v2071
    %v2145 = vunpack.c.h.b16 %v2071
    %v2146 = vunpack.c.l.b16 %v2072
    %v2147 = vunpack.c.h.b16 %v2072
    %v2148 = vunpack.c.l.b16 %v2073
    %v2149 = vunpack.c.h.b16 %v2073
    %v2150 = vunpack.c.l.b16 %v2074
    %v2151 = vunpack.c.h.b16 %v2074
    %v2152 = vunpack.c.l.b16 %v2075
    %v2153 = vunpack.c.h.b16 %v2075
    %v2154 = vunpack.c.l.b16 %v2076
    %v2155 = vunpack.c.h.b16 %v2076
    %v2156 = vunpack.c.l.b16 %v2077
    %v2157 = vunpack.c.h.b16 %v2077
    %v2158 = vunpack.c.l.b16 %v2078
    %v2159 = vunpack.c.h.b16 %v2078
    %v2160 = vunpack.c.l.b16 %v2079
    %v2161 = vunpack.c.h.b16 %v2079
    %v2162 = vunpack.c.l.b16 %v2080
    %v2163 = vunpack.c.h.b16 %v2080
    %v2164 = vunpack.c.l.b16 %v2081
    %v2165 = vunpack.c.h.b16 %v2081
    %v2166 = vunpack.c.l.b16 %v2082
    %v2167 = vunpack.c.h.b16 %v2082
    %v2168 = vunpack.c.l.b16 %v2083
    %v2169 = vunpack.c.h.b16 %v2083
    %v2170 = vunpack.c.l.b16 %v2084
    %v2171 = vunpack.c.h.b16 %v2084
    %v2172 = vunpack.c.l.b16 %v2085
    %v2173 = vunpack.c.h.b16 %v2085
    %v2174 = vunpack.c.l.b16 %v2086
    %v2175 = vunpack.c.h.b16 %v2086
    %v2176 = vunpack.c.l.b16 %v2087
    %v2177 = vunpack.c.h.b16 %v2087
    %v2178 = vunpack.c.l.b16 %v2088
    %v2179 = vunpack.c.h.b16 %v2088
    %v2180 = vunpack.c.l.b16 %v2089
    %v2181 = vunpack.c.h.b16 %v2089
    %v2182 = vunpack.c.l.b16 %v2090
    %v2183 = vunpack.c.h.b16 %v2090
    %v2184 = vunpack.c.l.b16 %v2091
    %v2185 = vunpack.c.h.b16 %v2091
    %v2186 = vunpack.c.l.b16 %v2092
    %v2187 = vunpack.c.h.b16 %v2092
    %v2188 = vunpack.c.l.b16 %v2093
    %v2189 = vunpack.c.h.b16 %v2093
    %v2190 = vpack.c.b16 %v2130, %v2126
    %v2191 = vpack.c.b16 %v2131, %v2127
    %v2192 = vpack.c.b16 %v2132, %v2128
    %v2193 = vpack.c.b16 %v2133, %v2129
    %v2194 = vpack.c.b16 %v2138, %v2134
    %v2195 = vpack.c.b16 %v2139, %v2135
    %v2196 = vpack.c.b16 %v2140, %v2136
    %v2197 = vpack.c.b16 %v2141, %v2137
    %v2198 = vpack.c.b16 %v2146, %v2142
    %v2199 = vpack.c.b16 %v2147, %v2143
    %v2200 = vpack.c.b16 %v2148, %v2144
    %v2201 = vpack.c.b16 %v2149, %v2145
    %v2202 = vpack.c.b16 %v2154, %v2150
    %v2203 = vpack.c.b16 %v2155, %v2151
    %v2204 = vpack.c.b16 %v2156, %v2152
    %v2205 = vpack.c.b16 %v2157, %v2153
    %v2206 = vpack.c.b16 %v2162, %v2158
    %v2207 = vpack.c.b16 %v2163, %v2159
    %v2208 = vpack.c.b16 %v2164, %v2160
    %v2209 = vpack.c.b16 %v2165, %v2161
    %v2210 = vpack.c.b16 %v2170, %v2166
    %v2211 = vpack.c.b16 %v2171, %v2167
    %v2212 = vpack.c.b16 %v2172, %v2168
    %v2213 = vpack.c.b16 %v2173, %v2169
    %v2214 = vpack.c.b16 %v2178, %v2174
    %v2215 = vpack.c.b16 %v2179, %v2175
    %v2216 = vpack.c.b16 %v2180, %v2176
    %v2217 = vpack.c.b16 %v2181, %v2177
    %v2218 = vpack.c.b16 %v2186, %v2182
    %v2219 = vpack.c.b16 %v2187, %v2183
    %v2220 = vpack.c.b16 %v2188, %v2184
    %v2221 = vpack.c.b16 %v2189, %v2185
    %2254 = vmatpush.bf16.msra.mxu0 %v2218
    %2255 = vmatpush.bf16.msra.mxu0 %v2214
    %2256 = vmatpush.bf16.msra.mxu0 %v2210
    %2257 = vmatpush.bf16.msra.mxu0 %v2206
    %2258 = vmatpush.bf16.msra.mxu0 %v2202
    %2259 = vmatpush.bf16.msra.mxu0 %v2198
    %2260 = vmatpush.bf16.msra.mxu0 %v2194
    %2261 = vmatpush.bf16.msra.mxu0 %v2190
    %2262 = vmatmul.bf16.gmra.mxu0 %v2061
    %v2263 = vpop.f32.mrf.mxu0
    %v2264 = vadd.f32 0.0, %v2263
    %v2265 = vpop.f32.mrf.mxu0
    %2266 = vdwg.mxu0
    %2267 = vmatpush.bf16.msra.mxu0 %v2219
    %2268 = vmatpush.bf16.msra.mxu0 %v2215
    %2269 = vmatpush.bf16.msra.mxu0 %v2211
    %2270 = vmatpush.bf16.msra.mxu0 %v2207
    %2271 = vmatpush.bf16.msra.mxu0 %v2203
    %2272 = vmatpush.bf16.msra.mxu0 %v2199
    %2273 = vmatpush.bf16.msra.mxu0 %v2195
    %2274 = vmatpush.bf16.msra.mxu0 %v2191
    %2275 = vmatmul.bf16.gmra.mxu0 %v2061
    %v2276 = vpop.f32.mrf.mxu0
    %v2277 = vadd.f32 0.0, %v2276
    %v2278 = vpop.f32.mrf.mxu0
    %2279 = vdwg.mxu0
    %2280 = vmatpush.bf16.msra.mxu0 %v2220
    %2281 = vmatpush.bf16.msra.mxu0 %v2216
    %2282 = vmatpush.bf16.msra.mxu0 %v2212
    %2283 = vmatpush.bf16.msra.mxu0 %v2208
    %2284 = vmatpush.bf16.msra.mxu0 %v2204
    %2285 = vmatpush.bf16.msra.mxu0 %v2200
    %2286 = vmatpush.bf16.msra.mxu0 %v2196
    %2287 = vmatpush.bf16.msra.mxu0 %v2192
    %2288 = vmatmul.bf16.gmra.mxu0 %v2061
    %v2289 = vpop.f32.mrf.mxu0
    %v2290 = vadd.f32 0.0, %v2289
    %v2291 = vpop.f32.mrf.mxu0
    %2292 = vdwg.mxu0
    %2293 = vmatpush.bf16.msra.mxu0 %v2221
    %2294 = vmatpush.bf16.msra.mxu0 %v2217
    %2295 = vmatpush.bf16.msra.mxu0 %v2213
    %2296 = vmatpush.bf16.msra.mxu0 %v2209
    %2297 = vmatpush.bf16.msra.mxu0 %v2205
    %2298 = vmatpush.bf16.msra.mxu0 %v2201
    %2299 = vmatpush.bf16.msra.mxu0 %v2197
    %2300 = vmatpush.bf16.msra.mxu0 %v2193
    %2301 = vmatmul.bf16.gmra.mxu0 %v2061
    %v2302 = vpop.f32.mrf.mxu0
    %v2303 = vadd.f32 0.0, %v2302
    %v2304 = vpop.f32.mrf.mxu0
    %2305 = vdwg.mxu0
    %v2306 = vadd.f32 %v2057, %v2264
    %v2307 = vadd.f32 %v2058, %v2277
    %v2308 = vadd.f32 %v2059, %v2290
    %v2309 = vadd.f32 %v2060, %v2303
    %v2310 = vxor.u32 %v2306, 2147483648
    %v2311 = vmul.f32 %v2310, 1.442695
    %v2312 = vpow.pop %v2311
    %v2313 = vadd.f32 %v2312, 1.0
    %v2314 = vrcp.pop %v2313
    %v2315 = vmul.f32 %v2313, %v2314
    %v2316 = vsub.f32 1.0, %v2315
    %v2317 = vmul.f32 %v2314, %v2316
    %v2318 = vadd.f32 %v2314, %v2317
    %vm2319 = vweird.f32 %v2313
    %vm2320 = vweird.f32 %v2314
    %vm2321 = vmor %vm2319, %vm2320
    %v2322 = vsel %vm2321, %v2314, %v2318
    %v2323 = vand.u32 2147483647, %v2313
    %vm2324 = vcmp.eq.f32.partialorder %v2323, 8.507059e+37
    %v2325 = vand.u32 %v2313, 2147483648
    %v2326 = vor.u32 1.1754944e-38, %v2325
    %v2327 = vsel %vm2324, %v2326, %v2322
    %v2328 = vmul.f32 1.0, %v2327
    %v2329 = vxor.u32 %v2307, 2147483648
    %v2330 = vmul.f32 %v2329, 1.442695
    %v2331 = vpow.pop %v2330
    %v2332 = vadd.f32 %v2331, 1.0
    %v2333 = vrcp.pop %v2332
    %v2334 = vmul.f32 %v2332, %v2333
    %v2335 = vsub.f32 1.0, %v2334
    %v2336 = vmul.f32 %v2333, %v2335
    %v2337 = vadd.f32 %v2333, %v2336
    %vm2338 = vweird.f32 %v2332
    %vm2339 = vweird.f32 %v2333
    %vm2340 = vmor %vm2338, %vm2339
    %v2341 = vsel %vm2340, %v2333, %v2337
    %v2342 = vand.u32 2147483647, %v2332
    %vm2343 = vcmp.eq.f32.partialorder %v2342, 8.507059e+37
    %v2344 = vand.u32 %v2332, 2147483648
    %v2345 = vor.u32 1.1754944e-38, %v2344
    %v2346 = vsel %vm2343, %v2345, %v2341
    %v2347 = vmul.f32 1.0, %v2346
    %v2348 = vtanh.pop %v2308
    %v2349 = vxor.u32 %v2309, 2147483648
    %v2350 = vmul.f32 %v2349, 1.442695
    %v2351 = vpow.pop %v2350
    %v2352 = vadd.f32 %v2351, 1.0
    %v2353 = vrcp.pop %v2352
    %v2354 = vmul.f32 %v2352, %v2353
    %v2355 = vsub.f32 1.0, %v2354
    %v2356 = vmul.f32 %v2353, %v2355
    %v2357 = vadd.f32 %v2353, %v2356
    %vm2358 = vweird.f32 %v2352
    %vm2359 = vweird.f32 %v2353
    %vm2360 = vmor %vm2358, %vm2359
    %v2361 = vsel %vm2360, %v2353, %v2357
    %v2362 = vand.u32 2147483647, %v2352
    %vm2363 = vcmp.eq.f32.partialorder %v2362, 8.507059e+37
    %v2364 = vand.u32 %v2352, 2147483648
    %v2365 = vor.u32 1.1754944e-38, %v2364
    %v2366 = vsel %vm2363, %v2365, %v2361
    %v2367 = vmul.f32 1.0, %v2366
    %v2368 = vmul.f32 %v2347, %v2049
    %v2369 = vmul.f32 %v2328, %v2348
    %v2370 = vadd.f32 %v2368, %v2369
    %v2371 = vtanh.pop %v2370
    %v2372 = vmul.f32 %v2367, %v2371
    %s2373 = scalar_lea.vmem [#allocation2], 40
    %2374 = vst [vmem:[%s2373] sm:$0xff] %v2372
    %s2375 = smul.u32 6, 4
    %s2376 = smul.addr %s2375, 8
    %s2377 = scalar_lea.vmem [#allocation3], %s2376
    %v2378 = vld [vmem:[%s2377] sm:$0xff]
    %v2379 = vld [vmem:[%s2377 + $0x8] sm:$0xff]
    %v2380 = vld [vmem:[%s2377 + $0x10] sm:$0xff]
    %v2381 = vld [vmem:[%s2377 + $0x18] sm:$0xff]
    %v2382 = vpack.c.bf16 %v2372, %v2372
    %v2383 = vld [vmem:[%s457] sm:$0xff]
    %v2384 = vld [vmem:[%s457 + $0x8] sm:$0xff]
    %v2385 = vld [vmem:[%s457 + $0x10] sm:$0xff]
    %v2386 = vld [vmem:[%s457 + $0x18] sm:$0xff]
    %v2387 = vld [vmem:[%s457 + $0x20] sm:$0xff]
    %v2388 = vld [vmem:[%s457 + $0x28] sm:$0xff]
    %v2389 = vld [vmem:[%s457 + $0x30] sm:$0xff]
    %v2390 = vld [vmem:[%s457 + $0x38] sm:$0xff]
    %v2391 = vld [vmem:[%s457 + $0x40] sm:$0xff]
    %v2392 = vld [vmem:[%s457 + $0x48] sm:$0xff]
    %v2393 = vld [vmem:[%s457 + $0x50] sm:$0xff]
    %v2394 = vld [vmem:[%s457 + $0x58] sm:$0xff]
    %v2395 = vld [vmem:[%s457 + $0x60] sm:$0xff]
    %v2396 = vld [vmem:[%s457 + $0x68] sm:$0xff]
    %v2397 = vld [vmem:[%s457 + $0x70] sm:$0xff]
    %v2398 = vld [vmem:[%s457 + $0x78] sm:$0xff]
    %v2399 = vld [vmem:[%s457 + $0x80] sm:$0xff]
    %v2400 = vld [vmem:[%s457 + $0x88] sm:$0xff]
    %v2401 = vld [vmem:[%s457 + $0x90] sm:$0xff]
    %v2402 = vld [vmem:[%s457 + $0x98] sm:$0xff]
    %v2403 = vld [vmem:[%s457 + $0xa0] sm:$0xff]
    %v2404 = vld [vmem:[%s457 + $0xa8] sm:$0xff]
    %v2405 = vld [vmem:[%s457 + $0xb0] sm:$0xff]
    %v2406 = vld [vmem:[%s457 + $0xb8] sm:$0xff]
    %v2407 = vld [vmem:[%s457 + $0xc0] sm:$0xff]
    %v2408 = vld [vmem:[%s457 + $0xc8] sm:$0xff]
    %v2409 = vld [vmem:[%s457 + $0xd0] sm:$0xff]
    %v2410 = vld [vmem:[%s457 + $0xd8] sm:$0xff]
    %v2411 = vld [vmem:[%s457 + $0xe0] sm:$0xff]
    %v2412 = vld [vmem:[%s457 + $0xe8] sm:$0xff]
    %v2413 = vld [vmem:[%s457 + $0xf0] sm:$0xff]
    %v2414 = vld [vmem:[%s457 + $0xf8] sm:$0xff]
    %v2447 = vunpack.c.l.b16 %v2383
    %v2448 = vunpack.c.h.b16 %v2383
    %v2449 = vunpack.c.l.b16 %v2384
    %v2450 = vunpack.c.h.b16 %v2384
    %v2451 = vunpack.c.l.b16 %v2385
    %v2452 = vunpack.c.h.b16 %v2385
    %v2453 = vunpack.c.l.b16 %v2386
    %v2454 = vunpack.c.h.b16 %v2386
    %v2455 = vunpack.c.l.b16 %v2387
    %v2456 = vunpack.c.h.b16 %v2387
    %v2457 = vunpack.c.l.b16 %v2388
    %v2458 = vunpack.c.h.b16 %v2388
    %v2459 = vunpack.c.l.b16 %v2389
    %v2460 = vunpack.c.h.b16 %v2389
    %v2461 = vunpack.c.l.b16 %v2390
    %v2462 = vunpack.c.h.b16 %v2390
    %v2463 = vunpack.c.l.b16 %v2391
    %v2464 = vunpack.c.h.b16 %v2391
    %v2465 = vunpack.c.l.b16 %v2392
    %v2466 = vunpack.c.h.b16 %v2392
    %v2467 = vunpack.c.l.b16 %v2393
    %v2468 = vunpack.c.h.b16 %v2393
    %v2469 = vunpack.c.l.b16 %v2394
    %v2470 = vunpack.c.h.b16 %v2394
    %v2471 = vunpack.c.l.b16 %v2395
    %v2472 = vunpack.c.h.b16 %v2395
    %v2473 = vunpack.c.l.b16 %v2396
    %v2474 = vunpack.c.h.b16 %v2396
    %v2475 = vunpack.c.l.b16 %v2397
    %v2476 = vunpack.c.h.b16 %v2397
    %v2477 = vunpack.c.l.b16 %v2398
    %v2478 = vunpack.c.h.b16 %v2398
    %v2479 = vunpack.c.l.b16 %v2399
    %v2480 = vunpack.c.h.b16 %v2399
    %v2481 = vunpack.c.l.b16 %v2400
    %v2482 = vunpack.c.h.b16 %v2400
    %v2483 = vunpack.c.l.b16 %v2401
    %v2484 = vunpack.c.h.b16 %v2401
    %v2485 = vunpack.c.l.b16 %v2402
    %v2486 = vunpack.c.h.b16 %v2402
    %v2487 = vunpack.c.l.b16 %v2403
    %v2488 = vunpack.c.h.b16 %v2403
    %v2489 = vunpack.c.l.b16 %v2404
    %v2490 = vunpack.c.h.b16 %v2404
    %v2491 = vunpack.c.l.b16 %v2405
    %v2492 = vunpack.c.h.b16 %v2405
    %v2493 = vunpack.c.l.b16 %v2406
    %v2494 = vunpack.c.h.b16 %v2406
    %v2495 = vunpack.c.l.b16 %v2407
    %v2496 = vunpack.c.h.b16 %v2407
    %v2497 = vunpack.c.l.b16 %v2408
    %v2498 = vunpack.c.h.b16 %v2408
    %v2499 = vunpack.c.l.b16 %v2409
    %v2500 = vunpack.c.h.b16 %v2409
    %v2501 = vunpack.c.l.b16 %v2410
    %v2502 = vunpack.c.h.b16 %v2410
    %v2503 = vunpack.c.l.b16 %v2411
    %v2504 = vunpack.c.h.b16 %v2411
    %v2505 = vunpack.c.l.b16 %v2412
    %v2506 = vunpack.c.h.b16 %v2412
    %v2507 = vunpack.c.l.b16 %v2413
    %v2508 = vunpack.c.h.b16 %v2413
    %v2509 = vunpack.c.l.b16 %v2414
    %v2510 = vunpack.c.h.b16 %v2414
    %v2511 = vpack.c.b16 %v2451, %v2447
    %v2512 = vpack.c.b16 %v2452, %v2448
    %v2513 = vpack.c.b16 %v2453, %v2449
    %v2514 = vpack.c.b16 %v2454, %v2450
    %v2515 = vpack.c.b16 %v2459, %v2455
    %v2516 = vpack.c.b16 %v2460, %v2456
    %v2517 = vpack.c.b16 %v2461, %v2457
    %v2518 = vpack.c.b16 %v2462, %v2458
    %v2519 = vpack.c.b16 %v2467, %v2463
    %v2520 = vpack.c.b16 %v2468, %v2464
    %v2521 = vpack.c.b16 %v2469, %v2465
    %v2522 = vpack.c.b16 %v2470, %v2466
    %v2523 = vpack.c.b16 %v2475, %v2471
    %v2524 = vpack.c.b16 %v2476, %v2472
    %v2525 = vpack.c.b16 %v2477, %v2473
    %v2526 = vpack.c.b16 %v2478, %v2474
    %v2527 = vpack.c.b16 %v2483, %v2479
    %v2528 = vpack.c.b16 %v2484, %v2480
    %v2529 = vpack.c.b16 %v2485, %v2481
    %v2530 = vpack.c.b16 %v2486, %v2482
    %v2531 = vpack.c.b16 %v2491, %v2487
    %v2532 = vpack.c.b16 %v2492, %v2488
    %v2533 = vpack.c.b16 %v2493, %v2489
    %v2534 = vpack.c.b16 %v2494, %v2490
    %v2535 = vpack.c.b16 %v2499, %v2495
    %v2536 = vpack.c.b16 %v2500, %v2496
    %v2537 = vpack.c.b16 %v2501, %v2497
    %v2538 = vpack.c.b16 %v2502, %v2498
    %v2539 = vpack.c.b16 %v2507, %v2503
    %v2540 = vpack.c.b16 %v2508, %v2504
    %v2541 = vpack.c.b16 %v2509, %v2505
    %v2542 = vpack.c.b16 %v2510, %v2506
    %2575 = vmatpush.bf16.msra.mxu0 %v2539
    %2576 = vmatpush.bf16.msra.mxu0 %v2535
    %2577 = vmatpush.bf16.msra.mxu0 %v2531
    %2578 = vmatpush.bf16.msra.mxu0 %v2527
    %2579 = vmatpush.bf16.msra.mxu0 %v2523
    %2580 = vmatpush.bf16.msra.mxu0 %v2519
    %2581 = vmatpush.bf16.msra.mxu0 %v2515
    %2582 = vmatpush.bf16.msra.mxu0 %v2511
    %2583 = vmatmul.bf16.gmra.mxu0 %v2382
    %v2584 = vpop.f32.mrf.mxu0
    %v2585 = vadd.f32 0.0, %v2584
    %v2586 = vpop.f32.mrf.mxu0
    %2587 = vdwg.mxu0
    %2588 = vmatpush.bf16.msra.mxu0 %v2540
    %2589 = vmatpush.bf16.msra.mxu0 %v2536
    %2590 = vmatpush.bf16.msra.mxu0 %v2532
    %2591 = vmatpush.bf16.msra.mxu0 %v2528
    %2592 = vmatpush.bf16.msra.mxu0 %v2524
    %2593 = vmatpush.bf16.msra.mxu0 %v2520
    %2594 = vmatpush.bf16.msra.mxu0 %v2516
    %2595 = vmatpush.bf16.msra.mxu0 %v2512
    %2596 = vmatmul.bf16.gmra.mxu0 %v2382
    %v2597 = vpop.f32.mrf.mxu0
    %v2598 = vadd.f32 0.0, %v2597
    %v2599 = vpop.f32.mrf.mxu0
    %2600 = vdwg.mxu0
    %2601 = vmatpush.bf16.msra.mxu0 %v2541
    %2602 = vmatpush.bf16.msra.mxu0 %v2537
    %2603 = vmatpush.bf16.msra.mxu0 %v2533
    %2604 = vmatpush.bf16.msra.mxu0 %v2529
    %2605 = vmatpush.bf16.msra.mxu0 %v2525
    %2606 = vmatpush.bf16.msra.mxu0 %v2521
    %2607 = vmatpush.bf16.msra.mxu0 %v2517
    %2608 = vmatpush.bf16.msra.mxu0 %v2513
    %2609 = vmatmul.bf16.gmra.mxu0 %v2382
    %v2610 = vpop.f32.mrf.mxu0
    %v2611 = vadd.f32 0.0, %v2610
    %v2612 = vpop.f32.mrf.mxu0
    %2613 = vdwg.mxu0
    %2614 = vmatpush.bf16.msra.mxu0 %v2542
    %2615 = vmatpush.bf16.msra.mxu0 %v2538
    %2616 = vmatpush.bf16.msra.mxu0 %v2534
    %2617 = vmatpush.bf16.msra.mxu0 %v2530
    %2618 = vmatpush.bf16.msra.mxu0 %v2526
    %2619 = vmatpush.bf16.msra.mxu0 %v2522
    %2620 = vmatpush.bf16.msra.mxu0 %v2518
    %2621 = vmatpush.bf16.msra.mxu0 %v2514
    %2622 = vmatmul.bf16.gmra.mxu0 %v2382
    %v2623 = vpop.f32.mrf.mxu0
    %v2624 = vadd.f32 0.0, %v2623
    %v2625 = vpop.f32.mrf.mxu0
    %2626 = vdwg.mxu0
    %v2627 = vadd.f32 %v2378, %v2585
    %v2628 = vadd.f32 %v2379, %v2598
    %v2629 = vadd.f32 %v2380, %v2611
    %v2630 = vadd.f32 %v2381, %v2624
    %v2631 = vxor.u32 %v2627, 2147483648
    %v2632 = vmul.f32 %v2631, 1.442695
    %v2633 = vpow.pop %v2632
    %v2634 = vadd.f32 %v2633, 1.0
    %v2635 = vrcp.pop %v2634
    %v2636 = vmul.f32 %v2634, %v2635
    %v2637 = vsub.f32 1.0, %v2636
    %v2638 = vmul.f32 %v2635, %v2637
    %v2639 = vadd.f32 %v2635, %v2638
    %vm2640 = vweird.f32 %v2634
    %vm2641 = vweird.f32 %v2635
    %vm2642 = vmor %vm2640, %vm2641
    %v2643 = vsel %vm2642, %v2635, %v2639
    %v2644 = vand.u32 2147483647, %v2634
    %vm2645 = vcmp.eq.f32.partialorder %v2644, 8.507059e+37
    %v2646 = vand.u32 %v2634, 2147483648
    %v2647 = vor.u32 1.1754944e-38, %v2646
    %v2648 = vsel %vm2645, %v2647, %v2643
    %v2649 = vmul.f32 1.0, %v2648
    %v2650 = vxor.u32 %v2628, 2147483648
    %v2651 = vmul.f32 %v2650, 1.442695
    %v2652 = vpow.pop %v2651
    %v2653 = vadd.f32 %v2652, 1.0
    %v2654 = vrcp.pop %v2653
    %v2655 = vmul.f32 %v2653, %v2654
    %v2656 = vsub.f32 1.0, %v2655
    %v2657 = vmul.f32 %v2654, %v2656
    %v2658 = vadd.f32 %v2654, %v2657
    %vm2659 = vweird.f32 %v2653
    %vm2660 = vweird.f32 %v2654
    %vm2661 = vmor %vm2659, %vm2660
    %v2662 = vsel %vm2661, %v2654, %v2658
    %v2663 = vand.u32 2147483647, %v2653
    %vm2664 = vcmp.eq.f32.partialorder %v2663, 8.507059e+37
    %v2665 = vand.u32 %v2653, 2147483648
    %v2666 = vor.u32 1.1754944e-38, %v2665
    %v2667 = vsel %vm2664, %v2666, %v2662
    %v2668 = vmul.f32 1.0, %v2667
    %v2669 = vtanh.pop %v2629
    %v2670 = vxor.u32 %v2630, 2147483648
    %v2671 = vmul.f32 %v2670, 1.442695
    %v2672 = vpow.pop %v2671
    %v2673 = vadd.f32 %v2672, 1.0
    %v2674 = vrcp.pop %v2673
    %v2675 = vmul.f32 %v2673, %v2674
    %v2676 = vsub.f32 1.0, %v2675
    %v2677 = vmul.f32 %v2674, %v2676
    %v2678 = vadd.f32 %v2674, %v2677
    %vm2679 = vweird.f32 %v2673
    %vm2680 = vweird.f32 %v2674
    %vm2681 = vmor %vm2679, %vm2680
    %v2682 = vsel %vm2681, %v2674, %v2678
    %v2683 = vand.u32 2147483647, %v2673
    %vm2684 = vcmp.eq.f32.partialorder %v2683, 8.507059e+37
    %v2685 = vand.u32 %v2673, 2147483648
    %v2686 = vor.u32 1.1754944e-38, %v2685
    %v2687 = vsel %vm2684, %v2686, %v2682
    %v2688 = vmul.f32 1.0, %v2687
    %v2689 = vmul.f32 %v2668, %v2370
    %v2690 = vmul.f32 %v2649, %v2669
    %v2691 = vadd.f32 %v2689, %v2690
    %v2692 = vtanh.pop %v2691
    %v2693 = vmul.f32 %v2688, %v2692
    %s2694 = scalar_lea.vmem [#allocation2], 48
    %2695 = vst [vmem:[%s2694] sm:$0xff] %v2693
    %s2696 = smul.u32 7, 4
    %s2697 = smul.addr %s2696, 8
    %s2698 = scalar_lea.vmem [#allocation3], %s2697
    %v2699 = vld [vmem:[%s2698] sm:$0xff]
    %v2700 = vld [vmem:[%s2698 + $0x8] sm:$0xff]
    %v2701 = vld [vmem:[%s2698 + $0x10] sm:$0xff]
    %v2702 = vld [vmem:[%s2698 + $0x18] sm:$0xff]
    %v2703 = vpack.c.bf16 %v2693, %v2693
    %v2704 = vld [vmem:[%s457] sm:$0xff]
    %v2705 = vld [vmem:[%s457 + $0x8] sm:$0xff]
    %v2706 = vld [vmem:[%s457 + $0x10] sm:$0xff]
    %v2707 = vld [vmem:[%s457 + $0x18] sm:$0xff]
    %v2708 = vld [vmem:[%s457 + $0x20] sm:$0xff]
    %v2709 = vld [vmem:[%s457 + $0x28] sm:$0xff]
    %v2710 = vld [vmem:[%s457 + $0x30] sm:$0xff]
    %v2711 = vld [vmem:[%s457 + $0x38] sm:$0xff]
    %v2712 = vld [vmem:[%s457 + $0x40] sm:$0xff]
    %v2713 = vld [vmem:[%s457 + $0x48] sm:$0xff]
    %v2714 = vld [vmem:[%s457 + $0x50] sm:$0xff]
    %v2715 = vld [vmem:[%s457 + $0x58] sm:$0xff]
    %v2716 = vld [vmem:[%s457 + $0x60] sm:$0xff]
    %v2717 = vld [vmem:[%s457 + $0x68] sm:$0xff]
    %v2718 = vld [vmem:[%s457 + $0x70] sm:$0xff]
    %v2719 = vld [vmem:[%s457 + $0x78] sm:$0xff]
    %v2720 = vld [vmem:[%s457 + $0x80] sm:$0xff]
    %v2721 = vld [vmem:[%s457 + $0x88] sm:$0xff]
    %v2722 = vld [vmem:[%s457 + $0x90] sm:$0xff]
    %v2723 = vld [vmem:[%s457 + $0x98] sm:$0xff]
    %v2724 = vld [vmem:[%s457 + $0xa0] sm:$0xff]
    %v2725 = vld [vmem:[%s457 + $0xa8] sm:$0xff]
    %v2726 = vld [vmem:[%s457 + $0xb0] sm:$0xff]
    %v2727 = vld [vmem:[%s457 + $0xb8] sm:$0xff]
    %v2728 = vld [vmem:[%s457 + $0xc0] sm:$0xff]
    %v2729 = vld [vmem:[%s457 + $0xc8] sm:$0xff]
    %v2730 = vld [vmem:[%s457 + $0xd0] sm:$0xff]
    %v2731 = vld [vmem:[%s457 + $0xd8] sm:$0xff]
    %v2732 = vld [vmem:[%s457 + $0xe0] sm:$0xff]
    %v2733 = vld [vmem:[%s457 + $0xe8] sm:$0xff]
    %v2734 = vld [vmem:[%s457 + $0xf0] sm:$0xff]
    %v2735 = vld [vmem:[%s457 + $0xf8] sm:$0xff]
    %v2768 = vunpack.c.l.b16 %v2704
    %v2769 = vunpack.c.h.b16 %v2704
    %v2770 = vunpack.c.l.b16 %v2705
    %v2771 = vunpack.c.h.b16 %v2705
    %v2772 = vunpack.c.l.b16 %v2706
    %v2773 = vunpack.c.h.b16 %v2706
    %v2774 = vunpack.c.l.b16 %v2707
    %v2775 = vunpack.c.h.b16 %v2707
    %v2776 = vunpack.c.l.b16 %v2708
    %v2777 = vunpack.c.h.b16 %v2708
    %v2778 = vunpack.c.l.b16 %v2709
    %v2779 = vunpack.c.h.b16 %v2709
    %v2780 = vunpack.c.l.b16 %v2710
    %v2781 = vunpack.c.h.b16 %v2710
    %v2782 = vunpack.c.l.b16 %v2711
    %v2783 = vunpack.c.h.b16 %v2711
    %v2784 = vunpack.c.l.b16 %v2712
    %v2785 = vunpack.c.h.b16 %v2712
    %v2786 = vunpack.c.l.b16 %v2713
    %v2787 = vunpack.c.h.b16 %v2713
    %v2788 = vunpack.c.l.b16 %v2714
    %v2789 = vunpack.c.h.b16 %v2714
    %v2790 = vunpack.c.l.b16 %v2715
    %v2791 = vunpack.c.h.b16 %v2715
    %v2792 = vunpack.c.l.b16 %v2716
    %v2793 = vunpack.c.h.b16 %v2716
    %v2794 = vunpack.c.l.b16 %v2717
    %v2795 = vunpack.c.h.b16 %v2717
    %v2796 = vunpack.c.l.b16 %v2718
    %v2797 = vunpack.c.h.b16 %v2718
    %v2798 = vunpack.c.l.b16 %v2719
    %v2799 = vunpack.c.h.b16 %v2719
    %v2800 = vunpack.c.l.b16 %v2720
    %v2801 = vunpack.c.h.b16 %v2720
    %v2802 = vunpack.c.l.b16 %v2721
    %v2803 = vunpack.c.h.b16 %v2721
    %v2804 = vunpack.c.l.b16 %v2722
    %v2805 = vunpack.c.h.b16 %v2722
    %v2806 = vunpack.c.l.b16 %v2723
    %v2807 = vunpack.c.h.b16 %v2723
    %v2808 = vunpack.c.l.b16 %v2724
    %v2809 = vunpack.c.h.b16 %v2724
    %v2810 = vunpack.c.l.b16 %v2725
    %v2811 = vunpack.c.h.b16 %v2725
    %v2812 = vunpack.c.l.b16 %v2726
    %v2813 = vunpack.c.h.b16 %v2726
    %v2814 = vunpack.c.l.b16 %v2727
    %v2815 = vunpack.c.h.b16 %v2727
    %v2816 = vunpack.c.l.b16 %v2728
    %v2817 = vunpack.c.h.b16 %v2728
    %v2818 = vunpack.c.l.b16 %v2729
    %v2819 = vunpack.c.h.b16 %v2729
    %v2820 = vunpack.c.l.b16 %v2730
    %v2821 = vunpack.c.h.b16 %v2730
    %v2822 = vunpack.c.l.b16 %v2731
    %v2823 = vunpack.c.h.b16 %v2731
    %v2824 = vunpack.c.l.b16 %v2732
    %v2825 = vunpack.c.h.b16 %v2732
    %v2826 = vunpack.c.l.b16 %v2733
    %v2827 = vunpack.c.h.b16 %v2733
    %v2828 = vunpack.c.l.b16 %v2734
    %v2829 = vunpack.c.h.b16 %v2734
    %v2830 = vunpack.c.l.b16 %v2735
    %v2831 = vunpack.c.h.b16 %v2735
    %v2832 = vpack.c.b16 %v2772, %v2768
    %v2833 = vpack.c.b16 %v2773, %v2769
    %v2834 = vpack.c.b16 %v2774, %v2770
    %v2835 = vpack.c.b16 %v2775, %v2771
    %v2836 = vpack.c.b16 %v2780, %v2776
    %v2837 = vpack.c.b16 %v2781, %v2777
    %v2838 = vpack.c.b16 %v2782, %v2778
    %v2839 = vpack.c.b16 %v2783, %v2779
    %v2840 = vpack.c.b16 %v2788, %v2784
    %v2841 = vpack.c.b16 %v2789, %v2785
    %v2842 = vpack.c.b16 %v2790, %v2786
    %v2843 = vpack.c.b16 %v2791, %v2787
    %v2844 = vpack.c.b16 %v2796, %v2792
    %v2845 = vpack.c.b16 %v2797, %v2793
    %v2846 = vpack.c.b16 %v2798, %v2794
    %v2847 = vpack.c.b16 %v2799, %v2795
    %v2848 = vpack.c.b16 %v2804, %v2800
    %v2849 = vpack.c.b16 %v2805, %v2801
    %v2850 = vpack.c.b16 %v2806, %v2802
    %v2851 = vpack.c.b16 %v2807, %v2803
    %v2852 = vpack.c.b16 %v2812, %v2808
    %v2853 = vpack.c.b16 %v2813, %v2809
    %v2854 = vpack.c.b16 %v2814, %v2810
    %v2855 = vpack.c.b16 %v2815, %v2811
    %v2856 = vpack.c.b16 %v2820, %v2816
    %v2857 = vpack.c.b16 %v2821, %v2817
    %v2858 = vpack.c.b16 %v2822, %v2818
    %v2859 = vpack.c.b16 %v2823, %v2819
    %v2860 = vpack.c.b16 %v2828, %v2824
    %v2861 = vpack.c.b16 %v2829, %v2825
    %v2862 = vpack.c.b16 %v2830, %v2826
    %v2863 = vpack.c.b16 %v2831, %v2827
    %2896 = vmatpush.bf16.msra.mxu0 %v2860
    %2897 = vmatpush.bf16.msra.mxu0 %v2856
    %2898 = vmatpush.bf16.msra.mxu0 %v2852
    %2899 = vmatpush.bf16.msra.mxu0 %v2848
    %2900 = vmatpush.bf16.msra.mxu0 %v2844
    %2901 = vmatpush.bf16.msra.mxu0 %v2840
    %2902 = vmatpush.bf16.msra.mxu0 %v2836
    %2903 = vmatpush.bf16.msra.mxu0 %v2832
    %2904 = vmatmul.bf16.gmra.mxu0 %v2703
    %v2905 = vpop.f32.mrf.mxu0
    %v2906 = vadd.f32 0.0, %v2905
    %v2907 = vpop.f32.mrf.mxu0
    %2908 = vdwg.mxu0
    %2909 = vmatpush.bf16.msra.mxu0 %v2861
    %2910 = vmatpush.bf16.msra.mxu0 %v2857
    %2911 = vmatpush.bf16.msra.mxu0 %v2853
    %2912 = vmatpush.bf16.msra.mxu0 %v2849
    %2913 = vmatpush.bf16.msra.mxu0 %v2845
    %2914 = vmatpush.bf16.msra.mxu0 %v2841
    %2915 = vmatpush.bf16.msra.mxu0 %v2837
    %2916 = vmatpush.bf16.msra.mxu0 %v2833
    %2917 = vmatmul.bf16.gmra.mxu0 %v2703
    %v2918 = vpop.f32.mrf.mxu0
    %v2919 = vadd.f32 0.0, %v2918
    %v2920 = vpop.f32.mrf.mxu0
    %2921 = vdwg.mxu0
    %2922 = vmatpush.bf16.msra.mxu0 %v2862
    %2923 = vmatpush.bf16.msra.mxu0 %v2858
    %2924 = vmatpush.bf16.msra.mxu0 %v2854
    %2925 = vmatpush.bf16.msra.mxu0 %v2850
    %2926 = vmatpush.bf16.msra.mxu0 %v2846
    %2927 = vmatpush.bf16.msra.mxu0 %v2842
    %2928 = vmatpush.bf16.msra.mxu0 %v2838
    %2929 = vmatpush.bf16.msra.mxu0 %v2834
    %2930 = vmatmul.bf16.gmra.mxu0 %v2703
    %v2931 = vpop.f32.mrf.mxu0
    %v2932 = vadd.f32 0.0, %v2931
    %v2933 = vpop.f32.mrf.mxu0
    %2934 = vdwg.mxu0
    %2935 = vmatpush.bf16.msra.mxu0 %v2863
    %2936 = vmatpush.bf16.msra.mxu0 %v2859
    %2937 = vmatpush.bf16.msra.mxu0 %v2855
    %2938 = vmatpush.bf16.msra.mxu0 %v2851
    %2939 = vmatpush.bf16.msra.mxu0 %v2847
    %2940 = vmatpush.bf16.msra.mxu0 %v2843
    %2941 = vmatpush.bf16.msra.mxu0 %v2839
    %2942 = vmatpush.bf16.msra.mxu0 %v2835
    %2943 = vmatmul.bf16.gmra.mxu0 %v2703
    %v2944 = vpop.f32.mrf.mxu0
    %v2945 = vadd.f32 0.0, %v2944
    %v2946 = vpop.f32.mrf.mxu0
    %2947 = vdwg.mxu0
    %v2948 = vadd.f32 %v2699, %v2906
    %v2949 = vadd.f32 %v2700, %v2919
    %v2950 = vadd.f32 %v2701, %v2932
    %v2951 = vadd.f32 %v2702, %v2945
    %v2952 = vxor.u32 %v2948, 2147483648
    %v2953 = vmul.f32 %v2952, 1.442695
    %v2954 = vpow.pop %v2953
    %v2955 = vadd.f32 %v2954, 1.0
    %v2956 = vrcp.pop %v2955
    %v2957 = vmul.f32 %v2955, %v2956
    %v2958 = vsub.f32 1.0, %v2957
    %v2959 = vmul.f32 %v2956, %v2958
    %v2960 = vadd.f32 %v2956, %v2959
    %vm2961 = vweird.f32 %v2955
    %vm2962 = vweird.f32 %v2956
    %vm2963 = vmor %vm2961, %vm2962
    %v2964 = vsel %vm2963, %v2956, %v2960
    %v2965 = vand.u32 2147483647, %v2955
    %vm2966 = vcmp.eq.f32.partialorder %v2965, 8.507059e+37
    %v2967 = vand.u32 %v2955, 2147483648
    %v2968 = vor.u32 1.1754944e-38, %v2967
    %v2969 = vsel %vm2966, %v2968, %v2964
    %v2970 = vmul.f32 1.0, %v2969
    %v2971 = vxor.u32 %v2949, 2147483648
    %v2972 = vmul.f32 %v2971, 1.442695
    %v2973 = vpow.pop %v2972
    %v2974 = vadd.f32 %v2973, 1.0
    %v2975 = vrcp.pop %v2974
    %v2976 = vmul.f32 %v2974, %v2975
    %v2977 = vsub.f32 1.0, %v2976
    %v2978 = vmul.f32 %v2975, %v2977
    %v2979 = vadd.f32 %v2975, %v2978
    %vm2980 = vweird.f32 %v2974
    %vm2981 = vweird.f32 %v2975
    %vm2982 = vmor %vm2980, %vm2981
    %v2983 = vsel %vm2982, %v2975, %v2979
    %v2984 = vand.u32 2147483647, %v2974
    %vm2985 = vcmp.eq.f32.partialorder %v2984, 8.507059e+37
    %v2986 = vand.u32 %v2974, 2147483648
    %v2987 = vor.u32 1.1754944e-38, %v2986
    %v2988 = vsel %vm2985, %v2987, %v2983
    %v2989 = vmul.f32 1.0, %v2988
    %v2990 = vtanh.pop %v2950
    %v2991 = vxor.u32 %v2951, 2147483648
    %v2992 = vmul.f32 %v2991, 1.442695
    %v2993 = vpow.pop %v2992
    %v2994 = vadd.f32 %v2993, 1.0
    %v2995 = vrcp.pop %v2994
    %v2996 = vmul.f32 %v2994, %v2995
    %v2997 = vsub.f32 1.0, %v2996
    %v2998 = vmul.f32 %v2995, %v2997
    %v2999 = vadd.f32 %v2995, %v2998
    %vm3000 = vweird.f32 %v2994
    %vm3001 = vweird.f32 %v2995
    %vm3002 = vmor %vm3000, %vm3001
    %v3003 = vsel %vm3002, %v2995, %v2999
    %v3004 = vand.u32 2147483647, %v2994
    %vm3005 = vcmp.eq.f32.partialorder %v3004, 8.507059e+37
    %v3006 = vand.u32 %v2994, 2147483648
    %v3007 = vor.u32 1.1754944e-38, %v3006
    %v3008 = vsel %vm3005, %v3007, %v3003
    %v3009 = vmul.f32 1.0, %v3008
    %v3010 = vmul.f32 %v2989, %v2691
    %v3011 = vmul.f32 %v2970, %v2990
    %v3012 = vadd.f32 %v3010, %v3011
    %v3013 = vtanh.pop %v3012
    %v3014 = vmul.f32 %v3009, %v3013
    %s3015 = scalar_lea.vmem [#allocation2], 56
    %3016 = vst [vmem:[%s3015] sm:$0xff] %v3014
    %3017 = vst [vmem:[%s8] sm:$0xff] %v3014
    %3018 = vst [vmem:[%s9] sm:$0xff] %v3012
    %s3019 = smul.u32 4, 2
    %s3020 = smul.u32 %s3019, 16
    %s3021 = smul.u32 %s3020, 4
    %s3022 = sshll.u32 %s3021, 4
    %3023 = dma.done [#allocation6], %s3022
    %v3024 = vld [vmem:[#allocation2] sm:$0xff]
    %v3025 = vld [vmem:[#allocation2 + $0x8] sm:$0xff]
    %v3026 = vld [vmem:[#allocation2 + $0x10] sm:$0xff]
    %v3027 = vld [vmem:[#allocation2 + $0x18] sm:$0xff]
    %v3028 = vld [vmem:[#allocation2 + $0x20] sm:$0xff]
    %v3029 = vld [vmem:[#allocation2 + $0x28] sm:$0xff]
    %v3030 = vld [vmem:[#allocation2 + $0x30] sm:$0xff]
    %v3031 = vld [vmem:[#allocation2 + $0x38] sm:$0xff]
    %v3032 = vpack.c.bf16 %v3025, %v3024
    %v3033 = vpack.c.bf16 %v3027, %v3026
    %v3034 = vpack.c.bf16 %v3029, %v3028
    %v3035 = vpack.c.bf16 %v3031, %v3030
    %v3036 = vld [vmem:[#allocation4] sm:$0xff]
    %v3037 = vld [vmem:[#allocation4 + $0x8] sm:$0xff]
    %v3038 = vld [vmem:[#allocation4 + $0x10] sm:$0xff]
    %v3039 = vld [vmem:[#allocation4 + $0x18] sm:$0xff]
    %v3040 = vld [vmem:[#allocation4 + $0x20] sm:$0xff]
    %v3041 = vld [vmem:[#allocation4 + $0x28] sm:$0xff]
    %v3042 = vld [vmem:[#allocation4 + $0x30] sm:$0xff]
    %v3043 = vld [vmem:[#allocation4 + $0x38] sm:$0xff]
    %v3044 = vld [vmem:[#allocation4 + $0x40] sm:$0xff]
    %v3045 = vld [vmem:[#allocation4 + $0x48] sm:$0xff]
    %v3046 = vld [vmem:[#allocation4 + $0x50] sm:$0xff]
    %v3047 = vld [vmem:[#allocation4 + $0x58] sm:$0xff]
    %v3048 = vld [vmem:[#allocation4 + $0x60] sm:$0xff]
    %v3049 = vld [vmem:[#allocation4 + $0x68] sm:$0xff]
    %v3050 = vld [vmem:[#allocation4 + $0x70] sm:$0xff]
    %v3051 = vld [vmem:[#allocation4 + $0x78] sm:$0xff]
    %v3052 = vld [vmem:[#allocation4 + $0x80] sm:$0xff]
    %v3053 = vld [vmem:[#allocation4 + $0x88] sm:$0xff]
    %v3054 = vld [vmem:[#allocation4 + $0x90] sm:$0xff]
    %v3055 = vld [vmem:[#allocation4 + $0x98] sm:$0xff]
    %v3056 = vld [vmem:[#allocation4 + $0xa0] sm:$0xff]
    %v3057 = vld [vmem:[#allocation4 + $0xa8] sm:$0xff]
    %v3058 = vld [vmem:[#allocation4 + $0xb0] sm:$0xff]
    %v3059 = vld [vmem:[#allocation4 + $0xb8] sm:$0xff]
    %v3060 = vld [vmem:[#allocation4 + $0xc0] sm:$0xff]
    %v3061 = vld [vmem:[#allocation4 + $0xc8] sm:$0xff]
    %v3062 = vld [vmem:[#allocation4 + $0xd0] sm:$0xff]
    %v3063 = vld [vmem:[#allocation4 + $0xd8] sm:$0xff]
    %v3064 = vld [vmem:[#allocation4 + $0xe0] sm:$0xff]
    %v3065 = vld [vmem:[#allocation4 + $0xe8] sm:$0xff]
    %v3066 = vld [vmem:[#allocation4 + $0xf0] sm:$0xff]
    %v3067 = vld [vmem:[#allocation4 + $0xf8] sm:$0xff]
    %v3068 = vld [vmem:[%s4] sm:$0xf]
    %v3070 = vperm.slane %v3068, 0
    %v3071 = vperm.slane %v3068, 1
    %v3072 = vperm.slane %v3068, 2
    %v3073 = vperm.slane %v3068, 3
    %v3110 = vunpack.c.l.b16 %v3036
    %v3111 = vunpack.c.h.b16 %v3036
    %v3112 = vunpack.c.l.b16 %v3037
    %v3113 = vunpack.c.h.b16 %v3037
    %v3114 = vunpack.c.l.b16 %v3038
    %v3115 = vunpack.c.h.b16 %v3038
    %v3116 = vunpack.c.l.b16 %v3039
    %v3117 = vunpack.c.h.b16 %v3039
    %v3118 = vunpack.c.l.b16 %v3040
    %v3119 = vunpack.c.h.b16 %v3040
    %v3120 = vunpack.c.l.b16 %v3041
    %v3121 = vunpack.c.h.b16 %v3041
    %v3122 = vunpack.c.l.b16 %v3042
    %v3123 = vunpack.c.h.b16 %v3042
    %v3124 = vunpack.c.l.b16 %v3043
    %v3125 = vunpack.c.h.b16 %v3043
    %v3126 = vunpack.c.l.b16 %v3044
    %v3127 = vunpack.c.h.b16 %v3044
    %v3128 = vunpack.c.l.b16 %v3045
    %v3129 = vunpack.c.h.b16 %v3045
    %v3130 = vunpack.c.l.b16 %v3046
    %v3131 = vunpack.c.h.b16 %v3046
    %v3132 = vunpack.c.l.b16 %v3047
    %v3133 = vunpack.c.h.b16 %v3047
    %v3134 = vunpack.c.l.b16 %v3048
    %v3135 = vunpack.c.h.b16 %v3048
    %v3136 = vunpack.c.l.b16 %v3049
    %v3137 = vunpack.c.h.b16 %v3049
    %v3138 = vunpack.c.l.b16 %v3050
    %v3139 = vunpack.c.h.b16 %v3050
    %v3140 = vunpack.c.l.b16 %v3051
    %v3141 = vunpack.c.h.b16 %v3051
    %v3142 = vunpack.c.l.b16 %v3052
    %v3143 = vunpack.c.h.b16 %v3052
    %v3144 = vunpack.c.l.b16 %v3053
    %v3145 = vunpack.c.h.b16 %v3053
    %v3146 = vunpack.c.l.b16 %v3054
    %v3147 = vunpack.c.h.b16 %v3054
    %v3148 = vunpack.c.l.b16 %v3055
    %v3149 = vunpack.c.h.b16 %v3055
    %v3150 = vunpack.c.l.b16 %v3056
    %v3151 = vunpack.c.h.b16 %v3056
    %v3152 = vunpack.c.l.b16 %v3057
    %v3153 = vunpack.c.h.b16 %v3057
    %v3154 = vunpack.c.l.b16 %v3058
    %v3155 = vunpack.c.h.b16 %v3058
    %v3156 = vunpack.c.l.b16 %v3059
    %v3157 = vunpack.c.h.b16 %v3059
    %v3158 = vunpack.c.l.b16 %v3060
    %v3159 = vunpack.c.h.b16 %v3060
    %v3160 = vunpack.c.l.b16 %v3061
    %v3161 = vunpack.c.h.b16 %v3061
    %v3162 = vunpack.c.l.b16 %v3062
    %v3163 = vunpack.c.h.b16 %v3062
    %v3164 = vunpack.c.l.b16 %v3063
    %v3165 = vunpack.c.h.b16 %v3063
    %v3166 = vunpack.c.l.b16 %v3064
    %v3167 = vunpack.c.h.b16 %v3064
    %v3168 = vunpack.c.l.b16 %v3065
    %v3169 = vunpack.c.h.b16 %v3065
    %v3170 = vunpack.c.l.b16 %v3066
    %v3171 = vunpack.c.h.b16 %v3066
    %v3172 = vunpack.c.l.b16 %v3067
    %v3173 = vunpack.c.h.b16 %v3067
    %v3174 = vpack.c.b16 %v3114, %v3110
    %v3175 = vpack.c.b16 %v3115, %v3111
    %v3176 = vpack.c.b16 %v3116, %v3112
    %v3177 = vpack.c.b16 %v3117, %v3113
    %v3178 = vpack.c.b16 %v3122, %v3118
    %v3179 = vpack.c.b16 %v3123, %v3119
    %v3180 = vpack.c.b16 %v3124, %v3120
    %v3181 = vpack.c.b16 %v3125, %v3121
    %v3182 = vpack.c.b16 %v3130, %v3126
    %v3183 = vpack.c.b16 %v3131, %v3127
    %v3184 = vpack.c.b16 %v3132, %v3128
    %v3185 = vpack.c.b16 %v3133, %v3129
    %v3186 = vpack.c.b16 %v3138, %v3134
    %v3187 = vpack.c.b16 %v3139, %v3135
    %v3188 = vpack.c.b16 %v3140, %v3136
    %v3189 = vpack.c.b16 %v3141, %v3137
    %v3190 = vpack.c.b16 %v3146, %v3142
    %v3191 = vpack.c.b16 %v3147, %v3143
    %v3192 = vpack.c.b16 %v3148, %v3144
    %v3193 = vpack.c.b16 %v3149, %v3145
    %v3194 = vpack.c.b16 %v3154, %v3150
    %v3195 = vpack.c.b16 %v3155, %v3151
    %v3196 = vpack.c.b16 %v3156, %v3152
    %v3197 = vpack.c.b16 %v3157, %v3153
    %v3198 = vpack.c.b16 %v3162, %v3158
    %v3199 = vpack.c.b16 %v3163, %v3159
    %v3200 = vpack.c.b16 %v3164, %v3160
    %v3201 = vpack.c.b16 %v3165, %v3161
    %v3202 = vpack.c.b16 %v3170, %v3166
    %v3203 = vpack.c.b16 %v3171, %v3167
    %v3204 = vpack.c.b16 %v3172, %v3168
    %v3205 = vpack.c.b16 %v3173, %v3169
    %3238 = vmatpush.bf16.msra.mxu0 %v3202
    %3239 = vmatpush.bf16.msra.mxu0 %v3198
    %3240 = vmatpush.bf16.msra.mxu0 %v3194
    %3241 = vmatpush.bf16.msra.mxu0 %v3190
    %3242 = vmatpush.bf16.msra.mxu0 %v3186
    %3243 = vmatpush.bf16.msra.mxu0 %v3182
    %3244 = vmatpush.bf16.msra.mxu0 %v3178
    %3245 = vmatpush.bf16.msra.mxu0 %v3174
    %3246 = vmatmul.bf16.gmra.mxu0 %v3032
    %v3247 = vpop.f32.mrf.mxu0
    %v3248 = vadd.f32 %v3070, %v3247
    %v3249 = vpop.f32.mrf.mxu0
    %v3250 = vadd.f32 %v3070, %v3249
    %3251 = vmatmul.bf16.gmra.mxu0 %v3033
    %v3252 = vpop.f32.mrf.mxu0
    %v3253 = vadd.f32 %v3070, %v3252
    %v3254 = vpop.f32.mrf.mxu0
    %v3255 = vadd.f32 %v3070, %v3254
    %3256 = vmatmul.bf16.gmra.mxu0 %v3034
    %v3257 = vpop.f32.mrf.mxu0
    %v3258 = vadd.f32 %v3070, %v3257
    %v3259 = vpop.f32.mrf.mxu0
    %v3260 = vadd.f32 %v3070, %v3259
    %3261 = vmatmul.bf16.gmra.mxu0 %v3035
    %v3262 = vpop.f32.mrf.mxu0
    %v3263 = vadd.f32 %v3070, %v3262
    %v3264 = vpop.f32.mrf.mxu0
    %v3265 = vadd.f32 %v3070, %v3264
    %3266 = vdwg.mxu0
    %3267 = vmatpush.bf16.msra.mxu0 %v3203
    %3268 = vmatpush.bf16.msra.mxu0 %v3199
    %3269 = vmatpush.bf16.msra.mxu0 %v3195
    %3270 = vmatpush.bf16.msra.mxu0 %v3191
    %3271 = vmatpush.bf16.msra.mxu0 %v3187
    %3272 = vmatpush.bf16.msra.mxu0 %v3183
    %3273 = vmatpush.bf16.msra.mxu0 %v3179
    %3274 = vmatpush.bf16.msra.mxu0 %v3175
    %3275 = vmatmul.bf16.gmra.mxu0 %v3032
    %v3276 = vpop.f32.mrf.mxu0
    %v3277 = vadd.f32 %v3071, %v3276
    %v3278 = vpop.f32.mrf.mxu0
    %v3279 = vadd.f32 %v3071, %v3278
    %3280 = vmatmul.bf16.gmra.mxu0 %v3033
    %v3281 = vpop.f32.mrf.mxu0
    %v3282 = vadd.f32 %v3071, %v3281
    %v3283 = vpop.f32.mrf.mxu0
    %v3284 = vadd.f32 %v3071, %v3283
    %3285 = vmatmul.bf16.gmra.mxu0 %v3034
    %v3286 = vpop.f32.mrf.mxu0
    %v3287 = vadd.f32 %v3071, %v3286
    %v3288 = vpop.f32.mrf.mxu0
    %v3289 = vadd.f32 %v3071, %v3288
    %3290 = vmatmul.bf16.gmra.mxu0 %v3035
    %v3291 = vpop.f32.mrf.mxu0
    %v3292 = vadd.f32 %v3071, %v3291
    %v3293 = vpop.f32.mrf.mxu0
    %v3294 = vadd.f32 %v3071, %v3293
    %3295 = vdwg.mxu0
    %3296 = vmatpush.bf16.msra.mxu0 %v3204
    %3297 = vmatpush.bf16.msra.mxu0 %v3200
    %3298 = vmatpush.bf16.msra.mxu0 %v3196
    %3299 = vmatpush.bf16.msra.mxu0 %v3192
    %3300 = vmatpush.bf16.msra.mxu0 %v3188
    %3301 = vmatpush.bf16.msra.mxu0 %v3184
    %3302 = vmatpush.bf16.msra.mxu0 %v3180
    %3303 = vmatpush.bf16.msra.mxu0 %v3176
    %3304 = vmatmul.bf16.gmra.mxu0 %v3032
    %v3305 = vpop.f32.mrf.mxu0
    %v3306 = vadd.f32 %v3072, %v3305
    %v3307 = vpop.f32.mrf.mxu0
    %v3308 = vadd.f32 %v3072, %v3307
    %3309 = vmatmul.bf16.gmra.mxu0 %v3033
    %v3310 = vpop.f32.mrf.mxu0
    %v3311 = vadd.f32 %v3072, %v3310
    %v3312 = vpop.f32.mrf.mxu0
    %v3313 = vadd.f32 %v3072, %v3312
    %3314 = vmatmul.bf16.gmra.mxu0 %v3034
    %v3315 = vpop.f32.mrf.mxu0
    %v3316 = vadd.f32 %v3072, %v3315
    %v3317 = vpop.f32.mrf.mxu0
    %v3318 = vadd.f32 %v3072, %v3317
    %3319 = vmatmul.bf16.gmra.mxu0 %v3035
    %v3320 = vpop.f32.mrf.mxu0
    %v3321 = vadd.f32 %v3072, %v3320
    %v3322 = vpop.f32.mrf.mxu0
    %v3323 = vadd.f32 %v3072, %v3322
    %3324 = vdwg.mxu0
    %3325 = vmatpush.bf16.msra.mxu0 %v3205
    %3326 = vmatpush.bf16.msra.mxu0 %v3201
    %3327 = vmatpush.bf16.msra.mxu0 %v3197
    %3328 = vmatpush.bf16.msra.mxu0 %v3193
    %3329 = vmatpush.bf16.msra.mxu0 %v3189
    %3330 = vmatpush.bf16.msra.mxu0 %v3185
    %3331 = vmatpush.bf16.msra.mxu0 %v3181
    %3332 = vmatpush.bf16.msra.mxu0 %v3177
    %3333 = vmatmul.bf16.gmra.mxu0 %v3032
    %v3334 = vpop.f32.mrf.mxu0
    %v3335 = vadd.f32 %v3073, %v3334
    %v3336 = vpop.f32.mrf.mxu0
    %v3337 = vadd.f32 %v3073, %v3336
    %3338 = vmatmul.bf16.gmra.mxu0 %v3033
    %v3339 = vpop.f32.mrf.mxu0
    %v3340 = vadd.f32 %v3073, %v3339
    %v3341 = vpop.f32.mrf.mxu0
    %v3342 = vadd.f32 %v3073, %v3341
    %3343 = vmatmul.bf16.gmra.mxu0 %v3034
    %v3344 = vpop.f32.mrf.mxu0
    %v3345 = vadd.f32 %v3073, %v3344
    %v3346 = vpop.f32.mrf.mxu0
    %v3347 = vadd.f32 %v3073, %v3346
    %3348 = vmatmul.bf16.gmra.mxu0 %v3035
    %v3349 = vpop.f32.mrf.mxu0
    %v3350 = vadd.f32 %v3073, %v3349
    %v3351 = vpop.f32.mrf.mxu0
    %v3352 = vadd.f32 %v3073, %v3351
    %3353 = vdwg.mxu0
    %3354 = vst [vmem:[#allocation3] sm:$0xff] %v3248
    %3355 = vst [vmem:[#allocation3 + $0x8] sm:$0xff] %v3277
    %3356 = vst [vmem:[#allocation3 + $0x10] sm:$0xff] %v3306
    %3357 = vst [vmem:[#allocation3 + $0x18] sm:$0xff] %v3335
    %3358 = vst [vmem:[#allocation3 + $0x20] sm:$0xff] %v3250
    %3359 = vst [vmem:[#allocation3 + $0x28] sm:$0xff] %v3279
    %3360 = vst [vmem:[#allocation3 + $0x30] sm:$0xff] %v3308
    %3361 = vst [vmem:[#allocation3 + $0x38] sm:$0xff] %v3337
    %3362 = vst [vmem:[#allocation3 + $0x40] sm:$0xff] %v3253
    %3363 = vst [vmem:[#allocation3 + $0x48] sm:$0xff] %v3282
    %3364 = vst [vmem:[#allocation3 + $0x50] sm:$0xff] %v3311
    %3365 = vst [vmem:[#allocation3 + $0x58] sm:$0xff] %v3340
    %3366 = vst [vmem:[#allocation3 + $0x60] sm:$0xff] %v3255
    %3367 = vst [vmem:[#allocation3 + $0x68] sm:$0xff] %v3284
    %3368 = vst [vmem:[#allocation3 + $0x70] sm:$0xff] %v3313
    %3369 = vst [vmem:[#allocation3 + $0x78] sm:$0xff] %v3342
    %3370 = vst [vmem:[#allocation3 + $0x80] sm:$0xff] %v3258
    %3371 = vst [vmem:[#allocation3 + $0x88] sm:$0xff] %v3287
    %3372 = vst [vmem:[#allocation3 + $0x90] sm:$0xff] %v3316
    %3373 = vst [vmem:[#allocation3 + $0x98] sm:$0xff] %v3345
    %3374 = vst [vmem:[#allocation3 + $0xa0] sm:$0xff] %v3260
    %3375 = vst [vmem:[#allocation3 + $0xa8] sm:$0xff] %v3289
    %3376 = vst [vmem:[#allocation3 + $0xb0] sm:$0xff] %v3318
    %3377 = vst [vmem:[#allocation3 + $0xb8] sm:$0xff] %v3347
    %3378 = vst [vmem:[#allocation3 + $0xc0] sm:$0xff] %v3263
    %3379 = vst [vmem:[#allocation3 + $0xc8] sm:$0xff] %v3292
    %3380 = vst [vmem:[#allocation3 + $0xd0] sm:$0xff] %v3321
    %3381 = vst [vmem:[#allocation3 + $0xd8] sm:$0xff] %v3350
    %3382 = vst [vmem:[#allocation3 + $0xe0] sm:$0xff] %v3265
    %3383 = vst [vmem:[#allocation3 + $0xe8] sm:$0xff] %v3294
    %3384 = vst [vmem:[#allocation3 + $0xf0] sm:$0xff] %v3323
    %3385 = vst [vmem:[#allocation3 + $0xf8] sm:$0xff] %v3352
    %v3386 = vld [vmem:[%s452] sm:$0xff]
    %v3387 = vld [vmem:[%s452 + $0x8] sm:$0xff]
    %v3388 = vld [vmem:[%s452 + $0x10] sm:$0xff]
    %v3389 = vld [vmem:[%s452 + $0x18] sm:$0xff]
    %s3390 = scalar_lea.vmem [#allocation4], 256
    %v3391 = vld [vmem:[%s3390] sm:$0xff]
    %v3392 = vld [vmem:[%s3390 + $0x8] sm:$0xff]
    %v3393 = vld [vmem:[%s3390 + $0x10] sm:$0xff]
    %v3394 = vld [vmem:[%s3390 + $0x18] sm:$0xff]
    %v3395 = vld [vmem:[%s3390 + $0x20] sm:$0xff]
    %v3396 = vld [vmem:[%s3390 + $0x28] sm:$0xff]
    %v3397 = vld [vmem:[%s3390 + $0x30] sm:$0xff]
    %v3398 = vld [vmem:[%s3390 + $0x38] sm:$0xff]
    %v3399 = vld [vmem:[%s3390 + $0x40] sm:$0xff]
    %v3400 = vld [vmem:[%s3390 + $0x48] sm:$0xff]
    %v3401 = vld [vmem:[%s3390 + $0x50] sm:$0xff]
    %v3402 = vld [vmem:[%s3390 + $0x58] sm:$0xff]
    %v3403 = vld [vmem:[%s3390 + $0x60] sm:$0xff]
    %v3404 = vld [vmem:[%s3390 + $0x68] sm:$0xff]
    %v3405 = vld [vmem:[%s3390 + $0x70] sm:$0xff]
    %v3406 = vld [vmem:[%s3390 + $0x78] sm:$0xff]
    %v3407 = vld [vmem:[%s3390 + $0x80] sm:$0xff]
    %v3408 = vld [vmem:[%s3390 + $0x88] sm:$0xff]
    %v3409 = vld [vmem:[%s3390 + $0x90] sm:$0xff]
    %v3410 = vld [vmem:[%s3390 + $0x98] sm:$0xff]
    %v3411 = vld [vmem:[%s3390 + $0xa0] sm:$0xff]
    %v3412 = vld [vmem:[%s3390 + $0xa8] sm:$0xff]
    %v3413 = vld [vmem:[%s3390 + $0xb0] sm:$0xff]
    %v3414 = vld [vmem:[%s3390 + $0xb8] sm:$0xff]
    %v3415 = vld [vmem:[%s3390 + $0xc0] sm:$0xff]
    %v3416 = vld [vmem:[%s3390 + $0xc8] sm:$0xff]
    %v3417 = vld [vmem:[%s3390 + $0xd0] sm:$0xff]
    %v3418 = vld [vmem:[%s3390 + $0xd8] sm:$0xff]
    %v3419 = vld [vmem:[%s3390 + $0xe0] sm:$0xff]
    %v3420 = vld [vmem:[%s3390 + $0xe8] sm:$0xff]
    %v3421 = vld [vmem:[%s3390 + $0xf0] sm:$0xff]
    %v3422 = vld [vmem:[%s3390 + $0xf8] sm:$0xff]
    %v3455 = vunpack.c.l.b16 %v3391
    %v3456 = vunpack.c.h.b16 %v3391
    %v3457 = vunpack.c.l.b16 %v3392
    %v3458 = vunpack.c.h.b16 %v3392
    %v3459 = vunpack.c.l.b16 %v3393
    %v3460 = vunpack.c.h.b16 %v3393
    %v3461 = vunpack.c.l.b16 %v3394
    %v3462 = vunpack.c.h.b16 %v3394
    %v3463 = vunpack.c.l.b16 %v3395
    %v3464 = vunpack.c.h.b16 %v3395
    %v3465 = vunpack.c.l.b16 %v3396
    %v3466 = vunpack.c.h.b16 %v3396
    %v3467 = vunpack.c.l.b16 %v3397
    %v3468 = vunpack.c.h.b16 %v3397
    %v3469 = vunpack.c.l.b16 %v3398
    %v3470 = vunpack.c.h.b16 %v3398
    %v3471 = vunpack.c.l.b16 %v3399
    %v3472 = vunpack.c.h.b16 %v3399
    %v3473 = vunpack.c.l.b16 %v3400
    %v3474 = vunpack.c.h.b16 %v3400
    %v3475 = vunpack.c.l.b16 %v3401
    %v3476 = vunpack.c.h.b16 %v3401
    %v3477 = vunpack.c.l.b16 %v3402
    %v3478 = vunpack.c.h.b16 %v3402
    %v3479 = vunpack.c.l.b16 %v3403
    %v3480 = vunpack.c.h.b16 %v3403
    %v3481 = vunpack.c.l.b16 %v3404
    %v3482 = vunpack.c.h.b16 %v3404
    %v3483 = vunpack.c.l.b16 %v3405
    %v3484 = vunpack.c.h.b16 %v3405
    %v3485 = vunpack.c.l.b16 %v3406
    %v3486 = vunpack.c.h.b16 %v3406
    %v3487 = vunpack.c.l.b16 %v3407
    %v3488 = vunpack.c.h.b16 %v3407
    %v3489 = vunpack.c.l.b16 %v3408
    %v3490 = vunpack.c.h.b16 %v3408
    %v3491 = vunpack.c.l.b16 %v3409
    %v3492 = vunpack.c.h.b16 %v3409
    %v3493 = vunpack.c.l.b16 %v3410
    %v3494 = vunpack.c.h.b16 %v3410
    %v3495 = vunpack.c.l.b16 %v3411
    %v3496 = vunpack.c.h.b16 %v3411
    %v3497 = vunpack.c.l.b16 %v3412
    %v3498 = vunpack.c.h.b16 %v3412
    %v3499 = vunpack.c.l.b16 %v3413
    %v3500 = vunpack.c.h.b16 %v3413
    %v3501 = vunpack.c.l.b16 %v3414
    %v3502 = vunpack.c.h.b16 %v3414
    %v3503 = vunpack.c.l.b16 %v3415
    %v3504 = vunpack.c.h.b16 %v3415
    %v3505 = vunpack.c.l.b16 %v3416
    %v3506 = vunpack.c.h.b16 %v3416
    %v3507 = vunpack.c.l.b16 %v3417
    %v3508 = vunpack.c.h.b16 %v3417
    %v3509 = vunpack.c.l.b16 %v3418
    %v3510 = vunpack.c.h.b16 %v3418
    %v3511 = vunpack.c.l.b16 %v3419
    %v3512 = vunpack.c.h.b16 %v3419
    %v3513 = vunpack.c.l.b16 %v3420
    %v3514 = vunpack.c.h.b16 %v3420
    %v3515 = vunpack.c.l.b16 %v3421
    %v3516 = vunpack.c.h.b16 %v3421
    %v3517 = vunpack.c.l.b16 %v3422
    %v3518 = vunpack.c.h.b16 %v3422
    %v3519 = vpack.c.b16 %v3459, %v3455
    %v3520 = vpack.c.b16 %v3460, %v3456
    %v3521 = vpack.c.b16 %v3461, %v3457
    %v3522 = vpack.c.b16 %v3462, %v3458
    %v3523 = vpack.c.b16 %v3467, %v3463
    %v3524 = vpack.c.b16 %v3468, %v3464
    %v3525 = vpack.c.b16 %v3469, %v3465
    %v3526 = vpack.c.b16 %v3470, %v3466
    %v3527 = vpack.c.b16 %v3475, %v3471
    %v3528 = vpack.c.b16 %v3476, %v3472
    %v3529 = vpack.c.b16 %v3477, %v3473
    %v3530 = vpack.c.b16 %v3478, %v3474
    %v3531 = vpack.c.b16 %v3483, %v3479
    %v3532 = vpack.c.b16 %v3484, %v3480
    %v3533 = vpack.c.b16 %v3485, %v3481
    %v3534 = vpack.c.b16 %v3486, %v3482
    %v3535 = vpack.c.b16 %v3491, %v3487
    %v3536 = vpack.c.b16 %v3492, %v3488
    %v3537 = vpack.c.b16 %v3493, %v3489
    %v3538 = vpack.c.b16 %v3494, %v3490
    %v3539 = vpack.c.b16 %v3499, %v3495
    %v3540 = vpack.c.b16 %v3500, %v3496
    %v3541 = vpack.c.b16 %v3501, %v3497
    %v3542 = vpack.c.b16 %v3502, %v3498
    %v3543 = vpack.c.b16 %v3507, %v3503
    %v3544 = vpack.c.b16 %v3508, %v3504
    %v3545 = vpack.c.b16 %v3509, %v3505
    %v3546 = vpack.c.b16 %v3510, %v3506
    %v3547 = vpack.c.b16 %v3515, %v3511
    %v3548 = vpack.c.b16 %v3516, %v3512
    %v3549 = vpack.c.b16 %v3517, %v3513
    %v3550 = vpack.c.b16 %v3518, %v3514
    %3583 = vmatpush.bf16.msra.mxu0 %v3547
    %3584 = vmatpush.bf16.msra.mxu0 %v3543
    %3585 = vmatpush.bf16.msra.mxu0 %v3539
    %3586 = vmatpush.bf16.msra.mxu0 %v3535
    %3587 = vmatpush.bf16.msra.mxu0 %v3531
    %3588 = vmatpush.bf16.msra.mxu0 %v3527
    %3589 = vmatpush.bf16.msra.mxu0 %v3523
    %3590 = vmatpush.bf16.msra.mxu0 %v3519
    %3591 = vmatmul.bf16.gmra.mxu0 0
    %v3592 = vpop.f32.mrf.mxu0
    %v3593 = vadd.f32 0.0, %v3592
    %v3594 = vpop.f32.mrf.mxu0
    %3595 = vdwg.mxu0
    %3596 = vmatpush.bf16.msra.mxu0 %v3548
    %3597 = vmatpush.bf16.msra.mxu0 %v3544
    %3598 = vmatpush.bf16.msra.mxu0 %v3540
    %3599 = vmatpush.bf16.msra.mxu0 %v3536
    %3600 = vmatpush.bf16.msra.mxu0 %v3532
    %3601 = vmatpush.bf16.msra.mxu0 %v3528
    %3602 = vmatpush.bf16.msra.mxu0 %v3524
    %3603 = vmatpush.bf16.msra.mxu0 %v3520
    %3604 = vmatmul.bf16.gmra.mxu0 0
    %v3605 = vpop.f32.mrf.mxu0
    %v3606 = vadd.f32 0.0, %v3605
    %v3607 = vpop.f32.mrf.mxu0
    %3608 = vdwg.mxu0
    %3609 = vmatpush.bf16.msra.mxu0 %v3549
    %3610 = vmatpush.bf16.msra.mxu0 %v3545
    %3611 = vmatpush.bf16.msra.mxu0 %v3541
    %3612 = vmatpush.bf16.msra.mxu0 %v3537
    %3613 = vmatpush.bf16.msra.mxu0 %v3533
    %3614 = vmatpush.bf16.msra.mxu0 %v3529
    %3615 = vmatpush.bf16.msra.mxu0 %v3525
    %3616 = vmatpush.bf16.msra.mxu0 %v3521
    %3617 = vmatmul.bf16.gmra.mxu0 0
    %v3618 = vpop.f32.mrf.mxu0
    %v3619 = vadd.f32 0.0, %v3618
    %v3620 = vpop.f32.mrf.mxu0
    %3621 = vdwg.mxu0
    %3622 = vmatpush.bf16.msra.mxu0 %v3550
    %3623 = vmatpush.bf16.msra.mxu0 %v3546
    %3624 = vmatpush.bf16.msra.mxu0 %v3542
    %3625 = vmatpush.bf16.msra.mxu0 %v3538
    %3626 = vmatpush.bf16.msra.mxu0 %v3534
    %3627 = vmatpush.bf16.msra.mxu0 %v3530
    %3628 = vmatpush.bf16.msra.mxu0 %v3526
    %3629 = vmatpush.bf16.msra.mxu0 %v3522
    %3630 = vmatmul.bf16.gmra.mxu0 0
    %v3631 = vpop.f32.mrf.mxu0
    %v3632 = vadd.f32 0.0, %v3631
    %v3633 = vpop.f32.mrf.mxu0
    %3634 = vdwg.mxu0
    %v3635 = vadd.f32 %v3386, %v3593
    %v3636 = vadd.f32 %v3387, %v3606
    %v3637 = vadd.f32 %v3388, %v3619
    %v3638 = vadd.f32 %v3389, %v3632
    %v3639 = vxor.u32 %v3635, 2147483648
    %v3640 = vmul.f32 %v3639, 1.442695
    %v3641 = vpow.pop %v3640
    %v3642 = vadd.f32 %v3641, 1.0
    %v3643 = vrcp.pop %v3642
    %v3644 = vmul.f32 %v3642, %v3643
    %v3645 = vsub.f32 1.0, %v3644
    %v3646 = vmul.f32 %v3643, %v3645
    %v3647 = vadd.f32 %v3643, %v3646
    %vm3648 = vweird.f32 %v3642
    %vm3649 = vweird.f32 %v3643
    %vm3650 = vmor %vm3648, %vm3649
    %v3651 = vsel %vm3650, %v3643, %v3647
    %v3652 = vand.u32 2147483647, %v3642
    %vm3653 = vcmp.eq.f32.partialorder %v3652, 8.507059e+37
    %v3654 = vand.u32 %v3642, 2147483648
    %v3655 = vor.u32 1.1754944e-38, %v3654
    %v3656 = vsel %vm3653, %v3655, %v3651
    %v3657 = vmul.f32 1.0, %v3656
    %v3658 = vxor.u32 %v3636, 2147483648
    %v3659 = vmul.f32 %v3658, 1.442695
    %v3660 = vpow.pop %v3659
    %v3661 = vadd.f32 %v3660, 1.0
    %v3662 = vrcp.pop %v3661
    %v3663 = vmul.f32 %v3661, %v3662
    %v3664 = vsub.f32 1.0, %v3663
    %v3665 = vmul.f32 %v3662, %v3664
    %v3666 = vadd.f32 %v3662, %v3665
    %vm3667 = vweird.f32 %v3661
    %vm3668 = vweird.f32 %v3662
    %vm3669 = vmor %vm3667, %vm3668
    %v3670 = vsel %vm3669, %v3662, %v3666
    %v3671 = vand.u32 2147483647, %v3661
    %vm3672 = vcmp.eq.f32.partialorder %v3671, 8.507059e+37
    %v3673 = vand.u32 %v3661, 2147483648
    %v3674 = vor.u32 1.1754944e-38, %v3673
    %v3675 = vsel %vm3672, %v3674, %v3670
    %v3676 = vmul.f32 1.0, %v3675
    %v3677 = vtanh.pop %v3637
    %v3678 = vxor.u32 %v3638, 2147483648
    %v3679 = vmul.f32 %v3678, 1.442695
    %v3680 = vpow.pop %v3679
    %v3681 = vadd.f32 %v3680, 1.0
    %v3682 = vrcp.pop %v3681
    %v3683 = vmul.f32 %v3681, %v3682
    %v3684 = vsub.f32 1.0, %v3683
    %v3685 = vmul.f32 %v3682, %v3684
    %v3686 = vadd.f32 %v3682, %v3685
    %vm3687 = vweird.f32 %v3681
    %vm3688 = vweird.f32 %v3682
    %vm3689 = vmor %vm3687, %vm3688
    %v3690 = vsel %vm3689, %v3682, %v3686
    %v3691 = vand.u32 2147483647, %v3681
    %vm3692 = vcmp.eq.f32.partialorder %v3691, 8.507059e+37
    %v3693 = vand.u32 %v3681, 2147483648
    %v3694 = vor.u32 1.1754944e-38, %v3693
    %v3695 = vsel %vm3692, %v3694, %v3690
    %v3696 = vmul.f32 1.0, %v3695
    %v3697 = vmul.f32 %v3676, 0.0
    %v3698 = vmul.f32 %v3657, %v3677
    %v3699 = vadd.f32 %v3697, %v3698
    %v3700 = vtanh.pop %v3699
    %v3701 = vmul.f32 %v3696, %v3700
    %3702 = vst [vmem:[#allocation2] sm:$0xff] %v3701
    %v3703 = vld [vmem:[%s772] sm:$0xff]
    %v3704 = vld [vmem:[%s772 + $0x8] sm:$0xff]
    %v3705 = vld [vmem:[%s772 + $0x10] sm:$0xff]
    %v3706 = vld [vmem:[%s772 + $0x18] sm:$0xff]
    %v3707 = vpack.c.bf16 %v3701, %v3701
    %v3708 = vld [vmem:[%s3390] sm:$0xff]
    %v3709 = vld [vmem:[%s3390 + $0x8] sm:$0xff]
    %v3710 = vld [vmem:[%s3390 + $0x10] sm:$0xff]
    %v3711 = vld [vmem:[%s3390 + $0x18] sm:$0xff]
    %v3712 = vld [vmem:[%s3390 + $0x20] sm:$0xff]
    %v3713 = vld [vmem:[%s3390 + $0x28] sm:$0xff]
    %v3714 = vld [vmem:[%s3390 + $0x30] sm:$0xff]
    %v3715 = vld [vmem:[%s3390 + $0x38] sm:$0xff]
    %v3716 = vld [vmem:[%s3390 + $0x40] sm:$0xff]
    %v3717 = vld [vmem:[%s3390 + $0x48] sm:$0xff]
    %v3718 = vld [vmem:[%s3390 + $0x50] sm:$0xff]
    %v3719 = vld [vmem:[%s3390 + $0x58] sm:$0xff]
    %v3720 = vld [vmem:[%s3390 + $0x60] sm:$0xff]
    %v3721 = vld [vmem:[%s3390 + $0x68] sm:$0xff]
    %v3722 = vld [vmem:[%s3390 + $0x70] sm:$0xff]
    %v3723 = vld [vmem:[%s3390 + $0x78] sm:$0xff]
    %v3724 = vld [vmem:[%s3390 + $0x80] sm:$0xff]
    %v3725 = vld [vmem:[%s3390 + $0x88] sm:$0xff]
    %v3726 = vld [vmem:[%s3390 + $0x90] sm:$0xff]
    %v3727 = vld [vmem:[%s3390 + $0x98] sm:$0xff]
    %v3728 = vld [vmem:[%s3390 + $0xa0] sm:$0xff]
    %v3729 = vld [vmem:[%s3390 + $0xa8] sm:$0xff]
    %v3730 = vld [vmem:[%s3390 + $0xb0] sm:$0xff]
    %v3731 = vld [vmem:[%s3390 + $0xb8] sm:$0xff]
    %v3732 = vld [vmem:[%s3390 + $0xc0] sm:$0xff]
    %v3733 = vld [vmem:[%s3390 + $0xc8] sm:$0xff]
    %v3734 = vld [vmem:[%s3390 + $0xd0] sm:$0xff]
    %v3735 = vld [vmem:[%s3390 + $0xd8] sm:$0xff]
    %v3736 = vld [vmem:[%s3390 + $0xe0] sm:$0xff]
    %v3737 = vld [vmem:[%s3390 + $0xe8] sm:$0xff]
    %v3738 = vld [vmem:[%s3390 + $0xf0] sm:$0xff]
    %v3739 = vld [vmem:[%s3390 + $0xf8] sm:$0xff]
    %v3772 = vunpack.c.l.b16 %v3708
    %v3773 = vunpack.c.h.b16 %v3708
    %v3774 = vunpack.c.l.b16 %v3709
    %v3775 = vunpack.c.h.b16 %v3709
    %v3776 = vunpack.c.l.b16 %v3710
    %v3777 = vunpack.c.h.b16 %v3710
    %v3778 = vunpack.c.l.b16 %v3711
    %v3779 = vunpack.c.h.b16 %v3711
    %v3780 = vunpack.c.l.b16 %v3712
    %v3781 = vunpack.c.h.b16 %v3712
    %v3782 = vunpack.c.l.b16 %v3713
    %v3783 = vunpack.c.h.b16 %v3713
    %v3784 = vunpack.c.l.b16 %v3714
    %v3785 = vunpack.c.h.b16 %v3714
    %v3786 = vunpack.c.l.b16 %v3715
    %v3787 = vunpack.c.h.b16 %v3715
    %v3788 = vunpack.c.l.b16 %v3716
    %v3789 = vunpack.c.h.b16 %v3716
    %v3790 = vunpack.c.l.b16 %v3717
    %v3791 = vunpack.c.h.b16 %v3717
    %v3792 = vunpack.c.l.b16 %v3718
    %v3793 = vunpack.c.h.b16 %v3718
    %v3794 = vunpack.c.l.b16 %v3719
    %v3795 = vunpack.c.h.b16 %v3719
    %v3796 = vunpack.c.l.b16 %v3720
    %v3797 = vunpack.c.h.b16 %v3720
    %v3798 = vunpack.c.l.b16 %v3721
    %v3799 = vunpack.c.h.b16 %v3721
    %v3800 = vunpack.c.l.b16 %v3722
    %v3801 = vunpack.c.h.b16 %v3722
    %v3802 = vunpack.c.l.b16 %v3723
    %v3803 = vunpack.c.h.b16 %v3723
    %v3804 = vunpack.c.l.b16 %v3724
    %v3805 = vunpack.c.h.b16 %v3724
    %v3806 = vunpack.c.l.b16 %v3725
    %v3807 = vunpack.c.h.b16 %v3725
    %v3808 = vunpack.c.l.b16 %v3726
    %v3809 = vunpack.c.h.b16 %v3726
    %v3810 = vunpack.c.l.b16 %v3727
    %v3811 = vunpack.c.h.b16 %v3727
    %v3812 = vunpack.c.l.b16 %v3728
    %v3813 = vunpack.c.h.b16 %v3728
    %v3814 = vunpack.c.l.b16 %v3729
    %v3815 = vunpack.c.h.b16 %v3729
    %v3816 = vunpack.c.l.b16 %v3730
    %v3817 = vunpack.c.h.b16 %v3730
    %v3818 = vunpack.c.l.b16 %v3731
    %v3819 = vunpack.c.h.b16 %v3731
    %v3820 = vunpack.c.l.b16 %v3732
    %v3821 = vunpack.c.h.b16 %v3732
    %v3822 = vunpack.c.l.b16 %v3733
    %v3823 = vunpack.c.h.b16 %v3733
    %v3824 = vunpack.c.l.b16 %v3734
    %v3825 = vunpack.c.h.b16 %v3734
    %v3826 = vunpack.c.l.b16 %v3735
    %v3827 = vunpack.c.h.b16 %v3735
    %v3828 = vunpack.c.l.b16 %v3736
    %v3829 = vunpack.c.h.b16 %v3736
    %v3830 = vunpack.c.l.b16 %v3737
    %v3831 = vunpack.c.h.b16 %v3737
    %v3832 = vunpack.c.l.b16 %v3738
    %v3833 = vunpack.c.h.b16 %v3738
    %v3834 = vunpack.c.l.b16 %v3739
    %v3835 = vunpack.c.h.b16 %v3739
    %v3836 = vpack.c.b16 %v3776, %v3772
    %v3837 = vpack.c.b16 %v3777, %v3773
    %v3838 = vpack.c.b16 %v3778, %v3774
    %v3839 = vpack.c.b16 %v3779, %v3775
    %v3840 = vpack.c.b16 %v3784, %v3780
    %v3841 = vpack.c.b16 %v3785, %v3781
    %v3842 = vpack.c.b16 %v3786, %v3782
    %v3843 = vpack.c.b16 %v3787, %v3783
    %v3844 = vpack.c.b16 %v3792, %v3788
    %v3845 = vpack.c.b16 %v3793, %v3789
    %v3846 = vpack.c.b16 %v3794, %v3790
    %v3847 = vpack.c.b16 %v3795, %v3791
    %v3848 = vpack.c.b16 %v3800, %v3796
    %v3849 = vpack.c.b16 %v3801, %v3797
    %v3850 = vpack.c.b16 %v3802, %v3798
    %v3851 = vpack.c.b16 %v3803, %v3799
    %v3852 = vpack.c.b16 %v3808, %v3804
    %v3853 = vpack.c.b16 %v3809, %v3805
    %v3854 = vpack.c.b16 %v3810, %v3806
    %v3855 = vpack.c.b16 %v3811, %v3807
    %v3856 = vpack.c.b16 %v3816, %v3812
    %v3857 = vpack.c.b16 %v3817, %v3813
    %v3858 = vpack.c.b16 %v3818, %v3814
    %v3859 = vpack.c.b16 %v3819, %v3815
    %v3860 = vpack.c.b16 %v3824, %v3820
    %v3861 = vpack.c.b16 %v3825, %v3821
    %v3862 = vpack.c.b16 %v3826, %v3822
    %v3863 = vpack.c.b16 %v3827, %v3823
    %v3864 = vpack.c.b16 %v3832, %v3828
    %v3865 = vpack.c.b16 %v3833, %v3829
    %v3866 = vpack.c.b16 %v3834, %v3830
    %v3867 = vpack.c.b16 %v3835, %v3831
    %3900 = vmatpush.bf16.msra.mxu0 %v3864
    %3901 = vmatpush.bf16.msra.mxu0 %v3860
    %3902 = vmatpush.bf16.msra.mxu0 %v3856
    %3903 = vmatpush.bf16.msra.mxu0 %v3852
    %3904 = vmatpush.bf16.msra.mxu0 %v3848
    %3905 = vmatpush.bf16.msra.mxu0 %v3844
    %3906 = vmatpush.bf16.msra.mxu0 %v3840
    %3907 = vmatpush.bf16.msra.mxu0 %v3836
    %3908 = vmatmul.bf16.gmra.mxu0 %v3707
    %v3909 = vpop.f32.mrf.mxu0
    %v3910 = vadd.f32 0.0, %v3909
    %v3911 = vpop.f32.mrf.mxu0
    %3912 = vdwg.mxu0
    %3913 = vmatpush.bf16.msra.mxu0 %v3865
    %3914 = vmatpush.bf16.msra.mxu0 %v3861
    %3915 = vmatpush.bf16.msra.mxu0 %v3857
    %3916 = vmatpush.bf16.msra.mxu0 %v3853
    %3917 = vmatpush.bf16.msra.mxu0 %v3849
    %3918 = vmatpush.bf16.msra.mxu0 %v3845
    %3919 = vmatpush.bf16.msra.mxu0 %v3841
    %3920 = vmatpush.bf16.msra.mxu0 %v3837
    %3921 = vmatmul.bf16.gmra.mxu0 %v3707
    %v3922 = vpop.f32.mrf.mxu0
    %v3923 = vadd.f32 0.0, %v3922
    %v3924 = vpop.f32.mrf.mxu0
    %3925 = vdwg.mxu0
    %3926 = vmatpush.bf16.msra.mxu0 %v3866
    %3927 = vmatpush.bf16.msra.mxu0 %v3862
    %3928 = vmatpush.bf16.msra.mxu0 %v3858
    %3929 = vmatpush.bf16.msra.mxu0 %v3854
    %3930 = vmatpush.bf16.msra.mxu0 %v3850
    %3931 = vmatpush.bf16.msra.mxu0 %v3846
    %3932 = vmatpush.bf16.msra.mxu0 %v3842
    %3933 = vmatpush.bf16.msra.mxu0 %v3838
    %3934 = vmatmul.bf16.gmra.mxu0 %v3707
    %v3935 = vpop.f32.mrf.mxu0
    %v3936 = vadd.f32 0.0, %v3935
    %v3937 = vpop.f32.mrf.mxu0
    %3938 = vdwg.mxu0
    %3939 = vmatpush.bf16.msra.mxu0 %v3867
    %3940 = vmatpush.bf16.msra.mxu0 %v3863
    %3941 = vmatpush.bf16.msra.mxu0 %v3859
    %3942 = vmatpush.bf16.msra.mxu0 %v3855
    %3943 = vmatpush.bf16.msra.mxu0 %v3851
    %3944 = vmatpush.bf16.msra.mxu0 %v3847
    %3945 = vmatpush.bf16.msra.mxu0 %v3843
    %3946 = vmatpush.bf16.msra.mxu0 %v3839
    %3947 = vmatmul.bf16.gmra.mxu0 %v3707
    %v3948 = vpop.f32.mrf.mxu0
    %v3949 = vadd.f32 0.0, %v3948
    %v3950 = vpop.f32.mrf.mxu0
    %3951 = vdwg.mxu0
    %v3952 = vadd.f32 %v3703, %v3910
    %v3953 = vadd.f32 %v3704, %v3923
    %v3954 = vadd.f32 %v3705, %v3936
    %v3955 = vadd.f32 %v3706, %v3949
    %v3956 = vxor.u32 %v3952, 2147483648
    %v3957 = vmul.f32 %v3956, 1.442695
    %v3958 = vpow.pop %v3957
    %v3959 = vadd.f32 %v3958, 1.0
    %v3960 = vrcp.pop %v3959
    %v3961 = vmul.f32 %v3959, %v3960
    %v3962 = vsub.f32 1.0, %v3961
    %v3963 = vmul.f32 %v3960, %v3962
    %v3964 = vadd.f32 %v3960, %v3963
    %vm3965 = vweird.f32 %v3959
    %vm3966 = vweird.f32 %v3960
    %vm3967 = vmor %vm3965, %vm3966
    %v3968 = vsel %vm3967, %v3960, %v3964
    %v3969 = vand.u32 2147483647, %v3959
    %vm3970 = vcmp.eq.f32.partialorder %v3969, 8.507059e+37
    %v3971 = vand.u32 %v3959, 2147483648
    %v3972 = vor.u32 1.1754944e-38, %v3971
    %v3973 = vsel %vm3970, %v3972, %v3968
    %v3974 = vmul.f32 1.0, %v3973
    %v3975 = vxor.u32 %v3953, 2147483648
    %v3976 = vmul.f32 %v3975, 1.442695
    %v3977 = vpow.pop %v3976
    %v3978 = vadd.f32 %v3977, 1.0
    %v3979 = vrcp.pop %v3978
    %v3980 = vmul.f32 %v3978, %v3979
    %v3981 = vsub.f32 1.0, %v3980
    %v3982 = vmul.f32 %v3979, %v3981
    %v3983 = vadd.f32 %v3979, %v3982
    %vm3984 = vweird.f32 %v3978
    %vm3985 = vweird.f32 %v3979
    %vm3986 = vmor %vm3984, %vm3985
    %v3987 = vsel %vm3986, %v3979, %v3983
    %v3988 = vand.u32 2147483647, %v3978
    %vm3989 = vcmp.eq.f32.partialorder %v3988, 8.507059e+37
    %v3990 = vand.u32 %v3978, 2147483648
    %v3991 = vor.u32 1.1754944e-38, %v3990
    %v3992 = vsel %vm3989, %v3991, %v3987
    %v3993 = vmul.f32 1.0, %v3992
    %v3994 = vtanh.pop %v3954
    %v3995 = vxor.u32 %v3955, 2147483648
    %v3996 = vmul.f32 %v3995, 1.442695
    %v3997 = vpow.pop %v3996
    %v3998 = vadd.f32 %v3997, 1.0
    %v3999 = vrcp.pop %v3998
    %v4000 = vmul.f32 %v3998, %v3999
    %v4001 = vsub.f32 1.0, %v4000
    %v4002 = vmul.f32 %v3999, %v4001
    %v4003 = vadd.f32 %v3999, %v4002
    %vm4004 = vweird.f32 %v3998
    %vm4005 = vweird.f32 %v3999
    %vm4006 = vmor %vm4004, %vm4005
    %v4007 = vsel %vm4006, %v3999, %v4003
    %v4008 = vand.u32 2147483647, %v3998
    %vm4009 = vcmp.eq.f32.partialorder %v4008, 8.507059e+37
    %v4010 = vand.u32 %v3998, 2147483648
    %v4011 = vor.u32 1.1754944e-38, %v4010
    %v4012 = vsel %vm4009, %v4011, %v4007
    %v4013 = vmul.f32 1.0, %v4012
    %v4014 = vmul.f32 %v3993, %v3699
    %v4015 = vmul.f32 %v3974, %v3994
    %v4016 = vadd.f32 %v4014, %v4015
    %v4017 = vtanh.pop %v4016
    %v4018 = vmul.f32 %v4013, %v4017
    %4019 = vst [vmem:[%s1089] sm:$0xff] %v4018
    %v4020 = vld [vmem:[%s1093] sm:$0xff]
    %v4021 = vld [vmem:[%s1093 + $0x8] sm:$0xff]
    %v4022 = vld [vmem:[%s1093 + $0x10] sm:$0xff]
    %v4023 = vld [vmem:[%s1093 + $0x18] sm:$0xff]
    %v4024 = vpack.c.bf16 %v4018, %v4018
    %v4025 = vld [vmem:[%s3390] sm:$0xff]
    %v4026 = vld [vmem:[%s3390 + $0x8] sm:$0xff]
    %v4027 = vld [vmem:[%s3390 + $0x10] sm:$0xff]
    %v4028 = vld [vmem:[%s3390 + $0x18] sm:$0xff]
    %v4029 = vld [vmem:[%s3390 + $0x20] sm:$0xff]
    %v4030 = vld [vmem:[%s3390 + $0x28] sm:$0xff]
    %v4031 = vld [vmem:[%s3390 + $0x30] sm:$0xff]
    %v4032 = vld [vmem:[%s3390 + $0x38] sm:$0xff]
    %v4033 = vld [vmem:[%s3390 + $0x40] sm:$0xff]
    %v4034 = vld [vmem:[%s3390 + $0x48] sm:$0xff]
    %v4035 = vld [vmem:[%s3390 + $0x50] sm:$0xff]
    %v4036 = vld [vmem:[%s3390 + $0x58] sm:$0xff]
    %v4037 = vld [vmem:[%s3390 + $0x60] sm:$0xff]
    %v4038 = vld [vmem:[%s3390 + $0x68] sm:$0xff]
    %v4039 = vld [vmem:[%s3390 + $0x70] sm:$0xff]
    %v4040 = vld [vmem:[%s3390 + $0x78] sm:$0xff]
    %v4041 = vld [vmem:[%s3390 + $0x80] sm:$0xff]
    %v4042 = vld [vmem:[%s3390 + $0x88] sm:$0xff]
    %v4043 = vld [vmem:[%s3390 + $0x90] sm:$0xff]
    %v4044 = vld [vmem:[%s3390 + $0x98] sm:$0xff]
    %v4045 = vld [vmem:[%s3390 + $0xa0] sm:$0xff]
    %v4046 = vld [vmem:[%s3390 + $0xa8] sm:$0xff]
    %v4047 = vld [vmem:[%s3390 + $0xb0] sm:$0xff]
    %v4048 = vld [vmem:[%s3390 + $0xb8] sm:$0xff]
    %v4049 = vld [vmem:[%s3390 + $0xc0] sm:$0xff]
    %v4050 = vld [vmem:[%s3390 + $0xc8] sm:$0xff]
    %v4051 = vld [vmem:[%s3390 + $0xd0] sm:$0xff]
    %v4052 = vld [vmem:[%s3390 + $0xd8] sm:$0xff]
    %v4053 = vld [vmem:[%s3390 + $0xe0] sm:$0xff]
    %v4054 = vld [vmem:[%s3390 + $0xe8] sm:$0xff]
    %v4055 = vld [vmem:[%s3390 + $0xf0] sm:$0xff]
    %v4056 = vld [vmem:[%s3390 + $0xf8] sm:$0xff]
    %v4089 = vunpack.c.l.b16 %v4025
    %v4090 = vunpack.c.h.b16 %v4025
    %v4091 = vunpack.c.l.b16 %v4026
    %v4092 = vunpack.c.h.b16 %v4026
    %v4093 = vunpack.c.l.b16 %v4027
    %v4094 = vunpack.c.h.b16 %v4027
    %v4095 = vunpack.c.l.b16 %v4028
    %v4096 = vunpack.c.h.b16 %v4028
    %v4097 = vunpack.c.l.b16 %v4029
    %v4098 = vunpack.c.h.b16 %v4029
    %v4099 = vunpack.c.l.b16 %v4030
    %v4100 = vunpack.c.h.b16 %v4030
    %v4101 = vunpack.c.l.b16 %v4031
    %v4102 = vunpack.c.h.b16 %v4031
    %v4103 = vunpack.c.l.b16 %v4032
    %v4104 = vunpack.c.h.b16 %v4032
    %v4105 = vunpack.c.l.b16 %v4033
    %v4106 = vunpack.c.h.b16 %v4033
    %v4107 = vunpack.c.l.b16 %v4034
    %v4108 = vunpack.c.h.b16 %v4034
    %v4109 = vunpack.c.l.b16 %v4035
    %v4110 = vunpack.c.h.b16 %v4035
    %v4111 = vunpack.c.l.b16 %v4036
    %v4112 = vunpack.c.h.b16 %v4036
    %v4113 = vunpack.c.l.b16 %v4037
    %v4114 = vunpack.c.h.b16 %v4037
    %v4115 = vunpack.c.l.b16 %v4038
    %v4116 = vunpack.c.h.b16 %v4038
    %v4117 = vunpack.c.l.b16 %v4039
    %v4118 = vunpack.c.h.b16 %v4039
    %v4119 = vunpack.c.l.b16 %v4040
    %v4120 = vunpack.c.h.b16 %v4040
    %v4121 = vunpack.c.l.b16 %v4041
    %v4122 = vunpack.c.h.b16 %v4041
    %v4123 = vunpack.c.l.b16 %v4042
    %v4124 = vunpack.c.h.b16 %v4042
    %v4125 = vunpack.c.l.b16 %v4043
    %v4126 = vunpack.c.h.b16 %v4043
    %v4127 = vunpack.c.l.b16 %v4044
    %v4128 = vunpack.c.h.b16 %v4044
    %v4129 = vunpack.c.l.b16 %v4045
    %v4130 = vunpack.c.h.b16 %v4045
    %v4131 = vunpack.c.l.b16 %v4046
    %v4132 = vunpack.c.h.b16 %v4046
    %v4133 = vunpack.c.l.b16 %v4047
    %v4134 = vunpack.c.h.b16 %v4047
    %v4135 = vunpack.c.l.b16 %v4048
    %v4136 = vunpack.c.h.b16 %v4048
    %v4137 = vunpack.c.l.b16 %v4049
    %v4138 = vunpack.c.h.b16 %v4049
    %v4139 = vunpack.c.l.b16 %v4050
    %v4140 = vunpack.c.h.b16 %v4050
    %v4141 = vunpack.c.l.b16 %v4051
    %v4142 = vunpack.c.h.b16 %v4051
    %v4143 = vunpack.c.l.b16 %v4052
    %v4144 = vunpack.c.h.b16 %v4052
    %v4145 = vunpack.c.l.b16 %v4053
    %v4146 = vunpack.c.h.b16 %v4053
    %v4147 = vunpack.c.l.b16 %v4054
    %v4148 = vunpack.c.h.b16 %v4054
    %v4149 = vunpack.c.l.b16 %v4055
    %v4150 = vunpack.c.h.b16 %v4055
    %v4151 = vunpack.c.l.b16 %v4056
    %v4152 = vunpack.c.h.b16 %v4056
    %v4153 = vpack.c.b16 %v4093, %v4089
    %v4154 = vpack.c.b16 %v4094, %v4090
    %v4155 = vpack.c.b16 %v4095, %v4091
    %v4156 = vpack.c.b16 %v4096, %v4092
    %v4157 = vpack.c.b16 %v4101, %v4097
    %v4158 = vpack.c.b16 %v4102, %v4098
    %v4159 = vpack.c.b16 %v4103, %v4099
    %v4160 = vpack.c.b16 %v4104, %v4100
    %v4161 = vpack.c.b16 %v4109, %v4105
    %v4162 = vpack.c.b16 %v4110, %v4106
    %v4163 = vpack.c.b16 %v4111, %v4107
    %v4164 = vpack.c.b16 %v4112, %v4108
    %v4165 = vpack.c.b16 %v4117, %v4113
    %v4166 = vpack.c.b16 %v4118, %v4114
    %v4167 = vpack.c.b16 %v4119, %v4115
    %v4168 = vpack.c.b16 %v4120, %v4116
    %v4169 = vpack.c.b16 %v4125, %v4121
    %v4170 = vpack.c.b16 %v4126, %v4122
    %v4171 = vpack.c.b16 %v4127, %v4123
    %v4172 = vpack.c.b16 %v4128, %v4124
    %v4173 = vpack.c.b16 %v4133, %v4129
    %v4174 = vpack.c.b16 %v4134, %v4130
    %v4175 = vpack.c.b16 %v4135, %v4131
    %v4176 = vpack.c.b16 %v4136, %v4132
    %v4177 = vpack.c.b16 %v4141, %v4137
    %v4178 = vpack.c.b16 %v4142, %v4138
    %v4179 = vpack.c.b16 %v4143, %v4139
    %v4180 = vpack.c.b16 %v4144, %v4140
    %v4181 = vpack.c.b16 %v4149, %v4145
    %v4182 = vpack.c.b16 %v4150, %v4146
    %v4183 = vpack.c.b16 %v4151, %v4147
    %v4184 = vpack.c.b16 %v4152, %v4148
    %4217 = vmatpush.bf16.msra.mxu0 %v4181
    %4218 = vmatpush.bf16.msra.mxu0 %v4177
    %4219 = vmatpush.bf16.msra.mxu0 %v4173
    %4220 = vmatpush.bf16.msra.mxu0 %v4169
    %4221 = vmatpush.bf16.msra.mxu0 %v4165
    %4222 = vmatpush.bf16.msra.mxu0 %v4161
    %4223 = vmatpush.bf16.msra.mxu0 %v4157
    %4224 = vmatpush.bf16.msra.mxu0 %v4153
    %4225 = vmatmul.bf16.gmra.mxu0 %v4024
    %v4226 = vpop.f32.mrf.mxu0
    %v4227 = vadd.f32 0.0, %v4226
    %v4228 = vpop.f32.mrf.mxu0
    %4229 = vdwg.mxu0
    %4230 = vmatpush.bf16.msra.mxu0 %v4182
    %4231 = vmatpush.bf16.msra.mxu0 %v4178
    %4232 = vmatpush.bf16.msra.mxu0 %v4174
    %4233 = vmatpush.bf16.msra.mxu0 %v4170
    %4234 = vmatpush.bf16.msra.mxu0 %v4166
    %4235 = vmatpush.bf16.msra.mxu0 %v4162
    %4236 = vmatpush.bf16.msra.mxu0 %v4158
    %4237 = vmatpush.bf16.msra.mxu0 %v4154
    %4238 = vmatmul.bf16.gmra.mxu0 %v4024
    %v4239 = vpop.f32.mrf.mxu0
    %v4240 = vadd.f32 0.0, %v4239
    %v4241 = vpop.f32.mrf.mxu0
    %4242 = vdwg.mxu0
    %4243 = vmatpush.bf16.msra.mxu0 %v4183
    %4244 = vmatpush.bf16.msra.mxu0 %v4179
    %4245 = vmatpush.bf16.msra.mxu0 %v4175
    %4246 = vmatpush.bf16.msra.mxu0 %v4171
    %4247 = vmatpush.bf16.msra.mxu0 %v4167
    %4248 = vmatpush.bf16.msra.mxu0 %v4163
    %4249 = vmatpush.bf16.msra.mxu0 %v4159
    %4250 = vmatpush.bf16.msra.mxu0 %v4155
    %4251 = vmatmul.bf16.gmra.mxu0 %v4024
    %v4252 = vpop.f32.mrf.mxu0
    %v4253 = vadd.f32 0.0, %v4252
    %v4254 = vpop.f32.mrf.mxu0
    %4255 = vdwg.mxu0
    %4256 = vmatpush.bf16.msra.mxu0 %v4184
    %4257 = vmatpush.bf16.msra.mxu0 %v4180
    %4258 = vmatpush.bf16.msra.mxu0 %v4176
    %4259 = vmatpush.bf16.msra.mxu0 %v4172
    %4260 = vmatpush.bf16.msra.mxu0 %v4168
    %4261 = vmatpush.bf16.msra.mxu0 %v4164
    %4262 = vmatpush.bf16.msra.mxu0 %v4160
    %4263 = vmatpush.bf16.msra.mxu0 %v4156
    %4264 = vmatmul.bf16.gmra.mxu0 %v4024
    %v4265 = vpop.f32.mrf.mxu0
    %v4266 = vadd.f32 0.0, %v4265
    %v4267 = vpop.f32.mrf.mxu0
    %4268 = vdwg.mxu0
    %v4269 = vadd.f32 %v4020, %v4227
    %v4270 = vadd.f32 %v4021, %v4240
    %v4271 = vadd.f32 %v4022, %v4253
    %v4272 = vadd.f32 %v4023, %v4266
    %v4273 = vxor.u32 %v4269, 2147483648
    %v4274 = vmul.f32 %v4273, 1.442695
    %v4275 = vpow.pop %v4274
    %v4276 = vadd.f32 %v4275, 1.0
    %v4277 = vrcp.pop %v4276
    %v4278 = vmul.f32 %v4276, %v4277
    %v4279 = vsub.f32 1.0, %v4278
    %v4280 = vmul.f32 %v4277, %v4279
    %v4281 = vadd.f32 %v4277, %v4280
    %vm4282 = vweird.f32 %v4276
    %vm4283 = vweird.f32 %v4277
    %vm4284 = vmor %vm4282, %vm4283
    %v4285 = vsel %vm4284, %v4277, %v4281
    %v4286 = vand.u32 2147483647, %v4276
    %vm4287 = vcmp.eq.f32.partialorder %v4286, 8.507059e+37
    %v4288 = vand.u32 %v4276, 2147483648
    %v4289 = vor.u32 1.1754944e-38, %v4288
    %v4290 = vsel %vm4287, %v4289, %v4285
    %v4291 = vmul.f32 1.0, %v4290
    %v4292 = vxor.u32 %v4270, 2147483648
    %v4293 = vmul.f32 %v4292, 1.442695
    %v4294 = vpow.pop %v4293
    %v4295 = vadd.f32 %v4294, 1.0
    %v4296 = vrcp.pop %v4295
    %v4297 = vmul.f32 %v4295, %v4296
    %v4298 = vsub.f32 1.0, %v4297
    %v4299 = vmul.f32 %v4296, %v4298
    %v4300 = vadd.f32 %v4296, %v4299
    %vm4301 = vweird.f32 %v4295
    %vm4302 = vweird.f32 %v4296
    %vm4303 = vmor %vm4301, %vm4302
    %v4304 = vsel %vm4303, %v4296, %v4300
    %v4305 = vand.u32 2147483647, %v4295
    %vm4306 = vcmp.eq.f32.partialorder %v4305, 8.507059e+37
    %v4307 = vand.u32 %v4295, 2147483648
    %v4308 = vor.u32 1.1754944e-38, %v4307
    %v4309 = vsel %vm4306, %v4308, %v4304
    %v4310 = vmul.f32 1.0, %v4309
    %v4311 = vtanh.pop %v4271
    %v4312 = vxor.u32 %v4272, 2147483648
    %v4313 = vmul.f32 %v4312, 1.442695
    %v4314 = vpow.pop %v4313
    %v4315 = vadd.f32 %v4314, 1.0
    %v4316 = vrcp.pop %v4315
    %v4317 = vmul.f32 %v4315, %v4316
    %v4318 = vsub.f32 1.0, %v4317
    %v4319 = vmul.f32 %v4316, %v4318
    %v4320 = vadd.f32 %v4316, %v4319
    %vm4321 = vweird.f32 %v4315
    %vm4322 = vweird.f32 %v4316
    %vm4323 = vmor %vm4321, %vm4322
    %v4324 = vsel %vm4323, %v4316, %v4320
    %v4325 = vand.u32 2147483647, %v4315
    %vm4326 = vcmp.eq.f32.partialorder %v4325, 8.507059e+37
    %v4327 = vand.u32 %v4315, 2147483648
    %v4328 = vor.u32 1.1754944e-38, %v4327
    %v4329 = vsel %vm4326, %v4328, %v4324
    %v4330 = vmul.f32 1.0, %v4329
    %v4331 = vmul.f32 %v4310, %v4016
    %v4332 = vmul.f32 %v4291, %v4311
    %v4333 = vadd.f32 %v4331, %v4332
    %v4334 = vtanh.pop %v4333
    %v4335 = vmul.f32 %v4330, %v4334
    %4336 = vst [vmem:[%s1410] sm:$0xff] %v4335
    %v4337 = vld [vmem:[%s1414] sm:$0xff]
    %v4338 = vld [vmem:[%s1414 + $0x8] sm:$0xff]
    %v4339 = vld [vmem:[%s1414 + $0x10] sm:$0xff]
    %v4340 = vld [vmem:[%s1414 + $0x18] sm:$0xff]
    %v4341 = vpack.c.bf16 %v4335, %v4335
    %v4342 = vld [vmem:[%s3390] sm:$0xff]
    %v4343 = vld [vmem:[%s3390 + $0x8] sm:$0xff]
    %v4344 = vld [vmem:[%s3390 + $0x10] sm:$0xff]
    %v4345 = vld [vmem:[%s3390 + $0x18] sm:$0xff]
    %v4346 = vld [vmem:[%s3390 + $0x20] sm:$0xff]
    %v4347 = vld [vmem:[%s3390 + $0x28] sm:$0xff]
    %v4348 = vld [vmem:[%s3390 + $0x30] sm:$0xff]
    %v4349 = vld [vmem:[%s3390 + $0x38] sm:$0xff]
    %v4350 = vld [vmem:[%s3390 + $0x40] sm:$0xff]
    %v4351 = vld [vmem:[%s3390 + $0x48] sm:$0xff]
    %v4352 = vld [vmem:[%s3390 + $0x50] sm:$0xff]
    %v4353 = vld [vmem:[%s3390 + $0x58] sm:$0xff]
    %v4354 = vld [vmem:[%s3390 + $0x60] sm:$0xff]
    %v4355 = vld [vmem:[%s3390 + $0x68] sm:$0xff]
    %v4356 = vld [vmem:[%s3390 + $0x70] sm:$0xff]
    %v4357 = vld [vmem:[%s3390 + $0x78] sm:$0xff]
    %v4358 = vld [vmem:[%s3390 + $0x80] sm:$0xff]
    %v4359 = vld [vmem:[%s3390 + $0x88] sm:$0xff]
    %v4360 = vld [vmem:[%s3390 + $0x90] sm:$0xff]
    %v4361 = vld [vmem:[%s3390 + $0x98] sm:$0xff]
    %v4362 = vld [vmem:[%s3390 + $0xa0] sm:$0xff]
    %v4363 = vld [vmem:[%s3390 + $0xa8] sm:$0xff]
    %v4364 = vld [vmem:[%s3390 + $0xb0] sm:$0xff]
    %v4365 = vld [vmem:[%s3390 + $0xb8] sm:$0xff]
    %v4366 = vld [vmem:[%s3390 + $0xc0] sm:$0xff]
    %v4367 = vld [vmem:[%s3390 + $0xc8] sm:$0xff]
    %v4368 = vld [vmem:[%s3390 + $0xd0] sm:$0xff]
    %v4369 = vld [vmem:[%s3390 + $0xd8] sm:$0xff]
    %v4370 = vld [vmem:[%s3390 + $0xe0] sm:$0xff]
    %v4371 = vld [vmem:[%s3390 + $0xe8] sm:$0xff]
    %v4372 = vld [vmem:[%s3390 + $0xf0] sm:$0xff]
    %v4373 = vld [vmem:[%s3390 + $0xf8] sm:$0xff]
    %v4406 = vunpack.c.l.b16 %v4342
    %v4407 = vunpack.c.h.b16 %v4342
    %v4408 = vunpack.c.l.b16 %v4343
    %v4409 = vunpack.c.h.b16 %v4343
    %v4410 = vunpack.c.l.b16 %v4344
    %v4411 = vunpack.c.h.b16 %v4344
    %v4412 = vunpack.c.l.b16 %v4345
    %v4413 = vunpack.c.h.b16 %v4345
    %v4414 = vunpack.c.l.b16 %v4346
    %v4415 = vunpack.c.h.b16 %v4346
    %v4416 = vunpack.c.l.b16 %v4347
    %v4417 = vunpack.c.h.b16 %v4347
    %v4418 = vunpack.c.l.b16 %v4348
    %v4419 = vunpack.c.h.b16 %v4348
    %v4420 = vunpack.c.l.b16 %v4349
    %v4421 = vunpack.c.h.b16 %v4349
    %v4422 = vunpack.c.l.b16 %v4350
    %v4423 = vunpack.c.h.b16 %v4350
    %v4424 = vunpack.c.l.b16 %v4351
    %v4425 = vunpack.c.h.b16 %v4351
    %v4426 = vunpack.c.l.b16 %v4352
    %v4427 = vunpack.c.h.b16 %v4352
    %v4428 = vunpack.c.l.b16 %v4353
    %v4429 = vunpack.c.h.b16 %v4353
    %v4430 = vunpack.c.l.b16 %v4354
    %v4431 = vunpack.c.h.b16 %v4354
    %v4432 = vunpack.c.l.b16 %v4355
    %v4433 = vunpack.c.h.b16 %v4355
    %v4434 = vunpack.c.l.b16 %v4356
    %v4435 = vunpack.c.h.b16 %v4356
    %v4436 = vunpack.c.l.b16 %v4357
    %v4437 = vunpack.c.h.b16 %v4357
    %v4438 = vunpack.c.l.b16 %v4358
    %v4439 = vunpack.c.h.b16 %v4358
    %v4440 = vunpack.c.l.b16 %v4359
    %v4441 = vunpack.c.h.b16 %v4359
    %v4442 = vunpack.c.l.b16 %v4360
    %v4443 = vunpack.c.h.b16 %v4360
    %v4444 = vunpack.c.l.b16 %v4361
    %v4445 = vunpack.c.h.b16 %v4361
    %v4446 = vunpack.c.l.b16 %v4362
    %v4447 = vunpack.c.h.b16 %v4362
    %v4448 = vunpack.c.l.b16 %v4363
    %v4449 = vunpack.c.h.b16 %v4363
    %v4450 = vunpack.c.l.b16 %v4364
    %v4451 = vunpack.c.h.b16 %v4364
    %v4452 = vunpack.c.l.b16 %v4365
    %v4453 = vunpack.c.h.b16 %v4365
    %v4454 = vunpack.c.l.b16 %v4366
    %v4455 = vunpack.c.h.b16 %v4366
    %v4456 = vunpack.c.l.b16 %v4367
    %v4457 = vunpack.c.h.b16 %v4367
    %v4458 = vunpack.c.l.b16 %v4368
    %v4459 = vunpack.c.h.b16 %v4368
    %v4460 = vunpack.c.l.b16 %v4369
    %v4461 = vunpack.c.h.b16 %v4369
    %v4462 = vunpack.c.l.b16 %v4370
    %v4463 = vunpack.c.h.b16 %v4370
    %v4464 = vunpack.c.l.b16 %v4371
    %v4465 = vunpack.c.h.b16 %v4371
    %v4466 = vunpack.c.l.b16 %v4372
    %v4467 = vunpack.c.h.b16 %v4372
    %v4468 = vunpack.c.l.b16 %v4373
    %v4469 = vunpack.c.h.b16 %v4373
    %v4470 = vpack.c.b16 %v4410, %v4406
    %v4471 = vpack.c.b16 %v4411, %v4407
    %v4472 = vpack.c.b16 %v4412, %v4408
    %v4473 = vpack.c.b16 %v4413, %v4409
    %v4474 = vpack.c.b16 %v4418, %v4414
    %v4475 = vpack.c.b16 %v4419, %v4415
    %v4476 = vpack.c.b16 %v4420, %v4416
    %v4477 = vpack.c.b16 %v4421, %v4417
    %v4478 = vpack.c.b16 %v4426, %v4422
    %v4479 = vpack.c.b16 %v4427, %v4423
    %v4480 = vpack.c.b16 %v4428, %v4424
    %v4481 = vpack.c.b16 %v4429, %v4425
    %v4482 = vpack.c.b16 %v4434, %v4430
    %v4483 = vpack.c.b16 %v4435, %v4431
    %v4484 = vpack.c.b16 %v4436, %v4432
    %v4485 = vpack.c.b16 %v4437, %v4433
    %v4486 = vpack.c.b16 %v4442, %v4438
    %v4487 = vpack.c.b16 %v4443, %v4439
    %v4488 = vpack.c.b16 %v4444, %v4440
    %v4489 = vpack.c.b16 %v4445, %v4441
    %v4490 = vpack.c.b16 %v4450, %v4446
    %v4491 = vpack.c.b16 %v4451, %v4447
    %v4492 = vpack.c.b16 %v4452, %v4448
    %v4493 = vpack.c.b16 %v4453, %v4449
    %v4494 = vpack.c.b16 %v4458, %v4454
    %v4495 = vpack.c.b16 %v4459, %v4455
    %v4496 = vpack.c.b16 %v4460, %v4456
    %v4497 = vpack.c.b16 %v4461, %v4457
    %v4498 = vpack.c.b16 %v4466, %v4462
    %v4499 = vpack.c.b16 %v4467, %v4463
    %v4500 = vpack.c.b16 %v4468, %v4464
    %v4501 = vpack.c.b16 %v4469, %v4465
    %4534 = vmatpush.bf16.msra.mxu0 %v4498
    %4535 = vmatpush.bf16.msra.mxu0 %v4494
    %4536 = vmatpush.bf16.msra.mxu0 %v4490
    %4537 = vmatpush.bf16.msra.mxu0 %v4486
    %4538 = vmatpush.bf16.msra.mxu0 %v4482
    %4539 = vmatpush.bf16.msra.mxu0 %v4478
    %4540 = vmatpush.bf16.msra.mxu0 %v4474
    %4541 = vmatpush.bf16.msra.mxu0 %v4470
    %4542 = vmatmul.bf16.gmra.mxu0 %v4341
    %v4543 = vpop.f32.mrf.mxu0
    %v4544 = vadd.f32 0.0, %v4543
    %v4545 = vpop.f32.mrf.mxu0
    %4546 = vdwg.mxu0
    %4547 = vmatpush.bf16.msra.mxu0 %v4499
    %4548 = vmatpush.bf16.msra.mxu0 %v4495
    %4549 = vmatpush.bf16.msra.mxu0 %v4491
    %4550 = vmatpush.bf16.msra.mxu0 %v4487
    %4551 = vmatpush.bf16.msra.mxu0 %v4483
    %4552 = vmatpush.bf16.msra.mxu0 %v4479
    %4553 = vmatpush.bf16.msra.mxu0 %v4475
    %4554 = vmatpush.bf16.msra.mxu0 %v4471
    %4555 = vmatmul.bf16.gmra.mxu0 %v4341
    %v4556 = vpop.f32.mrf.mxu0
    %v4557 = vadd.f32 0.0, %v4556
    %v4558 = vpop.f32.mrf.mxu0
    %4559 = vdwg.mxu0
    %4560 = vmatpush.bf16.msra.mxu0 %v4500
    %4561 = vmatpush.bf16.msra.mxu0 %v4496
    %4562 = vmatpush.bf16.msra.mxu0 %v4492
    %4563 = vmatpush.bf16.msra.mxu0 %v4488
    %4564 = vmatpush.bf16.msra.mxu0 %v4484
    %4565 = vmatpush.bf16.msra.mxu0 %v4480
    %4566 = vmatpush.bf16.msra.mxu0 %v4476
    %4567 = vmatpush.bf16.msra.mxu0 %v4472
    %4568 = vmatmul.bf16.gmra.mxu0 %v4341
    %v4569 = vpop.f32.mrf.mxu0
    %v4570 = vadd.f32 0.0, %v4569
    %v4571 = vpop.f32.mrf.mxu0
    %4572 = vdwg.mxu0
    %4573 = vmatpush.bf16.msra.mxu0 %v4501
    %4574 = vmatpush.bf16.msra.mxu0 %v4497
    %4575 = vmatpush.bf16.msra.mxu0 %v4493
    %4576 = vmatpush.bf16.msra.mxu0 %v4489
    %4577 = vmatpush.bf16.msra.mxu0 %v4485
    %4578 = vmatpush.bf16.msra.mxu0 %v4481
    %4579 = vmatpush.bf16.msra.mxu0 %v4477
    %4580 = vmatpush.bf16.msra.mxu0 %v4473
    %4581 = vmatmul.bf16.gmra.mxu0 %v4341
    %v4582 = vpop.f32.mrf.mxu0
    %v4583 = vadd.f32 0.0, %v4582
    %v4584 = vpop.f32.mrf.mxu0
    %4585 = vdwg.mxu0
    %v4586 = vadd.f32 %v4337, %v4544
    %v4587 = vadd.f32 %v4338, %v4557
    %v4588 = vadd.f32 %v4339, %v4570
    %v4589 = vadd.f32 %v4340, %v4583
    %v4590 = vxor.u32 %v4586, 2147483648
    %v4591 = vmul.f32 %v4590, 1.442695
    %v4592 = vpow.pop %v4591
    %v4593 = vadd.f32 %v4592, 1.0
    %v4594 = vrcp.pop %v4593
    %v4595 = vmul.f32 %v4593, %v4594
    %v4596 = vsub.f32 1.0, %v4595
    %v4597 = vmul.f32 %v4594, %v4596
    %v4598 = vadd.f32 %v4594, %v4597
    %vm4599 = vweird.f32 %v4593
    %vm4600 = vweird.f32 %v4594
    %vm4601 = vmor %vm4599, %vm4600
    %v4602 = vsel %vm4601, %v4594, %v4598
    %v4603 = vand.u32 2147483647, %v4593
    %vm4604 = vcmp.eq.f32.partialorder %v4603, 8.507059e+37
    %v4605 = vand.u32 %v4593, 2147483648
    %v4606 = vor.u32 1.1754944e-38, %v4605
    %v4607 = vsel %vm4604, %v4606, %v4602
    %v4608 = vmul.f32 1.0, %v4607
    %v4609 = vxor.u32 %v4587, 2147483648
    %v4610 = vmul.f32 %v4609, 1.442695
    %v4611 = vpow.pop %v4610
    %v4612 = vadd.f32 %v4611, 1.0
    %v4613 = vrcp.pop %v4612
    %v4614 = vmul.f32 %v4612, %v4613
    %v4615 = vsub.f32 1.0, %v4614
    %v4616 = vmul.f32 %v4613, %v4615
    %v4617 = vadd.f32 %v4613, %v4616
    %vm4618 = vweird.f32 %v4612
    %vm4619 = vweird.f32 %v4613
    %vm4620 = vmor %vm4618, %vm4619
    %v4621 = vsel %vm4620, %v4613, %v4617
    %v4622 = vand.u32 2147483647, %v4612
    %vm4623 = vcmp.eq.f32.partialorder %v4622, 8.507059e+37
    %v4624 = vand.u32 %v4612, 2147483648
    %v4625 = vor.u32 1.1754944e-38, %v4624
    %v4626 = vsel %vm4623, %v4625, %v4621
    %v4627 = vmul.f32 1.0, %v4626
    %v4628 = vtanh.pop %v4588
    %v4629 = vxor.u32 %v4589, 2147483648
    %v4630 = vmul.f32 %v4629, 1.442695
    %v4631 = vpow.pop %v4630
    %v4632 = vadd.f32 %v4631, 1.0
    %v4633 = vrcp.pop %v4632
    %v4634 = vmul.f32 %v4632, %v4633
    %v4635 = vsub.f32 1.0, %v4634
    %v4636 = vmul.f32 %v4633, %v4635
    %v4637 = vadd.f32 %v4633, %v4636
    %vm4638 = vweird.f32 %v4632
    %vm4639 = vweird.f32 %v4633
    %vm4640 = vmor %vm4638, %vm4639
    %v4641 = vsel %vm4640, %v4633, %v4637
    %v4642 = vand.u32 2147483647, %v4632
    %vm4643 = vcmp.eq.f32.partialorder %v4642, 8.507059e+37
    %v4644 = vand.u32 %v4632, 2147483648
    %v4645 = vor.u32 1.1754944e-38, %v4644
    %v4646 = vsel %vm4643, %v4645, %v4641
    %v4647 = vmul.f32 1.0, %v4646
    %v4648 = vmul.f32 %v4627, %v4333
    %v4649 = vmul.f32 %v4608, %v4628
    %v4650 = vadd.f32 %v4648, %v4649
    %v4651 = vtanh.pop %v4650
    %v4652 = vmul.f32 %v4647, %v4651
    %4653 = vst [vmem:[%s1731] sm:$0xff] %v4652
    %v4654 = vld [vmem:[%s1735] sm:$0xff]
    %v4655 = vld [vmem:[%s1735 + $0x8] sm:$0xff]
    %v4656 = vld [vmem:[%s1735 + $0x10] sm:$0xff]
    %v4657 = vld [vmem:[%s1735 + $0x18] sm:$0xff]
    %v4658 = vpack.c.bf16 %v4652, %v4652
    %v4659 = vld [vmem:[%s3390] sm:$0xff]
    %v4660 = vld [vmem:[%s3390 + $0x8] sm:$0xff]
    %v4661 = vld [vmem:[%s3390 + $0x10] sm:$0xff]
    %v4662 = vld [vmem:[%s3390 + $0x18] sm:$0xff]
    %v4663 = vld [vmem:[%s3390 + $0x20] sm:$0xff]
    %v4664 = vld [vmem:[%s3390 + $0x28] sm:$0xff]
    %v4665 = vld [vmem:[%s3390 + $0x30] sm:$0xff]
    %v4666 = vld [vmem:[%s3390 + $0x38] sm:$0xff]
    %v4667 = vld [vmem:[%s3390 + $0x40] sm:$0xff]
    %v4668 = vld [vmem:[%s3390 + $0x48] sm:$0xff]
    %v4669 = vld [vmem:[%s3390 + $0x50] sm:$0xff]
    %v4670 = vld [vmem:[%s3390 + $0x58] sm:$0xff]
    %v4671 = vld [vmem:[%s3390 + $0x60] sm:$0xff]
    %v4672 = vld [vmem:[%s3390 + $0x68] sm:$0xff]
    %v4673 = vld [vmem:[%s3390 + $0x70] sm:$0xff]
    %v4674 = vld [vmem:[%s3390 + $0x78] sm:$0xff]
    %v4675 = vld [vmem:[%s3390 + $0x80] sm:$0xff]
    %v4676 = vld [vmem:[%s3390 + $0x88] sm:$0xff]
    %v4677 = vld [vmem:[%s3390 + $0x90] sm:$0xff]
    %v4678 = vld [vmem:[%s3390 + $0x98] sm:$0xff]
    %v4679 = vld [vmem:[%s3390 + $0xa0] sm:$0xff]
    %v4680 = vld [vmem:[%s3390 + $0xa8] sm:$0xff]
    %v4681 = vld [vmem:[%s3390 + $0xb0] sm:$0xff]
    %v4682 = vld [vmem:[%s3390 + $0xb8] sm:$0xff]
    %v4683 = vld [vmem:[%s3390 + $0xc0] sm:$0xff]
    %v4684 = vld [vmem:[%s3390 + $0xc8] sm:$0xff]
    %v4685 = vld [vmem:[%s3390 + $0xd0] sm:$0xff]
    %v4686 = vld [vmem:[%s3390 + $0xd8] sm:$0xff]
    %v4687 = vld [vmem:[%s3390 + $0xe0] sm:$0xff]
    %v4688 = vld [vmem:[%s3390 + $0xe8] sm:$0xff]
    %v4689 = vld [vmem:[%s3390 + $0xf0] sm:$0xff]
    %v4690 = vld [vmem:[%s3390 + $0xf8] sm:$0xff]
    %v4723 = vunpack.c.l.b16 %v4659
    %v4724 = vunpack.c.h.b16 %v4659
    %v4725 = vunpack.c.l.b16 %v4660
    %v4726 = vunpack.c.h.b16 %v4660
    %v4727 = vunpack.c.l.b16 %v4661
    %v4728 = vunpack.c.h.b16 %v4661
    %v4729 = vunpack.c.l.b16 %v4662
    %v4730 = vunpack.c.h.b16 %v4662
    %v4731 = vunpack.c.l.b16 %v4663
    %v4732 = vunpack.c.h.b16 %v4663
    %v4733 = vunpack.c.l.b16 %v4664
    %v4734 = vunpack.c.h.b16 %v4664
    %v4735 = vunpack.c.l.b16 %v4665
    %v4736 = vunpack.c.h.b16 %v4665
    %v4737 = vunpack.c.l.b16 %v4666
    %v4738 = vunpack.c.h.b16 %v4666
    %v4739 = vunpack.c.l.b16 %v4667
    %v4740 = vunpack.c.h.b16 %v4667
    %v4741 = vunpack.c.l.b16 %v4668
    %v4742 = vunpack.c.h.b16 %v4668
    %v4743 = vunpack.c.l.b16 %v4669
    %v4744 = vunpack.c.h.b16 %v4669
    %v4745 = vunpack.c.l.b16 %v4670
    %v4746 = vunpack.c.h.b16 %v4670
    %v4747 = vunpack.c.l.b16 %v4671
    %v4748 = vunpack.c.h.b16 %v4671
    %v4749 = vunpack.c.l.b16 %v4672
    %v4750 = vunpack.c.h.b16 %v4672
    %v4751 = vunpack.c.l.b16 %v4673
    %v4752 = vunpack.c.h.b16 %v4673
    %v4753 = vunpack.c.l.b16 %v4674
    %v4754 = vunpack.c.h.b16 %v4674
    %v4755 = vunpack.c.l.b16 %v4675
    %v4756 = vunpack.c.h.b16 %v4675
    %v4757 = vunpack.c.l.b16 %v4676
    %v4758 = vunpack.c.h.b16 %v4676
    %v4759 = vunpack.c.l.b16 %v4677
    %v4760 = vunpack.c.h.b16 %v4677
    %v4761 = vunpack.c.l.b16 %v4678
    %v4762 = vunpack.c.h.b16 %v4678
    %v4763 = vunpack.c.l.b16 %v4679
    %v4764 = vunpack.c.h.b16 %v4679
    %v4765 = vunpack.c.l.b16 %v4680
    %v4766 = vunpack.c.h.b16 %v4680
    %v4767 = vunpack.c.l.b16 %v4681
    %v4768 = vunpack.c.h.b16 %v4681
    %v4769 = vunpack.c.l.b16 %v4682
    %v4770 = vunpack.c.h.b16 %v4682
    %v4771 = vunpack.c.l.b16 %v4683
    %v4772 = vunpack.c.h.b16 %v4683
    %v4773 = vunpack.c.l.b16 %v4684
    %v4774 = vunpack.c.h.b16 %v4684
    %v4775 = vunpack.c.l.b16 %v4685
    %v4776 = vunpack.c.h.b16 %v4685
    %v4777 = vunpack.c.l.b16 %v4686
    %v4778 = vunpack.c.h.b16 %v4686
    %v4779 = vunpack.c.l.b16 %v4687
    %v4780 = vunpack.c.h.b16 %v4687
    %v4781 = vunpack.c.l.b16 %v4688
    %v4782 = vunpack.c.h.b16 %v4688
    %v4783 = vunpack.c.l.b16 %v4689
    %v4784 = vunpack.c.h.b16 %v4689
    %v4785 = vunpack.c.l.b16 %v4690
    %v4786 = vunpack.c.h.b16 %v4690
    %v4787 = vpack.c.b16 %v4727, %v4723
    %v4788 = vpack.c.b16 %v4728, %v4724
    %v4789 = vpack.c.b16 %v4729, %v4725
    %v4790 = vpack.c.b16 %v4730, %v4726
    %v4791 = vpack.c.b16 %v4735, %v4731
    %v4792 = vpack.c.b16 %v4736, %v4732
    %v4793 = vpack.c.b16 %v4737, %v4733
    %v4794 = vpack.c.b16 %v4738, %v4734
    %v4795 = vpack.c.b16 %v4743, %v4739
    %v4796 = vpack.c.b16 %v4744, %v4740
    %v4797 = vpack.c.b16 %v4745, %v4741
    %v4798 = vpack.c.b16 %v4746, %v4742
    %v4799 = vpack.c.b16 %v4751, %v4747
    %v4800 = vpack.c.b16 %v4752, %v4748
    %v4801 = vpack.c.b16 %v4753, %v4749
    %v4802 = vpack.c.b16 %v4754, %v4750
    %v4803 = vpack.c.b16 %v4759, %v4755
    %v4804 = vpack.c.b16 %v4760, %v4756
    %v4805 = vpack.c.b16 %v4761, %v4757
    %v4806 = vpack.c.b16 %v4762, %v4758
    %v4807 = vpack.c.b16 %v4767, %v4763
    %v4808 = vpack.c.b16 %v4768, %v4764
    %v4809 = vpack.c.b16 %v4769, %v4765
    %v4810 = vpack.c.b16 %v4770, %v4766
    %v4811 = vpack.c.b16 %v4775, %v4771
    %v4812 = vpack.c.b16 %v4776, %v4772
    %v4813 = vpack.c.b16 %v4777, %v4773
    %v4814 = vpack.c.b16 %v4778, %v4774
    %v4815 = vpack.c.b16 %v4783, %v4779
    %v4816 = vpack.c.b16 %v4784, %v4780
    %v4817 = vpack.c.b16 %v4785, %v4781
    %v4818 = vpack.c.b16 %v4786, %v4782
    %4851 = vmatpush.bf16.msra.mxu0 %v4815
    %4852 = vmatpush.bf16.msra.mxu0 %v4811
    %4853 = vmatpush.bf16.msra.mxu0 %v4807
    %4854 = vmatpush.bf16.msra.mxu0 %v4803
    %4855 = vmatpush.bf16.msra.mxu0 %v4799
    %4856 = vmatpush.bf16.msra.mxu0 %v4795
    %4857 = vmatpush.bf16.msra.mxu0 %v4791
    %4858 = vmatpush.bf16.msra.mxu0 %v4787
    %4859 = vmatmul.bf16.gmra.mxu0 %v4658
    %v4860 = vpop.f32.mrf.mxu0
    %v4861 = vadd.f32 0.0, %v4860
    %v4862 = vpop.f32.mrf.mxu0
    %4863 = vdwg.mxu0
    %4864 = vmatpush.bf16.msra.mxu0 %v4816
    %4865 = vmatpush.bf16.msra.mxu0 %v4812
    %4866 = vmatpush.bf16.msra.mxu0 %v4808
    %4867 = vmatpush.bf16.msra.mxu0 %v4804
    %4868 = vmatpush.bf16.msra.mxu0 %v4800
    %4869 = vmatpush.bf16.msra.mxu0 %v4796
    %4870 = vmatpush.bf16.msra.mxu0 %v4792
    %4871 = vmatpush.bf16.msra.mxu0 %v4788
    %4872 = vmatmul.bf16.gmra.mxu0 %v4658
    %v4873 = vpop.f32.mrf.mxu0
    %v4874 = vadd.f32 0.0, %v4873
    %v4875 = vpop.f32.mrf.mxu0
    %4876 = vdwg.mxu0
    %4877 = vmatpush.bf16.msra.mxu0 %v4817
    %4878 = vmatpush.bf16.msra.mxu0 %v4813
    %4879 = vmatpush.bf16.msra.mxu0 %v4809
    %4880 = vmatpush.bf16.msra.mxu0 %v4805
    %4881 = vmatpush.bf16.msra.mxu0 %v4801
    %4882 = vmatpush.bf16.msra.mxu0 %v4797
    %4883 = vmatpush.bf16.msra.mxu0 %v4793
    %4884 = vmatpush.bf16.msra.mxu0 %v4789
    %4885 = vmatmul.bf16.gmra.mxu0 %v4658
    %v4886 = vpop.f32.mrf.mxu0
    %v4887 = vadd.f32 0.0, %v4886
    %v4888 = vpop.f32.mrf.mxu0
    %4889 = vdwg.mxu0
    %4890 = vmatpush.bf16.msra.mxu0 %v4818
    %4891 = vmatpush.bf16.msra.mxu0 %v4814
    %4892 = vmatpush.bf16.msra.mxu0 %v4810
    %4893 = vmatpush.bf16.msra.mxu0 %v4806
    %4894 = vmatpush.bf16.msra.mxu0 %v4802
    %4895 = vmatpush.bf16.msra.mxu0 %v4798
    %4896 = vmatpush.bf16.msra.mxu0 %v4794
    %4897 = vmatpush.bf16.msra.mxu0 %v4790
    %4898 = vmatmul.bf16.gmra.mxu0 %v4658
    %v4899 = vpop.f32.mrf.mxu0
    %v4900 = vadd.f32 0.0, %v4899
    %v4901 = vpop.f32.mrf.mxu0
    %4902 = vdwg.mxu0
    %v4903 = vadd.f32 %v4654, %v4861
    %v4904 = vadd.f32 %v4655, %v4874
    %v4905 = vadd.f32 %v4656, %v4887
    %v4906 = vadd.f32 %v4657, %v4900
    %v4907 = vxor.u32 %v4903, 2147483648
    %v4908 = vmul.f32 %v4907, 1.442695
    %v4909 = vpow.pop %v4908
    %v4910 = vadd.f32 %v4909, 1.0
    %v4911 = vrcp.pop %v4910
    %v4912 = vmul.f32 %v4910, %v4911
    %v4913 = vsub.f32 1.0, %v4912
    %v4914 = vmul.f32 %v4911, %v4913
    %v4915 = vadd.f32 %v4911, %v4914
    %vm4916 = vweird.f32 %v4910
    %vm4917 = vweird.f32 %v4911
    %vm4918 = vmor %vm4916, %vm4917
    %v4919 = vsel %vm4918, %v4911, %v4915
    %v4920 = vand.u32 2147483647, %v4910
    %vm4921 = vcmp.eq.f32.partialorder %v4920, 8.507059e+37
    %v4922 = vand.u32 %v4910, 2147483648
    %v4923 = vor.u32 1.1754944e-38, %v4922
    %v4924 = vsel %vm4921, %v4923, %v4919
    %v4925 = vmul.f32 1.0, %v4924
    %v4926 = vxor.u32 %v4904, 2147483648
    %v4927 = vmul.f32 %v4926, 1.442695
    %v4928 = vpow.pop %v4927
    %v4929 = vadd.f32 %v4928, 1.0
    %v4930 = vrcp.pop %v4929
    %v4931 = vmul.f32 %v4929, %v4930
    %v4932 = vsub.f32 1.0, %v4931
    %v4933 = vmul.f32 %v4930, %v4932
    %v4934 = vadd.f32 %v4930, %v4933
    %vm4935 = vweird.f32 %v4929
    %vm4936 = vweird.f32 %v4930
    %vm4937 = vmor %vm4935, %vm4936
    %v4938 = vsel %vm4937, %v4930, %v4934
    %v4939 = vand.u32 2147483647, %v4929
    %vm4940 = vcmp.eq.f32.partialorder %v4939, 8.507059e+37
    %v4941 = vand.u32 %v4929, 2147483648
    %v4942 = vor.u32 1.1754944e-38, %v4941
    %v4943 = vsel %vm4940, %v4942, %v4938
    %v4944 = vmul.f32 1.0, %v4943
    %v4945 = vtanh.pop %v4905
    %v4946 = vxor.u32 %v4906, 2147483648
    %v4947 = vmul.f32 %v4946, 1.442695
    %v4948 = vpow.pop %v4947
    %v4949 = vadd.f32 %v4948, 1.0
    %v4950 = vrcp.pop %v4949
    %v4951 = vmul.f32 %v4949, %v4950
    %v4952 = vsub.f32 1.0, %v4951
    %v4953 = vmul.f32 %v4950, %v4952
    %v4954 = vadd.f32 %v4950, %v4953
    %vm4955 = vweird.f32 %v4949
    %vm4956 = vweird.f32 %v4950
    %vm4957 = vmor %vm4955, %vm4956
    %v4958 = vsel %vm4957, %v4950, %v4954
    %v4959 = vand.u32 2147483647, %v4949
    %vm4960 = vcmp.eq.f32.partialorder %v4959, 8.507059e+37
    %v4961 = vand.u32 %v4949, 2147483648
    %v4962 = vor.u32 1.1754944e-38, %v4961
    %v4963 = vsel %vm4960, %v4962, %v4958
    %v4964 = vmul.f32 1.0, %v4963
    %v4965 = vmul.f32 %v4944, %v4650
    %v4966 = vmul.f32 %v4925, %v4945
    %v4967 = vadd.f32 %v4965, %v4966
    %v4968 = vtanh.pop %v4967
    %v4969 = vmul.f32 %v4964, %v4968
    %4970 = vst [vmem:[%s2052] sm:$0xff] %v4969
    %v4971 = vld [vmem:[%s2056] sm:$0xff]
    %v4972 = vld [vmem:[%s2056 + $0x8] sm:$0xff]
    %v4973 = vld [vmem:[%s2056 + $0x10] sm:$0xff]
    %v4974 = vld [vmem:[%s2056 + $0x18] sm:$0xff]
    %v4975 = vpack.c.bf16 %v4969, %v4969
    %v4976 = vld [vmem:[%s3390] sm:$0xff]
    %v4977 = vld [vmem:[%s3390 + $0x8] sm:$0xff]
    %v4978 = vld [vmem:[%s3390 + $0x10] sm:$0xff]
    %v4979 = vld [vmem:[%s3390 + $0x18] sm:$0xff]
    %v4980 = vld [vmem:[%s3390 + $0x20] sm:$0xff]
    %v4981 = vld [vmem:[%s3390 + $0x28] sm:$0xff]
    %v4982 = vld [vmem:[%s3390 + $0x30] sm:$0xff]
    %v4983 = vld [vmem:[%s3390 + $0x38] sm:$0xff]
    %v4984 = vld [vmem:[%s3390 + $0x40] sm:$0xff]
    %v4985 = vld [vmem:[%s3390 + $0x48] sm:$0xff]
    %v4986 = vld [vmem:[%s3390 + $0x50] sm:$0xff]
    %v4987 = vld [vmem:[%s3390 + $0x58] sm:$0xff]
    %v4988 = vld [vmem:[%s3390 + $0x60] sm:$0xff]
    %v4989 = vld [vmem:[%s3390 + $0x68] sm:$0xff]
    %v4990 = vld [vmem:[%s3390 + $0x70] sm:$0xff]
    %v4991 = vld [vmem:[%s3390 + $0x78] sm:$0xff]
    %v4992 = vld [vmem:[%s3390 + $0x80] sm:$0xff]
    %v4993 = vld [vmem:[%s3390 + $0x88] sm:$0xff]
    %v4994 = vld [vmem:[%s3390 + $0x90] sm:$0xff]
    %v4995 = vld [vmem:[%s3390 + $0x98] sm:$0xff]
    %v4996 = vld [vmem:[%s3390 + $0xa0] sm:$0xff]
    %v4997 = vld [vmem:[%s3390 + $0xa8] sm:$0xff]
    %v4998 = vld [vmem:[%s3390 + $0xb0] sm:$0xff]
    %v4999 = vld [vmem:[%s3390 + $0xb8] sm:$0xff]
    %v5000 = vld [vmem:[%s3390 + $0xc0] sm:$0xff]
    %v5001 = vld [vmem:[%s3390 + $0xc8] sm:$0xff]
    %v5002 = vld [vmem:[%s3390 + $0xd0] sm:$0xff]
    %v5003 = vld [vmem:[%s3390 + $0xd8] sm:$0xff]
    %v5004 = vld [vmem:[%s3390 + $0xe0] sm:$0xff]
    %v5005 = vld [vmem:[%s3390 + $0xe8] sm:$0xff]
    %v5006 = vld [vmem:[%s3390 + $0xf0] sm:$0xff]
    %v5007 = vld [vmem:[%s3390 + $0xf8] sm:$0xff]
    %v5040 = vunpack.c.l.b16 %v4976
    %v5041 = vunpack.c.h.b16 %v4976
    %v5042 = vunpack.c.l.b16 %v4977
    %v5043 = vunpack.c.h.b16 %v4977
    %v5044 = vunpack.c.l.b16 %v4978
    %v5045 = vunpack.c.h.b16 %v4978
    %v5046 = vunpack.c.l.b16 %v4979
    %v5047 = vunpack.c.h.b16 %v4979
    %v5048 = vunpack.c.l.b16 %v4980
    %v5049 = vunpack.c.h.b16 %v4980
    %v5050 = vunpack.c.l.b16 %v4981
    %v5051 = vunpack.c.h.b16 %v4981
    %v5052 = vunpack.c.l.b16 %v4982
    %v5053 = vunpack.c.h.b16 %v4982
    %v5054 = vunpack.c.l.b16 %v4983
    %v5055 = vunpack.c.h.b16 %v4983
    %v5056 = vunpack.c.l.b16 %v4984
    %v5057 = vunpack.c.h.b16 %v4984
    %v5058 = vunpack.c.l.b16 %v4985
    %v5059 = vunpack.c.h.b16 %v4985
    %v5060 = vunpack.c.l.b16 %v4986
    %v5061 = vunpack.c.h.b16 %v4986
    %v5062 = vunpack.c.l.b16 %v4987
    %v5063 = vunpack.c.h.b16 %v4987
    %v5064 = vunpack.c.l.b16 %v4988
    %v5065 = vunpack.c.h.b16 %v4988
    %v5066 = vunpack.c.l.b16 %v4989
    %v5067 = vunpack.c.h.b16 %v4989
    %v5068 = vunpack.c.l.b16 %v4990
    %v5069 = vunpack.c.h.b16 %v4990
    %v5070 = vunpack.c.l.b16 %v4991
    %v5071 = vunpack.c.h.b16 %v4991
    %v5072 = vunpack.c.l.b16 %v4992
    %v5073 = vunpack.c.h.b16 %v4992
    %v5074 = vunpack.c.l.b16 %v4993
    %v5075 = vunpack.c.h.b16 %v4993
    %v5076 = vunpack.c.l.b16 %v4994
    %v5077 = vunpack.c.h.b16 %v4994
    %v5078 = vunpack.c.l.b16 %v4995
    %v5079 = vunpack.c.h.b16 %v4995
    %v5080 = vunpack.c.l.b16 %v4996
    %v5081 = vunpack.c.h.b16 %v4996
    %v5082 = vunpack.c.l.b16 %v4997
    %v5083 = vunpack.c.h.b16 %v4997
    %v5084 = vunpack.c.l.b16 %v4998
    %v5085 = vunpack.c.h.b16 %v4998
    %v5086 = vunpack.c.l.b16 %v4999
    %v5087 = vunpack.c.h.b16 %v4999
    %v5088 = vunpack.c.l.b16 %v5000
    %v5089 = vunpack.c.h.b16 %v5000
    %v5090 = vunpack.c.l.b16 %v5001
    %v5091 = vunpack.c.h.b16 %v5001
    %v5092 = vunpack.c.l.b16 %v5002
    %v5093 = vunpack.c.h.b16 %v5002
    %v5094 = vunpack.c.l.b16 %v5003
    %v5095 = vunpack.c.h.b16 %v5003
    %v5096 = vunpack.c.l.b16 %v5004
    %v5097 = vunpack.c.h.b16 %v5004
    %v5098 = vunpack.c.l.b16 %v5005
    %v5099 = vunpack.c.h.b16 %v5005
    %v5100 = vunpack.c.l.b16 %v5006
    %v5101 = vunpack.c.h.b16 %v5006
    %v5102 = vunpack.c.l.b16 %v5007
    %v5103 = vunpack.c.h.b16 %v5007
    %v5104 = vpack.c.b16 %v5044, %v5040
    %v5105 = vpack.c.b16 %v5045, %v5041
    %v5106 = vpack.c.b16 %v5046, %v5042
    %v5107 = vpack.c.b16 %v5047, %v5043
    %v5108 = vpack.c.b16 %v5052, %v5048
    %v5109 = vpack.c.b16 %v5053, %v5049
    %v5110 = vpack.c.b16 %v5054, %v5050
    %v5111 = vpack.c.b16 %v5055, %v5051
    %v5112 = vpack.c.b16 %v5060, %v5056
    %v5113 = vpack.c.b16 %v5061, %v5057
    %v5114 = vpack.c.b16 %v5062, %v5058
    %v5115 = vpack.c.b16 %v5063, %v5059
    %v5116 = vpack.c.b16 %v5068, %v5064
    %v5117 = vpack.c.b16 %v5069, %v5065
    %v5118 = vpack.c.b16 %v5070, %v5066
    %v5119 = vpack.c.b16 %v5071, %v5067
    %v5120 = vpack.c.b16 %v5076, %v5072
    %v5121 = vpack.c.b16 %v5077, %v5073
    %v5122 = vpack.c.b16 %v5078, %v5074
    %v5123 = vpack.c.b16 %v5079, %v5075
    %v5124 = vpack.c.b16 %v5084, %v5080
    %v5125 = vpack.c.b16 %v5085, %v5081
    %v5126 = vpack.c.b16 %v5086, %v5082
    %v5127 = vpack.c.b16 %v5087, %v5083
    %v5128 = vpack.c.b16 %v5092, %v5088
    %v5129 = vpack.c.b16 %v5093, %v5089
    %v5130 = vpack.c.b16 %v5094, %v5090
    %v5131 = vpack.c.b16 %v5095, %v5091
    %v5132 = vpack.c.b16 %v5100, %v5096
    %v5133 = vpack.c.b16 %v5101, %v5097
    %v5134 = vpack.c.b16 %v5102, %v5098
    %v5135 = vpack.c.b16 %v5103, %v5099
    %5168 = vmatpush.bf16.msra.mxu0 %v5132
    %5169 = vmatpush.bf16.msra.mxu0 %v5128
    %5170 = vmatpush.bf16.msra.mxu0 %v5124
    %5171 = vmatpush.bf16.msra.mxu0 %v5120
    %5172 = vmatpush.bf16.msra.mxu0 %v5116
    %5173 = vmatpush.bf16.msra.mxu0 %v5112
    %5174 = vmatpush.bf16.msra.mxu0 %v5108
    %5175 = vmatpush.bf16.msra.mxu0 %v5104
    %5176 = vmatmul.bf16.gmra.mxu0 %v4975
    %v5177 = vpop.f32.mrf.mxu0
    %v5178 = vadd.f32 0.0, %v5177
    %v5179 = vpop.f32.mrf.mxu0
    %5180 = vdwg.mxu0
    %5181 = vmatpush.bf16.msra.mxu0 %v5133
    %5182 = vmatpush.bf16.msra.mxu0 %v5129
    %5183 = vmatpush.bf16.msra.mxu0 %v5125
    %5184 = vmatpush.bf16.msra.mxu0 %v5121
    %5185 = vmatpush.bf16.msra.mxu0 %v5117
    %5186 = vmatpush.bf16.msra.mxu0 %v5113
    %5187 = vmatpush.bf16.msra.mxu0 %v5109
    %5188 = vmatpush.bf16.msra.mxu0 %v5105
    %5189 = vmatmul.bf16.gmra.mxu0 %v4975
    %v5190 = vpop.f32.mrf.mxu0
    %v5191 = vadd.f32 0.0, %v5190
    %v5192 = vpop.f32.mrf.mxu0
    %5193 = vdwg.mxu0
    %5194 = vmatpush.bf16.msra.mxu0 %v5134
    %5195 = vmatpush.bf16.msra.mxu0 %v5130
    %5196 = vmatpush.bf16.msra.mxu0 %v5126
    %5197 = vmatpush.bf16.msra.mxu0 %v5122
    %5198 = vmatpush.bf16.msra.mxu0 %v5118
    %5199 = vmatpush.bf16.msra.mxu0 %v5114
    %5200 = vmatpush.bf16.msra.mxu0 %v5110
    %5201 = vmatpush.bf16.msra.mxu0 %v5106
    %5202 = vmatmul.bf16.gmra.mxu0 %v4975
    %v5203 = vpop.f32.mrf.mxu0
    %v5204 = vadd.f32 0.0, %v5203
    %v5205 = vpop.f32.mrf.mxu0
    %5206 = vdwg.mxu0
    %5207 = vmatpush.bf16.msra.mxu0 %v5135
    %5208 = vmatpush.bf16.msra.mxu0 %v5131
    %5209 = vmatpush.bf16.msra.mxu0 %v5127
    %5210 = vmatpush.bf16.msra.mxu0 %v5123
    %5211 = vmatpush.bf16.msra.mxu0 %v5119
    %5212 = vmatpush.bf16.msra.mxu0 %v5115
    %5213 = vmatpush.bf16.msra.mxu0 %v5111
    %5214 = vmatpush.bf16.msra.mxu0 %v5107
    %5215 = vmatmul.bf16.gmra.mxu0 %v4975
    %v5216 = vpop.f32.mrf.mxu0
    %v5217 = vadd.f32 0.0, %v5216
    %v5218 = vpop.f32.mrf.mxu0
    %5219 = vdwg.mxu0
    %v5220 = vadd.f32 %v4971, %v5178
    %v5221 = vadd.f32 %v4972, %v5191
    %v5222 = vadd.f32 %v4973, %v5204
    %v5223 = vadd.f32 %v4974, %v5217
    %v5224 = vxor.u32 %v5220, 2147483648
    %v5225 = vmul.f32 %v5224, 1.442695
    %v5226 = vpow.pop %v5225
    %v5227 = vadd.f32 %v5226, 1.0
    %v5228 = vrcp.pop %v5227
    %v5229 = vmul.f32 %v5227, %v5228
    %v5230 = vsub.f32 1.0, %v5229
    %v5231 = vmul.f32 %v5228, %v5230
    %v5232 = vadd.f32 %v5228, %v5231
    %vm5233 = vweird.f32 %v5227
    %vm5234 = vweird.f32 %v5228
    %vm5235 = vmor %vm5233, %vm5234
    %v5236 = vsel %vm5235, %v5228, %v5232
    %v5237 = vand.u32 2147483647, %v5227
    %vm5238 = vcmp.eq.f32.partialorder %v5237, 8.507059e+37
    %v5239 = vand.u32 %v5227, 2147483648
    %v5240 = vor.u32 1.1754944e-38, %v5239
    %v5241 = vsel %vm5238, %v5240, %v5236
    %v5242 = vmul.f32 1.0, %v5241
    %v5243 = vxor.u32 %v5221, 2147483648
    %v5244 = vmul.f32 %v5243, 1.442695
    %v5245 = vpow.pop %v5244
    %v5246 = vadd.f32 %v5245, 1.0
    %v5247 = vrcp.pop %v5246
    %v5248 = vmul.f32 %v5246, %v5247
    %v5249 = vsub.f32 1.0, %v5248
    %v5250 = vmul.f32 %v5247, %v5249
    %v5251 = vadd.f32 %v5247, %v5250
    %vm5252 = vweird.f32 %v5246
    %vm5253 = vweird.f32 %v5247
    %vm5254 = vmor %vm5252, %vm5253
    %v5255 = vsel %vm5254, %v5247, %v5251
    %v5256 = vand.u32 2147483647, %v5246
    %vm5257 = vcmp.eq.f32.partialorder %v5256, 8.507059e+37
    %v5258 = vand.u32 %v5246, 2147483648
    %v5259 = vor.u32 1.1754944e-38, %v5258
    %v5260 = vsel %vm5257, %v5259, %v5255
    %v5261 = vmul.f32 1.0, %v5260
    %v5262 = vtanh.pop %v5222
    %v5263 = vxor.u32 %v5223, 2147483648
    %v5264 = vmul.f32 %v5263, 1.442695
    %v5265 = vpow.pop %v5264
    %v5266 = vadd.f32 %v5265, 1.0
    %v5267 = vrcp.pop %v5266
    %v5268 = vmul.f32 %v5266, %v5267
    %v5269 = vsub.f32 1.0, %v5268
    %v5270 = vmul.f32 %v5267, %v5269
    %v5271 = vadd.f32 %v5267, %v5270
    %vm5272 = vweird.f32 %v5266
    %vm5273 = vweird.f32 %v5267
    %vm5274 = vmor %vm5272, %vm5273
    %v5275 = vsel %vm5274, %v5267, %v5271
    %v5276 = vand.u32 2147483647, %v5266
    %vm5277 = vcmp.eq.f32.partialorder %v5276, 8.507059e+37
    %v5278 = vand.u32 %v5266, 2147483648
    %v5279 = vor.u32 1.1754944e-38, %v5278
    %v5280 = vsel %vm5277, %v5279, %v5275
    %v5281 = vmul.f32 1.0, %v5280
    %v5282 = vmul.f32 %v5261, %v4967
    %v5283 = vmul.f32 %v5242, %v5262
    %v5284 = vadd.f32 %v5282, %v5283
    %v5285 = vtanh.pop %v5284
    %v5286 = vmul.f32 %v5281, %v5285
    %5287 = vst [vmem:[%s2373] sm:$0xff] %v5286
    %v5288 = vld [vmem:[%s2377] sm:$0xff]
    %v5289 = vld [vmem:[%s2377 + $0x8] sm:$0xff]
    %v5290 = vld [vmem:[%s2377 + $0x10] sm:$0xff]
    %v5291 = vld [vmem:[%s2377 + $0x18] sm:$0xff]
    %v5292 = vpack.c.bf16 %v5286, %v5286
    %v5293 = vld [vmem:[%s3390] sm:$0xff]
    %v5294 = vld [vmem:[%s3390 + $0x8] sm:$0xff]
    %v5295 = vld [vmem:[%s3390 + $0x10] sm:$0xff]
    %v5296 = vld [vmem:[%s3390 + $0x18] sm:$0xff]
    %v5297 = vld [vmem:[%s3390 + $0x20] sm:$0xff]
    %v5298 = vld [vmem:[%s3390 + $0x28] sm:$0xff]
    %v5299 = vld [vmem:[%s3390 + $0x30] sm:$0xff]
    %v5300 = vld [vmem:[%s3390 + $0x38] sm:$0xff]
    %v5301 = vld [vmem:[%s3390 + $0x40] sm:$0xff]
    %v5302 = vld [vmem:[%s3390 + $0x48] sm:$0xff]
    %v5303 = vld [vmem:[%s3390 + $0x50] sm:$0xff]
    %v5304 = vld [vmem:[%s3390 + $0x58] sm:$0xff]
    %v5305 = vld [vmem:[%s3390 + $0x60] sm:$0xff]
    %v5306 = vld [vmem:[%s3390 + $0x68] sm:$0xff]
    %v5307 = vld [vmem:[%s3390 + $0x70] sm:$0xff]
    %v5308 = vld [vmem:[%s3390 + $0x78] sm:$0xff]
    %v5309 = vld [vmem:[%s3390 + $0x80] sm:$0xff]
    %v5310 = vld [vmem:[%s3390 + $0x88] sm:$0xff]
    %v5311 = vld [vmem:[%s3390 + $0x90] sm:$0xff]
    %v5312 = vld [vmem:[%s3390 + $0x98] sm:$0xff]
    %v5313 = vld [vmem:[%s3390 + $0xa0] sm:$0xff]
    %v5314 = vld [vmem:[%s3390 + $0xa8] sm:$0xff]
    %v5315 = vld [vmem:[%s3390 + $0xb0] sm:$0xff]
    %v5316 = vld [vmem:[%s3390 + $0xb8] sm:$0xff]
    %v5317 = vld [vmem:[%s3390 + $0xc0] sm:$0xff]
    %v5318 = vld [vmem:[%s3390 + $0xc8] sm:$0xff]
    %v5319 = vld [vmem:[%s3390 + $0xd0] sm:$0xff]
    %v5320 = vld [vmem:[%s3390 + $0xd8] sm:$0xff]
    %v5321 = vld [vmem:[%s3390 + $0xe0] sm:$0xff]
    %v5322 = vld [vmem:[%s3390 + $0xe8] sm:$0xff]
    %v5323 = vld [vmem:[%s3390 + $0xf0] sm:$0xff]
    %v5324 = vld [vmem:[%s3390 + $0xf8] sm:$0xff]
    %v5357 = vunpack.c.l.b16 %v5293
    %v5358 = vunpack.c.h.b16 %v5293
    %v5359 = vunpack.c.l.b16 %v5294
    %v5360 = vunpack.c.h.b16 %v5294
    %v5361 = vunpack.c.l.b16 %v5295
    %v5362 = vunpack.c.h.b16 %v5295
    %v5363 = vunpack.c.l.b16 %v5296
    %v5364 = vunpack.c.h.b16 %v5296
    %v5365 = vunpack.c.l.b16 %v5297
    %v5366 = vunpack.c.h.b16 %v5297
    %v5367 = vunpack.c.l.b16 %v5298
    %v5368 = vunpack.c.h.b16 %v5298
    %v5369 = vunpack.c.l.b16 %v5299
    %v5370 = vunpack.c.h.b16 %v5299
    %v5371 = vunpack.c.l.b16 %v5300
    %v5372 = vunpack.c.h.b16 %v5300
    %v5373 = vunpack.c.l.b16 %v5301
    %v5374 = vunpack.c.h.b16 %v5301
    %v5375 = vunpack.c.l.b16 %v5302
    %v5376 = vunpack.c.h.b16 %v5302
    %v5377 = vunpack.c.l.b16 %v5303
    %v5378 = vunpack.c.h.b16 %v5303
    %v5379 = vunpack.c.l.b16 %v5304
    %v5380 = vunpack.c.h.b16 %v5304
    %v5381 = vunpack.c.l.b16 %v5305
    %v5382 = vunpack.c.h.b16 %v5305
    %v5383 = vunpack.c.l.b16 %v5306
    %v5384 = vunpack.c.h.b16 %v5306
    %v5385 = vunpack.c.l.b16 %v5307
    %v5386 = vunpack.c.h.b16 %v5307
    %v5387 = vunpack.c.l.b16 %v5308
    %v5388 = vunpack.c.h.b16 %v5308
    %v5389 = vunpack.c.l.b16 %v5309
    %v5390 = vunpack.c.h.b16 %v5309
    %v5391 = vunpack.c.l.b16 %v5310
    %v5392 = vunpack.c.h.b16 %v5310
    %v5393 = vunpack.c.l.b16 %v5311
    %v5394 = vunpack.c.h.b16 %v5311
    %v5395 = vunpack.c.l.b16 %v5312
    %v5396 = vunpack.c.h.b16 %v5312
    %v5397 = vunpack.c.l.b16 %v5313
    %v5398 = vunpack.c.h.b16 %v5313
    %v5399 = vunpack.c.l.b16 %v5314
    %v5400 = vunpack.c.h.b16 %v5314
    %v5401 = vunpack.c.l.b16 %v5315
    %v5402 = vunpack.c.h.b16 %v5315
    %v5403 = vunpack.c.l.b16 %v5316
    %v5404 = vunpack.c.h.b16 %v5316
    %v5405 = vunpack.c.l.b16 %v5317
    %v5406 = vunpack.c.h.b16 %v5317
    %v5407 = vunpack.c.l.b16 %v5318
    %v5408 = vunpack.c.h.b16 %v5318
    %v5409 = vunpack.c.l.b16 %v5319
    %v5410 = vunpack.c.h.b16 %v5319
    %v5411 = vunpack.c.l.b16 %v5320
    %v5412 = vunpack.c.h.b16 %v5320
    %v5413 = vunpack.c.l.b16 %v5321
    %v5414 = vunpack.c.h.b16 %v5321
    %v5415 = vunpack.c.l.b16 %v5322
    %v5416 = vunpack.c.h.b16 %v5322
    %v5417 = vunpack.c.l.b16 %v5323
    %v5418 = vunpack.c.h.b16 %v5323
    %v5419 = vunpack.c.l.b16 %v5324
    %v5420 = vunpack.c.h.b16 %v5324
    %v5421 = vpack.c.b16 %v5361, %v5357
    %v5422 = vpack.c.b16 %v5362, %v5358
    %v5423 = vpack.c.b16 %v5363, %v5359
    %v5424 = vpack.c.b16 %v5364, %v5360
    %v5425 = vpack.c.b16 %v5369, %v5365
    %v5426 = vpack.c.b16 %v5370, %v5366
    %v5427 = vpack.c.b16 %v5371, %v5367
    %v5428 = vpack.c.b16 %v5372, %v5368
    %v5429 = vpack.c.b16 %v5377, %v5373
    %v5430 = vpack.c.b16 %v5378, %v5374
    %v5431 = vpack.c.b16 %v5379, %v5375
    %v5432 = vpack.c.b16 %v5380, %v5376
    %v5433 = vpack.c.b16 %v5385, %v5381
    %v5434 = vpack.c.b16 %v5386, %v5382
    %v5435 = vpack.c.b16 %v5387, %v5383
    %v5436 = vpack.c.b16 %v5388, %v5384
    %v5437 = vpack.c.b16 %v5393, %v5389
    %v5438 = vpack.c.b16 %v5394, %v5390
    %v5439 = vpack.c.b16 %v5395, %v5391
    %v5440 = vpack.c.b16 %v5396, %v5392
    %v5441 = vpack.c.b16 %v5401, %v5397
    %v5442 = vpack.c.b16 %v5402, %v5398
    %v5443 = vpack.c.b16 %v5403, %v5399
    %v5444 = vpack.c.b16 %v5404, %v5400
    %v5445 = vpack.c.b16 %v5409, %v5405
    %v5446 = vpack.c.b16 %v5410, %v5406
    %v5447 = vpack.c.b16 %v5411, %v5407
    %v5448 = vpack.c.b16 %v5412, %v5408
    %v5449 = vpack.c.b16 %v5417, %v5413
    %v5450 = vpack.c.b16 %v5418, %v5414
    %v5451 = vpack.c.b16 %v5419, %v5415
    %v5452 = vpack.c.b16 %v5420, %v5416
    %5485 = vmatpush.bf16.msra.mxu0 %v5449
    %5486 = vmatpush.bf16.msra.mxu0 %v5445
    %5487 = vmatpush.bf16.msra.mxu0 %v5441
    %5488 = vmatpush.bf16.msra.mxu0 %v5437
    %5489 = vmatpush.bf16.msra.mxu0 %v5433
    %5490 = vmatpush.bf16.msra.mxu0 %v5429
    %5491 = vmatpush.bf16.msra.mxu0 %v5425
    %5492 = vmatpush.bf16.msra.mxu0 %v5421
    %5493 = vmatmul.bf16.gmra.mxu0 %v5292
    %v5494 = vpop.f32.mrf.mxu0
    %v5495 = vadd.f32 0.0, %v5494
    %v5496 = vpop.f32.mrf.mxu0
    %5497 = vdwg.mxu0
    %5498 = vmatpush.bf16.msra.mxu0 %v5450
    %5499 = vmatpush.bf16.msra.mxu0 %v5446
    %5500 = vmatpush.bf16.msra.mxu0 %v5442
    %5501 = vmatpush.bf16.msra.mxu0 %v5438
    %5502 = vmatpush.bf16.msra.mxu0 %v5434
    %5503 = vmatpush.bf16.msra.mxu0 %v5430
    %5504 = vmatpush.bf16.msra.mxu0 %v5426
    %5505 = vmatpush.bf16.msra.mxu0 %v5422
    %5506 = vmatmul.bf16.gmra.mxu0 %v5292
    %v5507 = vpop.f32.mrf.mxu0
    %v5508 = vadd.f32 0.0, %v5507
    %v5509 = vpop.f32.mrf.mxu0
    %5510 = vdwg.mxu0
    %5511 = vmatpush.bf16.msra.mxu0 %v5451
    %5512 = vmatpush.bf16.msra.mxu0 %v5447
    %5513 = vmatpush.bf16.msra.mxu0 %v5443
    %5514 = vmatpush.bf16.msra.mxu0 %v5439
    %5515 = vmatpush.bf16.msra.mxu0 %v5435
    %5516 = vmatpush.bf16.msra.mxu0 %v5431
    %5517 = vmatpush.bf16.msra.mxu0 %v5427
    %5518 = vmatpush.bf16.msra.mxu0 %v5423
    %5519 = vmatmul.bf16.gmra.mxu0 %v5292
    %v5520 = vpop.f32.mrf.mxu0
    %v5521 = vadd.f32 0.0, %v5520
    %v5522 = vpop.f32.mrf.mxu0
    %5523 = vdwg.mxu0
    %5524 = vmatpush.bf16.msra.mxu0 %v5452
    %5525 = vmatpush.bf16.msra.mxu0 %v5448
    %5526 = vmatpush.bf16.msra.mxu0 %v5444
    %5527 = vmatpush.bf16.msra.mxu0 %v5440
    %5528 = vmatpush.bf16.msra.mxu0 %v5436
    %5529 = vmatpush.bf16.msra.mxu0 %v5432
    %5530 = vmatpush.bf16.msra.mxu0 %v5428
    %5531 = vmatpush.bf16.msra.mxu0 %v5424
    %5532 = vmatmul.bf16.gmra.mxu0 %v5292
    %v5533 = vpop.f32.mrf.mxu0
    %v5534 = vadd.f32 0.0, %v5533
    %v5535 = vpop.f32.mrf.mxu0
    %5536 = vdwg.mxu0
    %v5537 = vadd.f32 %v5288, %v5495
    %v5538 = vadd.f32 %v5289, %v5508
    %v5539 = vadd.f32 %v5290, %v5521
    %v5540 = vadd.f32 %v5291, %v5534
    %v5541 = vxor.u32 %v5537, 2147483648
    %v5542 = vmul.f32 %v5541, 1.442695
    %v5543 = vpow.pop %v5542
    %v5544 = vadd.f32 %v5543, 1.0
    %v5545 = vrcp.pop %v5544
    %v5546 = vmul.f32 %v5544, %v5545
    %v5547 = vsub.f32 1.0, %v5546
    %v5548 = vmul.f32 %v5545, %v5547
    %v5549 = vadd.f32 %v5545, %v5548
    %vm5550 = vweird.f32 %v5544
    %vm5551 = vweird.f32 %v5545
    %vm5552 = vmor %vm5550, %vm5551
    %v5553 = vsel %vm5552, %v5545, %v5549
    %v5554 = vand.u32 2147483647, %v5544
    %vm5555 = vcmp.eq.f32.partialorder %v5554, 8.507059e+37
    %v5556 = vand.u32 %v5544, 2147483648
    %v5557 = vor.u32 1.1754944e-38, %v5556
    %v5558 = vsel %vm5555, %v5557, %v5553
    %v5559 = vmul.f32 1.0, %v5558
    %v5560 = vxor.u32 %v5538, 2147483648
    %v5561 = vmul.f32 %v5560, 1.442695
    %v5562 = vpow.pop %v5561
    %v5563 = vadd.f32 %v5562, 1.0
    %v5564 = vrcp.pop %v5563
    %v5565 = vmul.f32 %v5563, %v5564
    %v5566 = vsub.f32 1.0, %v5565
    %v5567 = vmul.f32 %v5564, %v5566
    %v5568 = vadd.f32 %v5564, %v5567
    %vm5569 = vweird.f32 %v5563
    %vm5570 = vweird.f32 %v5564
    %vm5571 = vmor %vm5569, %vm5570
    %v5572 = vsel %vm5571, %v5564, %v5568
    %v5573 = vand.u32 2147483647, %v5563
    %vm5574 = vcmp.eq.f32.partialorder %v5573, 8.507059e+37
    %v5575 = vand.u32 %v5563, 2147483648
    %v5576 = vor.u32 1.1754944e-38, %v5575
    %v5577 = vsel %vm5574, %v5576, %v5572
    %v5578 = vmul.f32 1.0, %v5577
    %v5579 = vtanh.pop %v5539
    %v5580 = vxor.u32 %v5540, 2147483648
    %v5581 = vmul.f32 %v5580, 1.442695
    %v5582 = vpow.pop %v5581
    %v5583 = vadd.f32 %v5582, 1.0
    %v5584 = vrcp.pop %v5583
    %v5585 = vmul.f32 %v5583, %v5584
    %v5586 = vsub.f32 1.0, %v5585
    %v5587 = vmul.f32 %v5584, %v5586
    %v5588 = vadd.f32 %v5584, %v5587
    %vm5589 = vweird.f32 %v5583
    %vm5590 = vweird.f32 %v5584
    %vm5591 = vmor %vm5589, %vm5590
    %v5592 = vsel %vm5591, %v5584, %v5588
    %v5593 = vand.u32 2147483647, %v5583
    %vm5594 = vcmp.eq.f32.partialorder %v5593, 8.507059e+37
    %v5595 = vand.u32 %v5583, 2147483648
    %v5596 = vor.u32 1.1754944e-38, %v5595
    %v5597 = vsel %vm5594, %v5596, %v5592
    %v5598 = vmul.f32 1.0, %v5597
    %v5599 = vmul.f32 %v5578, %v5284
    %v5600 = vmul.f32 %v5559, %v5579
    %v5601 = vadd.f32 %v5599, %v5600
    %v5602 = vtanh.pop %v5601
    %v5603 = vmul.f32 %v5598, %v5602
    %5604 = vst [vmem:[%s2694] sm:$0xff] %v5603
    %v5605 = vld [vmem:[%s2698] sm:$0xff]
    %v5606 = vld [vmem:[%s2698 + $0x8] sm:$0xff]
    %v5607 = vld [vmem:[%s2698 + $0x10] sm:$0xff]
    %v5608 = vld [vmem:[%s2698 + $0x18] sm:$0xff]
    %v5609 = vpack.c.bf16 %v5603, %v5603
    %v5610 = vld [vmem:[%s3390] sm:$0xff]
    %v5611 = vld [vmem:[%s3390 + $0x8] sm:$0xff]
    %v5612 = vld [vmem:[%s3390 + $0x10] sm:$0xff]
    %v5613 = vld [vmem:[%s3390 + $0x18] sm:$0xff]
    %v5614 = vld [vmem:[%s3390 + $0x20] sm:$0xff]
    %v5615 = vld [vmem:[%s3390 + $0x28] sm:$0xff]
    %v5616 = vld [vmem:[%s3390 + $0x30] sm:$0xff]
    %v5617 = vld [vmem:[%s3390 + $0x38] sm:$0xff]
    %v5618 = vld [vmem:[%s3390 + $0x40] sm:$0xff]
    %v5619 = vld [vmem:[%s3390 + $0x48] sm:$0xff]
    %v5620 = vld [vmem:[%s3390 + $0x50] sm:$0xff]
    %v5621 = vld [vmem:[%s3390 + $0x58] sm:$0xff]
    %v5622 = vld [vmem:[%s3390 + $0x60] sm:$0xff]
    %v5623 = vld [vmem:[%s3390 + $0x68] sm:$0xff]
    %v5624 = vld [vmem:[%s3390 + $0x70] sm:$0xff]
    %v5625 = vld [vmem:[%s3390 + $0x78] sm:$0xff]
    %v5626 = vld [vmem:[%s3390 + $0x80] sm:$0xff]
    %v5627 = vld [vmem:[%s3390 + $0x88] sm:$0xff]
    %v5628 = vld [vmem:[%s3390 + $0x90] sm:$0xff]
    %v5629 = vld [vmem:[%s3390 + $0x98] sm:$0xff]
    %v5630 = vld [vmem:[%s3390 + $0xa0] sm:$0xff]
    %v5631 = vld [vmem:[%s3390 + $0xa8] sm:$0xff]
    %v5632 = vld [vmem:[%s3390 + $0xb0] sm:$0xff]
    %v5633 = vld [vmem:[%s3390 + $0xb8] sm:$0xff]
    %v5634 = vld [vmem:[%s3390 + $0xc0] sm:$0xff]
    %v5635 = vld [vmem:[%s3390 + $0xc8] sm:$0xff]
    %v5636 = vld [vmem:[%s3390 + $0xd0] sm:$0xff]
    %v5637 = vld [vmem:[%s3390 + $0xd8] sm:$0xff]
    %v5638 = vld [vmem:[%s3390 + $0xe0] sm:$0xff]
    %v5639 = vld [vmem:[%s3390 + $0xe8] sm:$0xff]
    %v5640 = vld [vmem:[%s3390 + $0xf0] sm:$0xff]
    %v5641 = vld [vmem:[%s3390 + $0xf8] sm:$0xff]
    %v5674 = vunpack.c.l.b16 %v5610
    %v5675 = vunpack.c.h.b16 %v5610
    %v5676 = vunpack.c.l.b16 %v5611
    %v5677 = vunpack.c.h.b16 %v5611
    %v5678 = vunpack.c.l.b16 %v5612
    %v5679 = vunpack.c.h.b16 %v5612
    %v5680 = vunpack.c.l.b16 %v5613
    %v5681 = vunpack.c.h.b16 %v5613
    %v5682 = vunpack.c.l.b16 %v5614
    %v5683 = vunpack.c.h.b16 %v5614
    %v5684 = vunpack.c.l.b16 %v5615
    %v5685 = vunpack.c.h.b16 %v5615
    %v5686 = vunpack.c.l.b16 %v5616
    %v5687 = vunpack.c.h.b16 %v5616
    %v5688 = vunpack.c.l.b16 %v5617
    %v5689 = vunpack.c.h.b16 %v5617
    %v5690 = vunpack.c.l.b16 %v5618
    %v5691 = vunpack.c.h.b16 %v5618
    %v5692 = vunpack.c.l.b16 %v5619
    %v5693 = vunpack.c.h.b16 %v5619
    %v5694 = vunpack.c.l.b16 %v5620
    %v5695 = vunpack.c.h.b16 %v5620
    %v5696 = vunpack.c.l.b16 %v5621
    %v5697 = vunpack.c.h.b16 %v5621
    %v5698 = vunpack.c.l.b16 %v5622
    %v5699 = vunpack.c.h.b16 %v5622
    %v5700 = vunpack.c.l.b16 %v5623
    %v5701 = vunpack.c.h.b16 %v5623
    %v5702 = vunpack.c.l.b16 %v5624
    %v5703 = vunpack.c.h.b16 %v5624
    %v5704 = vunpack.c.l.b16 %v5625
    %v5705 = vunpack.c.h.b16 %v5625
    %v5706 = vunpack.c.l.b16 %v5626
    %v5707 = vunpack.c.h.b16 %v5626
    %v5708 = vunpack.c.l.b16 %v5627
    %v5709 = vunpack.c.h.b16 %v5627
    %v5710 = vunpack.c.l.b16 %v5628
    %v5711 = vunpack.c.h.b16 %v5628
    %v5712 = vunpack.c.l.b16 %v5629
    %v5713 = vunpack.c.h.b16 %v5629
    %v5714 = vunpack.c.l.b16 %v5630
    %v5715 = vunpack.c.h.b16 %v5630
    %v5716 = vunpack.c.l.b16 %v5631
    %v5717 = vunpack.c.h.b16 %v5631
    %v5718 = vunpack.c.l.b16 %v5632
    %v5719 = vunpack.c.h.b16 %v5632
    %v5720 = vunpack.c.l.b16 %v5633
    %v5721 = vunpack.c.h.b16 %v5633
    %v5722 = vunpack.c.l.b16 %v5634
    %v5723 = vunpack.c.h.b16 %v5634
    %v5724 = vunpack.c.l.b16 %v5635
    %v5725 = vunpack.c.h.b16 %v5635
    %v5726 = vunpack.c.l.b16 %v5636
    %v5727 = vunpack.c.h.b16 %v5636
    %v5728 = vunpack.c.l.b16 %v5637
    %v5729 = vunpack.c.h.b16 %v5637
    %v5730 = vunpack.c.l.b16 %v5638
    %v5731 = vunpack.c.h.b16 %v5638
    %v5732 = vunpack.c.l.b16 %v5639
    %v5733 = vunpack.c.h.b16 %v5639
    %v5734 = vunpack.c.l.b16 %v5640
    %v5735 = vunpack.c.h.b16 %v5640
    %v5736 = vunpack.c.l.b16 %v5641
    %v5737 = vunpack.c.h.b16 %v5641
    %v5738 = vpack.c.b16 %v5678, %v5674
    %v5739 = vpack.c.b16 %v5679, %v5675
    %v5740 = vpack.c.b16 %v5680, %v5676
    %v5741 = vpack.c.b16 %v5681, %v5677
    %v5742 = vpack.c.b16 %v5686, %v5682
    %v5743 = vpack.c.b16 %v5687, %v5683
    %v5744 = vpack.c.b16 %v5688, %v5684
    %v5745 = vpack.c.b16 %v5689, %v5685
    %v5746 = vpack.c.b16 %v5694, %v5690
    %v5747 = vpack.c.b16 %v5695, %v5691
    %v5748 = vpack.c.b16 %v5696, %v5692
    %v5749 = vpack.c.b16 %v5697, %v5693
    %v5750 = vpack.c.b16 %v5702, %v5698
    %v5751 = vpack.c.b16 %v5703, %v5699
    %v5752 = vpack.c.b16 %v5704, %v5700
    %v5753 = vpack.c.b16 %v5705, %v5701
    %v5754 = vpack.c.b16 %v5710, %v5706
    %v5755 = vpack.c.b16 %v5711, %v5707
    %v5756 = vpack.c.b16 %v5712, %v5708
    %v5757 = vpack.c.b16 %v5713, %v5709
    %v5758 = vpack.c.b16 %v5718, %v5714
    %v5759 = vpack.c.b16 %v5719, %v5715
    %v5760 = vpack.c.b16 %v5720, %v5716
    %v5761 = vpack.c.b16 %v5721, %v5717
    %v5762 = vpack.c.b16 %v5726, %v5722
    %v5763 = vpack.c.b16 %v5727, %v5723
    %v5764 = vpack.c.b16 %v5728, %v5724
    %v5765 = vpack.c.b16 %v5729, %v5725
    %v5766 = vpack.c.b16 %v5734, %v5730
    %v5767 = vpack.c.b16 %v5735, %v5731
    %v5768 = vpack.c.b16 %v5736, %v5732
    %v5769 = vpack.c.b16 %v5737, %v5733
    %5802 = vmatpush.bf16.msra.mxu0 %v5766
    %5803 = vmatpush.bf16.msra.mxu0 %v5762
    %5804 = vmatpush.bf16.msra.mxu0 %v5758
    %5805 = vmatpush.bf16.msra.mxu0 %v5754
    %5806 = vmatpush.bf16.msra.mxu0 %v5750
    %5807 = vmatpush.bf16.msra.mxu0 %v5746
    %5808 = vmatpush.bf16.msra.mxu0 %v5742
    %5809 = vmatpush.bf16.msra.mxu0 %v5738
    %5810 = vmatmul.bf16.gmra.mxu0 %v5609
    %v5811 = vpop.f32.mrf.mxu0
    %v5812 = vadd.f32 0.0, %v5811
    %v5813 = vpop.f32.mrf.mxu0
    %5814 = vdwg.mxu0
    %5815 = vmatpush.bf16.msra.mxu0 %v5767
    %5816 = vmatpush.bf16.msra.mxu0 %v5763
    %5817 = vmatpush.bf16.msra.mxu0 %v5759
    %5818 = vmatpush.bf16.msra.mxu0 %v5755
    %5819 = vmatpush.bf16.msra.mxu0 %v5751
    %5820 = vmatpush.bf16.msra.mxu0 %v5747
    %5821 = vmatpush.bf16.msra.mxu0 %v5743
    %5822 = vmatpush.bf16.msra.mxu0 %v5739
    %5823 = vmatmul.bf16.gmra.mxu0 %v5609
    %v5824 = vpop.f32.mrf.mxu0
    %v5825 = vadd.f32 0.0, %v5824
    %v5826 = vpop.f32.mrf.mxu0
    %5827 = vdwg.mxu0
    %5828 = vmatpush.bf16.msra.mxu0 %v5768
    %5829 = vmatpush.bf16.msra.mxu0 %v5764
    %5830 = vmatpush.bf16.msra.mxu0 %v5760
    %5831 = vmatpush.bf16.msra.mxu0 %v5756
    %5832 = vmatpush.bf16.msra.mxu0 %v5752
    %5833 = vmatpush.bf16.msra.mxu0 %v5748
    %5834 = vmatpush.bf16.msra.mxu0 %v5744
    %5835 = vmatpush.bf16.msra.mxu0 %v5740
    %5836 = vmatmul.bf16.gmra.mxu0 %v5609
    %v5837 = vpop.f32.mrf.mxu0
    %v5838 = vadd.f32 0.0, %v5837
    %v5839 = vpop.f32.mrf.mxu0
    %5840 = vdwg.mxu0
    %5841 = vmatpush.bf16.msra.mxu0 %v5769
    %5842 = vmatpush.bf16.msra.mxu0 %v5765
    %5843 = vmatpush.bf16.msra.mxu0 %v5761
    %5844 = vmatpush.bf16.msra.mxu0 %v5757
    %5845 = vmatpush.bf16.msra.mxu0 %v5753
    %5846 = vmatpush.bf16.msra.mxu0 %v5749
    %5847 = vmatpush.bf16.msra.mxu0 %v5745
    %5848 = vmatpush.bf16.msra.mxu0 %v5741
    %5849 = vmatmul.bf16.gmra.mxu0 %v5609
    %v5850 = vpop.f32.mrf.mxu0
    %v5851 = vadd.f32 0.0, %v5850
    %v5852 = vpop.f32.mrf.mxu0
    %5853 = vdwg.mxu0
    %v5854 = vadd.f32 %v5605, %v5812
    %v5855 = vadd.f32 %v5606, %v5825
    %v5856 = vadd.f32 %v5607, %v5838
    %v5857 = vadd.f32 %v5608, %v5851
    %v5858 = vxor.u32 %v5854, 2147483648
    %v5859 = vmul.f32 %v5858, 1.442695
    %v5860 = vpow.pop %v5859
    %v5861 = vadd.f32 %v5860, 1.0
    %v5862 = vrcp.pop %v5861
    %v5863 = vmul.f32 %v5861, %v5862
    %v5864 = vsub.f32 1.0, %v5863
    %v5865 = vmul.f32 %v5862, %v5864
    %v5866 = vadd.f32 %v5862, %v5865
    %vm5867 = vweird.f32 %v5861
    %vm5868 = vweird.f32 %v5862
    %vm5869 = vmor %vm5867, %vm5868
    %v5870 = vsel %vm5869, %v5862, %v5866
    %v5871 = vand.u32 2147483647, %v5861
    %vm5872 = vcmp.eq.f32.partialorder %v5871, 8.507059e+37
    %v5873 = vand.u32 %v5861, 2147483648
    %v5874 = vor.u32 1.1754944e-38, %v5873
    %v5875 = vsel %vm5872, %v5874, %v5870
    %v5876 = vmul.f32 1.0, %v5875
    %v5877 = vxor.u32 %v5855, 2147483648
    %v5878 = vmul.f32 %v5877, 1.442695
    %v5879 = vpow.pop %v5878
    %v5880 = vadd.f32 %v5879, 1.0
    %v5881 = vrcp.pop %v5880
    %v5882 = vmul.f32 %v5880, %v5881
    %v5883 = vsub.f32 1.0, %v5882
    %v5884 = vmul.f32 %v5881, %v5883
    %v5885 = vadd.f32 %v5881, %v5884
    %vm5886 = vweird.f32 %v5880
    %vm5887 = vweird.f32 %v5881
    %vm5888 = vmor %vm5886, %vm5887
    %v5889 = vsel %vm5888, %v5881, %v5885
    %v5890 = vand.u32 2147483647, %v5880
    %vm5891 = vcmp.eq.f32.partialorder %v5890, 8.507059e+37
    %v5892 = vand.u32 %v5880, 2147483648
    %v5893 = vor.u32 1.1754944e-38, %v5892
    %v5894 = vsel %vm5891, %v5893, %v5889
    %v5895 = vmul.f32 1.0, %v5894
    %v5896 = vtanh.pop %v5856
    %v5897 = vxor.u32 %v5857, 2147483648
    %v5898 = vmul.f32 %v5897, 1.442695
    %v5899 = vpow.pop %v5898
    %v5900 = vadd.f32 %v5899, 1.0
    %v5901 = vrcp.pop %v5900
    %v5902 = vmul.f32 %v5900, %v5901
    %v5903 = vsub.f32 1.0, %v5902
    %v5904 = vmul.f32 %v5901, %v5903
    %v5905 = vadd.f32 %v5901, %v5904
    %vm5906 = vweird.f32 %v5900
    %vm5907 = vweird.f32 %v5901
    %vm5908 = vmor %vm5906, %vm5907
    %v5909 = vsel %vm5908, %v5901, %v5905
    %v5910 = vand.u32 2147483647, %v5900
    %vm5911 = vcmp.eq.f32.partialorder %v5910, 8.507059e+37
    %v5912 = vand.u32 %v5900, 2147483648
    %v5913 = vor.u32 1.1754944e-38, %v5912
    %v5914 = vsel %vm5911, %v5913, %v5909
    %v5915 = vmul.f32 1.0, %v5914
    %v5916 = vmul.f32 %v5895, %v5601
    %v5917 = vmul.f32 %v5876, %v5896
    %v5918 = vadd.f32 %v5916, %v5917
    %v5919 = vtanh.pop %v5918
    %v5920 = vmul.f32 %v5915, %v5919
    %5921 = vst [vmem:[%s3015] sm:$0xff] %v5920
    %s5922 = scalar_lea.vmem %s8, 8
    %5923 = vst [vmem:[%s5922] sm:$0xff] %v5920
    %s5924 = scalar_lea.vmem %s9, 8
    %5925 = vst [vmem:[%s5924] sm:$0xff] %v5918
    %s5926 = smul.u32 4, 16
    %s5927 = smul.u32 %s5926, 1
    %s5928 = sshll.u32 %s5927, 4
    %5929 = dma.done %s55, %s5928
    %v5930 = vld [vmem:[#allocation2] sm:$0xff]
    %v5931 = vld [vmem:[#allocation2 + $0x8] sm:$0xff]
    %v5932 = vld [vmem:[#allocation2 + $0x10] sm:$0xff]
    %v5933 = vld [vmem:[#allocation2 + $0x18] sm:$0xff]
    %v5934 = vld [vmem:[#allocation2 + $0x20] sm:$0xff]
    %v5935 = vld [vmem:[#allocation2 + $0x28] sm:$0xff]
    %v5936 = vld [vmem:[#allocation2 + $0x30] sm:$0xff]
    %v5937 = vld [vmem:[#allocation2 + $0x38] sm:$0xff]
    %v5938 = vpack.c.bf16 %v5931, %v5930
    %v5939 = vpack.c.bf16 %v5933, %v5932
    %v5940 = vpack.c.bf16 %v5935, %v5934
    %v5941 = vpack.c.bf16 %v5937, %v5936
    %v5942 = vld [vmem:[#allocation5] sm:$0xf]
    %v5943 = vld [vmem:[#allocation5 + $0x4] sm:$0xf]
    %v5944 = vld [vmem:[#allocation5 + $0x8] sm:$0xf]
    %v5945 = vld [vmem:[#allocation5 + $0xc] sm:$0xf]
    %v5946 = vld [vmem:[#allocation5 + $0x10] sm:$0xf]
    %v5947 = vld [vmem:[#allocation5 + $0x14] sm:$0xf]
    %v5948 = vld [vmem:[#allocation5 + $0x18] sm:$0xf]
    %v5949 = vld [vmem:[#allocation5 + $0x1c] sm:$0xf]
    %v5950 = vld [vmem:[#allocation5 + $0x20] sm:$0xf]
    %v5951 = vld [vmem:[#allocation5 + $0x24] sm:$0xf]
    %v5952 = vld [vmem:[#allocation5 + $0x28] sm:$0xf]
    %v5953 = vld [vmem:[#allocation5 + $0x2c] sm:$0xf]
    %v5954 = vld [vmem:[#allocation5 + $0x30] sm:$0xf]
    %v5955 = vld [vmem:[#allocation5 + $0x34] sm:$0xf]
    %v5956 = vld [vmem:[#allocation5 + $0x38] sm:$0xf]
    %v5957 = vld [vmem:[#allocation5 + $0x3c] sm:$0xf]
    %v5958 = vld [vmem:[%s6] sm:$0x1]
    %v5960 = vperm.slane %v5958, 0
    %v5978 = vunpack.c.l.b16 %v5942
    %v5979 = vunpack.c.l.b16 %v5943
    %v5980 = vunpack.c.l.b16 %v5944
    %v5981 = vunpack.c.l.b16 %v5945
    %v5982 = vunpack.c.l.b16 %v5946
    %v5983 = vunpack.c.l.b16 %v5947
    %v5984 = vunpack.c.l.b16 %v5948
    %v5985 = vunpack.c.l.b16 %v5949
    %v5986 = vunpack.c.l.b16 %v5950
    %v5987 = vunpack.c.l.b16 %v5951
    %v5988 = vunpack.c.l.b16 %v5952
    %v5989 = vunpack.c.l.b16 %v5953
    %v5990 = vunpack.c.l.b16 %v5954
    %v5991 = vunpack.c.l.b16 %v5955
    %v5992 = vunpack.c.l.b16 %v5956
    %v5993 = vunpack.c.l.b16 %v5957
    %v5994 = vpack.c.b16 %v5979, %v5978
    %v5995 = vpack.c.b16 %v5981, %v5980
    %v5996 = vpack.c.b16 %v5983, %v5982
    %v5997 = vpack.c.b16 %v5985, %v5984
    %v5998 = vpack.c.b16 %v5987, %v5986
    %v5999 = vpack.c.b16 %v5989, %v5988
    %v6000 = vpack.c.b16 %v5991, %v5990
    %v6001 = vpack.c.b16 %v5993, %v5992
    %6010 = vmatpush.bf16.msra.mxu0 %v6001
    %6011 = vmatpush.bf16.msra.mxu0 %v6000
    %6012 = vmatpush.bf16.msra.mxu0 %v5999
    %6013 = vmatpush.bf16.msra.mxu0 %v5998
    %6014 = vmatpush.bf16.msra.mxu0 %v5997
    %6015 = vmatpush.bf16.msra.mxu0 %v5996
    %6016 = vmatpush.bf16.msra.mxu0 %v5995
    %6017 = vmatpush.bf16.msra.mxu0 %v5994
    %6018 = vmatmul.bf16.gmra.mxu0 %v5938
    %v6019 = vpop.f32.mrf.mxu0
    %v6020 = vadd.f32 %v5960, %v6019
    %v6021 = vpop.f32.mrf.mxu0
    %v6022 = vadd.f32 %v5960, %v6021
    %6023 = vmatmul.bf16.gmra.mxu0 %v5939
    %v6024 = vpop.f32.mrf.mxu0
    %v6025 = vadd.f32 %v5960, %v6024
    %v6026 = vpop.f32.mrf.mxu0
    %v6027 = vadd.f32 %v5960, %v6026
    %6028 = vmatmul.bf16.gmra.mxu0 %v5940
    %v6029 = vpop.f32.mrf.mxu0
    %v6030 = vadd.f32 %v5960, %v6029
    %v6031 = vpop.f32.mrf.mxu0
    %v6032 = vadd.f32 %v5960, %v6031
    %6033 = vmatmul.bf16.gmra.mxu0 %v5941
    %v6034 = vpop.f32.mrf.mxu0
    %v6035 = vadd.f32 %v5960, %v6034
    %v6036 = vpop.f32.mrf.mxu0
    %v6037 = vadd.f32 %v5960, %v6036
    %6038 = vdwg.mxu0
    %6039 = vst [vmem:[%s7] sm:$0xff] %v6020
    %6040 = vst [vmem:[%s7 + $0x8] sm:$0xff] %v6022
    %6041 = vst [vmem:[%s7 + $0x10] sm:$0xff] %v6025
    %6042 = vst [vmem:[%s7 + $0x18] sm:$0xff] %v6027
    %6043 = vst [vmem:[%s7 + $0x20] sm:$0xff] %v6030
    %6044 = vst [vmem:[%s7 + $0x28] sm:$0xff] %v6032
    %6045 = vst [vmem:[%s7 + $0x30] sm:$0xff] %v6035
    %6046 = vst [vmem:[%s7 + $0x38] sm:$0xff] %v6037
    // Predicated region
    $region49: #{lstm_text_generator_forward.1} parent=1 // pred_check
      _
    $region50: #{lstm_text_generator_forward.1} parent=1 // pred_check_branch
      %6048 = sbr.rel (0) target = $region52
    $region51: #{lstm_text_generator_forward.1} parent=1 // pred_region
      _
    $region52: #{lstm_text_generator_forward.1} parent=1 // pred_fallthru
      _
    // Predicated region
    $region53: #{lstm_text_generator_forward.1} parent=1 // pred_check
      _
    $region54: #{lstm_text_generator_forward.1} parent=1 // pred_check_branch
      %6050 = sbr.rel (0) target = $region56
    $region55: #{lstm_text_generator_forward.1} parent=1 // pred_region
      _
    $region56: #{lstm_text_generator_forward.1} parent=1 // pred_fallthru
      _
    // Predicated region
    $region57: #{lstm_text_generator_forward.1} parent=1 // pred_check
      _
    $region58: #{lstm_text_generator_forward.1} parent=1 // pred_check_branch
      %6052 = sbr.rel (0) target = $region60
    $region59: #{lstm_text_generator_forward.1} parent=1 // pred_region
      _
    $region60: #{lstm_text_generator_forward.1} parent=1 // pred_fallthru
      _
    // Predicated region
    $region61: #{lstm_text_generator_forward.1} parent=1 // pred_check
      _
    $region62: #{lstm_text_generator_forward.1} parent=1 // pred_check_branch
      %6054 = sbr.rel (0) target = $region64
    $region63: #{lstm_text_generator_forward.1} parent=1 // pred_region
      _
    $region64: #{lstm_text_generator_forward.1} parent=1 // pred_fallthru
      _
    // Predicated region
    $region65: #{lstm_text_generator_forward.1} parent=1 // pred_check
      _
    $region66: #{lstm_text_generator_forward.1} parent=1 // pred_check_branch
      %6056 = sbr.rel (0) target = $region68
    $region67: #{lstm_text_generator_forward.1} parent=1 // pred_region
      _
    $region68: #{lstm_text_generator_forward.1} parent=1 // pred_fallthru
      _
    // Predicated region
    $region69: #{lstm_text_generator_forward.1} parent=1 // pred_check
      _
    $region70: #{lstm_text_generator_forward.1} parent=1 // pred_check_branch
      %6058 = sbr.rel (0) target = $region72
    $region71: #{lstm_text_generator_forward.1} parent=1 // pred_region
      _
    $region72: #{lstm_text_generator_forward.1} parent=1 // pred_fallthru
      _
    %6059 = vsyncpa [#allocation8], 1
  %6060 = vsyncmov [#allocation6]
  %s6061 = vpop.sfrf %6060
  %p6062 = scmp.eq.s32.totalorder %s6061, 0
  %p6063 = pneg %p6062
  %6065 = shalt.err (%p6063)
  %s6066 = scalar_lea.sflag [#allocation6], 1
  %6067 = vsyncmov %s6066
  %s6068 = vpop.sfrf %6067
  %p6069 = scmp.eq.s32.totalorder %s6068, 0
  %p6070 = pneg %p6069
  %6072 = shalt.err (%p6070)

</llo_original>
